<compile_context>
chip_gen: v6e
topology: v6e:2x2x1
jax: 0.10.0
libtpu: 0.0.40
codegen_flags: <defaults>
</compile_context>

<pallas_src>
import functools

import jax
import jax.numpy as jnp
from jax.experimental import pallas as pl
from jax.experimental.pallas import tpu as pltpu


def _window_attention_kernel(x_ref, wqkv_ref, bqkv_ref, bias_ref, *rest,
                             num_heads, head_dim, has_mask):
    if has_mask:
        mask_ref, wproj_ref, bproj_ref, out_ref, ctx_ref = rest
    else:
        mask_ref = None
        wproj_ref, bproj_ref, out_ref, ctx_ref = rest

    TB, N, C = x_ref.shape
    H, hd = num_heads, head_dim
    mxu_dt = x_ref.dtype                      # MXU operands stay in the input dtype

    # ---- fused QKV projection: ONE (TB*N, C) @ (C, 3C) matmul (scale folded into Q) ----
    x2d = x_ref[...].reshape(TB * N, C)
    qkv = (jnp.dot(x2d, wqkv_ref[...], preferred_element_type=jnp.float32)
           + bqkv_ref[...]).astype(mxu_dt)    # cast once: no f32 q/k/v live across head loop
    q = qkv[:, 0 * C:1 * C]
    k = qkv[:, 1 * C:2 * C]
    v = qkv[:, 2 * C:3 * C]

    if has_mask:
        mask = mask_ref[...].astype(jnp.float32)          # (TB, N, N): one mask per window

    # ---- per-head attention; context staged into VMEM scratch at lane offset h*hd ----
    # TODO(synk): for configs with many heads (H >= 12) switch this static unroll to
    # lax.fori_loop(..., unroll=2) with pl.ds head slices to bound live ranges.
    for h in range(H):
        qh = q[:, h * hd:(h + 1) * hd].reshape(TB, N, hd)
        kh = k[:, h * hd:(h + 1) * hd].reshape(TB, N, hd)
        vh = v[:, h * hd:(h + 1) * hd].reshape(TB, N, hd)

        s = jnp.einsum("tnd,tmd->tnm", qh, kh,
                       preferred_element_type=jnp.float32)            # (TB, N, N)
        s = s + bias_ref[h].astype(jnp.float32)                       # relative position bias
        if has_mask:
            s = s + mask                                              # shifted-window mask

        # numerically stable softmax (kept in f32)
        s = s - jnp.max(s, axis=-1, keepdims=True)
        p = jnp.exp(s)
        p = p * pl.reciprocal(jnp.sum(p, axis=-1, keepdims=True), approx=True)

        # TODO(synk): attn_drop / proj_drop are identity (p=0.0 defaults); dropout not implemented.
        ctx = jnp.einsum("tnm,tmd->tnd", p.astype(mxu_dt), vh,
                         preferred_element_type=jnp.float32)          # (TB, N, hd)
        ctx_ref[:, h * hd:(h + 1) * hd] = ctx.reshape(TB * N, hd).astype(mxu_dt)

    # ---- single full-contraction output projection: (TB*N, C) @ (C, C) ----
    out = (jnp.dot(ctx_ref[...], wproj_ref[...], preferred_element_type=jnp.float32)
           + bproj_ref[...])
    out_ref[...] = out.reshape(TB, N, C).astype(out_ref.dtype)


def _mask_compatible(tb, nW):
    """Adjust tb so the per-tile mask block is expressible from the (nW, N, N) mask."""
    tb = max(int(tb), 1)
    if nW is None:
        return tb
    if tb >= nW:
        return max(nW, (tb // nW) * nW)       # tb a multiple of nW
    while nW % tb != 0:                        # tb a divisor of nW
        tb -= 1
    return max(tb, 1)


def _choose_block_windows(B_, N_pad, nW, requested):
    if requested is not None:
        tb = max(1, int(requested))
    else:
        tb = max(1, pl.cdiv(256, N_pad))       # target ~256 MXU rows per tile
        for cand in range(tb, 4 * tb + 1):     # prefer TB*N a multiple of 256 if cheap
            if (cand * N_pad) % 256 == 0:
                tb = cand
                break
    tb = min(tb, max(1, B_))
    tb = _mask_compatible(tb, nW)
    # keep at least 2 grid steps when there is enough work (feeds both v7x TensorCores)
    while tb > 1 and pl.cdiv(B_, tb) < 2:
        tb = _mask_compatible(max(1, tb // 2), nW)
    return max(tb, 1)


def window_attention(x, w_qkv, b_qkv, rel_bias, w_proj, b_proj,
                     *, num_heads, mask=None, block_windows=None):
    """x: (B_, N, C); w_qkv: (C, 3C); b_qkv: (1, 3C); rel_bias: (H, N, N);
    w_proj: (C, C); b_proj: (1, C); mask: (nW, N, N) or None.
    block_windows is a hint; it is adjusted for mask periodicity / grid splitting."""
    B_, N, C = x.shape
    H = num_heads
    hd = C // H
    scale = hd ** (-0.5)
    has_mask = mask is not None
    nW = int(mask.shape[0]) if has_mask else None

    # Pad N up to a sublane multiple so in-kernel reshapes / per-head views are layout-free.
    N_pad = ((N + 7) // 8) * 8
    NEG = jnp.float32(-1e9)

    TB = _choose_block_windows(B_, N_pad, nW, block_windows)
    num_tiles = pl.cdiv(B_, TB)
    B_pad = num_tiles * TB

    # ---- one-time parameter prep (plain JAX glue) ----
    # fused QKV weight/bias with the softmax scale folded into the Q third
    w_qkv_s = jnp.concatenate([w_qkv[:, :C] * scale, w_qkv[:, C:]], axis=1).astype(x.dtype)
    b_qkv_s = jnp.concatenate([b_qkv[:, :C] * scale, b_qkv[:, C:]], axis=1).astype(jnp.float32)
    w_proj_c = w_proj.astype(x.dtype)
    b_proj_f = b_proj.astype(jnp.float32)

    if N_pad != N:
        bias_p = jnp.full((H, N_pad, N_pad), NEG, jnp.float32)      # padded keys masked out
        bias_p = bias_p.at[:, :N, :N].set(rel_bias.astype(jnp.float32))
    else:
        bias_p = rel_bias.astype(jnp.float32)

    xp = x
    if N_pad != N or B_pad != B_:
        xp = jnp.pad(x, ((0, B_pad - B_), (0, N_pad - N), (0, 0)))

    inputs = [xp, w_qkv_s, b_qkv_s, bias_p]
    in_specs = [
        pl.BlockSpec((TB, N_pad, C), lambda t: (t, 0, 0)),           # x tile of TB windows
        pl.BlockSpec((C, 3 * C), lambda t: (0, 0)),                  # fused qkv weight
        pl.BlockSpec((1, 3 * C), lambda t: (0, 0)),                  # fused qkv bias
        pl.BlockSpec((H, N_pad, N_pad), lambda t: (0, 0, 0)),        # relative position bias
    ]

    m_in = None
    if has_mask:
        m = mask.astype(jnp.float32)
        if N_pad != N:
            m = jnp.pad(m, ((0, 0), (0, N_pad - N), (0, N_pad - N)))
        if TB % nW == 0:
            # every tile sees the same (TB, N, N) block: tile the tiny (nW,N,N) mask once
            m_in = jnp.tile(m, (TB // nW, 1, 1))
            m_map = lambda t: (0, 0, 0)
        else:
            # nW % TB == 0 (guaranteed): index the ORIGINAL mask periodically, no gather
            period = nW // TB
            m_in = m
            m_map = lambda t: (t % period, 0, 0)
        inputs.append(m_in)
        in_specs.append(pl.BlockSpec((TB, N_pad, N_pad), m_map))

    inputs += [w_proj_c, b_proj_f]
    in_specs += [
        pl.BlockSpec((C, C), lambda t: (0, 0)),                      # output projection weight
        pl.BlockSpec((1, C), lambda t: (0, 0)),                      # output projection bias
    ]

    kernel = functools.partial(_window_attention_kernel,
                               num_heads=H, head_dim=hd, has_mask=has_mask)

    # ---- scheduler hints: cost estimate + explicit VMEM limit ----
    flops = (2 * B_pad * N_pad * C * 3 * C                # fused QKV projection
             + 4 * B_pad * H * N_pad * N_pad * hd         # q@k^T and attn@v
             + 2 * B_pad * N_pad * C * C)                 # output projection
    itemsize = x.dtype.itemsize
    bytes_accessed = int(2 * xp.size * itemsize
                         + (w_qkv_s.size + w_proj_c.size) * itemsize
                         + (b_qkv_s.size + b_proj_f.size + bias_p.size) * 4
                         + (m_in.size * 4 if has_mask else 0))
    cost = pl.CostEstimate(flops=int(flops),
                           transcendentals=int(B_pad * H * N_pad * N_pad),
                           bytes_accessed=bytes_accessed)

    tile_bytes = TB * N_pad * C * itemsize
    mask_bytes = TB * N_pad * N_pad * 4 if has_mask else 0
    weight_bytes = ((w_qkv_s.size + w_proj_c.size) * itemsize
                    + (b_qkv_s.size + b_proj_f.size + bias_p.size) * 4)
    temp_bytes = (TB * N_pad * 4 * C * 4                  # f32 qkv result + out
                  + 2 * TB * N_pad * N_pad * 4            # scores / probs
                  + TB * N_pad * C * itemsize)            # ctx scratch
    vmem_need = 2 * (2 * tile_bytes + mask_bytes) + 2 * weight_bytes + temp_bytes
    vmem_limit = int(min(100 * 2 ** 20, max(32 * 2 ** 20, 2 * vmem_need)))

    out = pl.pallas_call(
        kernel,
        out_shape=jax.ShapeDtypeStruct((B_pad, N_pad, C), x.dtype),
        grid=(num_tiles,),
        in_specs=in_specs,
        out_specs=pl.BlockSpec((TB, N_pad, C), lambda t: (t, 0, 0)),
        scratch_shapes=[pltpu.VMEM((TB * N_pad, C), x.dtype)],       # staged per-head context
        compiler_params=pltpu.CompilerParams(
            dimension_semantics=("parallel",),
            vmem_limit_bytes=vmem_limit),
        cost_estimate=cost,
    )(*inputs)

    if B_pad != B_ or N_pad != N:
        out = out[:B_, :N, :]
    return out


def make_relative_position_index(window_size):
    """Mirror of the PyTorch buffer computation."""
    Wh, Ww = window_size
    coords_h = jnp.arange(Wh)
    coords_w = jnp.arange(Ww)
    coords = jnp.stack(jnp.meshgrid(coords_h, coords_w, indexing="ij"))   # (2, Wh, Ww)
    coords_flatten = coords.reshape(2, -1)                                # (2, Wh*Ww)
    relative_coords = coords_flatten[:, :, None] - coords_flatten[:, None, :]  # (2, N, N)
    relative_coords = jnp.transpose(relative_coords, (1, 2, 0))           # (N, N, 2)
    relative_coords = relative_coords.at[:, :, 0].add(Wh - 1)
    relative_coords = relative_coords.at[:, :, 1].add(Ww - 1)
    relative_coords = relative_coords.at[:, :, 0].multiply(2 * Ww - 1)
    return relative_coords.sum(-1)                                        # (N, N)


def reference_forward(x, w_qkv, b_qkv, rel_bias, w_proj, b_proj, num_heads, mask):
    """Pure-JAX mirror of the PyTorch forward (for verification)."""
    B_, N, C = x.shape
    hd = C // num_heads
    scale = hd ** (-0.5)
    qkv = (x @ w_qkv + b_qkv[0]).reshape(B_, N, 3, num_heads, hd).transpose(2, 0, 3, 1, 4)
    q, k, v = qkv[0] * scale, qkv[1], qkv[2]
    attn = jnp.einsum("bhnd,bhmd->bhnm", q, k)
    attn = attn + rel_bias[None]
    if mask is not None:
        nW = mask.shape[0]
        attn = attn.reshape(B_ // nW, nW, num_heads, N, N) + mask[None, :, None]
        attn = attn.reshape(B_, num_heads, N, N)
    attn = jax.nn.softmax(attn, axis=-1)
    out = jnp.einsum("bhnm,bhmd->bhnd", attn, v).transpose(0, 2, 1, 3).reshape(B_, N, C)
    return out @ w_proj + b_proj[0]


def _make_params(key, dim, window_size, num_heads):
    N = window_size[0] * window_size[1]
    k_tbl, k_wq, k_bq, k_wp, k_bp = jax.random.split(key, 5)
    table_size = (2 * window_size[0] - 1) * (2 * window_size[1] - 1)
    rel_table = 0.02 * jax.random.normal(k_tbl, (table_size, num_heads), dtype=jnp.float32)
    w_qkv = 0.05 * jax.random.normal(k_wq, (dim, 3 * dim), dtype=jnp.float32)
    b_qkv = 0.05 * jax.random.normal(k_bq, (1, 3 * dim), dtype=jnp.float32)
    w_proj = 0.05 * jax.random.normal(k_wp, (dim, dim), dtype=jnp.float32)
    b_proj = 0.05 * jax.random.normal(k_bp, (1, dim), dtype=jnp.float32)
    rel_index = make_relative_position_index(window_size)                  # (N, N)
    rel_bias = rel_table[rel_index.reshape(-1)].reshape(N, N, num_heads)
    rel_bias = jnp.transpose(rel_bias, (2, 0, 1)).astype(jnp.float32)      # (H, N, N)
    return w_qkv, b_qkv, rel_bias, w_proj, b_proj


if __name__ == "__main__":
    key = jax.random.PRNGKey(0)
    k_p1, k_x1, k_m1, k_p2, k_x2, k_m2 = jax.random.split(key, 6)

    # ---- test 1: dim=32, window 4x4 (N=16), 4 heads, batch=4, nW=4 -> B_=16, masked ----
    dim, window_size, num_heads = 32, (4, 4), 4
    N = window_size[0] * window_size[1]
    nW, batch = 4, 4
    B_ = batch * nW
    params = _make_params(k_p1, dim, window_size, num_heads)
    x = jax.random.normal(k_x1, (B_, N, dim), dtype=jnp.float32)
    mask = jnp.where(jax.random.uniform(k_m1, (nW, N, N)) > 0.8, -100.0, 0.0).astype(jnp.float32)

    out = jax.block_until_ready(
        window_attention(x, *params, num_heads=num_heads, mask=mask))
    ref = reference_forward(x, *params, num_heads, mask)
    assert out.shape == (B_, N, dim)
    err = float(jnp.max(jnp.abs(out - ref)))
    assert jnp.allclose(out, ref, atol=2e-3, rtol=2e-3), err

    # ---- test 2: mask=None path, ragged B_ (12 windows) ----
    x2 = x[:12]
    out2 = jax.block_until_ready(
        window_attention(x2, *params, num_heads=num_heads, mask=None))
    ref2 = reference_forward(x2, *params, num_heads, None)
    assert out2.shape == (12, N, dim)
    err2 = float(jnp.max(jnp.abs(out2 - ref2)))
    assert jnp.allclose(out2, ref2, atol=2e-3, rtol=2e-3), err2

    # ---- test 3: window 3x3 (N=9 -> padded to 16), nW=8, masked, TB a divisor of nW ----
    dim3, window_size3, num_heads3 = 32, (3, 3), 4
    N3 = window_size3[0] * window_size3[1]
    nW3, batch3 = 8, 2
    B3 = batch3 * nW3
    params3 = _make_params(k_p2, dim3, window_size3, num_heads3)
    x3 = jax.random.normal(k_x2, (B3, N3, dim3), dtype=jnp.float32)
    mask3 = jnp.where(jax.random.uniform(k_m2, (nW3, N3, N3)) > 0.8, -100.0, 0.0).astype(jnp.float32)

    out3 = jax.block_until_ready(
        window_attention(x3, *params3, num_heads=num_heads3, mask=mask3, block_windows=4))
    ref3 = reference_forward(x3, *params3, num_heads3, mask3)
    assert out3.shape == (B3, N3, dim3)
    err3 = float(jnp.max(jnp.abs(out3 - ref3)))
    assert jnp.allclose(out3, ref3, atol=2e-3, rtol=2e-3), err3

    print("KERNEL_OK")
</pallas_src>

<mosaic_0001>
module attributes {stable_mosaic.version = 11 : i64} {
  func.func @_window_attention_kernel(%arg0: i32, %arg1: memref<8x16x32xf32, #tpu.memory_space<vmem>>, %arg2: memref<32x96xf32, #tpu.memory_space<vmem>>, %arg3: memref<1x96xf32, #tpu.memory_space<vmem>>, %arg4: memref<4x16x16xf32, #tpu.memory_space<vmem>>, %arg5: memref<8x16x16xf32, #tpu.memory_space<vmem>>, %arg6: memref<32x32xf32, #tpu.memory_space<vmem>>, %arg7: memref<1x32xf32, #tpu.memory_space<vmem>>, %arg8: memref<8x16x32xf32, #tpu.memory_space<vmem>>, %arg9: memref<128x32xf32, #tpu.memory_space<vmem>>) attributes {dimension_semantics = [#tpu.dimension_semantics<parallel>], iteration_bounds = array<i64: 2>, scalar_prefetch = 0 : i64, scratch_operands = 1 : i64, tpu.core_type = #tpu.core_type<tc>, window_params = [{transform_indices = @transform_0, window_bounds = array<i64: 8, 16, 32>}, {pipeline_mode = #tpu.pipeline_mode<synchronous>, transform_indices = @transform_1, window_bounds = array<i64: 32, 96>}, {pipeline_mode = #tpu.pipeline_mode<synchronous>, transform_indices = @transform_2, window_bounds = array<i64: 1, 96>}, {pipeline_mode = #tpu.pipeline_mode<synchronous>, transform_indices = @transform_3, window_bounds = array<i64: 4, 16, 16>}, {pipeline_mode = #tpu.pipeline_mode<synchronous>, transform_indices = @transform_4, window_bounds = array<i64: 8, 16, 16>}, {pipeline_mode = #tpu.pipeline_mode<synchronous>, transform_indices = @transform_5, window_bounds = array<i64: 32, 32>}, {pipeline_mode = #tpu.pipeline_mode<synchronous>, transform_indices = @transform_6, window_bounds = array<i64: 1, 32>}, {transform_indices = @transform_7, window_bounds = array<i64: 8, 16, 32>}]} {
    %c0 = arith.constant 0 : index
    %c0_0 = arith.constant 0 : index
    %c0_1 = arith.constant 0 : index
    %0 = vector.load %arg1[%c0, %c0_0, %c0_1] : memref<8x16x32xf32, #tpu.memory_space<vmem>>, vector<8x16x32xf32>
    %1 = vector.shape_cast %0 : vector<8x16x32xf32> to vector<128x32xf32>
    %c0_2 = arith.constant 0 : index
    %c0_3 = arith.constant 0 : index
    %2 = vector.load %arg2[%c0_2, %c0_3] : memref<32x96xf32, #tpu.memory_space<vmem>>, vector<32x96xf32>
    %cst = arith.constant dense<0.000000e+00> : vector<128x96xf32>
    %3 = tpu.matmul %1, %2, %cst {dimension_numbers = #tpu.dot_dimension_numbers<[1], [0], [0], [1], [0, 0, 1, 1], [], []>} : vector<128x32xf32>, vector<32x96xf32>, vector<128x96xf32> -> vector<128x96xf32>
    %c0_4 = arith.constant 0 : index
    %c0_5 = arith.constant 0 : index
    %4 = vector.load %arg3[%c0_4, %c0_5] : memref<1x96xf32, #tpu.memory_space<vmem>>, vector<1x96xf32>
    %5 = vector.broadcast %4 : vector<1x96xf32> to vector<128x96xf32>
    %6 = arith.addf %3, %5 : vector<128x96xf32>
    %7 = vector.extract_strided_slice %6 {offsets = [0, 0], sizes = [128, 32], strides = [1, 1]} : vector<128x96xf32> to vector<128x32xf32>
    %8 = vector.extract_strided_slice %6 {offsets = [0, 32], sizes = [128, 32], strides = [1, 1]} : vector<128x96xf32> to vector<128x32xf32>
    %9 = vector.extract_strided_slice %6 {offsets = [0, 64], sizes = [128, 32], strides = [1, 1]} : vector<128x96xf32> to vector<128x32xf32>
    %c0_6 = arith.constant 0 : index
    %c0_7 = arith.constant 0 : index
    %c0_8 = arith.constant 0 : index
    %10 = vector.load %arg5[%c0_6, %c0_7, %c0_8] : memref<8x16x16xf32, #tpu.memory_space<vmem>>, vector<8x16x16xf32>
    %11 = vector.extract_strided_slice %7 {offsets = [0, 0], sizes = [128, 8], strides = [1, 1]} : vector<128x32xf32> to vector<128x8xf32>
    %12 = vector.shape_cast %11 : vector<128x8xf32> to vector<8x16x8xf32>
    %13 = vector.extract_strided_slice %8 {offsets = [0, 0], sizes = [128, 8], strides = [1, 1]} : vector<128x32xf32> to vector<128x8xf32>
    %14 = vector.shape_cast %13 : vector<128x8xf32> to vector<8x16x8xf32>
    %15 = vector.extract_strided_slice %9 {offsets = [0, 0], sizes = [128, 8], strides = [1, 1]} : vector<128x32xf32> to vector<128x8xf32>
    %16 = vector.shape_cast %15 : vector<128x8xf32> to vector<8x16x8xf32>
    "tpu.trace_start"() <{level = 10 : i32, message = "tnd,tmd->tnm"}> : () -> ()
    %cst_9 = arith.constant dense<0.000000e+00> : vector<8x16x16xf32>
    %17 = tpu.matmul %12, %14, %cst_9 {dimension_numbers = #tpu.dot_dimension_numbers<[2], [2], [1], [1], [0, 0, 0, 1, 1, 1], [0], [0]>} : vector<8x16x8xf32>, vector<8x16x8xf32>, vector<8x16x16xf32> -> vector<8x16x16xf32>
    "tpu.trace_stop"() : () -> ()
    %c0_10 = arith.constant 0 : index
    %c0_11 = arith.constant 0 : index
    %c0_12 = arith.constant 0 : index
    %18 = vector.load %arg4[%c0_10, %c0_11, %c0_12] : memref<4x16x16xf32, #tpu.memory_space<vmem>>, vector<1x16x16xf32>
    %19 = vector.shape_cast %18 : vector<1x16x16xf32> to vector<16x16xf32>
    %20 = vector.shape_cast %19 : vector<16x16xf32> to vector<1x16x16xf32>
    %21 = vector.broadcast %20 : vector<1x16x16xf32> to vector<8x16x16xf32>
    %22 = arith.addf %17, %21 : vector<8x16x16xf32>
    %23 = arith.addf %22, %10 : vector<8x16x16xf32>
    %cst_13 = arith.constant dense<0xFF800000> : vector<8x16xf32>
    %24 = vector.multi_reduction <maximumf>, %23, %cst_13 [2] : vector<8x16x16xf32> to vector<8x16xf32>
    %25 = vector.shape_cast %24 : vector<8x16xf32> to vector<8x16x1xf32>
    %26 = vector.broadcast %25 : vector<8x16x1xf32> to vector<8x16x16xf32>
    %27 = arith.subf %23, %26 : vector<8x16x16xf32>
    %28 = math.exp %27 : vector<8x16x16xf32>
    %cst_14 = arith.constant dense<0.000000e+00> : vector<8x16xf32>
    %29 = vector.multi_reduction <add>, %28, %cst_14 [2] : vector<8x16x16xf32> to vector<8x16xf32>
    %30 = vector.shape_cast %29 : vector<8x16xf32> to vector<8x16x1xf32>
    %31 = tpu.reciprocal %30 {approx = true} : vector<8x16x1xf32> -> vector<8x16x1xf32>
    %32 = vector.broadcast %31 : vector<8x16x1xf32> to vector<8x16x16xf32>
    %33 = arith.mulf %28, %32 : vector<8x16x16xf32>
    "tpu.trace_start"() <{level = 10 : i32, message = "tnm,tmd->tnd"}> : () -> ()
    %cst_15 = arith.constant dense<0.000000e+00> : vector<8x16x8xf32>
    %34 = tpu.matmul %33, %16, %cst_15 {dimension_numbers = #tpu.dot_dimension_numbers<[2], [1], [1], [2], [0, 0, 0, 1, 1, 2], [0], [0]>} : vector<8x16x16xf32>, vector<8x16x8xf32>, vector<8x16x8xf32> -> vector<8x16x8xf32>
    "tpu.trace_stop"() : () -> ()
    %35 = vector.shape_cast %34 : vector<8x16x8xf32> to vector<128x8xf32>
    %c0_16 = arith.constant 0 : index
    %c0_17 = arith.constant 0 : index
    %36 = vector.load %arg9[%c0_16, %c0_17] : memref<128x32xf32, #tpu.memory_space<vmem>>, vector<128x8xf32>
    tpu.vector_store %arg9[%c0_16, %c0_17], %35 {strides = array<i32>} : memref<128x32xf32, #tpu.memory_space<vmem>>, vector<128x8xf32>,
    %37 = vector.extract_strided_slice %7 {offsets = [0, 8], sizes = [128, 8], strides = [1, 1]} : vector<128x32xf32> to vector<128x8xf32>
    %38 = vector.shape_cast %37 : vector<128x8xf32> to vector<8x16x8xf32>
    %39 = vector.extract_strided_slice %8 {offsets = [0, 8], sizes = [128, 8], strides = [1, 1]} : vector<128x32xf32> to vector<128x8xf32>
    %40 = vector.shape_cast %39 : vector<128x8xf32> to vector<8x16x8xf32>
    %41 = vector.extract_strided_slice %9 {offsets = [0, 8], sizes = [128, 8], strides = [1, 1]} : vector<128x32xf32> to vector<128x8xf32>
    %42 = vector.shape_cast %41 : vector<128x8xf32> to vector<8x16x8xf32>
    "tpu.trace_start"() <{level = 10 : i32, message = "tnd,tmd->tnm"}> : () -> ()
    %cst_18 = arith.constant dense<0.000000e+00> : vector<8x16x16xf32>
    %43 = tpu.matmul %38, %40, %cst_18 {dimension_numbers = #tpu.dot_dimension_numbers<[2], [2], [1], [1], [0, 0, 0, 1, 1, 1], [0], [0]>} : vector<8x16x8xf32>, vector<8x16x8xf32>, vector<8x16x16xf32> -> vector<8x16x16xf32>
    "tpu.trace_stop"() : () -> ()
    %c1 = arith.constant 1 : index
    %c0_19 = arith.constant 0 : index
    %c0_20 = arith.constant 0 : index
    %44 = vector.load %arg4[%c1, %c0_19, %c0_20] : memref<4x16x16xf32, #tpu.memory_space<vmem>>, vector<1x16x16xf32>
    %45 = vector.shape_cast %44 : vector<1x16x16xf32> to vector<16x16xf32>
    %46 = vector.shape_cast %45 : vector<16x16xf32> to vector<1x16x16xf32>
    %47 = vector.broadcast %46 : vector<1x16x16xf32> to vector<8x16x16xf32>
    %48 = arith.addf %43, %47 : vector<8x16x16xf32>
    %49 = arith.addf %48, %10 : vector<8x16x16xf32>
    %cst_21 = arith.constant dense<0xFF800000> : vector<8x16xf32>
    %50 = vector.multi_reduction <maximumf>, %49, %cst_21 [2] : vector<8x16x16xf32> to vector<8x16xf32>
    %51 = vector.shape_cast %50 : vector<8x16xf32> to vector<8x16x1xf32>
    %52 = vector.broadcast %51 : vector<8x16x1xf32> to vector<8x16x16xf32>
    %53 = arith.subf %49, %52 : vector<8x16x16xf32>
    %54 = math.exp %53 : vector<8x16x16xf32>
    %cst_22 = arith.constant dense<0.000000e+00> : vector<8x16xf32>
    %55 = vector.multi_reduction <add>, %54, %cst_22 [2] : vector<8x16x16xf32> to vector<8x16xf32>
    %56 = vector.shape_cast %55 : vector<8x16xf32> to vector<8x16x1xf32>
    %57 = tpu.reciprocal %56 {approx = true} : vector<8x16x1xf32> -> vector<8x16x1xf32>
    %58 = vector.broadcast %57 : vector<8x16x1xf32> to vector<8x16x16xf32>
    %59 = arith.mulf %54, %58 : vector<8x16x16xf32>
    "tpu.trace_start"() <{level = 10 : i32, message = "tnm,tmd->tnd"}> : () -> ()
    %cst_23 = arith.constant dense<0.000000e+00> : vector<8x16x8xf32>
    %60 = tpu.matmul %59, %42, %cst_23 {dimension_numbers = #tpu.dot_dimension_numbers<[2], [1], [1], [2], [0, 0, 0, 1, 1, 2], [0], [0]>} : vector<8x16x16xf32>, vector<8x16x8xf32>, vector<8x16x8xf32> -> vector<8x16x8xf32>
    "tpu.trace_stop"() : () -> ()
    %61 = vector.shape_cast %60 : vector<8x16x8xf32> to vector<128x8xf32>
    %c0_24 = arith.constant 0 : index
    %c8 = arith.constant 8 : index
    %62 = vector.load %arg9[%c0_24, %c8] : memref<128x32xf32, #tpu.memory_space<vmem>>, vector<128x8xf32>
    tpu.vector_store %arg9[%c0_24, %c8], %61 {strides = array<i32>} : memref<128x32xf32, #tpu.memory_space<vmem>>, vector<128x8xf32>,
    %63 = vector.extract_strided_slice %7 {offsets = [0, 16], sizes = [128, 8], strides = [1, 1]} : vector<128x32xf32> to vector<128x8xf32>
    %64 = vector.shape_cast %63 : vector<128x8xf32> to vector<8x16x8xf32>
    %65 = vector.extract_strided_slice %8 {offsets = [0, 16], sizes = [128, 8], strides = [1, 1]} : vector<128x32xf32> to vector<128x8xf32>
    %66 = vector.shape_cast %65 : vector<128x8xf32> to vector<8x16x8xf32>
    %67 = vector.extract_strided_slice %9 {offsets = [0, 16], sizes = [128, 8], strides = [1, 1]} : vector<128x32xf32> to vector<128x8xf32>
    %68 = vector.shape_cast %67 : vector<128x8xf32> to vector<8x16x8xf32>
    "tpu.trace_start"() <{level = 10 : i32, message = "tnd,tmd->tnm"}> : () -> ()
    %cst_25 = arith.constant dense<0.000000e+00> : vector<8x16x16xf32>
    %69 = tpu.matmul %64, %66, %cst_25 {dimension_numbers = #tpu.dot_dimension_numbers<[2], [2], [1], [1], [0, 0, 0, 1, 1, 1], [0], [0]>} : vector<8x16x8xf32>, vector<8x16x8xf32>, vector<8x16x16xf32> -> vector<8x16x16xf32>
    "tpu.trace_stop"() : () -> ()
    %c2 = arith.constant 2 : index
    %c0_26 = arith.constant 0 : index
    %c0_27 = arith.constant 0 : index
    %70 = vector.load %arg4[%c2, %c0_26, %c0_27] : memref<4x16x16xf32, #tpu.memory_space<vmem>>, vector<1x16x16xf32>
    %71 = vector.shape_cast %70 : vector<1x16x16xf32> to vector<16x16xf32>
    %72 = vector.shape_cast %71 : vector<16x16xf32> to vector<1x16x16xf32>
    %73 = vector.broadcast %72 : vector<1x16x16xf32> to vector<8x16x16xf32>
    %74 = arith.addf %69, %73 : vector<8x16x16xf32>
    %75 = arith.addf %74, %10 : vector<8x16x16xf32>
    %cst_28 = arith.constant dense<0xFF800000> : vector<8x16xf32>
    %76 = vector.multi_reduction <maximumf>, %75, %cst_28 [2] : vector<8x16x16xf32> to vector<8x16xf32>
    %77 = vector.shape_cast %76 : vector<8x16xf32> to vector<8x16x1xf32>
    %78 = vector.broadcast %77 : vector<8x16x1xf32> to vector<8x16x16xf32>
    %79 = arith.subf %75, %78 : vector<8x16x16xf32>
    %80 = math.exp %79 : vector<8x16x16xf32>
    %cst_29 = arith.constant dense<0.000000e+00> : vector<8x16xf32>
    %81 = vector.multi_reduction <add>, %80, %cst_29 [2] : vector<8x16x16xf32> to vector<8x16xf32>
    %82 = vector.shape_cast %81 : vector<8x16xf32> to vector<8x16x1xf32>
    %83 = tpu.reciprocal %82 {approx = true} : vector<8x16x1xf32> -> vector<8x16x1xf32>
    %84 = vector.broadcast %83 : vector<8x16x1xf32> to vector<8x16x16xf32>
    %85 = arith.mulf %80, %84 : vector<8x16x16xf32>
    "tpu.trace_start"() <{level = 10 : i32, message = "tnm,tmd->tnd"}> : () -> ()
    %cst_30 = arith.constant dense<0.000000e+00> : vector<8x16x8xf32>
    %86 = tpu.matmul %85, %68, %cst_30 {dimension_numbers = #tpu.dot_dimension_numbers<[2], [1], [1], [2], [0, 0, 0, 1, 1, 2], [0], [0]>} : vector<8x16x16xf32>, vector<8x16x8xf32>, vector<8x16x8xf32> -> vector<8x16x8xf32>
    "tpu.trace_stop"() : () -> ()
    %87 = vector.shape_cast %86 : vector<8x16x8xf32> to vector<128x8xf32>
    %c0_31 = arith.constant 0 : index
    %c16 = arith.constant 16 : index
    %88 = vector.load %arg9[%c0_31, %c16] : memref<128x32xf32, #tpu.memory_space<vmem>>, vector<128x8xf32>
    tpu.vector_store %arg9[%c0_31, %c16], %87 {strides = array<i32>} : memref<128x32xf32, #tpu.memory_space<vmem>>, vector<128x8xf32>,
    %89 = vector.extract_strided_slice %7 {offsets = [0, 24], sizes = [128, 8], strides = [1, 1]} : vector<128x32xf32> to vector<128x8xf32>
    %90 = vector.shape_cast %89 : vector<128x8xf32> to vector<8x16x8xf32>
    %91 = vector.extract_strided_slice %8 {offsets = [0, 24], sizes = [128, 8], strides = [1, 1]} : vector<128x32xf32> to vector<128x8xf32>
    %92 = vector.shape_cast %91 : vector<128x8xf32> to vector<8x16x8xf32>
    %93 = vector.extract_strided_slice %9 {offsets = [0, 24], sizes = [128, 8], strides = [1, 1]} : vector<128x32xf32> to vector<128x8xf32>
    %94 = vector.shape_cast %93 : vector<128x8xf32> to vector<8x16x8xf32>
    "tpu.trace_start"() <{level = 10 : i32, message = "tnd,tmd->tnm"}> : () -> ()
    %cst_32 = arith.constant dense<0.000000e+00> : vector<8x16x16xf32>
    %95 = tpu.matmul %90, %92, %cst_32 {dimension_numbers = #tpu.dot_dimension_numbers<[2], [2], [1], [1], [0, 0, 0, 1, 1, 1], [0], [0]>} : vector<8x16x8xf32>, vector<8x16x8xf32>, vector<8x16x16xf32> -> vector<8x16x16xf32>
    "tpu.trace_stop"() : () -> ()
    %c3 = arith.constant 3 : index
    %c0_33 = arith.constant 0 : index
    %c0_34 = arith.constant 0 : index
    %96 = vector.load %arg4[%c3, %c0_33, %c0_34] : memref<4x16x16xf32, #tpu.memory_space<vmem>>, vector<1x16x16xf32>
    %97 = vector.shape_cast %96 : vector<1x16x16xf32> to vector<16x16xf32>
    %98 = vector.shape_cast %97 : vector<16x16xf32> to vector<1x16x16xf32>
    %99 = vector.broadcast %98 : vector<1x16x16xf32> to vector<8x16x16xf32>
    %100 = arith.addf %95, %99 : vector<8x16x16xf32>
    %101 = arith.addf %100, %10 : vector<8x16x16xf32>
    %cst_35 = arith.constant dense<0xFF800000> : vector<8x16xf32>
    %102 = vector.multi_reduction <maximumf>, %101, %cst_35 [2] : vector<8x16x16xf32> to vector<8x16xf32>
    %103 = vector.shape_cast %102 : vector<8x16xf32> to vector<8x16x1xf32>
    %104 = vector.broadcast %103 : vector<8x16x1xf32> to vector<8x16x16xf32>
    %105 = arith.subf %101, %104 : vector<8x16x16xf32>
    %106 = math.exp %105 : vector<8x16x16xf32>
    %cst_36 = arith.constant dense<0.000000e+00> : vector<8x16xf32>
    %107 = vector.multi_reduction <add>, %106, %cst_36 [2] : vector<8x16x16xf32> to vector<8x16xf32>
    %108 = vector.shape_cast %107 : vector<8x16xf32> to vector<8x16x1xf32>
    %109 = tpu.reciprocal %108 {approx = true} : vector<8x16x1xf32> -> vector<8x16x1xf32>
    %110 = vector.broadcast %109 : vector<8x16x1xf32> to vector<8x16x16xf32>
    %111 = arith.mulf %106, %110 : vector<8x16x16xf32>
    "tpu.trace_start"() <{level = 10 : i32, message = "tnm,tmd->tnd"}> : () -> ()
    %cst_37 = arith.constant dense<0.000000e+00> : vector<8x16x8xf32>
    %112 = tpu.matmul %111, %94, %cst_37 {dimension_numbers = #tpu.dot_dimension_numbers<[2], [1], [1], [2], [0, 0, 0, 1, 1, 2], [0], [0]>} : vector<8x16x16xf32>, vector<8x16x8xf32>, vector<8x16x8xf32> -> vector<8x16x8xf32>
    "tpu.trace_stop"() : () -> ()
    %113 = vector.shape_cast %112 : vector<8x16x8xf32> to vector<128x8xf32>
    %c0_38 = arith.constant 0 : index
    %c24 = arith.constant 24 : index
    %114 = vector.load %arg9[%c0_38, %c24] : memref<128x32xf32, #tpu.memory_space<vmem>>, vector<128x8xf32>
    tpu.vector_store %arg9[%c0_38, %c24], %113 {strides = array<i32>} : memref<128x32xf32, #tpu.memory_space<vmem>>, vector<128x8xf32>,
    %c0_39 = arith.constant 0 : index
    %c0_40 = arith.constant 0 : index
    %115 = vector.load %arg9[%c0_39, %c0_40] : memref<128x32xf32, #tpu.memory_space<vmem>>, vector<128x32xf32>
    %c0_41 = arith.constant 0 : index
    %c0_42 = arith.constant 0 : index
    %116 = vector.load %arg6[%c0_41, %c0_42] : memref<32x32xf32, #tpu.memory_space<vmem>>, vector<32x32xf32>
    %cst_43 = arith.constant dense<0.000000e+00> : vector<128x32xf32>
    %117 = tpu.matmul %115, %116, %cst_43 {dimension_numbers = #tpu.dot_dimension_numbers<[1], [0], [0], [1], [0, 0, 1, 1], [], []>} : vector<128x32xf32>, vector<32x32xf32>, vector<128x32xf32> -> vector<128x32xf32>
    %c0_44 = arith.constant 0 : index
    %c0_45 = arith.constant 0 : index
    %118 = vector.load %arg7[%c0_44, %c0_45] : memref<1x32xf32, #tpu.memory_space<vmem>>, vector<1x32xf32>
    %119 = vector.broadcast %118 : vector<1x32xf32> to vector<128x32xf32>
    %120 = arith.addf %117, %119 : vector<128x32xf32>
    %121 = vector.shape_cast %120 : vector<128x32xf32> to vector<8x16x32xf32>
    %c0_46 = arith.constant 0 : index
    %c0_47 = arith.constant 0 : index
    %c0_48 = arith.constant 0 : index
    %122 = vector.load %arg8[%c0_46, %c0_47, %c0_48] : memref<8x16x32xf32, #tpu.memory_space<vmem>>, vector<8x16x32xf32>
    tpu.vector_store %arg8[%c0_46, %c0_47, %c0_48], %121 {strides = array<i32>} : memref<8x16x32xf32, #tpu.memory_space<vmem>>, vector<8x16x32xf32>,
    return
  }
  func.func @transform_0(%arg0: i32) -> (i32, i32, i32) {
    %c0_i32 = arith.constant 0 : i32
    %c0_i32_0 = arith.constant 0 : i32
    %c0_i32_1 = arith.constant 0 : i32
    return %arg0, %c0_i32, %c0_i32_0 : i32, i32, i32
  }
  func.func @transform_1(%arg0: i32) -> (i32, i32) {
    %c0_i32 = arith.constant 0 : i32
    %c0_i32_0 = arith.constant 0 : i32
    %c0_i32_1 = arith.constant 0 : i32
    return %c0_i32, %c0_i32_0 : i32, i32
  }
  func.func @transform_2(%arg0: i32) -> (i32, i32) {
    %c0_i32 = arith.constant 0 : i32
    %c0_i32_0 = arith.constant 0 : i32
    %c0_i32_1 = arith.constant 0 : i32
    return %c0_i32, %c0_i32_0 : i32, i32
  }
  func.func @transform_3(%arg0: i32) -> (i32, i32, i32) {
    %c0_i32 = arith.constant 0 : i32
    %c0_i32_0 = arith.constant 0 : i32
    %c0_i32_1 = arith.constant 0 : i32
    %c0_i32_2 = arith.constant 0 : i32
    return %c0_i32, %c0_i32_0, %c0_i32_1 : i32, i32, i32
  }
  func.func @transform_4(%arg0: i32) -> (i32, i32, i32) {
    %c0_i32 = arith.constant 0 : i32
    %c0_i32_0 = arith.constant 0 : i32
    %c0_i32_1 = arith.constant 0 : i32
    %c0_i32_2 = arith.constant 0 : i32
    return %c0_i32, %c0_i32_0, %c0_i32_1 : i32, i32, i32
  }
  func.func @transform_5(%arg0: i32) -> (i32, i32) {
    %c0_i32 = arith.constant 0 : i32
    %c0_i32_0 = arith.constant 0 : i32
    %c0_i32_1 = arith.constant 0 : i32
    return %c0_i32, %c0_i32_0 : i32, i32
  }
  func.func @transform_6(%arg0: i32) -> (i32, i32) {
    %c0_i32 = arith.constant 0 : i32
    %c0_i32_0 = arith.constant 0 : i32
    %c0_i32_1 = arith.constant 0 : i32
    return %c0_i32, %c0_i32_0 : i32, i32
  }
  func.func @transform_7(%arg0: i32) -> (i32, i32, i32) {
    %c0_i32 = arith.constant 0 : i32
    %c0_i32_0 = arith.constant 0 : i32
    %c0_i32_1 = arith.constant 0 : i32
    return %arg0, %c0_i32, %c0_i32_0 : i32, i32, i32
  }
}

</mosaic_0001>

<llo_original>
// kernel: tpu_custom_call.1
$region0: #{tpu_custom_call.1}
  #allocation0 [shape = 'u32[]', space=smem, size = 0x4, offset = 0x4, fixed_abs, tag = 'smem constant byte address 0x4 - core index']
  #allocation1 [shape = 'u32[144,128]{1,0:T(1,128)}', space=vmem, size = 0x12000, scoped, tag = 'internal scratch']
  #allocation2 [shape = 'f32[128,32]{1,0:T(8,128)}', space=vmem, size = 0x10000, scoped, tag = 'scratch operand']
  %s0 = inlined_call_operand.hbm [shape: f32[16,16,32], index: 0, kind: input, shape index: {}]
  %s1 = inlined_call_operand.hbm [shape: f32[32,96], index: 1, kind: input, shape index: {}]
  %s2 = inlined_call_operand.vmem [shape: f32[1,96], index: 2, kind: input, shape index: {}]
  %s3 = inlined_call_operand.hbm [shape: f32[4,16,16], index: 3, kind: input, shape index: {}]
  %s4 = inlined_call_operand.hbm [shape: f32[8,16,16], index: 4, kind: input, shape index: {}]
  %s5 = inlined_call_operand.hbm [shape: f32[32,32], index: 5, kind: input, shape index: {}]
  %s6 = inlined_call_operand.vmem [shape: f32[1,32], index: 6, kind: input, shape index: {}]
  %s7 = inlined_call_operand.hbm [shape: f32[16,16,32], index: 7, kind: output, shape index: {}]
  %s8 = sld [smem:[#allocation0]]
  $region81: #{tpu_custom_call.1} parent=0
    _
  %s10 = ssub.s32 1, %s8
  %s11 = scalar_select 0, %s10, %s8
  $region1: #{tpu_custom_call.1} parent=0
    #allocation3 [shape = 'u8[131072]{0}', space=vmem, size = 0x20000, scoped, tag = 'input window, operand 0']
    #allocation4 [shape = 's32[2]{0}', space=sflag, size = 0x8, scoped, tag = 'scoped memory for tpu_custom_call.1']
    #allocation5 [shape = 's32[2]{0}', space=sflag, size = 0x8, scoped, tag = 'scoped memory for tpu_custom_call.1']
    #allocation6 [shape = 'u8[16384]{0}', space=vmem, size = 0x4000, scoped, tag = 'input window, operand 1, single buffered']
    #allocation7 [shape = 's32[1]{0}', space=sflag, size = 0x4, scoped, tag = 'scoped memory for tpu_custom_call.1']
    #allocation8 [shape = 'u8[32768]{0}', space=vmem, size = 0x8000, scoped, tag = 'input window, operand 3, single buffered']
    #allocation9 [shape = 'u8[65536]{0}', space=vmem, size = 0x10000, scoped, tag = 'input window, operand 4, single buffered']
    #allocation10 [shape = 's32[1]{0}', space=sflag, size = 0x4, scoped, tag = 'scoped memory for tpu_custom_call.1']
    #allocation11 [shape = 'u8[16384]{0}', space=vmem, size = 0x4000, scoped, tag = 'input window, operand 5, single buffered']
    #allocation12 [shape = 'u8[131072]{0}', space=vmem, size = 0x20000, scoped, tag = 'output window, operand 0']
    %12 = vsyncpa [#allocation4], 0
    %s13 = scalar_lea.sflag [#allocation4], 1
    %14 = vsyncpa %s13, 0
    %15 = vsyncpa [#allocation7], 0
    %16 = vsyncpa [#allocation10], 0
    %17 = vsyncpa [#allocation5], 0
    %s18 = scalar_lea.sflag [#allocation5], 1
    %19 = vsyncpa %s18, 0
    loop: start=0, step=1, limit=4
    $region2: #{tpu_custom_call.1} parent=1 // loop_pre_header
      _
    $region3: #{tpu_custom_call.1} parent=1 // loop_header
      %s21 = sphi 0, %s25
      %p22 = scmp.ge.s32.totalorder %s21, 4
      %s31 = sphi 0, %s33
      %s34 = sphi 0, %s31
      %s35 = sphi 0, %s34
      %s51 = sphi 0, %s35
      %s55 = sphi 0, %s55
      %s57 = sphi 0, %s55
      %s58 = sphi 0, %s57
      %s72 = sphi 0, %s58
      %s76 = sphi 0, %s76
      %s78 = sphi 0, %s76
      %s79 = sphi 0, %s78
      %s93 = sphi 0, %s79
      %s97 = sphi 0, %s97
      %s99 = sphi 0, %s97
      %s100 = sphi 0, %s99
      %s114 = sphi 0, %s100
      %s118 = sphi 0, %s118
      %s120 = sphi 0, %s118
      %s121 = sphi 0, %s120
      %s135 = sphi 0, %s121
      %s139 = sphi 0, %s139
      %s141 = sphi 0, %s139
      %s142 = sphi 0, %s141
      %s156 = sphi 0, %s142
      %s160 = sphi 0, %s160
      %s162 = sphi 0, %s160
      %s163 = sphi 0, %s162
      %s177 = sphi 0, %s163
      %s183 = sphi 0, %s185
      %s186 = sphi 0, %s183
      %s187 = sphi 0, %s186
      %s203 = sphi 0, %s187
    $region4: #{tpu_custom_call.1} parent=1 // loop_header_branch
      %24 = sbr.rel (%p22) target = $region8
    $region5: #{tpu_custom_call.1} parent=1 // loop_body
      %s26 = ssub.s32 %s21, 1
      %s27 = ssub.s32 %s21, 2
      %s28 = sadd.s32 %s21, 1
      %s29 = ssub.s32 %s21, %s28
      %p30 = scmp.eq.s32.totalorder %s29, 0
      %s32 = sadd.s32 %s31, 1
      %s33 = scalar_select %p30, %s31, %s32
      %p36 = pneg %p30
      %p37 = scmp.eq.s32.totalorder %s21, 1
      %p38 = por %p36, %p37
      %p39 = scmp.ne.s32.totalorder %s31, %s34
      %p40 = scmp.eq.s32.totalorder %s21, 0
      %p41 = por %p39, %p40
      %p42 = scmp.ne.s32.totalorder %s31, %s34
      %p43 = scmp.eq.s32.totalorder %s26, 1
      %p44 = por %p42, %p43
      %p45 = scmp.ne.s32.totalorder %s34, %s35
      %p46 = scmp.eq.s32.totalorder %s26, 0
      %p47 = por %p45, %p46
      %p48 = scmp.ne.s32.totalorder %s34, %s35
      %p49 = scmp.eq.s32.totalorder %s27, 1
      %p50 = por %p48, %p49
      %p52 = scmp.ne.s32.totalorder %s35, %s51
      %p53 = scmp.eq.s32.totalorder %s27, 0
      %p54 = por %p52, %p53
      %s56 = sadd.s32 %s55, 1
      %p59 = scmp.eq.s32.totalorder %s21, 1
      %p60 = scmp.ne.s32.totalorder %s55, %s57
      %p61 = scmp.eq.s32.totalorder %s21, 0
      %p62 = por %p60, %p61
      %p63 = scmp.ne.s32.totalorder %s55, %s57
      %p64 = scmp.eq.s32.totalorder %s26, 1
      %p65 = por %p63, %p64
      %p66 = scmp.ne.s32.totalorder %s57, %s58
      %p67 = scmp.eq.s32.totalorder %s26, 0
      %p68 = por %p66, %p67
      %p69 = scmp.ne.s32.totalorder %s57, %s58
      %p70 = scmp.eq.s32.totalorder %s27, 1
      %p71 = por %p69, %p70
      %p73 = scmp.ne.s32.totalorder %s58, %s72
      %p74 = scmp.eq.s32.totalorder %s27, 0
      %p75 = por %p73, %p74
      %s77 = sadd.s32 %s76, 1
      %p80 = scmp.eq.s32.totalorder %s21, 1
      %p81 = scmp.ne.s32.totalorder %s76, %s78
      %p82 = scmp.eq.s32.totalorder %s21, 0
      %p83 = por %p81, %p82
      %p84 = scmp.ne.s32.totalorder %s76, %s78
      %p85 = scmp.eq.s32.totalorder %s26, 1
      %p86 = por %p84, %p85
      %p87 = scmp.ne.s32.totalorder %s78, %s79
      %p88 = scmp.eq.s32.totalorder %s26, 0
      %p89 = por %p87, %p88
      %p90 = scmp.ne.s32.totalorder %s78, %s79
      %p91 = scmp.eq.s32.totalorder %s27, 1
      %p92 = por %p90, %p91
      %p94 = scmp.ne.s32.totalorder %s79, %s93
      %p95 = scmp.eq.s32.totalorder %s27, 0
      %p96 = por %p94, %p95
      %s98 = sadd.s32 %s97, 1
      %p101 = scmp.eq.s32.totalorder %s21, 1
      %p102 = scmp.ne.s32.totalorder %s97, %s99
      %p103 = scmp.eq.s32.totalorder %s21, 0
      %p104 = por %p102, %p103
      %p105 = scmp.ne.s32.totalorder %s97, %s99
      %p106 = scmp.eq.s32.totalorder %s26, 1
      %p107 = por %p105, %p106
      %p108 = scmp.ne.s32.totalorder %s99, %s100
      %p109 = scmp.eq.s32.totalorder %s26, 0
      %p110 = por %p108, %p109
      %p111 = scmp.ne.s32.totalorder %s99, %s100
      %p112 = scmp.eq.s32.totalorder %s27, 1
      %p113 = por %p111, %p112
      %p115 = scmp.ne.s32.totalorder %s100, %s114
      %p116 = scmp.eq.s32.totalorder %s27, 0
      %p117 = por %p115, %p116
      %s119 = sadd.s32 %s118, 1
      %p122 = scmp.eq.s32.totalorder %s21, 1
      %p123 = scmp.ne.s32.totalorder %s118, %s120
      %p124 = scmp.eq.s32.totalorder %s21, 0
      %p125 = por %p123, %p124
      %p126 = scmp.ne.s32.totalorder %s118, %s120
      %p127 = scmp.eq.s32.totalorder %s26, 1
      %p128 = por %p126, %p127
      %p129 = scmp.ne.s32.totalorder %s120, %s121
      %p130 = scmp.eq.s32.totalorder %s26, 0
      %p131 = por %p129, %p130
      %p132 = scmp.ne.s32.totalorder %s120, %s121
      %p133 = scmp.eq.s32.totalorder %s27, 1
      %p134 = por %p132, %p133
      %p136 = scmp.ne.s32.totalorder %s121, %s135
      %p137 = scmp.eq.s32.totalorder %s27, 0
      %p138 = por %p136, %p137
      %s140 = sadd.s32 %s139, 1
      %p143 = scmp.eq.s32.totalorder %s21, 1
      %p144 = scmp.ne.s32.totalorder %s139, %s141
      %p145 = scmp.eq.s32.totalorder %s21, 0
      %p146 = por %p144, %p145
      %p147 = scmp.ne.s32.totalorder %s139, %s141
      %p148 = scmp.eq.s32.totalorder %s26, 1
      %p149 = por %p147, %p148
      %p150 = scmp.ne.s32.totalorder %s141, %s142
      %p151 = scmp.eq.s32.totalorder %s26, 0
      %p152 = por %p150, %p151
      %p153 = scmp.ne.s32.totalorder %s141, %s142
      %p154 = scmp.eq.s32.totalorder %s27, 1
      %p155 = por %p153, %p154
      %p157 = scmp.ne.s32.totalorder %s142, %s156
      %p158 = scmp.eq.s32.totalorder %s27, 0
      %p159 = por %p157, %p158
      %s161 = sadd.s32 %s160, 1
      %p164 = scmp.eq.s32.totalorder %s21, 1
      %p165 = scmp.ne.s32.totalorder %s160, %s162
      %p166 = scmp.eq.s32.totalorder %s21, 0
      %p167 = por %p165, %p166
      %p168 = scmp.ne.s32.totalorder %s160, %s162
      %p169 = scmp.eq.s32.totalorder %s26, 1
      %p170 = por %p168, %p169
      %p171 = scmp.ne.s32.totalorder %s162, %s163
      %p172 = scmp.eq.s32.totalorder %s26, 0
      %p173 = por %p171, %p172
      %p174 = scmp.ne.s32.totalorder %s162, %s163
      %p175 = scmp.eq.s32.totalorder %s27, 1
      %p176 = por %p174, %p175
      %p178 = scmp.ne.s32.totalorder %s163, %s177
      %p179 = scmp.eq.s32.totalorder %s27, 0
      %p180 = por %p178, %p179
      %s181 = ssub.s32 %s21, %s28
      %p182 = scmp.eq.s32.totalorder %s181, 0
      %s184 = sadd.s32 %s183, 1
      %s185 = scalar_select %p182, %s183, %s184
      %p188 = pneg %p182
      %p189 = scmp.eq.s32.totalorder %s21, 1
      %p190 = por %p188, %p189
      %p191 = scmp.ne.s32.totalorder %s183, %s186
      %p192 = scmp.eq.s32.totalorder %s21, 0
      %p193 = por %p191, %p192
      %p194 = scmp.ne.s32.totalorder %s183, %s186
      %p195 = scmp.eq.s32.totalorder %s26, 1
      %p196 = por %p194, %p195
      %p197 = scmp.ne.s32.totalorder %s186, %s187
      %p198 = scmp.eq.s32.totalorder %s26, 0
      %p199 = por %p197, %p198
      %p200 = scmp.ne.s32.totalorder %s186, %s187
      %p201 = scmp.eq.s32.totalorder %s27, 1
      %p202 = por %p200, %p201
      %p204 = scmp.ne.s32.totalorder %s187, %s203
      %p205 = scmp.eq.s32.totalorder %s27, 0
      %p206 = por %p204, %p205
      %p207 = scmp.le.s32.totalorder 1, %s21
      %p208 = scmp.lt.s32.totalorder %s21, 3
      %p209 = pnand %p207, %p208
      %p210 = pneg %p209
      // Predicated region
      $region9: #{tpu_custom_call.1} parent=5 // pred_check
        _
      $region10: #{tpu_custom_call.1} parent=5 // pred_check_branch
        %212 = sbr.rel (%p209) target = $region12
      $region11: #{tpu_custom_call.1} parent=5 // pred_region
        %s213 = ssub.s32 %s21, 1
        // Predicated region
        $region13: #{tpu_custom_call.1} parent=11 // pred_check
          %p214 = pneg %p68
        $region14: #{tpu_custom_call.1} parent=11 // pred_check_branch
          %216 = sbr.rel (%p214) target = $region16
        $region15: #{tpu_custom_call.1} parent=11 // pred_region
          %s218 = ssub.s32 512, 512
          %219 = vsyncadd [#allocation7], %s218
          %s220 = sshll.u32 [#allocation6], 4
          %s221 = int_to_ptr.vmem [resolvable:$true] %s220
          %226 = dma.hbm_to_vmem [thread:$0]  %s1, 512, %s221, [#allocation7], 128, 128, 8
        $region16: #{tpu_custom_call.1} parent=11 // pred_fallthru
          _
        // Predicated region
        $region17: #{tpu_custom_call.1} parent=11 // pred_check
          %p227 = pneg %p89
        $region18: #{tpu_custom_call.1} parent=11 // pred_check_branch
          %229 = sbr.rel (%p227) target = $region20
        $region19: #{tpu_custom_call.1} parent=11 // pred_region
          _
        $region20: #{tpu_custom_call.1} parent=11 // pred_fallthru
          _
        // Predicated region
        $region21: #{tpu_custom_call.1} parent=11 // pred_check
          %p230 = pneg %p110
        $region22: #{tpu_custom_call.1} parent=11 // pred_check_branch
          %232 = sbr.rel (%p230) target = $region24
        $region23: #{tpu_custom_call.1} parent=11 // pred_region
          %s234 = ssub.s32 1024, 1024
          %235 = vsyncadd [#allocation7], %s234
          %s236 = sshll.u32 [#allocation8], 4
          %s237 = int_to_ptr.vmem [resolvable:$true] %s236
          %242 = dma.hbm_to_vmem [thread:$0]  %s3, 1024, %s237, [#allocation7], 128, 128, 8
        $region24: #{tpu_custom_call.1} parent=11 // pred_fallthru
          _
        // Predicated region
        $region25: #{tpu_custom_call.1} parent=11 // pred_check
          %p243 = pneg %p131
        $region26: #{tpu_custom_call.1} parent=11 // pred_check_branch
          %245 = sbr.rel (%p243) target = $region28
        $region27: #{tpu_custom_call.1} parent=11 // pred_region
          %s247 = ssub.s32 2048, 2048
          %248 = vsyncadd [#allocation10], %s247
          %s249 = sshll.u32 [#allocation9], 4
          %s250 = int_to_ptr.vmem [resolvable:$true] %s249
          %255 = dma.hbm_to_vmem [thread:$0]  %s4, 2048, %s250, [#allocation10], 128, 128, 8
        $region28: #{tpu_custom_call.1} parent=11 // pred_fallthru
          _
        // Predicated region
        $region29: #{tpu_custom_call.1} parent=11 // pred_check
          %p256 = pneg %p152
        $region30: #{tpu_custom_call.1} parent=11 // pred_check_branch
          %258 = sbr.rel (%p256) target = $region32
        $region31: #{tpu_custom_call.1} parent=11 // pred_region
          %s260 = ssub.s32 512, 512
          %261 = vsyncadd [#allocation10], %s260
          %s262 = sshll.u32 [#allocation11], 4
          %s263 = int_to_ptr.vmem [resolvable:$true] %s262
          %268 = dma.hbm_to_vmem [thread:$0]  %s5, 512, %s263, [#allocation10], 128, 128, 8
        $region32: #{tpu_custom_call.1} parent=11 // pred_fallthru
          _
        // Predicated region
        $region33: #{tpu_custom_call.1} parent=11 // pred_check
          %p269 = pneg %p173
        $region34: #{tpu_custom_call.1} parent=11 // pred_check_branch
          %271 = sbr.rel (%p269) target = $region36
        $region35: #{tpu_custom_call.1} parent=11 // pred_region
          _
        $region36: #{tpu_custom_call.1} parent=11 // pred_fallthru
          _
      $region12: #{tpu_custom_call.1} parent=5 // pred_fallthru
        _
      %p272 = scmp.lt.s32.totalorder %s21, 2
      // Predicated region
      $region37: #{tpu_custom_call.1} parent=5 // pred_check
        %p273 = pneg %p272
      $region38: #{tpu_custom_call.1} parent=5 // pred_check_branch
        %275 = sbr.rel (%p273) target = $region40
      $region39: #{tpu_custom_call.1} parent=5 // pred_region
        // Predicated region
        $region41: #{tpu_custom_call.1} parent=39 // pred_check
          %p276 = pneg %p41
        $region42: #{tpu_custom_call.1} parent=39 // pred_check_branch
          %278 = sbr.rel (%p276) target = $region44
        $region43: #{tpu_custom_call.1} parent=39 // pred_region
          %s279 = sand.u32 %s31, 1
          %s280 = scalar_lea.sflag [#allocation4], %s279
          %s281 = sand.u32 %s31, 1
          %s282 = smul.addr %s281, 128
          %s283 = scalar_lea.vmem [#allocation3], %s282
          %s284 = smul.u32 8, %s21
          %s286 = ssub.s32 2048, 2048
          %287 = vsyncadd %s280, %s286
          %s288 = smul.addr %s284, 2
          %s289 = smul.addr %s288, 128
          %s290 = scalar_lea.hbm %s0, %s289
          %s291 = sshll.u32 %s283, 4
          %s292 = int_to_ptr.vmem [resolvable:$true] %s291
          %297 = dma.hbm_to_vmem [thread:$0]  %s290, 2048, %s292, %s280, 128, 128, 8
        $region44: #{tpu_custom_call.1} parent=39 // pred_fallthru
          _
      $region40: #{tpu_custom_call.1} parent=5 // pred_fallthru
        _
      %p298 = scmp.le.s32.totalorder 1, %s21
      %p299 = scmp.lt.s32.totalorder %s21, 3
      %p300 = pnand %p298, %p299
      %p301 = pneg %p300
      // Predicated region
      $region45: #{tpu_custom_call.1} parent=5 // pred_check
        _
      $region46: #{tpu_custom_call.1} parent=5 // pred_check_branch
        %303 = sbr.rel (%p300) target = $region48
      $region47: #{tpu_custom_call.1} parent=5 // pred_region
        %s304 = ssub.s32 %s21, 1
        %s305 = sand.u32 %s34, 1
        %s306 = scalar_lea.sflag [#allocation4], %s305
        %s307 = sand.u32 %s34, 1
        %s308 = smul.addr %s307, 128
        %s309 = scalar_lea.vmem [#allocation3], %s308
        // Predicated region
        $region49: #{tpu_custom_call.1} parent=47 // pred_check
          %p310 = pneg %p47
        $region50: #{tpu_custom_call.1} parent=47 // pred_check_branch
          %312 = sbr.rel (%p310) target = $region52
        $region51: #{tpu_custom_call.1} parent=47 // pred_region
          %313 = dma.done %s306, 2048
        $region52: #{tpu_custom_call.1} parent=47 // pred_fallthru
          _
        // Predicated region
        $region53: #{tpu_custom_call.1} parent=47 // pred_check
          %p314 = pneg %p68
        $region54: #{tpu_custom_call.1} parent=47 // pred_check_branch
          %316 = sbr.rel (%p314) target = $region56
        $region55: #{tpu_custom_call.1} parent=47 // pred_region
          %317 = dma.done [#allocation7], 512
        $region56: #{tpu_custom_call.1} parent=47 // pred_fallthru
          _
        // Predicated region
        $region57: #{tpu_custom_call.1} parent=47 // pred_check
          %p318 = pneg %p110
        $region58: #{tpu_custom_call.1} parent=47 // pred_check_branch
          %320 = sbr.rel (%p318) target = $region60
        $region59: #{tpu_custom_call.1} parent=47 // pred_region
          %321 = dma.done [#allocation7], 1024
        $region60: #{tpu_custom_call.1} parent=47 // pred_fallthru
          _
        // Predicated region
        $region61: #{tpu_custom_call.1} parent=47 // pred_check
          %p322 = pneg %p131
        $region62: #{tpu_custom_call.1} parent=47 // pred_check_branch
          %324 = sbr.rel (%p322) target = $region64
        $region63: #{tpu_custom_call.1} parent=47 // pred_region
          %325 = dma.done [#allocation10], 2048
        $region64: #{tpu_custom_call.1} parent=47 // pred_fallthru
          _
        // Predicated region
        $region65: #{tpu_custom_call.1} parent=47 // pred_check
          %p326 = pneg %p152
        $region66: #{tpu_custom_call.1} parent=47 // pred_check_branch
          %328 = sbr.rel (%p326) target = $region68
        $region67: #{tpu_custom_call.1} parent=47 // pred_region
          %329 = dma.done [#allocation10], 512
        $region68: #{tpu_custom_call.1} parent=47 // pred_fallthru
          _
        %s330 = sand.u32 %s34, 1
        %s331 = scalar_lea.sflag [#allocation4], %s330
        %s332 = sand.u32 %s34, 1
        %s333 = smul.addr %s332, 128
        %s334 = scalar_lea.vmem [#allocation3], %s333
        %p335 = pneg %p47
        %p336 = pneg %p44
        %p337 = pneg %p68
        %p338 = pneg %p65
        %p339 = pneg %p89
        %p340 = pneg %p86
        %p341 = pneg %p110
        %p342 = pneg %p107
        %p343 = pneg %p131
        %p344 = pneg %p128
        %p345 = pneg %p152
        %p346 = pneg %p149
        %p347 = pneg %p173
        %p348 = pneg %p170
        %p349 = pneg %p199
        %p350 = pneg %p196
        %s351 = sand.u32 %s186, 1
        %s352 = scalar_lea.sflag [#allocation5], %s351
        %s353 = sand.u32 %s186, 1
        %s354 = smul.addr %s353, 128
        %s355 = scalar_lea.vmem [#allocation12], %s354
        %s356 = smul.u32 8, %s26
        %s357 = smul.u32 8, %s26
        %v358 = vld [vmem:[%s309] sm:$0xff]
        %v359 = vld [vmem:[%s309 + $0x8] sm:$0xff]
        %v360 = vld [vmem:[%s309 + $0x10] sm:$0xff]
        %v361 = vld [vmem:[%s309 + $0x18] sm:$0xff]
        %v362 = vld [vmem:[%s309 + $0x20] sm:$0xff]
        %v363 = vld [vmem:[%s309 + $0x28] sm:$0xff]
        %v364 = vld [vmem:[%s309 + $0x30] sm:$0xff]
        %v365 = vld [vmem:[%s309 + $0x38] sm:$0xff]
        %v366 = vld [vmem:[%s309 + $0x40] sm:$0xff]
        %v367 = vld [vmem:[%s309 + $0x48] sm:$0xff]
        %v368 = vld [vmem:[%s309 + $0x50] sm:$0xff]
        %v369 = vld [vmem:[%s309 + $0x58] sm:$0xff]
        %v370 = vld [vmem:[%s309 + $0x60] sm:$0xff]
        %v371 = vld [vmem:[%s309 + $0x68] sm:$0xff]
        %v372 = vld [vmem:[%s309 + $0x70] sm:$0xff]
        %v373 = vld [vmem:[%s309 + $0x78] sm:$0xff]
        %v374 = vld [vmem:[#allocation6] sm:$0xff]
        %v375 = vld [vmem:[#allocation6 + $0x8] sm:$0xff]
        %v376 = vld [vmem:[#allocation6 + $0x10] sm:$0xff]
        %v377 = vld [vmem:[#allocation6 + $0x18] sm:$0xff]
        %v378 = vld [vmem:[%s2] sm:$0x1]
        %v380 = vlaneseq
        %v381 = vshrl.u32 %v380, 7
        %v382 = vsub.s32 0, %v381
        %v383 = vrot.slane %v378, %v382
        %vm385 = vcmask 261120
        %v387 = vsel %vm385, %v358, 0
        %v390 = vsel %vm385, %v359, 0
        %v393 = vsel %vm385, %v360, 0
        %v396 = vsel %vm385, %v361, 0
        %v399 = vsel %vm385, %v362, 0
        %v402 = vsel %vm385, %v363, 0
        %v405 = vsel %vm385, %v364, 0
        %v408 = vsel %vm385, %v365, 0
        %v411 = vsel %vm385, %v366, 0
        %v414 = vsel %vm385, %v367, 0
        %v417 = vsel %vm385, %v368, 0
        %v420 = vsel %vm385, %v369, 0
        %v423 = vsel %vm385, %v370, 0
        %v426 = vsel %vm385, %v371, 0
        %v429 = vsel %vm385, %v372, 0
        %v432 = vsel %vm385, %v373, 0
        %434 = vmatprep.subr.mxu0 0.0
        %435 = vmatpush1.msra.mxu0 0.0
        %436 = vmatprep.subr.mxu0 0.0
        %437 = vmatpush1.msra.mxu0 0.0
        %438 = vmatprep.subr.mxu0 0.0
        %439 = vmatpush1.msra.mxu0 0.0
        %440 = vmatprep.subr.mxu0 0.0
        %441 = vmatpush1.msra.mxu0 0.0
        %442 = vmatprep.subr.mxu0 0.0
        %443 = vmatpush1.msra.mxu0 0.0
        %444 = vmatprep.subr.mxu0 0.0
        %445 = vmatpush1.msra.mxu0 0.0
        %446 = vmatprep.subr.mxu0 0.0
        %447 = vmatpush1.msra.mxu0 0.0
        %448 = vmatprep.subr.mxu0 0.0
        %449 = vmatpush1.msra.mxu0 0.0
        %450 = vmatprep.subr.mxu0 0.0
        %451 = vmatpush1.msra.mxu0 0.0
        %452 = vmatprep.subr.mxu0 0.0
        %453 = vmatpush1.msra.mxu0 0.0
        %454 = vmatprep.subr.mxu0 0.0
        %455 = vmatpush1.msra.mxu0 0.0
        %456 = vmatprep.subr.mxu0 0.0
        %457 = vmatpush1.msra.mxu0 0.0
        %458 = vmatprep.subr.mxu0 0.0
        %459 = vmatpush1.msra.mxu0 %v377
        %460 = vmatprep.subr.mxu0 0.0
        %461 = vmatpush1.msra.mxu0 %v376
        %462 = vmatprep.subr.mxu0 0.0
        %463 = vmatpush1.msra.mxu0 %v375
        %464 = vmatprep.subr.mxu0 0.0
        %465 = vmatpush1.msra.mxu0 %v374
        %466 = vmatprep.subr.mxu0 0.0
        %467 = vmatpush2.msra.mxu0 0.0
        %468 = vmatprep.subr.mxu0 0.0
        %469 = vmatpush2.msra.mxu0 0.0
        %470 = vmatprep.subr.mxu0 0.0
        %471 = vmatpush2.msra.mxu0 0.0
        %472 = vmatprep.subr.mxu0 0.0
        %473 = vmatpush2.msra.mxu0 0.0
        %474 = vmatprep.subr.mxu0 0.0
        %475 = vmatpush2.msra.mxu0 0.0
        %476 = vmatprep.subr.mxu0 0.0
        %477 = vmatpush2.msra.mxu0 0.0
        %478 = vmatprep.subr.mxu0 0.0
        %479 = vmatpush2.msra.mxu0 0.0
        %480 = vmatprep.subr.mxu0 0.0
        %481 = vmatpush2.msra.mxu0 0.0
        %482 = vmatprep.subr.mxu0 0.0
        %483 = vmatpush2.msra.mxu0 0.0
        %484 = vmatprep.subr.mxu0 0.0
        %485 = vmatpush2.msra.mxu0 0.0
        %486 = vmatprep.subr.mxu0 0.0
        %487 = vmatpush2.msra.mxu0 0.0
        %488 = vmatprep.subr.mxu0 0.0
        %489 = vmatpush2.msra.mxu0 0.0
        %490 = vmatprep.subr.mxu0 0.0
        %491 = vmatpush2.msra.mxu0 0.0
        %492 = vmatprep.subr.mxu0 0.0
        %493 = vmatpush2.msra.mxu0 0.0
        %494 = vmatprep.subr.mxu0 0.0
        %495 = vmatpush2.msra.mxu0 0.0
        %496 = vmatprep.subr.mxu0 0.0
        %497 = vmatpush2.msra.mxu0 0.0
        %498 = vmatprep.mubr.f32.mxu0 0.0
        %499 = vmatmul.mubr.f32.gmra.mxu0 %v387
        %v500 = vpop.f32.mrf.mxu0
        %v501 = vadd.f32 %v383, %v500
        %v502 = vpop.f32.mrf.mxu0
        %503 = vmatprep.mubr.f32.mxu0 0.0
        %504 = vmatmul.mubr.f32.gmra.mxu0 %v390
        %v505 = vpop.f32.mrf.mxu0
        %v506 = vadd.f32 %v383, %v505
        %v507 = vpop.f32.mrf.mxu0
        %508 = vmatprep.mubr.f32.mxu0 0.0
        %509 = vmatmul.mubr.f32.gmra.mxu0 %v393
        %v510 = vpop.f32.mrf.mxu0
        %v511 = vadd.f32 %v383, %v510
        %v512 = vpop.f32.mrf.mxu0
        %513 = vmatprep.mubr.f32.mxu0 0.0
        %514 = vmatmul.mubr.f32.gmra.mxu0 %v396
        %v515 = vpop.f32.mrf.mxu0
        %v516 = vadd.f32 %v383, %v515
        %v517 = vpop.f32.mrf.mxu0
        %518 = vmatprep.mubr.f32.mxu0 0.0
        %519 = vmatmul.mubr.f32.gmra.mxu0 %v399
        %v520 = vpop.f32.mrf.mxu0
        %v521 = vadd.f32 %v383, %v520
        %v522 = vpop.f32.mrf.mxu0
        %523 = vmatprep.mubr.f32.mxu0 0.0
        %524 = vmatmul.mubr.f32.gmra.mxu0 %v402
        %v525 = vpop.f32.mrf.mxu0
        %v526 = vadd.f32 %v383, %v525
        %v527 = vpop.f32.mrf.mxu0
        %528 = vmatprep.mubr.f32.mxu0 0.0
        %529 = vmatmul.mubr.f32.gmra.mxu0 %v405
        %v530 = vpop.f32.mrf.mxu0
        %v531 = vadd.f32 %v383, %v530
        %v532 = vpop.f32.mrf.mxu0
        %533 = vmatprep.mubr.f32.mxu0 0.0
        %534 = vmatmul.mubr.f32.gmra.mxu0 %v408
        %v535 = vpop.f32.mrf.mxu0
        %v536 = vadd.f32 %v383, %v535
        %v537 = vpop.f32.mrf.mxu0
        %538 = vmatprep.mubr.f32.mxu0 0.0
        %539 = vmatmul.mubr.f32.gmra.mxu0 %v411
        %v540 = vpop.f32.mrf.mxu0
        %v541 = vadd.f32 %v383, %v540
        %v542 = vpop.f32.mrf.mxu0
        %543 = vmatprep.mubr.f32.mxu0 0.0
        %544 = vmatmul.mubr.f32.gmra.mxu0 %v414
        %v545 = vpop.f32.mrf.mxu0
        %v546 = vadd.f32 %v383, %v545
        %v547 = vpop.f32.mrf.mxu0
        %548 = vmatprep.mubr.f32.mxu0 0.0
        %549 = vmatmul.mubr.f32.gmra.mxu0 %v417
        %v550 = vpop.f32.mrf.mxu0
        %v551 = vadd.f32 %v383, %v550
        %v552 = vpop.f32.mrf.mxu0
        %553 = vmatprep.mubr.f32.mxu0 0.0
        %554 = vmatmul.mubr.f32.gmra.mxu0 %v420
        %v555 = vpop.f32.mrf.mxu0
        %v556 = vadd.f32 %v383, %v555
        %v557 = vpop.f32.mrf.mxu0
        %558 = vmatprep.mubr.f32.mxu0 0.0
        %559 = vmatmul.mubr.f32.gmra.mxu0 %v423
        %v560 = vpop.f32.mrf.mxu0
        %v561 = vadd.f32 %v383, %v560
        %v562 = vpop.f32.mrf.mxu0
        %563 = vmatprep.mubr.f32.mxu0 0.0
        %564 = vmatmul.mubr.f32.gmra.mxu0 %v426
        %v565 = vpop.f32.mrf.mxu0
        %v566 = vadd.f32 %v383, %v565
        %v567 = vpop.f32.mrf.mxu0
        %568 = vmatprep.mubr.f32.mxu0 0.0
        %569 = vmatmul.mubr.f32.gmra.mxu0 %v429
        %v570 = vpop.f32.mrf.mxu0
        %v571 = vadd.f32 %v383, %v570
        %v572 = vpop.f32.mrf.mxu0
        %573 = vmatprep.mubr.f32.mxu0 0.0
        %574 = vmatmul.mubr.f32.gmra.mxu0 %v432
        %v575 = vpop.f32.mrf.mxu0
        %v576 = vadd.f32 %v383, %v575
        %v577 = vpop.f32.mrf.mxu0
        %578 = vdwg.mxu0
        %v579 = vld [vmem:[#allocation9] sm:$0xff]
        %v580 = vld [vmem:[#allocation9 + $0x8] sm:$0xff]
        %v581 = vld [vmem:[#allocation9 + $0x10] sm:$0xff]
        %v582 = vld [vmem:[#allocation9 + $0x18] sm:$0xff]
        %v583 = vld [vmem:[#allocation9 + $0x20] sm:$0xff]
        %v584 = vld [vmem:[#allocation9 + $0x28] sm:$0xff]
        %v585 = vld [vmem:[#allocation9 + $0x30] sm:$0xff]
        %v586 = vld [vmem:[#allocation9 + $0x38] sm:$0xff]
        %v587 = vld [vmem:[#allocation9 + $0x40] sm:$0xff]
        %v588 = vld [vmem:[#allocation9 + $0x48] sm:$0xff]
        %v589 = vld [vmem:[#allocation9 + $0x50] sm:$0xff]
        %v590 = vld [vmem:[#allocation9 + $0x58] sm:$0xff]
        %v591 = vld [vmem:[#allocation9 + $0x60] sm:$0xff]
        %v592 = vld [vmem:[#allocation9 + $0x68] sm:$0xff]
        %v593 = vld [vmem:[#allocation9 + $0x70] sm:$0xff]
        %v594 = vld [vmem:[#allocation9 + $0x78] sm:$0xff]
        %v595 = vld [vmem:[#allocation8] sm:$0xff]
        %v596 = vld [vmem:[#allocation8 + $0x8] sm:$0xff]
        %599 = vrot.lane.b32.xlu0 %v501, 96
        %v600 = vpop.permute.xlu0 %599
        %601 = vrot.lane.b32.xlu0 %v506, 96
        %v602 = vpop.permute.xlu0 %601
        %vm603 = vcmask 64512
        %v604 = vsel %vm603, %v501, 0
        %v606 = vsel %vm603, %v506, 0
        %v608 = vsel %vm603, %v600, 0
        %v610 = vsel %vm603, %v602, 0
        %612 = vmatprep.subr.mxu0 0.0
        %613 = vmatpush1.xpose.msra.mxu0 0.0
        %614 = vmatprep.subr.mxu0 0.0
        %615 = vmatpush1.xpose.msra.mxu0 0.0
        %616 = vmatprep.subr.mxu0 0.0
        %617 = vmatpush1.xpose.msra.mxu0 0.0
        %618 = vmatprep.subr.mxu0 0.0
        %619 = vmatpush1.xpose.msra.mxu0 0.0
        %620 = vmatprep.subr.mxu0 0.0
        %621 = vmatpush1.xpose.msra.mxu0 0.0
        %622 = vmatprep.subr.mxu0 0.0
        %623 = vmatpush1.xpose.msra.mxu0 0.0
        %624 = vmatprep.subr.mxu0 0.0
        %625 = vmatpush1.xpose.msra.mxu0 0.0
        %626 = vmatprep.subr.mxu0 0.0
        %627 = vmatpush1.xpose.msra.mxu0 0.0
        %628 = vmatprep.subr.mxu0 0.0
        %629 = vmatpush1.xpose.msra.mxu0 0.0
        %630 = vmatprep.subr.mxu0 0.0
        %631 = vmatpush1.xpose.msra.mxu0 0.0
        %632 = vmatprep.subr.mxu0 0.0
        %633 = vmatpush1.xpose.msra.mxu0 0.0
        %634 = vmatprep.subr.mxu0 0.0
        %635 = vmatpush1.xpose.msra.mxu0 0.0
        %636 = vmatprep.subr.mxu0 0.0
        %637 = vmatpush1.xpose.msra.mxu0 0.0
        %638 = vmatprep.subr.mxu0 0.0
        %639 = vmatpush1.xpose.msra.mxu0 0.0
        %640 = vmatprep.subr.mxu0 0.0
        %641 = vmatpush1.xpose.msra.mxu0 %v610
        %642 = vmatprep.subr.mxu0 0.0
        %643 = vmatpush1.xpose.msra.mxu0 %v608
        %644 = vmatprep.subr.mxu0 0.0
        %645 = vmatpush2.xpose.msra.mxu0 0.0
        %646 = vmatprep.subr.mxu0 0.0
        %647 = vmatpush2.xpose.msra.mxu0 0.0
        %648 = vmatprep.subr.mxu0 0.0
        %649 = vmatpush2.xpose.msra.mxu0 0.0
        %650 = vmatprep.subr.mxu0 0.0
        %651 = vmatpush2.xpose.msra.mxu0 0.0
        %652 = vmatprep.subr.mxu0 0.0
        %653 = vmatpush2.xpose.msra.mxu0 0.0
        %654 = vmatprep.subr.mxu0 0.0
        %655 = vmatpush2.xpose.msra.mxu0 0.0
        %656 = vmatprep.subr.mxu0 0.0
        %657 = vmatpush2.xpose.msra.mxu0 0.0
        %658 = vmatprep.subr.mxu0 0.0
        %659 = vmatpush2.xpose.msra.mxu0 0.0
        %660 = vmatprep.subr.mxu0 0.0
        %661 = vmatpush2.xpose.msra.mxu0 0.0
        %662 = vmatprep.subr.mxu0 0.0
        %663 = vmatpush2.xpose.msra.mxu0 0.0
        %664 = vmatprep.subr.mxu0 0.0
        %665 = vmatpush2.xpose.msra.mxu0 0.0
        %666 = vmatprep.subr.mxu0 0.0
        %667 = vmatpush2.xpose.msra.mxu0 0.0
        %668 = vmatprep.subr.mxu0 0.0
        %669 = vmatpush2.xpose.msra.mxu0 0.0
        %670 = vmatprep.subr.mxu0 0.0
        %671 = vmatpush2.xpose.msra.mxu0 0.0
        %672 = vmatprep.subr.mxu0 0.0
        %673 = vmatpush2.xpose.msra.mxu0 0.0
        %674 = vmatprep.subr.mxu0 0.0
        %675 = vmatpush2.xpose.msra.mxu0 0.0
        %676 = vmatprep.mubr.f32.mxu0 0.0
        %677 = vmatmul.mubr.f32.gmra.mxu0 %v604
        %v678 = vpop.f32.mrf.mxu0
        %v679 = vadd.f32 %v595, %v678
        %v680 = vpop.f32.mrf.mxu0
        %681 = vmatprep.mubr.f32.mxu0 0.0
        %682 = vmatmul.mubr.f32.gmra.mxu0 %v606
        %v683 = vpop.f32.mrf.mxu0
        %v684 = vadd.f32 %v596, %v683
        %v685 = vpop.f32.mrf.mxu0
        %686 = vdwg.mxu0
        %689 = vrot.lane.b32.xlu0 %v511, 96
        %v690 = vpop.permute.xlu0 %689
        %691 = vrot.lane.b32.xlu0 %v516, 96
        %v692 = vpop.permute.xlu0 %691
        %v693 = vsel %vm603, %v511, 0
        %v695 = vsel %vm603, %v516, 0
        %v697 = vsel %vm603, %v690, 0
        %v699 = vsel %vm603, %v692, 0
        %701 = vmatprep.subr.mxu0 0.0
        %702 = vmatpush1.xpose.msra.mxu0 0.0
        %703 = vmatprep.subr.mxu0 0.0
        %704 = vmatpush1.xpose.msra.mxu0 0.0
        %705 = vmatprep.subr.mxu0 0.0
        %706 = vmatpush1.xpose.msra.mxu0 0.0
        %707 = vmatprep.subr.mxu0 0.0
        %708 = vmatpush1.xpose.msra.mxu0 0.0
        %709 = vmatprep.subr.mxu0 0.0
        %710 = vmatpush1.xpose.msra.mxu0 0.0
        %711 = vmatprep.subr.mxu0 0.0
        %712 = vmatpush1.xpose.msra.mxu0 0.0
        %713 = vmatprep.subr.mxu0 0.0
        %714 = vmatpush1.xpose.msra.mxu0 0.0
        %715 = vmatprep.subr.mxu0 0.0
        %716 = vmatpush1.xpose.msra.mxu0 0.0
        %717 = vmatprep.subr.mxu0 0.0
        %718 = vmatpush1.xpose.msra.mxu0 0.0
        %719 = vmatprep.subr.mxu0 0.0
        %720 = vmatpush1.xpose.msra.mxu0 0.0
        %721 = vmatprep.subr.mxu0 0.0
        %722 = vmatpush1.xpose.msra.mxu0 0.0
        %723 = vmatprep.subr.mxu0 0.0
        %724 = vmatpush1.xpose.msra.mxu0 0.0
        %725 = vmatprep.subr.mxu0 0.0
        %726 = vmatpush1.xpose.msra.mxu0 0.0
        %727 = vmatprep.subr.mxu0 0.0
        %728 = vmatpush1.xpose.msra.mxu0 0.0
        %729 = vmatprep.subr.mxu0 0.0
        %730 = vmatpush1.xpose.msra.mxu0 %v699
        %731 = vmatprep.subr.mxu0 0.0
        %732 = vmatpush1.xpose.msra.mxu0 %v697
        %733 = vmatprep.subr.mxu0 0.0
        %734 = vmatpush2.xpose.msra.mxu0 0.0
        %735 = vmatprep.subr.mxu0 0.0
        %736 = vmatpush2.xpose.msra.mxu0 0.0
        %737 = vmatprep.subr.mxu0 0.0
        %738 = vmatpush2.xpose.msra.mxu0 0.0
        %739 = vmatprep.subr.mxu0 0.0
        %740 = vmatpush2.xpose.msra.mxu0 0.0
        %741 = vmatprep.subr.mxu0 0.0
        %742 = vmatpush2.xpose.msra.mxu0 0.0
        %743 = vmatprep.subr.mxu0 0.0
        %744 = vmatpush2.xpose.msra.mxu0 0.0
        %745 = vmatprep.subr.mxu0 0.0
        %746 = vmatpush2.xpose.msra.mxu0 0.0
        %747 = vmatprep.subr.mxu0 0.0
        %748 = vmatpush2.xpose.msra.mxu0 0.0
        %749 = vmatprep.subr.mxu0 0.0
        %750 = vmatpush2.xpose.msra.mxu0 0.0
        %751 = vmatprep.subr.mxu0 0.0
        %752 = vmatpush2.xpose.msra.mxu0 0.0
        %753 = vmatprep.subr.mxu0 0.0
        %754 = vmatpush2.xpose.msra.mxu0 0.0
        %755 = vmatprep.subr.mxu0 0.0
        %756 = vmatpush2.xpose.msra.mxu0 0.0
        %757 = vmatprep.subr.mxu0 0.0
        %758 = vmatpush2.xpose.msra.mxu0 0.0
        %759 = vmatprep.subr.mxu0 0.0
        %760 = vmatpush2.xpose.msra.mxu0 0.0
        %761 = vmatprep.subr.mxu0 0.0
        %762 = vmatpush2.xpose.msra.mxu0 0.0
        %763 = vmatprep.subr.mxu0 0.0
        %764 = vmatpush2.xpose.msra.mxu0 0.0
        %765 = vmatprep.mubr.f32.mxu0 0.0
        %766 = vmatmul.mubr.f32.gmra.mxu0 %v693
        %v767 = vpop.f32.mrf.mxu0
        %v768 = vadd.f32 %v595, %v767
        %v769 = vpop.f32.mrf.mxu0
        %770 = vmatprep.mubr.f32.mxu0 0.0
        %771 = vmatmul.mubr.f32.gmra.mxu0 %v695
        %v772 = vpop.f32.mrf.mxu0
        %v773 = vadd.f32 %v596, %v772
        %v774 = vpop.f32.mrf.mxu0
        %775 = vdwg.mxu0
        %778 = vrot.lane.b32.xlu0 %v521, 96
        %v779 = vpop.permute.xlu0 %778
        %780 = vrot.lane.b32.xlu0 %v526, 96
        %v781 = vpop.permute.xlu0 %780
        %v782 = vsel %vm603, %v521, 0
        %v784 = vsel %vm603, %v526, 0
        %v786 = vsel %vm603, %v779, 0
        %v788 = vsel %vm603, %v781, 0
        %790 = vmatprep.subr.mxu0 0.0
        %791 = vmatpush1.xpose.msra.mxu0 0.0
        %792 = vmatprep.subr.mxu0 0.0
        %793 = vmatpush1.xpose.msra.mxu0 0.0
        %794 = vmatprep.subr.mxu0 0.0
        %795 = vmatpush1.xpose.msra.mxu0 0.0
        %796 = vmatprep.subr.mxu0 0.0
        %797 = vmatpush1.xpose.msra.mxu0 0.0
        %798 = vmatprep.subr.mxu0 0.0
        %799 = vmatpush1.xpose.msra.mxu0 0.0
        %800 = vmatprep.subr.mxu0 0.0
        %801 = vmatpush1.xpose.msra.mxu0 0.0
        %802 = vmatprep.subr.mxu0 0.0
        %803 = vmatpush1.xpose.msra.mxu0 0.0
        %804 = vmatprep.subr.mxu0 0.0
        %805 = vmatpush1.xpose.msra.mxu0 0.0
        %806 = vmatprep.subr.mxu0 0.0
        %807 = vmatpush1.xpose.msra.mxu0 0.0
        %808 = vmatprep.subr.mxu0 0.0
        %809 = vmatpush1.xpose.msra.mxu0 0.0
        %810 = vmatprep.subr.mxu0 0.0
        %811 = vmatpush1.xpose.msra.mxu0 0.0
        %812 = vmatprep.subr.mxu0 0.0
        %813 = vmatpush1.xpose.msra.mxu0 0.0
        %814 = vmatprep.subr.mxu0 0.0
        %815 = vmatpush1.xpose.msra.mxu0 0.0
        %816 = vmatprep.subr.mxu0 0.0
        %817 = vmatpush1.xpose.msra.mxu0 0.0
        %818 = vmatprep.subr.mxu0 0.0
        %819 = vmatpush1.xpose.msra.mxu0 %v788
        %820 = vmatprep.subr.mxu0 0.0
        %821 = vmatpush1.xpose.msra.mxu0 %v786
        %822 = vmatprep.subr.mxu0 0.0
        %823 = vmatpush2.xpose.msra.mxu0 0.0
        %824 = vmatprep.subr.mxu0 0.0
        %825 = vmatpush2.xpose.msra.mxu0 0.0
        %826 = vmatprep.subr.mxu0 0.0
        %827 = vmatpush2.xpose.msra.mxu0 0.0
        %828 = vmatprep.subr.mxu0 0.0
        %829 = vmatpush2.xpose.msra.mxu0 0.0
        %830 = vmatprep.subr.mxu0 0.0
        %831 = vmatpush2.xpose.msra.mxu0 0.0
        %832 = vmatprep.subr.mxu0 0.0
        %833 = vmatpush2.xpose.msra.mxu0 0.0
        %834 = vmatprep.subr.mxu0 0.0
        %835 = vmatpush2.xpose.msra.mxu0 0.0
        %836 = vmatprep.subr.mxu0 0.0
        %837 = vmatpush2.xpose.msra.mxu0 0.0
        %838 = vmatprep.subr.mxu0 0.0
        %839 = vmatpush2.xpose.msra.mxu0 0.0
        %840 = vmatprep.subr.mxu0 0.0
        %841 = vmatpush2.xpose.msra.mxu0 0.0
        %842 = vmatprep.subr.mxu0 0.0
        %843 = vmatpush2.xpose.msra.mxu0 0.0
        %844 = vmatprep.subr.mxu0 0.0
        %845 = vmatpush2.xpose.msra.mxu0 0.0
        %846 = vmatprep.subr.mxu0 0.0
        %847 = vmatpush2.xpose.msra.mxu0 0.0
        %848 = vmatprep.subr.mxu0 0.0
        %849 = vmatpush2.xpose.msra.mxu0 0.0
        %850 = vmatprep.subr.mxu0 0.0
        %851 = vmatpush2.xpose.msra.mxu0 0.0
        %852 = vmatprep.subr.mxu0 0.0
        %853 = vmatpush2.xpose.msra.mxu0 0.0
        %854 = vmatprep.mubr.f32.mxu0 0.0
        %855 = vmatmul.mubr.f32.gmra.mxu0 %v782
        %v856 = vpop.f32.mrf.mxu0
        %v857 = vadd.f32 %v595, %v856
        %v858 = vpop.f32.mrf.mxu0
        %859 = vmatprep.mubr.f32.mxu0 0.0
        %860 = vmatmul.mubr.f32.gmra.mxu0 %v784
        %v861 = vpop.f32.mrf.mxu0
        %v862 = vadd.f32 %v596, %v861
        %v863 = vpop.f32.mrf.mxu0
        %864 = vdwg.mxu0
        %867 = vrot.lane.b32.xlu0 %v531, 96
        %v868 = vpop.permute.xlu0 %867
        %869 = vrot.lane.b32.xlu0 %v536, 96
        %v870 = vpop.permute.xlu0 %869
        %v871 = vsel %vm603, %v531, 0
        %v873 = vsel %vm603, %v536, 0
        %v875 = vsel %vm603, %v868, 0
        %v877 = vsel %vm603, %v870, 0
        %879 = vmatprep.subr.mxu0 0.0
        %880 = vmatpush1.xpose.msra.mxu0 0.0
        %881 = vmatprep.subr.mxu0 0.0
        %882 = vmatpush1.xpose.msra.mxu0 0.0
        %883 = vmatprep.subr.mxu0 0.0
        %884 = vmatpush1.xpose.msra.mxu0 0.0
        %885 = vmatprep.subr.mxu0 0.0
        %886 = vmatpush1.xpose.msra.mxu0 0.0
        %887 = vmatprep.subr.mxu0 0.0
        %888 = vmatpush1.xpose.msra.mxu0 0.0
        %889 = vmatprep.subr.mxu0 0.0
        %890 = vmatpush1.xpose.msra.mxu0 0.0
        %891 = vmatprep.subr.mxu0 0.0
        %892 = vmatpush1.xpose.msra.mxu0 0.0
        %893 = vmatprep.subr.mxu0 0.0
        %894 = vmatpush1.xpose.msra.mxu0 0.0
        %895 = vmatprep.subr.mxu0 0.0
        %896 = vmatpush1.xpose.msra.mxu0 0.0
        %897 = vmatprep.subr.mxu0 0.0
        %898 = vmatpush1.xpose.msra.mxu0 0.0
        %899 = vmatprep.subr.mxu0 0.0
        %900 = vmatpush1.xpose.msra.mxu0 0.0
        %901 = vmatprep.subr.mxu0 0.0
        %902 = vmatpush1.xpose.msra.mxu0 0.0
        %903 = vmatprep.subr.mxu0 0.0
        %904 = vmatpush1.xpose.msra.mxu0 0.0
        %905 = vmatprep.subr.mxu0 0.0
        %906 = vmatpush1.xpose.msra.mxu0 0.0
        %907 = vmatprep.subr.mxu0 0.0
        %908 = vmatpush1.xpose.msra.mxu0 %v877
        %909 = vmatprep.subr.mxu0 0.0
        %910 = vmatpush1.xpose.msra.mxu0 %v875
        %911 = vmatprep.subr.mxu0 0.0
        %912 = vmatpush2.xpose.msra.mxu0 0.0
        %913 = vmatprep.subr.mxu0 0.0
        %914 = vmatpush2.xpose.msra.mxu0 0.0
        %915 = vmatprep.subr.mxu0 0.0
        %916 = vmatpush2.xpose.msra.mxu0 0.0
        %917 = vmatprep.subr.mxu0 0.0
        %918 = vmatpush2.xpose.msra.mxu0 0.0
        %919 = vmatprep.subr.mxu0 0.0
        %920 = vmatpush2.xpose.msra.mxu0 0.0
        %921 = vmatprep.subr.mxu0 0.0
        %922 = vmatpush2.xpose.msra.mxu0 0.0
        %923 = vmatprep.subr.mxu0 0.0
        %924 = vmatpush2.xpose.msra.mxu0 0.0
        %925 = vmatprep.subr.mxu0 0.0
        %926 = vmatpush2.xpose.msra.mxu0 0.0
        %927 = vmatprep.subr.mxu0 0.0
        %928 = vmatpush2.xpose.msra.mxu0 0.0
        %929 = vmatprep.subr.mxu0 0.0
        %930 = vmatpush2.xpose.msra.mxu0 0.0
        %931 = vmatprep.subr.mxu0 0.0
        %932 = vmatpush2.xpose.msra.mxu0 0.0
        %933 = vmatprep.subr.mxu0 0.0
        %934 = vmatpush2.xpose.msra.mxu0 0.0
        %935 = vmatprep.subr.mxu0 0.0
        %936 = vmatpush2.xpose.msra.mxu0 0.0
        %937 = vmatprep.subr.mxu0 0.0
        %938 = vmatpush2.xpose.msra.mxu0 0.0
        %939 = vmatprep.subr.mxu0 0.0
        %940 = vmatpush2.xpose.msra.mxu0 0.0
        %941 = vmatprep.subr.mxu0 0.0
        %942 = vmatpush2.xpose.msra.mxu0 0.0
        %943 = vmatprep.mubr.f32.mxu0 0.0
        %944 = vmatmul.mubr.f32.gmra.mxu0 %v871
        %v945 = vpop.f32.mrf.mxu0
        %v946 = vadd.f32 %v595, %v945
        %v947 = vpop.f32.mrf.mxu0
        %948 = vmatprep.mubr.f32.mxu0 0.0
        %949 = vmatmul.mubr.f32.gmra.mxu0 %v873
        %v950 = vpop.f32.mrf.mxu0
        %v951 = vadd.f32 %v596, %v950
        %v952 = vpop.f32.mrf.mxu0
        %953 = vdwg.mxu0
        %956 = vrot.lane.b32.xlu0 %v541, 96
        %v957 = vpop.permute.xlu0 %956
        %958 = vrot.lane.b32.xlu0 %v546, 96
        %v959 = vpop.permute.xlu0 %958
        %v960 = vsel %vm603, %v541, 0
        %v962 = vsel %vm603, %v546, 0
        %v964 = vsel %vm603, %v957, 0
        %v966 = vsel %vm603, %v959, 0
        %968 = vmatprep.subr.mxu0 0.0
        %969 = vmatpush1.xpose.msra.mxu0 0.0
        %970 = vmatprep.subr.mxu0 0.0
        %971 = vmatpush1.xpose.msra.mxu0 0.0
        %972 = vmatprep.subr.mxu0 0.0
        %973 = vmatpush1.xpose.msra.mxu0 0.0
        %974 = vmatprep.subr.mxu0 0.0
        %975 = vmatpush1.xpose.msra.mxu0 0.0
        %976 = vmatprep.subr.mxu0 0.0
        %977 = vmatpush1.xpose.msra.mxu0 0.0
        %978 = vmatprep.subr.mxu0 0.0
        %979 = vmatpush1.xpose.msra.mxu0 0.0
        %980 = vmatprep.subr.mxu0 0.0
        %981 = vmatpush1.xpose.msra.mxu0 0.0
        %982 = vmatprep.subr.mxu0 0.0
        %983 = vmatpush1.xpose.msra.mxu0 0.0
        %984 = vmatprep.subr.mxu0 0.0
        %985 = vmatpush1.xpose.msra.mxu0 0.0
        %986 = vmatprep.subr.mxu0 0.0
        %987 = vmatpush1.xpose.msra.mxu0 0.0
        %988 = vmatprep.subr.mxu0 0.0
        %989 = vmatpush1.xpose.msra.mxu0 0.0
        %990 = vmatprep.subr.mxu0 0.0
        %991 = vmatpush1.xpose.msra.mxu0 0.0
        %992 = vmatprep.subr.mxu0 0.0
        %993 = vmatpush1.xpose.msra.mxu0 0.0
        %994 = vmatprep.subr.mxu0 0.0
        %995 = vmatpush1.xpose.msra.mxu0 0.0
        %996 = vmatprep.subr.mxu0 0.0
        %997 = vmatpush1.xpose.msra.mxu0 %v966
        %998 = vmatprep.subr.mxu0 0.0
        %999 = vmatpush1.xpose.msra.mxu0 %v964
        %1000 = vmatprep.subr.mxu0 0.0
        %1001 = vmatpush2.xpose.msra.mxu0 0.0
        %1002 = vmatprep.subr.mxu0 0.0
        %1003 = vmatpush2.xpose.msra.mxu0 0.0
        %1004 = vmatprep.subr.mxu0 0.0
        %1005 = vmatpush2.xpose.msra.mxu0 0.0
        %1006 = vmatprep.subr.mxu0 0.0
        %1007 = vmatpush2.xpose.msra.mxu0 0.0
        %1008 = vmatprep.subr.mxu0 0.0
        %1009 = vmatpush2.xpose.msra.mxu0 0.0
        %1010 = vmatprep.subr.mxu0 0.0
        %1011 = vmatpush2.xpose.msra.mxu0 0.0
        %1012 = vmatprep.subr.mxu0 0.0
        %1013 = vmatpush2.xpose.msra.mxu0 0.0
        %1014 = vmatprep.subr.mxu0 0.0
        %1015 = vmatpush2.xpose.msra.mxu0 0.0
        %1016 = vmatprep.subr.mxu0 0.0
        %1017 = vmatpush2.xpose.msra.mxu0 0.0
        %1018 = vmatprep.subr.mxu0 0.0
        %1019 = vmatpush2.xpose.msra.mxu0 0.0
        %1020 = vmatprep.subr.mxu0 0.0
        %1021 = vmatpush2.xpose.msra.mxu0 0.0
        %1022 = vmatprep.subr.mxu0 0.0
        %1023 = vmatpush2.xpose.msra.mxu0 0.0
        %1024 = vmatprep.subr.mxu0 0.0
        %1025 = vmatpush2.xpose.msra.mxu0 0.0
        %1026 = vmatprep.subr.mxu0 0.0
        %1027 = vmatpush2.xpose.msra.mxu0 0.0
        %1028 = vmatprep.subr.mxu0 0.0
        %1029 = vmatpush2.xpose.msra.mxu0 0.0
        %1030 = vmatprep.subr.mxu0 0.0
        %1031 = vmatpush2.xpose.msra.mxu0 0.0
        %1032 = vmatprep.mubr.f32.mxu0 0.0
        %1033 = vmatmul.mubr.f32.gmra.mxu0 %v960
        %v1034 = vpop.f32.mrf.mxu0
        %v1035 = vadd.f32 %v595, %v1034
        %v1036 = vpop.f32.mrf.mxu0
        %1037 = vmatprep.mubr.f32.mxu0 0.0
        %1038 = vmatmul.mubr.f32.gmra.mxu0 %v962
        %v1039 = vpop.f32.mrf.mxu0
        %v1040 = vadd.f32 %v596, %v1039
        %v1041 = vpop.f32.mrf.mxu0
        %1042 = vdwg.mxu0
        %1045 = vrot.lane.b32.xlu0 %v551, 96
        %v1046 = vpop.permute.xlu0 %1045
        %1047 = vrot.lane.b32.xlu0 %v556, 96
        %v1048 = vpop.permute.xlu0 %1047
        %v1049 = vsel %vm603, %v551, 0
        %v1051 = vsel %vm603, %v556, 0
        %v1053 = vsel %vm603, %v1046, 0
        %v1055 = vsel %vm603, %v1048, 0
        %1057 = vmatprep.subr.mxu0 0.0
        %1058 = vmatpush1.xpose.msra.mxu0 0.0
        %1059 = vmatprep.subr.mxu0 0.0
        %1060 = vmatpush1.xpose.msra.mxu0 0.0
        %1061 = vmatprep.subr.mxu0 0.0
        %1062 = vmatpush1.xpose.msra.mxu0 0.0
        %1063 = vmatprep.subr.mxu0 0.0
        %1064 = vmatpush1.xpose.msra.mxu0 0.0
        %1065 = vmatprep.subr.mxu0 0.0
        %1066 = vmatpush1.xpose.msra.mxu0 0.0
        %1067 = vmatprep.subr.mxu0 0.0
        %1068 = vmatpush1.xpose.msra.mxu0 0.0
        %1069 = vmatprep.subr.mxu0 0.0
        %1070 = vmatpush1.xpose.msra.mxu0 0.0
        %1071 = vmatprep.subr.mxu0 0.0
        %1072 = vmatpush1.xpose.msra.mxu0 0.0
        %1073 = vmatprep.subr.mxu0 0.0
        %1074 = vmatpush1.xpose.msra.mxu0 0.0
        %1075 = vmatprep.subr.mxu0 0.0
        %1076 = vmatpush1.xpose.msra.mxu0 0.0
        %1077 = vmatprep.subr.mxu0 0.0
        %1078 = vmatpush1.xpose.msra.mxu0 0.0
        %1079 = vmatprep.subr.mxu0 0.0
        %1080 = vmatpush1.xpose.msra.mxu0 0.0
        %1081 = vmatprep.subr.mxu0 0.0
        %1082 = vmatpush1.xpose.msra.mxu0 0.0
        %1083 = vmatprep.subr.mxu0 0.0
        %1084 = vmatpush1.xpose.msra.mxu0 0.0
        %1085 = vmatprep.subr.mxu0 0.0
        %1086 = vmatpush1.xpose.msra.mxu0 %v1055
        %1087 = vmatprep.subr.mxu0 0.0
        %1088 = vmatpush1.xpose.msra.mxu0 %v1053
        %1089 = vmatprep.subr.mxu0 0.0
        %1090 = vmatpush2.xpose.msra.mxu0 0.0
        %1091 = vmatprep.subr.mxu0 0.0
        %1092 = vmatpush2.xpose.msra.mxu0 0.0
        %1093 = vmatprep.subr.mxu0 0.0
        %1094 = vmatpush2.xpose.msra.mxu0 0.0
        %1095 = vmatprep.subr.mxu0 0.0
        %1096 = vmatpush2.xpose.msra.mxu0 0.0
        %1097 = vmatprep.subr.mxu0 0.0
        %1098 = vmatpush2.xpose.msra.mxu0 0.0
        %1099 = vmatprep.subr.mxu0 0.0
        %1100 = vmatpush2.xpose.msra.mxu0 0.0
        %1101 = vmatprep.subr.mxu0 0.0
        %1102 = vmatpush2.xpose.msra.mxu0 0.0
        %1103 = vmatprep.subr.mxu0 0.0
        %1104 = vmatpush2.xpose.msra.mxu0 0.0
        %1105 = vmatprep.subr.mxu0 0.0
        %1106 = vmatpush2.xpose.msra.mxu0 0.0
        %1107 = vmatprep.subr.mxu0 0.0
        %1108 = vmatpush2.xpose.msra.mxu0 0.0
        %1109 = vmatprep.subr.mxu0 0.0
        %1110 = vmatpush2.xpose.msra.mxu0 0.0
        %1111 = vmatprep.subr.mxu0 0.0
        %1112 = vmatpush2.xpose.msra.mxu0 0.0
        %1113 = vmatprep.subr.mxu0 0.0
        %1114 = vmatpush2.xpose.msra.mxu0 0.0
        %1115 = vmatprep.subr.mxu0 0.0
        %1116 = vmatpush2.xpose.msra.mxu0 0.0
        %1117 = vmatprep.subr.mxu0 0.0
        %1118 = vmatpush2.xpose.msra.mxu0 0.0
        %1119 = vmatprep.subr.mxu0 0.0
        %1120 = vmatpush2.xpose.msra.mxu0 0.0
        %1121 = vmatprep.mubr.f32.mxu0 0.0
        %1122 = vmatmul.mubr.f32.gmra.mxu0 %v1049
        %v1123 = vpop.f32.mrf.mxu0
        %v1124 = vadd.f32 %v595, %v1123
        %v1125 = vpop.f32.mrf.mxu0
        %1126 = vmatprep.mubr.f32.mxu0 0.0
        %1127 = vmatmul.mubr.f32.gmra.mxu0 %v1051
        %v1128 = vpop.f32.mrf.mxu0
        %v1129 = vadd.f32 %v596, %v1128
        %v1130 = vpop.f32.mrf.mxu0
        %1131 = vdwg.mxu0
        %1134 = vrot.lane.b32.xlu0 %v561, 96
        %v1135 = vpop.permute.xlu0 %1134
        %1136 = vrot.lane.b32.xlu0 %v566, 96
        %v1137 = vpop.permute.xlu0 %1136
        %v1138 = vsel %vm603, %v561, 0
        %v1140 = vsel %vm603, %v566, 0
        %v1142 = vsel %vm603, %v1135, 0
        %v1144 = vsel %vm603, %v1137, 0
        %1146 = vmatprep.subr.mxu0 0.0
        %1147 = vmatpush1.xpose.msra.mxu0 0.0
        %1148 = vmatprep.subr.mxu0 0.0
        %1149 = vmatpush1.xpose.msra.mxu0 0.0
        %1150 = vmatprep.subr.mxu0 0.0
        %1151 = vmatpush1.xpose.msra.mxu0 0.0
        %1152 = vmatprep.subr.mxu0 0.0
        %1153 = vmatpush1.xpose.msra.mxu0 0.0
        %1154 = vmatprep.subr.mxu0 0.0
        %1155 = vmatpush1.xpose.msra.mxu0 0.0
        %1156 = vmatprep.subr.mxu0 0.0
        %1157 = vmatpush1.xpose.msra.mxu0 0.0
        %1158 = vmatprep.subr.mxu0 0.0
        %1159 = vmatpush1.xpose.msra.mxu0 0.0
        %1160 = vmatprep.subr.mxu0 0.0
        %1161 = vmatpush1.xpose.msra.mxu0 0.0
        %1162 = vmatprep.subr.mxu0 0.0
        %1163 = vmatpush1.xpose.msra.mxu0 0.0
        %1164 = vmatprep.subr.mxu0 0.0
        %1165 = vmatpush1.xpose.msra.mxu0 0.0
        %1166 = vmatprep.subr.mxu0 0.0
        %1167 = vmatpush1.xpose.msra.mxu0 0.0
        %1168 = vmatprep.subr.mxu0 0.0
        %1169 = vmatpush1.xpose.msra.mxu0 0.0
        %1170 = vmatprep.subr.mxu0 0.0
        %1171 = vmatpush1.xpose.msra.mxu0 0.0
        %1172 = vmatprep.subr.mxu0 0.0
        %1173 = vmatpush1.xpose.msra.mxu0 0.0
        %1174 = vmatprep.subr.mxu0 0.0
        %1175 = vmatpush1.xpose.msra.mxu0 %v1144
        %1176 = vmatprep.subr.mxu0 0.0
        %1177 = vmatpush1.xpose.msra.mxu0 %v1142
        %1178 = vmatprep.subr.mxu0 0.0
        %1179 = vmatpush2.xpose.msra.mxu0 0.0
        %1180 = vmatprep.subr.mxu0 0.0
        %1181 = vmatpush2.xpose.msra.mxu0 0.0
        %1182 = vmatprep.subr.mxu0 0.0
        %1183 = vmatpush2.xpose.msra.mxu0 0.0
        %1184 = vmatprep.subr.mxu0 0.0
        %1185 = vmatpush2.xpose.msra.mxu0 0.0
        %1186 = vmatprep.subr.mxu0 0.0
        %1187 = vmatpush2.xpose.msra.mxu0 0.0
        %1188 = vmatprep.subr.mxu0 0.0
        %1189 = vmatpush2.xpose.msra.mxu0 0.0
        %1190 = vmatprep.subr.mxu0 0.0
        %1191 = vmatpush2.xpose.msra.mxu0 0.0
        %1192 = vmatprep.subr.mxu0 0.0
        %1193 = vmatpush2.xpose.msra.mxu0 0.0
        %1194 = vmatprep.subr.mxu0 0.0
        %1195 = vmatpush2.xpose.msra.mxu0 0.0
        %1196 = vmatprep.subr.mxu0 0.0
        %1197 = vmatpush2.xpose.msra.mxu0 0.0
        %1198 = vmatprep.subr.mxu0 0.0
        %1199 = vmatpush2.xpose.msra.mxu0 0.0
        %1200 = vmatprep.subr.mxu0 0.0
        %1201 = vmatpush2.xpose.msra.mxu0 0.0
        %1202 = vmatprep.subr.mxu0 0.0
        %1203 = vmatpush2.xpose.msra.mxu0 0.0
        %1204 = vmatprep.subr.mxu0 0.0
        %1205 = vmatpush2.xpose.msra.mxu0 0.0
        %1206 = vmatprep.subr.mxu0 0.0
        %1207 = vmatpush2.xpose.msra.mxu0 0.0
        %1208 = vmatprep.subr.mxu0 0.0
        %1209 = vmatpush2.xpose.msra.mxu0 0.0
        %1210 = vmatprep.mubr.f32.mxu0 0.0
        %1211 = vmatmul.mubr.f32.gmra.mxu0 %v1138
        %v1212 = vpop.f32.mrf.mxu0
        %v1213 = vadd.f32 %v595, %v1212
        %v1214 = vpop.f32.mrf.mxu0
        %1215 = vmatprep.mubr.f32.mxu0 0.0
        %1216 = vmatmul.mubr.f32.gmra.mxu0 %v1140
        %v1217 = vpop.f32.mrf.mxu0
        %v1218 = vadd.f32 %v596, %v1217
        %v1219 = vpop.f32.mrf.mxu0
        %1220 = vdwg.mxu0
        %1223 = vrot.lane.b32.xlu0 %v571, 96
        %v1224 = vpop.permute.xlu0 %1223
        %1225 = vrot.lane.b32.xlu0 %v576, 96
        %v1226 = vpop.permute.xlu0 %1225
        %v1227 = vsel %vm603, %v571, 0
        %v1229 = vsel %vm603, %v576, 0
        %v1231 = vsel %vm603, %v1224, 0
        %v1233 = vsel %vm603, %v1226, 0
        %1235 = vmatprep.subr.mxu0 0.0
        %1236 = vmatpush1.xpose.msra.mxu0 0.0
        %1237 = vmatprep.subr.mxu0 0.0
        %1238 = vmatpush1.xpose.msra.mxu0 0.0
        %1239 = vmatprep.subr.mxu0 0.0
        %1240 = vmatpush1.xpose.msra.mxu0 0.0
        %1241 = vmatprep.subr.mxu0 0.0
        %1242 = vmatpush1.xpose.msra.mxu0 0.0
        %1243 = vmatprep.subr.mxu0 0.0
        %1244 = vmatpush1.xpose.msra.mxu0 0.0
        %1245 = vmatprep.subr.mxu0 0.0
        %1246 = vmatpush1.xpose.msra.mxu0 0.0
        %1247 = vmatprep.subr.mxu0 0.0
        %1248 = vmatpush1.xpose.msra.mxu0 0.0
        %1249 = vmatprep.subr.mxu0 0.0
        %1250 = vmatpush1.xpose.msra.mxu0 0.0
        %1251 = vmatprep.subr.mxu0 0.0
        %1252 = vmatpush1.xpose.msra.mxu0 0.0
        %1253 = vmatprep.subr.mxu0 0.0
        %1254 = vmatpush1.xpose.msra.mxu0 0.0
        %1255 = vmatprep.subr.mxu0 0.0
        %1256 = vmatpush1.xpose.msra.mxu0 0.0
        %1257 = vmatprep.subr.mxu0 0.0
        %1258 = vmatpush1.xpose.msra.mxu0 0.0
        %1259 = vmatprep.subr.mxu0 0.0
        %1260 = vmatpush1.xpose.msra.mxu0 0.0
        %1261 = vmatprep.subr.mxu0 0.0
        %1262 = vmatpush1.xpose.msra.mxu0 0.0
        %1263 = vmatprep.subr.mxu0 0.0
        %1264 = vmatpush1.xpose.msra.mxu0 %v1233
        %1265 = vmatprep.subr.mxu0 0.0
        %1266 = vmatpush1.xpose.msra.mxu0 %v1231
        %1267 = vmatprep.subr.mxu0 0.0
        %1268 = vmatpush2.xpose.msra.mxu0 0.0
        %1269 = vmatprep.subr.mxu0 0.0
        %1270 = vmatpush2.xpose.msra.mxu0 0.0
        %1271 = vmatprep.subr.mxu0 0.0
        %1272 = vmatpush2.xpose.msra.mxu0 0.0
        %1273 = vmatprep.subr.mxu0 0.0
        %1274 = vmatpush2.xpose.msra.mxu0 0.0
        %1275 = vmatprep.subr.mxu0 0.0
        %1276 = vmatpush2.xpose.msra.mxu0 0.0
        %1277 = vmatprep.subr.mxu0 0.0
        %1278 = vmatpush2.xpose.msra.mxu0 0.0
        %1279 = vmatprep.subr.mxu0 0.0
        %1280 = vmatpush2.xpose.msra.mxu0 0.0
        %1281 = vmatprep.subr.mxu0 0.0
        %1282 = vmatpush2.xpose.msra.mxu0 0.0
        %1283 = vmatprep.subr.mxu0 0.0
        %1284 = vmatpush2.xpose.msra.mxu0 0.0
        %1285 = vmatprep.subr.mxu0 0.0
        %1286 = vmatpush2.xpose.msra.mxu0 0.0
        %1287 = vmatprep.subr.mxu0 0.0
        %1288 = vmatpush2.xpose.msra.mxu0 0.0
        %1289 = vmatprep.subr.mxu0 0.0
        %1290 = vmatpush2.xpose.msra.mxu0 0.0
        %1291 = vmatprep.subr.mxu0 0.0
        %1292 = vmatpush2.xpose.msra.mxu0 0.0
        %1293 = vmatprep.subr.mxu0 0.0
        %1294 = vmatpush2.xpose.msra.mxu0 0.0
        %1295 = vmatprep.subr.mxu0 0.0
        %1296 = vmatpush2.xpose.msra.mxu0 0.0
        %1297 = vmatprep.subr.mxu0 0.0
        %1298 = vmatpush2.xpose.msra.mxu0 0.0
        %1299 = vmatprep.mubr.f32.mxu0 0.0
        %1300 = vmatmul.mubr.f32.gmra.mxu0 %v1227
        %v1301 = vpop.f32.mrf.mxu0
        %v1302 = vadd.f32 %v595, %v1301
        %v1303 = vpop.f32.mrf.mxu0
        %1304 = vmatprep.mubr.f32.mxu0 0.0
        %1305 = vmatmul.mubr.f32.gmra.mxu0 %v1229
        %v1306 = vpop.f32.mrf.mxu0
        %v1307 = vadd.f32 %v596, %v1306
        %v1308 = vpop.f32.mrf.mxu0
        %1309 = vdwg.mxu0
        %v1310 = vadd.f32 %v679, %v579
        %v1311 = vadd.f32 %v684, %v580
        %v1312 = vadd.f32 %v768, %v581
        %v1313 = vadd.f32 %v773, %v582
        %v1314 = vadd.f32 %v857, %v583
        %v1315 = vadd.f32 %v862, %v584
        %v1316 = vadd.f32 %v946, %v585
        %v1317 = vadd.f32 %v951, %v586
        %v1318 = vadd.f32 %v1035, %v587
        %v1319 = vadd.f32 %v1040, %v588
        %v1320 = vadd.f32 %v1124, %v589
        %v1321 = vadd.f32 %v1129, %v590
        %v1322 = vadd.f32 %v1213, %v591
        %v1323 = vadd.f32 %v1218, %v592
        %v1324 = vadd.f32 %v1302, %v593
        %v1325 = vadd.f32 %v1307, %v594
        %vm1326 = vcmask 130048
        %v1327 = vsel %vm1326, %v1310, -inf
        %1328 = vmax.xlane.f32.xlu0 %v1327
        %v1329 = vpop.xlane.xlu0 %1328
        %v1330 = vsel %vm1326, %v1311, -inf
        %1331 = vmax.xlane.f32.xlu0 %v1330
        %v1332 = vpop.xlane.xlu0 %1331
        %v1333 = vsel %vm1326, %v1312, -inf
        %1334 = vmax.xlane.f32.xlu0 %v1333
        %v1335 = vpop.xlane.xlu0 %1334
        %v1336 = vsel %vm1326, %v1313, -inf
        %1337 = vmax.xlane.f32.xlu0 %v1336
        %v1338 = vpop.xlane.xlu0 %1337
        %v1339 = vsel %vm1326, %v1314, -inf
        %1340 = vmax.xlane.f32.xlu0 %v1339
        %v1341 = vpop.xlane.xlu0 %1340
        %v1342 = vsel %vm1326, %v1315, -inf
        %1343 = vmax.xlane.f32.xlu0 %v1342
        %v1344 = vpop.xlane.xlu0 %1343
        %v1345 = vsel %vm1326, %v1316, -inf
        %1346 = vmax.xlane.f32.xlu0 %v1345
        %v1347 = vpop.xlane.xlu0 %1346
        %v1348 = vsel %vm1326, %v1317, -inf
        %1349 = vmax.xlane.f32.xlu0 %v1348
        %v1350 = vpop.xlane.xlu0 %1349
        %v1351 = vsel %vm1326, %v1318, -inf
        %1352 = vmax.xlane.f32.xlu0 %v1351
        %v1353 = vpop.xlane.xlu0 %1352
        %v1354 = vsel %vm1326, %v1319, -inf
        %1355 = vmax.xlane.f32.xlu0 %v1354
        %v1356 = vpop.xlane.xlu0 %1355
        %v1357 = vsel %vm1326, %v1320, -inf
        %1358 = vmax.xlane.f32.xlu0 %v1357
        %v1359 = vpop.xlane.xlu0 %1358
        %v1360 = vsel %vm1326, %v1321, -inf
        %1361 = vmax.xlane.f32.xlu0 %v1360
        %v1362 = vpop.xlane.xlu0 %1361
        %v1363 = vsel %vm1326, %v1322, -inf
        %1364 = vmax.xlane.f32.xlu0 %v1363
        %v1365 = vpop.xlane.xlu0 %1364
        %v1366 = vsel %vm1326, %v1323, -inf
        %1367 = vmax.xlane.f32.xlu0 %v1366
        %v1368 = vpop.xlane.xlu0 %1367
        %v1369 = vsel %vm1326, %v1324, -inf
        %1370 = vmax.xlane.f32.xlu0 %v1369
        %v1371 = vpop.xlane.xlu0 %1370
        %v1372 = vsel %vm1326, %v1325, -inf
        %1373 = vmax.xlane.f32.xlu0 %v1372
        %v1374 = vpop.xlane.xlu0 %1373
        %v1375 = vsub.f32 %v1310, %v1329
        %v1376 = vsub.f32 %v1311, %v1332
        %v1377 = vsub.f32 %v1312, %v1335
        %v1378 = vsub.f32 %v1313, %v1338
        %v1379 = vsub.f32 %v1314, %v1341
        %v1380 = vsub.f32 %v1315, %v1344
        %v1381 = vsub.f32 %v1316, %v1347
        %v1382 = vsub.f32 %v1317, %v1350
        %v1383 = vsub.f32 %v1318, %v1353
        %v1384 = vsub.f32 %v1319, %v1356
        %v1385 = vsub.f32 %v1320, %v1359
        %v1386 = vsub.f32 %v1321, %v1362
        %v1387 = vsub.f32 %v1322, %v1365
        %v1388 = vsub.f32 %v1323, %v1368
        %v1389 = vsub.f32 %v1324, %v1371
        %v1390 = vsub.f32 %v1325, %v1374
        %v1391 = vmul.f32 %v1375, 1.442695
        %v1392 = vpow.pop %v1391
        %v1393 = vmul.f32 %v1376, 1.442695
        %v1394 = vpow.pop %v1393
        %v1395 = vmul.f32 %v1377, 1.442695
        %v1396 = vpow.pop %v1395
        %v1397 = vmul.f32 %v1378, 1.442695
        %v1398 = vpow.pop %v1397
        %v1399 = vmul.f32 %v1379, 1.442695
        %v1400 = vpow.pop %v1399
        %v1401 = vmul.f32 %v1380, 1.442695
        %v1402 = vpow.pop %v1401
        %v1403 = vmul.f32 %v1381, 1.442695
        %v1404 = vpow.pop %v1403
        %v1405 = vmul.f32 %v1382, 1.442695
        %v1406 = vpow.pop %v1405
        %v1407 = vmul.f32 %v1383, 1.442695
        %v1408 = vpow.pop %v1407
        %v1409 = vmul.f32 %v1384, 1.442695
        %v1410 = vpow.pop %v1409
        %v1411 = vmul.f32 %v1385, 1.442695
        %v1412 = vpow.pop %v1411
        %v1413 = vmul.f32 %v1386, 1.442695
        %v1414 = vpow.pop %v1413
        %v1415 = vmul.f32 %v1387, 1.442695
        %v1416 = vpow.pop %v1415
        %v1417 = vmul.f32 %v1388, 1.442695
        %v1418 = vpow.pop %v1417
        %v1419 = vmul.f32 %v1389, 1.442695
        %v1420 = vpow.pop %v1419
        %v1421 = vmul.f32 %v1390, 1.442695
        %v1422 = vpow.pop %v1421
        %v1423 = vsel %vm1326, %v1392, 0.0
        %1424 = vadd.xlane.f32.xlu0 %v1423
        %v1425 = vpop.xlane.xlu0 %1424
        %v1426 = vsel %vm1326, %v1394, 0.0
        %1427 = vadd.xlane.f32.xlu0 %v1426
        %v1428 = vpop.xlane.xlu0 %1427
        %v1429 = vsel %vm1326, %v1396, 0.0
        %1430 = vadd.xlane.f32.xlu0 %v1429
        %v1431 = vpop.xlane.xlu0 %1430
        %v1432 = vsel %vm1326, %v1398, 0.0
        %1433 = vadd.xlane.f32.xlu0 %v1432
        %v1434 = vpop.xlane.xlu0 %1433
        %v1435 = vsel %vm1326, %v1400, 0.0
        %1436 = vadd.xlane.f32.xlu0 %v1435
        %v1437 = vpop.xlane.xlu0 %1436
        %v1438 = vsel %vm1326, %v1402, 0.0
        %1439 = vadd.xlane.f32.xlu0 %v1438
        %v1440 = vpop.xlane.xlu0 %1439
        %v1441 = vsel %vm1326, %v1404, 0.0
        %1442 = vadd.xlane.f32.xlu0 %v1441
        %v1443 = vpop.xlane.xlu0 %1442
        %v1444 = vsel %vm1326, %v1406, 0.0
        %1445 = vadd.xlane.f32.xlu0 %v1444
        %v1446 = vpop.xlane.xlu0 %1445
        %v1447 = vsel %vm1326, %v1408, 0.0
        %1448 = vadd.xlane.f32.xlu0 %v1447
        %v1449 = vpop.xlane.xlu0 %1448
        %v1450 = vsel %vm1326, %v1410, 0.0
        %1451 = vadd.xlane.f32.xlu0 %v1450
        %v1452 = vpop.xlane.xlu0 %1451
        %v1453 = vsel %vm1326, %v1412, 0.0
        %1454 = vadd.xlane.f32.xlu0 %v1453
        %v1455 = vpop.xlane.xlu0 %1454
        %v1456 = vsel %vm1326, %v1414, 0.0
        %1457 = vadd.xlane.f32.xlu0 %v1456
        %v1458 = vpop.xlane.xlu0 %1457
        %v1459 = vsel %vm1326, %v1416, 0.0
        %1460 = vadd.xlane.f32.xlu0 %v1459
        %v1461 = vpop.xlane.xlu0 %1460
        %v1462 = vsel %vm1326, %v1418, 0.0
        %1463 = vadd.xlane.f32.xlu0 %v1462
        %v1464 = vpop.xlane.xlu0 %1463
        %v1465 = vsel %vm1326, %v1420, 0.0
        %1466 = vadd.xlane.f32.xlu0 %v1465
        %v1467 = vpop.xlane.xlu0 %1466
        %v1468 = vsel %vm1326, %v1422, 0.0
        %1469 = vadd.xlane.f32.xlu0 %v1468
        %v1470 = vpop.xlane.xlu0 %1469
        %v1471 = vrcp.pop %v1425
        %v1472 = vrcp.pop %v1428
        %v1473 = vrcp.pop %v1431
        %v1474 = vrcp.pop %v1434
        %v1475 = vrcp.pop %v1437
        %v1476 = vrcp.pop %v1440
        %v1477 = vrcp.pop %v1443
        %v1478 = vrcp.pop %v1446
        %v1479 = vrcp.pop %v1449
        %v1480 = vrcp.pop %v1452
        %v1481 = vrcp.pop %v1455
        %v1482 = vrcp.pop %v1458
        %v1483 = vrcp.pop %v1461
        %v1484 = vrcp.pop %v1464
        %v1485 = vrcp.pop %v1467
        %v1486 = vrcp.pop %v1470
        %v1487 = vmul.f32 %v1392, %v1471
        %v1488 = vmul.f32 %v1394, %v1472
        %v1489 = vmul.f32 %v1396, %v1473
        %v1490 = vmul.f32 %v1398, %v1474
        %v1491 = vmul.f32 %v1400, %v1475
        %v1492 = vmul.f32 %v1402, %v1476
        %v1493 = vmul.f32 %v1404, %v1477
        %v1494 = vmul.f32 %v1406, %v1478
        %v1495 = vmul.f32 %v1408, %v1479
        %v1496 = vmul.f32 %v1410, %v1480
        %v1497 = vmul.f32 %v1412, %v1481
        %v1498 = vmul.f32 %v1414, %v1482
        %v1499 = vmul.f32 %v1416, %v1483
        %v1500 = vmul.f32 %v1418, %v1484
        %v1501 = vmul.f32 %v1420, %v1485
        %v1502 = vmul.f32 %v1422, %v1486
        %1503 = vrot.lane.b32.xlu0 %v501, 64
        %v1504 = vpop.permute.xlu0 %1503
        %1505 = vrot.lane.b32.xlu0 %v506, 64
        %v1506 = vpop.permute.xlu0 %1505
        %v1510 = vsel %vm1326, %v1487, 0
        %v1513 = vsel %vm1326, %v1488, 0
        %1515 = vmatprep.subr.mxu0 0.0
        %1516 = vmatpush1.msra.mxu0 0.0
        %1517 = vmatprep.subr.mxu0 0.0
        %1518 = vmatpush1.msra.mxu0 0.0
        %1519 = vmatprep.subr.mxu0 0.0
        %1520 = vmatpush1.msra.mxu0 0.0
        %1521 = vmatprep.subr.mxu0 0.0
        %1522 = vmatpush1.msra.mxu0 0.0
        %1523 = vmatprep.subr.mxu0 0.0
        %1524 = vmatpush1.msra.mxu0 0.0
        %1525 = vmatprep.subr.mxu0 0.0
        %1526 = vmatpush1.msra.mxu0 0.0
        %1527 = vmatprep.subr.mxu0 0.0
        %1528 = vmatpush1.msra.mxu0 0.0
        %1529 = vmatprep.subr.mxu0 0.0
        %1530 = vmatpush1.msra.mxu0 0.0
        %1531 = vmatprep.subr.mxu0 0.0
        %1532 = vmatpush1.msra.mxu0 0.0
        %1533 = vmatprep.subr.mxu0 0.0
        %1534 = vmatpush1.msra.mxu0 0.0
        %1535 = vmatprep.subr.mxu0 0.0
        %1536 = vmatpush1.msra.mxu0 0.0
        %1537 = vmatprep.subr.mxu0 0.0
        %1538 = vmatpush1.msra.mxu0 0.0
        %1539 = vmatprep.subr.mxu0 0.0
        %1540 = vmatpush1.msra.mxu0 0.0
        %1541 = vmatprep.subr.mxu0 0.0
        %1542 = vmatpush1.msra.mxu0 0.0
        %1543 = vmatprep.subr.mxu0 0.0
        %1544 = vmatpush1.msra.mxu0 %v1506
        %1545 = vmatprep.subr.mxu0 0.0
        %1546 = vmatpush1.msra.mxu0 %v1504
        %1547 = vmatprep.subr.mxu0 0.0
        %1548 = vmatpush2.msra.mxu0 0.0
        %1549 = vmatprep.subr.mxu0 0.0
        %1550 = vmatpush2.msra.mxu0 0.0
        %1551 = vmatprep.subr.mxu0 0.0
        %1552 = vmatpush2.msra.mxu0 0.0
        %1553 = vmatprep.subr.mxu0 0.0
        %1554 = vmatpush2.msra.mxu0 0.0
        %1555 = vmatprep.subr.mxu0 0.0
        %1556 = vmatpush2.msra.mxu0 0.0
        %1557 = vmatprep.subr.mxu0 0.0
        %1558 = vmatpush2.msra.mxu0 0.0
        %1559 = vmatprep.subr.mxu0 0.0
        %1560 = vmatpush2.msra.mxu0 0.0
        %1561 = vmatprep.subr.mxu0 0.0
        %1562 = vmatpush2.msra.mxu0 0.0
        %1563 = vmatprep.subr.mxu0 0.0
        %1564 = vmatpush2.msra.mxu0 0.0
        %1565 = vmatprep.subr.mxu0 0.0
        %1566 = vmatpush2.msra.mxu0 0.0
        %1567 = vmatprep.subr.mxu0 0.0
        %1568 = vmatpush2.msra.mxu0 0.0
        %1569 = vmatprep.subr.mxu0 0.0
        %1570 = vmatpush2.msra.mxu0 0.0
        %1571 = vmatprep.subr.mxu0 0.0
        %1572 = vmatpush2.msra.mxu0 0.0
        %1573 = vmatprep.subr.mxu0 0.0
        %1574 = vmatpush2.msra.mxu0 0.0
        %1575 = vmatprep.subr.mxu0 0.0
        %1576 = vmatpush2.msra.mxu0 0.0
        %1577 = vmatprep.subr.mxu0 0.0
        %1578 = vmatpush2.msra.mxu0 0.0
        %1579 = vmatprep.mubr.f32.mxu0 0.0
        %1580 = vmatmul.mubr.f32.gmra.mxu0 %v1510
        %v1581 = vpop.f32.mrf.mxu0
        %v1582 = vadd.f32 0.0, %v1581
        %v1583 = vpop.f32.mrf.mxu0
        %1584 = vmatprep.mubr.f32.mxu0 0.0
        %1585 = vmatmul.mubr.f32.gmra.mxu0 %v1513
        %v1586 = vpop.f32.mrf.mxu0
        %v1587 = vadd.f32 0.0, %v1586
        %v1588 = vpop.f32.mrf.mxu0
        %1589 = vdwg.mxu0
        %1590 = vrot.lane.b32.xlu0 %v511, 64
        %v1591 = vpop.permute.xlu0 %1590
        %1592 = vrot.lane.b32.xlu0 %v516, 64
        %v1593 = vpop.permute.xlu0 %1592
        %v1597 = vsel %vm1326, %v1489, 0
        %v1600 = vsel %vm1326, %v1490, 0
        %1602 = vmatprep.subr.mxu0 0.0
        %1603 = vmatpush1.msra.mxu0 0.0
        %1604 = vmatprep.subr.mxu0 0.0
        %1605 = vmatpush1.msra.mxu0 0.0
        %1606 = vmatprep.subr.mxu0 0.0
        %1607 = vmatpush1.msra.mxu0 0.0
        %1608 = vmatprep.subr.mxu0 0.0
        %1609 = vmatpush1.msra.mxu0 0.0
        %1610 = vmatprep.subr.mxu0 0.0
        %1611 = vmatpush1.msra.mxu0 0.0
        %1612 = vmatprep.subr.mxu0 0.0
        %1613 = vmatpush1.msra.mxu0 0.0
        %1614 = vmatprep.subr.mxu0 0.0
        %1615 = vmatpush1.msra.mxu0 0.0
        %1616 = vmatprep.subr.mxu0 0.0
        %1617 = vmatpush1.msra.mxu0 0.0
        %1618 = vmatprep.subr.mxu0 0.0
        %1619 = vmatpush1.msra.mxu0 0.0
        %1620 = vmatprep.subr.mxu0 0.0
        %1621 = vmatpush1.msra.mxu0 0.0
        %1622 = vmatprep.subr.mxu0 0.0
        %1623 = vmatpush1.msra.mxu0 0.0
        %1624 = vmatprep.subr.mxu0 0.0
        %1625 = vmatpush1.msra.mxu0 0.0
        %1626 = vmatprep.subr.mxu0 0.0
        %1627 = vmatpush1.msra.mxu0 0.0
        %1628 = vmatprep.subr.mxu0 0.0
        %1629 = vmatpush1.msra.mxu0 0.0
        %1630 = vmatprep.subr.mxu0 0.0
        %1631 = vmatpush1.msra.mxu0 %v1593
        %1632 = vmatprep.subr.mxu0 0.0
        %1633 = vmatpush1.msra.mxu0 %v1591
        %1634 = vmatprep.subr.mxu0 0.0
        %1635 = vmatpush2.msra.mxu0 0.0
        %1636 = vmatprep.subr.mxu0 0.0
        %1637 = vmatpush2.msra.mxu0 0.0
        %1638 = vmatprep.subr.mxu0 0.0
        %1639 = vmatpush2.msra.mxu0 0.0
        %1640 = vmatprep.subr.mxu0 0.0
        %1641 = vmatpush2.msra.mxu0 0.0
        %1642 = vmatprep.subr.mxu0 0.0
        %1643 = vmatpush2.msra.mxu0 0.0
        %1644 = vmatprep.subr.mxu0 0.0
        %1645 = vmatpush2.msra.mxu0 0.0
        %1646 = vmatprep.subr.mxu0 0.0
        %1647 = vmatpush2.msra.mxu0 0.0
        %1648 = vmatprep.subr.mxu0 0.0
        %1649 = vmatpush2.msra.mxu0 0.0
        %1650 = vmatprep.subr.mxu0 0.0
        %1651 = vmatpush2.msra.mxu0 0.0
        %1652 = vmatprep.subr.mxu0 0.0
        %1653 = vmatpush2.msra.mxu0 0.0
        %1654 = vmatprep.subr.mxu0 0.0
        %1655 = vmatpush2.msra.mxu0 0.0
        %1656 = vmatprep.subr.mxu0 0.0
        %1657 = vmatpush2.msra.mxu0 0.0
        %1658 = vmatprep.subr.mxu0 0.0
        %1659 = vmatpush2.msra.mxu0 0.0
        %1660 = vmatprep.subr.mxu0 0.0
        %1661 = vmatpush2.msra.mxu0 0.0
        %1662 = vmatprep.subr.mxu0 0.0
        %1663 = vmatpush2.msra.mxu0 0.0
        %1664 = vmatprep.subr.mxu0 0.0
        %1665 = vmatpush2.msra.mxu0 0.0
        %1666 = vmatprep.mubr.f32.mxu0 0.0
        %1667 = vmatmul.mubr.f32.gmra.mxu0 %v1597
        %v1668 = vpop.f32.mrf.mxu0
        %v1669 = vadd.f32 0.0, %v1668
        %v1670 = vpop.f32.mrf.mxu0
        %1671 = vmatprep.mubr.f32.mxu0 0.0
        %1672 = vmatmul.mubr.f32.gmra.mxu0 %v1600
        %v1673 = vpop.f32.mrf.mxu0
        %v1674 = vadd.f32 0.0, %v1673
        %v1675 = vpop.f32.mrf.mxu0
        %1676 = vdwg.mxu0
        %1677 = vrot.lane.b32.xlu0 %v521, 64
        %v1678 = vpop.permute.xlu0 %1677
        %1679 = vrot.lane.b32.xlu0 %v526, 64
        %v1680 = vpop.permute.xlu0 %1679
        %v1684 = vsel %vm1326, %v1491, 0
        %v1687 = vsel %vm1326, %v1492, 0
        %1689 = vmatprep.subr.mxu0 0.0
        %1690 = vmatpush1.msra.mxu0 0.0
        %1691 = vmatprep.subr.mxu0 0.0
        %1692 = vmatpush1.msra.mxu0 0.0
        %1693 = vmatprep.subr.mxu0 0.0
        %1694 = vmatpush1.msra.mxu0 0.0
        %1695 = vmatprep.subr.mxu0 0.0
        %1696 = vmatpush1.msra.mxu0 0.0
        %1697 = vmatprep.subr.mxu0 0.0
        %1698 = vmatpush1.msra.mxu0 0.0
        %1699 = vmatprep.subr.mxu0 0.0
        %1700 = vmatpush1.msra.mxu0 0.0
        %1701 = vmatprep.subr.mxu0 0.0
        %1702 = vmatpush1.msra.mxu0 0.0
        %1703 = vmatprep.subr.mxu0 0.0
        %1704 = vmatpush1.msra.mxu0 0.0
        %1705 = vmatprep.subr.mxu0 0.0
        %1706 = vmatpush1.msra.mxu0 0.0
        %1707 = vmatprep.subr.mxu0 0.0
        %1708 = vmatpush1.msra.mxu0 0.0
        %1709 = vmatprep.subr.mxu0 0.0
        %1710 = vmatpush1.msra.mxu0 0.0
        %1711 = vmatprep.subr.mxu0 0.0
        %1712 = vmatpush1.msra.mxu0 0.0
        %1713 = vmatprep.subr.mxu0 0.0
        %1714 = vmatpush1.msra.mxu0 0.0
        %1715 = vmatprep.subr.mxu0 0.0
        %1716 = vmatpush1.msra.mxu0 0.0
        %1717 = vmatprep.subr.mxu0 0.0
        %1718 = vmatpush1.msra.mxu0 %v1680
        %1719 = vmatprep.subr.mxu0 0.0
        %1720 = vmatpush1.msra.mxu0 %v1678
        %1721 = vmatprep.subr.mxu0 0.0
        %1722 = vmatpush2.msra.mxu0 0.0
        %1723 = vmatprep.subr.mxu0 0.0
        %1724 = vmatpush2.msra.mxu0 0.0
        %1725 = vmatprep.subr.mxu0 0.0
        %1726 = vmatpush2.msra.mxu0 0.0
        %1727 = vmatprep.subr.mxu0 0.0
        %1728 = vmatpush2.msra.mxu0 0.0
        %1729 = vmatprep.subr.mxu0 0.0
        %1730 = vmatpush2.msra.mxu0 0.0
        %1731 = vmatprep.subr.mxu0 0.0
        %1732 = vmatpush2.msra.mxu0 0.0
        %1733 = vmatprep.subr.mxu0 0.0
        %1734 = vmatpush2.msra.mxu0 0.0
        %1735 = vmatprep.subr.mxu0 0.0
        %1736 = vmatpush2.msra.mxu0 0.0
        %1737 = vmatprep.subr.mxu0 0.0
        %1738 = vmatpush2.msra.mxu0 0.0
        %1739 = vmatprep.subr.mxu0 0.0
        %1740 = vmatpush2.msra.mxu0 0.0
        %1741 = vmatprep.subr.mxu0 0.0
        %1742 = vmatpush2.msra.mxu0 0.0
        %1743 = vmatprep.subr.mxu0 0.0
        %1744 = vmatpush2.msra.mxu0 0.0
        %1745 = vmatprep.subr.mxu0 0.0
        %1746 = vmatpush2.msra.mxu0 0.0
        %1747 = vmatprep.subr.mxu0 0.0
        %1748 = vmatpush2.msra.mxu0 0.0
        %1749 = vmatprep.subr.mxu0 0.0
        %1750 = vmatpush2.msra.mxu0 0.0
        %1751 = vmatprep.subr.mxu0 0.0
        %1752 = vmatpush2.msra.mxu0 0.0
        %1753 = vmatprep.mubr.f32.mxu0 0.0
        %1754 = vmatmul.mubr.f32.gmra.mxu0 %v1684
        %v1755 = vpop.f32.mrf.mxu0
        %v1756 = vadd.f32 0.0, %v1755
        %v1757 = vpop.f32.mrf.mxu0
        %1758 = vmatprep.mubr.f32.mxu0 0.0
        %1759 = vmatmul.mubr.f32.gmra.mxu0 %v1687
        %v1760 = vpop.f32.mrf.mxu0
        %v1761 = vadd.f32 0.0, %v1760
        %v1762 = vpop.f32.mrf.mxu0
        %1763 = vdwg.mxu0
        %1764 = vrot.lane.b32.xlu0 %v531, 64
        %v1765 = vpop.permute.xlu0 %1764
        %1766 = vrot.lane.b32.xlu0 %v536, 64
        %v1767 = vpop.permute.xlu0 %1766
        %v1771 = vsel %vm1326, %v1493, 0
        %v1774 = vsel %vm1326, %v1494, 0
        %1776 = vmatprep.subr.mxu0 0.0
        %1777 = vmatpush1.msra.mxu0 0.0
        %1778 = vmatprep.subr.mxu0 0.0
        %1779 = vmatpush1.msra.mxu0 0.0
        %1780 = vmatprep.subr.mxu0 0.0
        %1781 = vmatpush1.msra.mxu0 0.0
        %1782 = vmatprep.subr.mxu0 0.0
        %1783 = vmatpush1.msra.mxu0 0.0
        %1784 = vmatprep.subr.mxu0 0.0
        %1785 = vmatpush1.msra.mxu0 0.0
        %1786 = vmatprep.subr.mxu0 0.0
        %1787 = vmatpush1.msra.mxu0 0.0
        %1788 = vmatprep.subr.mxu0 0.0
        %1789 = vmatpush1.msra.mxu0 0.0
        %1790 = vmatprep.subr.mxu0 0.0
        %1791 = vmatpush1.msra.mxu0 0.0
        %1792 = vmatprep.subr.mxu0 0.0
        %1793 = vmatpush1.msra.mxu0 0.0
        %1794 = vmatprep.subr.mxu0 0.0
        %1795 = vmatpush1.msra.mxu0 0.0
        %1796 = vmatprep.subr.mxu0 0.0
        %1797 = vmatpush1.msra.mxu0 0.0
        %1798 = vmatprep.subr.mxu0 0.0
        %1799 = vmatpush1.msra.mxu0 0.0
        %1800 = vmatprep.subr.mxu0 0.0
        %1801 = vmatpush1.msra.mxu0 0.0
        %1802 = vmatprep.subr.mxu0 0.0
        %1803 = vmatpush1.msra.mxu0 0.0
        %1804 = vmatprep.subr.mxu0 0.0
        %1805 = vmatpush1.msra.mxu0 %v1767
        %1806 = vmatprep.subr.mxu0 0.0
        %1807 = vmatpush1.msra.mxu0 %v1765
        %1808 = vmatprep.subr.mxu0 0.0
        %1809 = vmatpush2.msra.mxu0 0.0
        %1810 = vmatprep.subr.mxu0 0.0
        %1811 = vmatpush2.msra.mxu0 0.0
        %1812 = vmatprep.subr.mxu0 0.0
        %1813 = vmatpush2.msra.mxu0 0.0
        %1814 = vmatprep.subr.mxu0 0.0
        %1815 = vmatpush2.msra.mxu0 0.0
        %1816 = vmatprep.subr.mxu0 0.0
        %1817 = vmatpush2.msra.mxu0 0.0
        %1818 = vmatprep.subr.mxu0 0.0
        %1819 = vmatpush2.msra.mxu0 0.0
        %1820 = vmatprep.subr.mxu0 0.0
        %1821 = vmatpush2.msra.mxu0 0.0
        %1822 = vmatprep.subr.mxu0 0.0
        %1823 = vmatpush2.msra.mxu0 0.0
        %1824 = vmatprep.subr.mxu0 0.0
        %1825 = vmatpush2.msra.mxu0 0.0
        %1826 = vmatprep.subr.mxu0 0.0
        %1827 = vmatpush2.msra.mxu0 0.0
        %1828 = vmatprep.subr.mxu0 0.0
        %1829 = vmatpush2.msra.mxu0 0.0
        %1830 = vmatprep.subr.mxu0 0.0
        %1831 = vmatpush2.msra.mxu0 0.0
        %1832 = vmatprep.subr.mxu0 0.0
        %1833 = vmatpush2.msra.mxu0 0.0
        %1834 = vmatprep.subr.mxu0 0.0
        %1835 = vmatpush2.msra.mxu0 0.0
        %1836 = vmatprep.subr.mxu0 0.0
        %1837 = vmatpush2.msra.mxu0 0.0
        %1838 = vmatprep.subr.mxu0 0.0
        %1839 = vmatpush2.msra.mxu0 0.0
        %1840 = vmatprep.mubr.f32.mxu0 0.0
        %1841 = vmatmul.mubr.f32.gmra.mxu0 %v1771
        %v1842 = vpop.f32.mrf.mxu0
        %v1843 = vadd.f32 0.0, %v1842
        %v1844 = vpop.f32.mrf.mxu0
        %1845 = vmatprep.mubr.f32.mxu0 0.0
        %1846 = vmatmul.mubr.f32.gmra.mxu0 %v1774
        %v1847 = vpop.f32.mrf.mxu0
        %v1848 = vadd.f32 0.0, %v1847
        %v1849 = vpop.f32.mrf.mxu0
        %1850 = vdwg.mxu0
        %1851 = vrot.lane.b32.xlu0 %v541, 64
        %v1852 = vpop.permute.xlu0 %1851
        %1853 = vrot.lane.b32.xlu0 %v546, 64
        %v1854 = vpop.permute.xlu0 %1853
        %v1858 = vsel %vm1326, %v1495, 0
        %v1861 = vsel %vm1326, %v1496, 0
        %1863 = vmatprep.subr.mxu0 0.0
        %1864 = vmatpush1.msra.mxu0 0.0
        %1865 = vmatprep.subr.mxu0 0.0
        %1866 = vmatpush1.msra.mxu0 0.0
        %1867 = vmatprep.subr.mxu0 0.0
        %1868 = vmatpush1.msra.mxu0 0.0
        %1869 = vmatprep.subr.mxu0 0.0
        %1870 = vmatpush1.msra.mxu0 0.0
        %1871 = vmatprep.subr.mxu0 0.0
        %1872 = vmatpush1.msra.mxu0 0.0
        %1873 = vmatprep.subr.mxu0 0.0
        %1874 = vmatpush1.msra.mxu0 0.0
        %1875 = vmatprep.subr.mxu0 0.0
        %1876 = vmatpush1.msra.mxu0 0.0
        %1877 = vmatprep.subr.mxu0 0.0
        %1878 = vmatpush1.msra.mxu0 0.0
        %1879 = vmatprep.subr.mxu0 0.0
        %1880 = vmatpush1.msra.mxu0 0.0
        %1881 = vmatprep.subr.mxu0 0.0
        %1882 = vmatpush1.msra.mxu0 0.0
        %1883 = vmatprep.subr.mxu0 0.0
        %1884 = vmatpush1.msra.mxu0 0.0
        %1885 = vmatprep.subr.mxu0 0.0
        %1886 = vmatpush1.msra.mxu0 0.0
        %1887 = vmatprep.subr.mxu0 0.0
        %1888 = vmatpush1.msra.mxu0 0.0
        %1889 = vmatprep.subr.mxu0 0.0
        %1890 = vmatpush1.msra.mxu0 0.0
        %1891 = vmatprep.subr.mxu0 0.0
        %1892 = vmatpush1.msra.mxu0 %v1854
        %1893 = vmatprep.subr.mxu0 0.0
        %1894 = vmatpush1.msra.mxu0 %v1852
        %1895 = vmatprep.subr.mxu0 0.0
        %1896 = vmatpush2.msra.mxu0 0.0
        %1897 = vmatprep.subr.mxu0 0.0
        %1898 = vmatpush2.msra.mxu0 0.0
        %1899 = vmatprep.subr.mxu0 0.0
        %1900 = vmatpush2.msra.mxu0 0.0
        %1901 = vmatprep.subr.mxu0 0.0
        %1902 = vmatpush2.msra.mxu0 0.0
        %1903 = vmatprep.subr.mxu0 0.0
        %1904 = vmatpush2.msra.mxu0 0.0
        %1905 = vmatprep.subr.mxu0 0.0
        %1906 = vmatpush2.msra.mxu0 0.0
        %1907 = vmatprep.subr.mxu0 0.0
        %1908 = vmatpush2.msra.mxu0 0.0
        %1909 = vmatprep.subr.mxu0 0.0
        %1910 = vmatpush2.msra.mxu0 0.0
        %1911 = vmatprep.subr.mxu0 0.0
        %1912 = vmatpush2.msra.mxu0 0.0
        %1913 = vmatprep.subr.mxu0 0.0
        %1914 = vmatpush2.msra.mxu0 0.0
        %1915 = vmatprep.subr.mxu0 0.0
        %1916 = vmatpush2.msra.mxu0 0.0
        %1917 = vmatprep.subr.mxu0 0.0
        %1918 = vmatpush2.msra.mxu0 0.0
        %1919 = vmatprep.subr.mxu0 0.0
        %1920 = vmatpush2.msra.mxu0 0.0
        %1921 = vmatprep.subr.mxu0 0.0
        %1922 = vmatpush2.msra.mxu0 0.0
        %1923 = vmatprep.subr.mxu0 0.0
        %1924 = vmatpush2.msra.mxu0 0.0
        %1925 = vmatprep.subr.mxu0 0.0
        %1926 = vmatpush2.msra.mxu0 0.0
        %1927 = vmatprep.mubr.f32.mxu0 0.0
        %1928 = vmatmul.mubr.f32.gmra.mxu0 %v1858
        %v1929 = vpop.f32.mrf.mxu0
        %v1930 = vadd.f32 0.0, %v1929
        %v1931 = vpop.f32.mrf.mxu0
        %1932 = vmatprep.mubr.f32.mxu0 0.0
        %1933 = vmatmul.mubr.f32.gmra.mxu0 %v1861
        %v1934 = vpop.f32.mrf.mxu0
        %v1935 = vadd.f32 0.0, %v1934
        %v1936 = vpop.f32.mrf.mxu0
        %1937 = vdwg.mxu0
        %1938 = vrot.lane.b32.xlu0 %v551, 64
        %v1939 = vpop.permute.xlu0 %1938
        %1940 = vrot.lane.b32.xlu0 %v556, 64
        %v1941 = vpop.permute.xlu0 %1940
        %v1945 = vsel %vm1326, %v1497, 0
        %v1948 = vsel %vm1326, %v1498, 0
        %1950 = vmatprep.subr.mxu0 0.0
        %1951 = vmatpush1.msra.mxu0 0.0
        %1952 = vmatprep.subr.mxu0 0.0
        %1953 = vmatpush1.msra.mxu0 0.0
        %1954 = vmatprep.subr.mxu0 0.0
        %1955 = vmatpush1.msra.mxu0 0.0
        %1956 = vmatprep.subr.mxu0 0.0
        %1957 = vmatpush1.msra.mxu0 0.0
        %1958 = vmatprep.subr.mxu0 0.0
        %1959 = vmatpush1.msra.mxu0 0.0
        %1960 = vmatprep.subr.mxu0 0.0
        %1961 = vmatpush1.msra.mxu0 0.0
        %1962 = vmatprep.subr.mxu0 0.0
        %1963 = vmatpush1.msra.mxu0 0.0
        %1964 = vmatprep.subr.mxu0 0.0
        %1965 = vmatpush1.msra.mxu0 0.0
        %1966 = vmatprep.subr.mxu0 0.0
        %1967 = vmatpush1.msra.mxu0 0.0
        %1968 = vmatprep.subr.mxu0 0.0
        %1969 = vmatpush1.msra.mxu0 0.0
        %1970 = vmatprep.subr.mxu0 0.0
        %1971 = vmatpush1.msra.mxu0 0.0
        %1972 = vmatprep.subr.mxu0 0.0
        %1973 = vmatpush1.msra.mxu0 0.0
        %1974 = vmatprep.subr.mxu0 0.0
        %1975 = vmatpush1.msra.mxu0 0.0
        %1976 = vmatprep.subr.mxu0 0.0
        %1977 = vmatpush1.msra.mxu0 0.0
        %1978 = vmatprep.subr.mxu0 0.0
        %1979 = vmatpush1.msra.mxu0 %v1941
        %1980 = vmatprep.subr.mxu0 0.0
        %1981 = vmatpush1.msra.mxu0 %v1939
        %1982 = vmatprep.subr.mxu0 0.0
        %1983 = vmatpush2.msra.mxu0 0.0
        %1984 = vmatprep.subr.mxu0 0.0
        %1985 = vmatpush2.msra.mxu0 0.0
        %1986 = vmatprep.subr.mxu0 0.0
        %1987 = vmatpush2.msra.mxu0 0.0
        %1988 = vmatprep.subr.mxu0 0.0
        %1989 = vmatpush2.msra.mxu0 0.0
        %1990 = vmatprep.subr.mxu0 0.0
        %1991 = vmatpush2.msra.mxu0 0.0
        %1992 = vmatprep.subr.mxu0 0.0
        %1993 = vmatpush2.msra.mxu0 0.0
        %1994 = vmatprep.subr.mxu0 0.0
        %1995 = vmatpush2.msra.mxu0 0.0
        %1996 = vmatprep.subr.mxu0 0.0
        %1997 = vmatpush2.msra.mxu0 0.0
        %1998 = vmatprep.subr.mxu0 0.0
        %1999 = vmatpush2.msra.mxu0 0.0
        %2000 = vmatprep.subr.mxu0 0.0
        %2001 = vmatpush2.msra.mxu0 0.0
        %2002 = vmatprep.subr.mxu0 0.0
        %2003 = vmatpush2.msra.mxu0 0.0
        %2004 = vmatprep.subr.mxu0 0.0
        %2005 = vmatpush2.msra.mxu0 0.0
        %2006 = vmatprep.subr.mxu0 0.0
        %2007 = vmatpush2.msra.mxu0 0.0
        %2008 = vmatprep.subr.mxu0 0.0
        %2009 = vmatpush2.msra.mxu0 0.0
        %2010 = vmatprep.subr.mxu0 0.0
        %2011 = vmatpush2.msra.mxu0 0.0
        %2012 = vmatprep.subr.mxu0 0.0
        %2013 = vmatpush2.msra.mxu0 0.0
        %2014 = vmatprep.mubr.f32.mxu0 0.0
        %2015 = vmatmul.mubr.f32.gmra.mxu0 %v1945
        %v2016 = vpop.f32.mrf.mxu0
        %v2017 = vadd.f32 0.0, %v2016
        %v2018 = vpop.f32.mrf.mxu0
        %2019 = vmatprep.mubr.f32.mxu0 0.0
        %2020 = vmatmul.mubr.f32.gmra.mxu0 %v1948
        %v2021 = vpop.f32.mrf.mxu0
        %v2022 = vadd.f32 0.0, %v2021
        %v2023 = vpop.f32.mrf.mxu0
        %2024 = vdwg.mxu0
        %2025 = vrot.lane.b32.xlu0 %v561, 64
        %v2026 = vpop.permute.xlu0 %2025
        %2027 = vrot.lane.b32.xlu0 %v566, 64
        %v2028 = vpop.permute.xlu0 %2027
        %v2032 = vsel %vm1326, %v1499, 0
        %v2035 = vsel %vm1326, %v1500, 0
        %2037 = vmatprep.subr.mxu0 0.0
        %2038 = vmatpush1.msra.mxu0 0.0
        %2039 = vmatprep.subr.mxu0 0.0
        %2040 = vmatpush1.msra.mxu0 0.0
        %2041 = vmatprep.subr.mxu0 0.0
        %2042 = vmatpush1.msra.mxu0 0.0
        %2043 = vmatprep.subr.mxu0 0.0
        %2044 = vmatpush1.msra.mxu0 0.0
        %2045 = vmatprep.subr.mxu0 0.0
        %2046 = vmatpush1.msra.mxu0 0.0
        %2047 = vmatprep.subr.mxu0 0.0
        %2048 = vmatpush1.msra.mxu0 0.0
        %2049 = vmatprep.subr.mxu0 0.0
        %2050 = vmatpush1.msra.mxu0 0.0
        %2051 = vmatprep.subr.mxu0 0.0
        %2052 = vmatpush1.msra.mxu0 0.0
        %2053 = vmatprep.subr.mxu0 0.0
        %2054 = vmatpush1.msra.mxu0 0.0
        %2055 = vmatprep.subr.mxu0 0.0
        %2056 = vmatpush1.msra.mxu0 0.0
        %2057 = vmatprep.subr.mxu0 0.0
        %2058 = vmatpush1.msra.mxu0 0.0
        %2059 = vmatprep.subr.mxu0 0.0
        %2060 = vmatpush1.msra.mxu0 0.0
        %2061 = vmatprep.subr.mxu0 0.0
        %2062 = vmatpush1.msra.mxu0 0.0
        %2063 = vmatprep.subr.mxu0 0.0
        %2064 = vmatpush1.msra.mxu0 0.0
        %2065 = vmatprep.subr.mxu0 0.0
        %2066 = vmatpush1.msra.mxu0 %v2028
        %2067 = vmatprep.subr.mxu0 0.0
        %2068 = vmatpush1.msra.mxu0 %v2026
        %2069 = vmatprep.subr.mxu0 0.0
        %2070 = vmatpush2.msra.mxu0 0.0
        %2071 = vmatprep.subr.mxu0 0.0
        %2072 = vmatpush2.msra.mxu0 0.0
        %2073 = vmatprep.subr.mxu0 0.0
        %2074 = vmatpush2.msra.mxu0 0.0
        %2075 = vmatprep.subr.mxu0 0.0
        %2076 = vmatpush2.msra.mxu0 0.0
        %2077 = vmatprep.subr.mxu0 0.0
        %2078 = vmatpush2.msra.mxu0 0.0
        %2079 = vmatprep.subr.mxu0 0.0
        %2080 = vmatpush2.msra.mxu0 0.0
        %2081 = vmatprep.subr.mxu0 0.0
        %2082 = vmatpush2.msra.mxu0 0.0
        %2083 = vmatprep.subr.mxu0 0.0
        %2084 = vmatpush2.msra.mxu0 0.0
        %2085 = vmatprep.subr.mxu0 0.0
        %2086 = vmatpush2.msra.mxu0 0.0
        %2087 = vmatprep.subr.mxu0 0.0
        %2088 = vmatpush2.msra.mxu0 0.0
        %2089 = vmatprep.subr.mxu0 0.0
        %2090 = vmatpush2.msra.mxu0 0.0
        %2091 = vmatprep.subr.mxu0 0.0
        %2092 = vmatpush2.msra.mxu0 0.0
        %2093 = vmatprep.subr.mxu0 0.0
        %2094 = vmatpush2.msra.mxu0 0.0
        %2095 = vmatprep.subr.mxu0 0.0
        %2096 = vmatpush2.msra.mxu0 0.0
        %2097 = vmatprep.subr.mxu0 0.0
        %2098 = vmatpush2.msra.mxu0 0.0
        %2099 = vmatprep.subr.mxu0 0.0
        %2100 = vmatpush2.msra.mxu0 0.0
        %2101 = vmatprep.mubr.f32.mxu0 0.0
        %2102 = vmatmul.mubr.f32.gmra.mxu0 %v2032
        %v2103 = vpop.f32.mrf.mxu0
        %v2104 = vadd.f32 0.0, %v2103
        %v2105 = vpop.f32.mrf.mxu0
        %2106 = vmatprep.mubr.f32.mxu0 0.0
        %2107 = vmatmul.mubr.f32.gmra.mxu0 %v2035
        %v2108 = vpop.f32.mrf.mxu0
        %v2109 = vadd.f32 0.0, %v2108
        %v2110 = vpop.f32.mrf.mxu0
        %2111 = vdwg.mxu0
        %2112 = vrot.lane.b32.xlu0 %v571, 64
        %v2113 = vpop.permute.xlu0 %2112
        %2114 = vrot.lane.b32.xlu0 %v576, 64
        %v2115 = vpop.permute.xlu0 %2114
        %v2119 = vsel %vm1326, %v1501, 0
        %v2122 = vsel %vm1326, %v1502, 0
        %2124 = vmatprep.subr.mxu0 0.0
        %2125 = vmatpush1.msra.mxu0 0.0
        %2126 = vmatprep.subr.mxu0 0.0
        %2127 = vmatpush1.msra.mxu0 0.0
        %2128 = vmatprep.subr.mxu0 0.0
        %2129 = vmatpush1.msra.mxu0 0.0
        %2130 = vmatprep.subr.mxu0 0.0
        %2131 = vmatpush1.msra.mxu0 0.0
        %2132 = vmatprep.subr.mxu0 0.0
        %2133 = vmatpush1.msra.mxu0 0.0
        %2134 = vmatprep.subr.mxu0 0.0
        %2135 = vmatpush1.msra.mxu0 0.0
        %2136 = vmatprep.subr.mxu0 0.0
        %2137 = vmatpush1.msra.mxu0 0.0
        %2138 = vmatprep.subr.mxu0 0.0
        %2139 = vmatpush1.msra.mxu0 0.0
        %2140 = vmatprep.subr.mxu0 0.0
        %2141 = vmatpush1.msra.mxu0 0.0
        %2142 = vmatprep.subr.mxu0 0.0
        %2143 = vmatpush1.msra.mxu0 0.0
        %2144 = vmatprep.subr.mxu0 0.0
        %2145 = vmatpush1.msra.mxu0 0.0
        %2146 = vmatprep.subr.mxu0 0.0
        %2147 = vmatpush1.msra.mxu0 0.0
        %2148 = vmatprep.subr.mxu0 0.0
        %2149 = vmatpush1.msra.mxu0 0.0
        %2150 = vmatprep.subr.mxu0 0.0
        %2151 = vmatpush1.msra.mxu0 0.0
        %2152 = vmatprep.subr.mxu0 0.0
        %2153 = vmatpush1.msra.mxu0 %v2115
        %2154 = vmatprep.subr.mxu0 0.0
        %2155 = vmatpush1.msra.mxu0 %v2113
        %2156 = vmatprep.subr.mxu0 0.0
        %2157 = vmatpush2.msra.mxu0 0.0
        %2158 = vmatprep.subr.mxu0 0.0
        %2159 = vmatpush2.msra.mxu0 0.0
        %2160 = vmatprep.subr.mxu0 0.0
        %2161 = vmatpush2.msra.mxu0 0.0
        %2162 = vmatprep.subr.mxu0 0.0
        %2163 = vmatpush2.msra.mxu0 0.0
        %2164 = vmatprep.subr.mxu0 0.0
        %2165 = vmatpush2.msra.mxu0 0.0
        %2166 = vmatprep.subr.mxu0 0.0
        %2167 = vmatpush2.msra.mxu0 0.0
        %2168 = vmatprep.subr.mxu0 0.0
        %2169 = vmatpush2.msra.mxu0 0.0
        %2170 = vmatprep.subr.mxu0 0.0
        %2171 = vmatpush2.msra.mxu0 0.0
        %2172 = vmatprep.subr.mxu0 0.0
        %2173 = vmatpush2.msra.mxu0 0.0
        %2174 = vmatprep.subr.mxu0 0.0
        %2175 = vmatpush2.msra.mxu0 0.0
        %2176 = vmatprep.subr.mxu0 0.0
        %2177 = vmatpush2.msra.mxu0 0.0
        %2178 = vmatprep.subr.mxu0 0.0
        %2179 = vmatpush2.msra.mxu0 0.0
        %2180 = vmatprep.subr.mxu0 0.0
        %2181 = vmatpush2.msra.mxu0 0.0
        %2182 = vmatprep.subr.mxu0 0.0
        %2183 = vmatpush2.msra.mxu0 0.0
        %2184 = vmatprep.subr.mxu0 0.0
        %2185 = vmatpush2.msra.mxu0 0.0
        %2186 = vmatprep.subr.mxu0 0.0
        %2187 = vmatpush2.msra.mxu0 0.0
        %2188 = vmatprep.mubr.f32.mxu0 0.0
        %2189 = vmatmul.mubr.f32.gmra.mxu0 %v2119
        %v2190 = vpop.f32.mrf.mxu0
        %v2191 = vadd.f32 0.0, %v2190
        %v2192 = vpop.f32.mrf.mxu0
        %2193 = vmatprep.mubr.f32.mxu0 0.0
        %2194 = vmatmul.mubr.f32.gmra.mxu0 %v2122
        %v2195 = vpop.f32.mrf.mxu0
        %v2196 = vadd.f32 0.0, %v2195
        %v2197 = vpop.f32.mrf.mxu0
        %2198 = vdwg.mxu0
        %2199 = vst.msk [vmem:[#allocation2] sm:$0xff] %vm603, %v1582
        %2200 = vst.msk [vmem:[#allocation2 + $0x8] sm:$0xff] %vm603, %v1587
        %2201 = vst.msk [vmem:[#allocation2 + $0x10] sm:$0xff] %vm603, %v1669
        %2202 = vst.msk [vmem:[#allocation2 + $0x18] sm:$0xff] %vm603, %v1674
        %2203 = vst.msk [vmem:[#allocation2 + $0x20] sm:$0xff] %vm603, %v1756
        %2204 = vst.msk [vmem:[#allocation2 + $0x28] sm:$0xff] %vm603, %v1761
        %2205 = vst.msk [vmem:[#allocation2 + $0x30] sm:$0xff] %vm603, %v1843
        %2206 = vst.msk [vmem:[#allocation2 + $0x38] sm:$0xff] %vm603, %v1848
        %2207 = vst.msk [vmem:[#allocation2 + $0x40] sm:$0xff] %vm603, %v1930
        %2208 = vst.msk [vmem:[#allocation2 + $0x48] sm:$0xff] %vm603, %v1935
        %2209 = vst.msk [vmem:[#allocation2 + $0x50] sm:$0xff] %vm603, %v2017
        %2210 = vst.msk [vmem:[#allocation2 + $0x58] sm:$0xff] %vm603, %v2022
        %2211 = vst.msk [vmem:[#allocation2 + $0x60] sm:$0xff] %vm603, %v2104
        %2212 = vst.msk [vmem:[#allocation2 + $0x68] sm:$0xff] %vm603, %v2109
        %2213 = vst.msk [vmem:[#allocation2 + $0x70] sm:$0xff] %vm603, %v2191
        %2214 = vst.msk [vmem:[#allocation2 + $0x78] sm:$0xff] %vm603, %v2196
        %s2215 = scalar_lea.vmem [#allocation8], 16
        %v2216 = vld [vmem:[%s2215] sm:$0xff]
        %v2217 = vld [vmem:[%s2215 + $0x8] sm:$0xff]
        %2218 = vrot.lane.b32.xlu0 %v501, 120
        %v2219 = vpop.permute.xlu0 %2218
        %2220 = vrot.lane.b32.xlu0 %v506, 120
        %v2221 = vpop.permute.xlu0 %2220
        %2222 = vrot.lane.b32.xlu0 %v501, 88
        %v2223 = vpop.permute.xlu0 %2222
        %2224 = vrot.lane.b32.xlu0 %v506, 88
        %v2225 = vpop.permute.xlu0 %2224
        %v2226 = vsel %vm603, %v2219, 0
        %v2228 = vsel %vm603, %v2221, 0
        %v2230 = vsel %vm603, %v2223, 0
        %v2232 = vsel %vm603, %v2225, 0
        %2234 = vmatprep.subr.mxu0 0.0
        %2235 = vmatpush1.xpose.msra.mxu0 0.0
        %2236 = vmatprep.subr.mxu0 0.0
        %2237 = vmatpush1.xpose.msra.mxu0 0.0
        %2238 = vmatprep.subr.mxu0 0.0
        %2239 = vmatpush1.xpose.msra.mxu0 0.0
        %2240 = vmatprep.subr.mxu0 0.0
        %2241 = vmatpush1.xpose.msra.mxu0 0.0
        %2242 = vmatprep.subr.mxu0 0.0
        %2243 = vmatpush1.xpose.msra.mxu0 0.0
        %2244 = vmatprep.subr.mxu0 0.0
        %2245 = vmatpush1.xpose.msra.mxu0 0.0
        %2246 = vmatprep.subr.mxu0 0.0
        %2247 = vmatpush1.xpose.msra.mxu0 0.0
        %2248 = vmatprep.subr.mxu0 0.0
        %2249 = vmatpush1.xpose.msra.mxu0 0.0
        %2250 = vmatprep.subr.mxu0 0.0
        %2251 = vmatpush1.xpose.msra.mxu0 0.0
        %2252 = vmatprep.subr.mxu0 0.0
        %2253 = vmatpush1.xpose.msra.mxu0 0.0
        %2254 = vmatprep.subr.mxu0 0.0
        %2255 = vmatpush1.xpose.msra.mxu0 0.0
        %2256 = vmatprep.subr.mxu0 0.0
        %2257 = vmatpush1.xpose.msra.mxu0 0.0
        %2258 = vmatprep.subr.mxu0 0.0
        %2259 = vmatpush1.xpose.msra.mxu0 0.0
        %2260 = vmatprep.subr.mxu0 0.0
        %2261 = vmatpush1.xpose.msra.mxu0 0.0
        %2262 = vmatprep.subr.mxu0 0.0
        %2263 = vmatpush1.xpose.msra.mxu0 %v2232
        %2264 = vmatprep.subr.mxu0 0.0
        %2265 = vmatpush1.xpose.msra.mxu0 %v2230
        %2266 = vmatprep.subr.mxu0 0.0
        %2267 = vmatpush2.xpose.msra.mxu0 0.0
        %2268 = vmatprep.subr.mxu0 0.0
        %2269 = vmatpush2.xpose.msra.mxu0 0.0
        %2270 = vmatprep.subr.mxu0 0.0
        %2271 = vmatpush2.xpose.msra.mxu0 0.0
        %2272 = vmatprep.subr.mxu0 0.0
        %2273 = vmatpush2.xpose.msra.mxu0 0.0
        %2274 = vmatprep.subr.mxu0 0.0
        %2275 = vmatpush2.xpose.msra.mxu0 0.0
        %2276 = vmatprep.subr.mxu0 0.0
        %2277 = vmatpush2.xpose.msra.mxu0 0.0
        %2278 = vmatprep.subr.mxu0 0.0
        %2279 = vmatpush2.xpose.msra.mxu0 0.0
        %2280 = vmatprep.subr.mxu0 0.0
        %2281 = vmatpush2.xpose.msra.mxu0 0.0
        %2282 = vmatprep.subr.mxu0 0.0
        %2283 = vmatpush2.xpose.msra.mxu0 0.0
        %2284 = vmatprep.subr.mxu0 0.0
        %2285 = vmatpush2.xpose.msra.mxu0 0.0
        %2286 = vmatprep.subr.mxu0 0.0
        %2287 = vmatpush2.xpose.msra.mxu0 0.0
        %2288 = vmatprep.subr.mxu0 0.0
        %2289 = vmatpush2.xpose.msra.mxu0 0.0
        %2290 = vmatprep.subr.mxu0 0.0
        %2291 = vmatpush2.xpose.msra.mxu0 0.0
        %2292 = vmatprep.subr.mxu0 0.0
        %2293 = vmatpush2.xpose.msra.mxu0 0.0
        %2294 = vmatprep.subr.mxu0 0.0
        %2295 = vmatpush2.xpose.msra.mxu0 0.0
        %2296 = vmatprep.subr.mxu0 0.0
        %2297 = vmatpush2.xpose.msra.mxu0 0.0
        %2298 = vmatprep.mubr.f32.mxu0 0.0
        %2299 = vmatmul.mubr.f32.gmra.mxu0 %v2226
        %v2300 = vpop.f32.mrf.mxu0
        %v2301 = vadd.f32 %v2216, %v2300
        %v2302 = vpop.f32.mrf.mxu0
        %2303 = vmatprep.mubr.f32.mxu0 0.0
        %2304 = vmatmul.mubr.f32.gmra.mxu0 %v2228
        %v2305 = vpop.f32.mrf.mxu0
        %v2306 = vadd.f32 %v2217, %v2305
        %v2307 = vpop.f32.mrf.mxu0
        %2308 = vdwg.mxu0
        %2309 = vrot.lane.b32.xlu0 %v511, 120
        %v2310 = vpop.permute.xlu0 %2309
        %2311 = vrot.lane.b32.xlu0 %v516, 120
        %v2312 = vpop.permute.xlu0 %2311
        %2313 = vrot.lane.b32.xlu0 %v511, 88
        %v2314 = vpop.permute.xlu0 %2313
        %2315 = vrot.lane.b32.xlu0 %v516, 88
        %v2316 = vpop.permute.xlu0 %2315
        %v2317 = vsel %vm603, %v2310, 0
        %v2319 = vsel %vm603, %v2312, 0
        %v2321 = vsel %vm603, %v2314, 0
        %v2323 = vsel %vm603, %v2316, 0
        %2325 = vmatprep.subr.mxu0 0.0
        %2326 = vmatpush1.xpose.msra.mxu0 0.0
        %2327 = vmatprep.subr.mxu0 0.0
        %2328 = vmatpush1.xpose.msra.mxu0 0.0
        %2329 = vmatprep.subr.mxu0 0.0
        %2330 = vmatpush1.xpose.msra.mxu0 0.0
        %2331 = vmatprep.subr.mxu0 0.0
        %2332 = vmatpush1.xpose.msra.mxu0 0.0
        %2333 = vmatprep.subr.mxu0 0.0
        %2334 = vmatpush1.xpose.msra.mxu0 0.0
        %2335 = vmatprep.subr.mxu0 0.0
        %2336 = vmatpush1.xpose.msra.mxu0 0.0
        %2337 = vmatprep.subr.mxu0 0.0
        %2338 = vmatpush1.xpose.msra.mxu0 0.0
        %2339 = vmatprep.subr.mxu0 0.0
        %2340 = vmatpush1.xpose.msra.mxu0 0.0
        %2341 = vmatprep.subr.mxu0 0.0
        %2342 = vmatpush1.xpose.msra.mxu0 0.0
        %2343 = vmatprep.subr.mxu0 0.0
        %2344 = vmatpush1.xpose.msra.mxu0 0.0
        %2345 = vmatprep.subr.mxu0 0.0
        %2346 = vmatpush1.xpose.msra.mxu0 0.0
        %2347 = vmatprep.subr.mxu0 0.0
        %2348 = vmatpush1.xpose.msra.mxu0 0.0
        %2349 = vmatprep.subr.mxu0 0.0
        %2350 = vmatpush1.xpose.msra.mxu0 0.0
        %2351 = vmatprep.subr.mxu0 0.0
        %2352 = vmatpush1.xpose.msra.mxu0 0.0
        %2353 = vmatprep.subr.mxu0 0.0
        %2354 = vmatpush1.xpose.msra.mxu0 %v2323
        %2355 = vmatprep.subr.mxu0 0.0
        %2356 = vmatpush1.xpose.msra.mxu0 %v2321
        %2357 = vmatprep.subr.mxu0 0.0
        %2358 = vmatpush2.xpose.msra.mxu0 0.0
        %2359 = vmatprep.subr.mxu0 0.0
        %2360 = vmatpush2.xpose.msra.mxu0 0.0
        %2361 = vmatprep.subr.mxu0 0.0
        %2362 = vmatpush2.xpose.msra.mxu0 0.0
        %2363 = vmatprep.subr.mxu0 0.0
        %2364 = vmatpush2.xpose.msra.mxu0 0.0
        %2365 = vmatprep.subr.mxu0 0.0
        %2366 = vmatpush2.xpose.msra.mxu0 0.0
        %2367 = vmatprep.subr.mxu0 0.0
        %2368 = vmatpush2.xpose.msra.mxu0 0.0
        %2369 = vmatprep.subr.mxu0 0.0
        %2370 = vmatpush2.xpose.msra.mxu0 0.0
        %2371 = vmatprep.subr.mxu0 0.0
        %2372 = vmatpush2.xpose.msra.mxu0 0.0
        %2373 = vmatprep.subr.mxu0 0.0
        %2374 = vmatpush2.xpose.msra.mxu0 0.0
        %2375 = vmatprep.subr.mxu0 0.0
        %2376 = vmatpush2.xpose.msra.mxu0 0.0
        %2377 = vmatprep.subr.mxu0 0.0
        %2378 = vmatpush2.xpose.msra.mxu0 0.0
        %2379 = vmatprep.subr.mxu0 0.0
        %2380 = vmatpush2.xpose.msra.mxu0 0.0
        %2381 = vmatprep.subr.mxu0 0.0
        %2382 = vmatpush2.xpose.msra.mxu0 0.0
        %2383 = vmatprep.subr.mxu0 0.0
        %2384 = vmatpush2.xpose.msra.mxu0 0.0
        %2385 = vmatprep.subr.mxu0 0.0
        %2386 = vmatpush2.xpose.msra.mxu0 0.0
        %2387 = vmatprep.subr.mxu0 0.0
        %2388 = vmatpush2.xpose.msra.mxu0 0.0
        %2389 = vmatprep.mubr.f32.mxu0 0.0
        %2390 = vmatmul.mubr.f32.gmra.mxu0 %v2317
        %v2391 = vpop.f32.mrf.mxu0
        %v2392 = vadd.f32 %v2216, %v2391
        %v2393 = vpop.f32.mrf.mxu0
        %2394 = vmatprep.mubr.f32.mxu0 0.0
        %2395 = vmatmul.mubr.f32.gmra.mxu0 %v2319
        %v2396 = vpop.f32.mrf.mxu0
        %v2397 = vadd.f32 %v2217, %v2396
        %v2398 = vpop.f32.mrf.mxu0
        %2399 = vdwg.mxu0
        %2400 = vrot.lane.b32.xlu0 %v521, 120
        %v2401 = vpop.permute.xlu0 %2400
        %2402 = vrot.lane.b32.xlu0 %v526, 120
        %v2403 = vpop.permute.xlu0 %2402
        %2404 = vrot.lane.b32.xlu0 %v521, 88
        %v2405 = vpop.permute.xlu0 %2404
        %2406 = vrot.lane.b32.xlu0 %v526, 88
        %v2407 = vpop.permute.xlu0 %2406
        %v2408 = vsel %vm603, %v2401, 0
        %v2410 = vsel %vm603, %v2403, 0
        %v2412 = vsel %vm603, %v2405, 0
        %v2414 = vsel %vm603, %v2407, 0
        %2416 = vmatprep.subr.mxu0 0.0
        %2417 = vmatpush1.xpose.msra.mxu0 0.0
        %2418 = vmatprep.subr.mxu0 0.0
        %2419 = vmatpush1.xpose.msra.mxu0 0.0
        %2420 = vmatprep.subr.mxu0 0.0
        %2421 = vmatpush1.xpose.msra.mxu0 0.0
        %2422 = vmatprep.subr.mxu0 0.0
        %2423 = vmatpush1.xpose.msra.mxu0 0.0
        %2424 = vmatprep.subr.mxu0 0.0
        %2425 = vmatpush1.xpose.msra.mxu0 0.0
        %2426 = vmatprep.subr.mxu0 0.0
        %2427 = vmatpush1.xpose.msra.mxu0 0.0
        %2428 = vmatprep.subr.mxu0 0.0
        %2429 = vmatpush1.xpose.msra.mxu0 0.0
        %2430 = vmatprep.subr.mxu0 0.0
        %2431 = vmatpush1.xpose.msra.mxu0 0.0
        %2432 = vmatprep.subr.mxu0 0.0
        %2433 = vmatpush1.xpose.msra.mxu0 0.0
        %2434 = vmatprep.subr.mxu0 0.0
        %2435 = vmatpush1.xpose.msra.mxu0 0.0
        %2436 = vmatprep.subr.mxu0 0.0
        %2437 = vmatpush1.xpose.msra.mxu0 0.0
        %2438 = vmatprep.subr.mxu0 0.0
        %2439 = vmatpush1.xpose.msra.mxu0 0.0
        %2440 = vmatprep.subr.mxu0 0.0
        %2441 = vmatpush1.xpose.msra.mxu0 0.0
        %2442 = vmatprep.subr.mxu0 0.0
        %2443 = vmatpush1.xpose.msra.mxu0 0.0
        %2444 = vmatprep.subr.mxu0 0.0
        %2445 = vmatpush1.xpose.msra.mxu0 %v2414
        %2446 = vmatprep.subr.mxu0 0.0
        %2447 = vmatpush1.xpose.msra.mxu0 %v2412
        %2448 = vmatprep.subr.mxu0 0.0
        %2449 = vmatpush2.xpose.msra.mxu0 0.0
        %2450 = vmatprep.subr.mxu0 0.0
        %2451 = vmatpush2.xpose.msra.mxu0 0.0
        %2452 = vmatprep.subr.mxu0 0.0
        %2453 = vmatpush2.xpose.msra.mxu0 0.0
        %2454 = vmatprep.subr.mxu0 0.0
        %2455 = vmatpush2.xpose.msra.mxu0 0.0
        %2456 = vmatprep.subr.mxu0 0.0
        %2457 = vmatpush2.xpose.msra.mxu0 0.0
        %2458 = vmatprep.subr.mxu0 0.0
        %2459 = vmatpush2.xpose.msra.mxu0 0.0
        %2460 = vmatprep.subr.mxu0 0.0
        %2461 = vmatpush2.xpose.msra.mxu0 0.0
        %2462 = vmatprep.subr.mxu0 0.0
        %2463 = vmatpush2.xpose.msra.mxu0 0.0
        %2464 = vmatprep.subr.mxu0 0.0
        %2465 = vmatpush2.xpose.msra.mxu0 0.0
        %2466 = vmatprep.subr.mxu0 0.0
        %2467 = vmatpush2.xpose.msra.mxu0 0.0
        %2468 = vmatprep.subr.mxu0 0.0
        %2469 = vmatpush2.xpose.msra.mxu0 0.0
        %2470 = vmatprep.subr.mxu0 0.0
        %2471 = vmatpush2.xpose.msra.mxu0 0.0
        %2472 = vmatprep.subr.mxu0 0.0
        %2473 = vmatpush2.xpose.msra.mxu0 0.0
        %2474 = vmatprep.subr.mxu0 0.0
        %2475 = vmatpush2.xpose.msra.mxu0 0.0
        %2476 = vmatprep.subr.mxu0 0.0
        %2477 = vmatpush2.xpose.msra.mxu0 0.0
        %2478 = vmatprep.subr.mxu0 0.0
        %2479 = vmatpush2.xpose.msra.mxu0 0.0
        %2480 = vmatprep.mubr.f32.mxu0 0.0
        %2481 = vmatmul.mubr.f32.gmra.mxu0 %v2408
        %v2482 = vpop.f32.mrf.mxu0
        %v2483 = vadd.f32 %v2216, %v2482
        %v2484 = vpop.f32.mrf.mxu0
        %2485 = vmatprep.mubr.f32.mxu0 0.0
        %2486 = vmatmul.mubr.f32.gmra.mxu0 %v2410
        %v2487 = vpop.f32.mrf.mxu0
        %v2488 = vadd.f32 %v2217, %v2487
        %v2489 = vpop.f32.mrf.mxu0
        %2490 = vdwg.mxu0
        %2491 = vrot.lane.b32.xlu0 %v531, 120
        %v2492 = vpop.permute.xlu0 %2491
        %2493 = vrot.lane.b32.xlu0 %v536, 120
        %v2494 = vpop.permute.xlu0 %2493
        %2495 = vrot.lane.b32.xlu0 %v531, 88
        %v2496 = vpop.permute.xlu0 %2495
        %2497 = vrot.lane.b32.xlu0 %v536, 88
        %v2498 = vpop.permute.xlu0 %2497
        %v2499 = vsel %vm603, %v2492, 0
        %v2501 = vsel %vm603, %v2494, 0
        %v2503 = vsel %vm603, %v2496, 0
        %v2505 = vsel %vm603, %v2498, 0
        %2507 = vmatprep.subr.mxu0 0.0
        %2508 = vmatpush1.xpose.msra.mxu0 0.0
        %2509 = vmatprep.subr.mxu0 0.0
        %2510 = vmatpush1.xpose.msra.mxu0 0.0
        %2511 = vmatprep.subr.mxu0 0.0
        %2512 = vmatpush1.xpose.msra.mxu0 0.0
        %2513 = vmatprep.subr.mxu0 0.0
        %2514 = vmatpush1.xpose.msra.mxu0 0.0
        %2515 = vmatprep.subr.mxu0 0.0
        %2516 = vmatpush1.xpose.msra.mxu0 0.0
        %2517 = vmatprep.subr.mxu0 0.0
        %2518 = vmatpush1.xpose.msra.mxu0 0.0
        %2519 = vmatprep.subr.mxu0 0.0
        %2520 = vmatpush1.xpose.msra.mxu0 0.0
        %2521 = vmatprep.subr.mxu0 0.0
        %2522 = vmatpush1.xpose.msra.mxu0 0.0
        %2523 = vmatprep.subr.mxu0 0.0
        %2524 = vmatpush1.xpose.msra.mxu0 0.0
        %2525 = vmatprep.subr.mxu0 0.0
        %2526 = vmatpush1.xpose.msra.mxu0 0.0
        %2527 = vmatprep.subr.mxu0 0.0
        %2528 = vmatpush1.xpose.msra.mxu0 0.0
        %2529 = vmatprep.subr.mxu0 0.0
        %2530 = vmatpush1.xpose.msra.mxu0 0.0
        %2531 = vmatprep.subr.mxu0 0.0
        %2532 = vmatpush1.xpose.msra.mxu0 0.0
        %2533 = vmatprep.subr.mxu0 0.0
        %2534 = vmatpush1.xpose.msra.mxu0 0.0
        %2535 = vmatprep.subr.mxu0 0.0
        %2536 = vmatpush1.xpose.msra.mxu0 %v2505
        %2537 = vmatprep.subr.mxu0 0.0
        %2538 = vmatpush1.xpose.msra.mxu0 %v2503
        %2539 = vmatprep.subr.mxu0 0.0
        %2540 = vmatpush2.xpose.msra.mxu0 0.0
        %2541 = vmatprep.subr.mxu0 0.0
        %2542 = vmatpush2.xpose.msra.mxu0 0.0
        %2543 = vmatprep.subr.mxu0 0.0
        %2544 = vmatpush2.xpose.msra.mxu0 0.0
        %2545 = vmatprep.subr.mxu0 0.0
        %2546 = vmatpush2.xpose.msra.mxu0 0.0
        %2547 = vmatprep.subr.mxu0 0.0
        %2548 = vmatpush2.xpose.msra.mxu0 0.0
        %2549 = vmatprep.subr.mxu0 0.0
        %2550 = vmatpush2.xpose.msra.mxu0 0.0
        %2551 = vmatprep.subr.mxu0 0.0
        %2552 = vmatpush2.xpose.msra.mxu0 0.0
        %2553 = vmatprep.subr.mxu0 0.0
        %2554 = vmatpush2.xpose.msra.mxu0 0.0
        %2555 = vmatprep.subr.mxu0 0.0
        %2556 = vmatpush2.xpose.msra.mxu0 0.0
        %2557 = vmatprep.subr.mxu0 0.0
        %2558 = vmatpush2.xpose.msra.mxu0 0.0
        %2559 = vmatprep.subr.mxu0 0.0
        %2560 = vmatpush2.xpose.msra.mxu0 0.0
        %2561 = vmatprep.subr.mxu0 0.0
        %2562 = vmatpush2.xpose.msra.mxu0 0.0
        %2563 = vmatprep.subr.mxu0 0.0
        %2564 = vmatpush2.xpose.msra.mxu0 0.0
        %2565 = vmatprep.subr.mxu0 0.0
        %2566 = vmatpush2.xpose.msra.mxu0 0.0
        %2567 = vmatprep.subr.mxu0 0.0
        %2568 = vmatpush2.xpose.msra.mxu0 0.0
        %2569 = vmatprep.subr.mxu0 0.0
        %2570 = vmatpush2.xpose.msra.mxu0 0.0
        %2571 = vmatprep.mubr.f32.mxu0 0.0
        %2572 = vmatmul.mubr.f32.gmra.mxu0 %v2499
        %v2573 = vpop.f32.mrf.mxu0
        %v2574 = vadd.f32 %v2216, %v2573
        %v2575 = vpop.f32.mrf.mxu0
        %2576 = vmatprep.mubr.f32.mxu0 0.0
        %2577 = vmatmul.mubr.f32.gmra.mxu0 %v2501
        %v2578 = vpop.f32.mrf.mxu0
        %v2579 = vadd.f32 %v2217, %v2578
        %v2580 = vpop.f32.mrf.mxu0
        %2581 = vdwg.mxu0
        %2582 = vrot.lane.b32.xlu0 %v541, 120
        %v2583 = vpop.permute.xlu0 %2582
        %2584 = vrot.lane.b32.xlu0 %v546, 120
        %v2585 = vpop.permute.xlu0 %2584
        %2586 = vrot.lane.b32.xlu0 %v541, 88
        %v2587 = vpop.permute.xlu0 %2586
        %2588 = vrot.lane.b32.xlu0 %v546, 88
        %v2589 = vpop.permute.xlu0 %2588
        %v2590 = vsel %vm603, %v2583, 0
        %v2592 = vsel %vm603, %v2585, 0
        %v2594 = vsel %vm603, %v2587, 0
        %v2596 = vsel %vm603, %v2589, 0
        %2598 = vmatprep.subr.mxu0 0.0
        %2599 = vmatpush1.xpose.msra.mxu0 0.0
        %2600 = vmatprep.subr.mxu0 0.0
        %2601 = vmatpush1.xpose.msra.mxu0 0.0
        %2602 = vmatprep.subr.mxu0 0.0
        %2603 = vmatpush1.xpose.msra.mxu0 0.0
        %2604 = vmatprep.subr.mxu0 0.0
        %2605 = vmatpush1.xpose.msra.mxu0 0.0
        %2606 = vmatprep.subr.mxu0 0.0
        %2607 = vmatpush1.xpose.msra.mxu0 0.0
        %2608 = vmatprep.subr.mxu0 0.0
        %2609 = vmatpush1.xpose.msra.mxu0 0.0
        %2610 = vmatprep.subr.mxu0 0.0
        %2611 = vmatpush1.xpose.msra.mxu0 0.0
        %2612 = vmatprep.subr.mxu0 0.0
        %2613 = vmatpush1.xpose.msra.mxu0 0.0
        %2614 = vmatprep.subr.mxu0 0.0
        %2615 = vmatpush1.xpose.msra.mxu0 0.0
        %2616 = vmatprep.subr.mxu0 0.0
        %2617 = vmatpush1.xpose.msra.mxu0 0.0
        %2618 = vmatprep.subr.mxu0 0.0
        %2619 = vmatpush1.xpose.msra.mxu0 0.0
        %2620 = vmatprep.subr.mxu0 0.0
        %2621 = vmatpush1.xpose.msra.mxu0 0.0
        %2622 = vmatprep.subr.mxu0 0.0
        %2623 = vmatpush1.xpose.msra.mxu0 0.0
        %2624 = vmatprep.subr.mxu0 0.0
        %2625 = vmatpush1.xpose.msra.mxu0 0.0
        %2626 = vmatprep.subr.mxu0 0.0
        %2627 = vmatpush1.xpose.msra.mxu0 %v2596
        %2628 = vmatprep.subr.mxu0 0.0
        %2629 = vmatpush1.xpose.msra.mxu0 %v2594
        %2630 = vmatprep.subr.mxu0 0.0
        %2631 = vmatpush2.xpose.msra.mxu0 0.0
        %2632 = vmatprep.subr.mxu0 0.0
        %2633 = vmatpush2.xpose.msra.mxu0 0.0
        %2634 = vmatprep.subr.mxu0 0.0
        %2635 = vmatpush2.xpose.msra.mxu0 0.0
        %2636 = vmatprep.subr.mxu0 0.0
        %2637 = vmatpush2.xpose.msra.mxu0 0.0
        %2638 = vmatprep.subr.mxu0 0.0
        %2639 = vmatpush2.xpose.msra.mxu0 0.0
        %2640 = vmatprep.subr.mxu0 0.0
        %2641 = vmatpush2.xpose.msra.mxu0 0.0
        %2642 = vmatprep.subr.mxu0 0.0
        %2643 = vmatpush2.xpose.msra.mxu0 0.0
        %2644 = vmatprep.subr.mxu0 0.0
        %2645 = vmatpush2.xpose.msra.mxu0 0.0
        %2646 = vmatprep.subr.mxu0 0.0
        %2647 = vmatpush2.xpose.msra.mxu0 0.0
        %2648 = vmatprep.subr.mxu0 0.0
        %2649 = vmatpush2.xpose.msra.mxu0 0.0
        %2650 = vmatprep.subr.mxu0 0.0
        %2651 = vmatpush2.xpose.msra.mxu0 0.0
        %2652 = vmatprep.subr.mxu0 0.0
        %2653 = vmatpush2.xpose.msra.mxu0 0.0
        %2654 = vmatprep.subr.mxu0 0.0
        %2655 = vmatpush2.xpose.msra.mxu0 0.0
        %2656 = vmatprep.subr.mxu0 0.0
        %2657 = vmatpush2.xpose.msra.mxu0 0.0
        %2658 = vmatprep.subr.mxu0 0.0
        %2659 = vmatpush2.xpose.msra.mxu0 0.0
        %2660 = vmatprep.subr.mxu0 0.0
        %2661 = vmatpush2.xpose.msra.mxu0 0.0
        %2662 = vmatprep.mubr.f32.mxu0 0.0
        %2663 = vmatmul.mubr.f32.gmra.mxu0 %v2590
        %v2664 = vpop.f32.mrf.mxu0
        %v2665 = vadd.f32 %v2216, %v2664
        %v2666 = vpop.f32.mrf.mxu0
        %2667 = vmatprep.mubr.f32.mxu0 0.0
        %2668 = vmatmul.mubr.f32.gmra.mxu0 %v2592
        %v2669 = vpop.f32.mrf.mxu0
        %v2670 = vadd.f32 %v2217, %v2669
        %v2671 = vpop.f32.mrf.mxu0
        %2672 = vdwg.mxu0
        %2673 = vrot.lane.b32.xlu0 %v551, 120
        %v2674 = vpop.permute.xlu0 %2673
        %2675 = vrot.lane.b32.xlu0 %v556, 120
        %v2676 = vpop.permute.xlu0 %2675
        %2677 = vrot.lane.b32.xlu0 %v551, 88
        %v2678 = vpop.permute.xlu0 %2677
        %2679 = vrot.lane.b32.xlu0 %v556, 88
        %v2680 = vpop.permute.xlu0 %2679
        %v2681 = vsel %vm603, %v2674, 0
        %v2683 = vsel %vm603, %v2676, 0
        %v2685 = vsel %vm603, %v2678, 0
        %v2687 = vsel %vm603, %v2680, 0
        %2689 = vmatprep.subr.mxu0 0.0
        %2690 = vmatpush1.xpose.msra.mxu0 0.0
        %2691 = vmatprep.subr.mxu0 0.0
        %2692 = vmatpush1.xpose.msra.mxu0 0.0
        %2693 = vmatprep.subr.mxu0 0.0
        %2694 = vmatpush1.xpose.msra.mxu0 0.0
        %2695 = vmatprep.subr.mxu0 0.0
        %2696 = vmatpush1.xpose.msra.mxu0 0.0
        %2697 = vmatprep.subr.mxu0 0.0
        %2698 = vmatpush1.xpose.msra.mxu0 0.0
        %2699 = vmatprep.subr.mxu0 0.0
        %2700 = vmatpush1.xpose.msra.mxu0 0.0
        %2701 = vmatprep.subr.mxu0 0.0
        %2702 = vmatpush1.xpose.msra.mxu0 0.0
        %2703 = vmatprep.subr.mxu0 0.0
        %2704 = vmatpush1.xpose.msra.mxu0 0.0
        %2705 = vmatprep.subr.mxu0 0.0
        %2706 = vmatpush1.xpose.msra.mxu0 0.0
        %2707 = vmatprep.subr.mxu0 0.0
        %2708 = vmatpush1.xpose.msra.mxu0 0.0
        %2709 = vmatprep.subr.mxu0 0.0
        %2710 = vmatpush1.xpose.msra.mxu0 0.0
        %2711 = vmatprep.subr.mxu0 0.0
        %2712 = vmatpush1.xpose.msra.mxu0 0.0
        %2713 = vmatprep.subr.mxu0 0.0
        %2714 = vmatpush1.xpose.msra.mxu0 0.0
        %2715 = vmatprep.subr.mxu0 0.0
        %2716 = vmatpush1.xpose.msra.mxu0 0.0
        %2717 = vmatprep.subr.mxu0 0.0
        %2718 = vmatpush1.xpose.msra.mxu0 %v2687
        %2719 = vmatprep.subr.mxu0 0.0
        %2720 = vmatpush1.xpose.msra.mxu0 %v2685
        %2721 = vmatprep.subr.mxu0 0.0
        %2722 = vmatpush2.xpose.msra.mxu0 0.0
        %2723 = vmatprep.subr.mxu0 0.0
        %2724 = vmatpush2.xpose.msra.mxu0 0.0
        %2725 = vmatprep.subr.mxu0 0.0
        %2726 = vmatpush2.xpose.msra.mxu0 0.0
        %2727 = vmatprep.subr.mxu0 0.0
        %2728 = vmatpush2.xpose.msra.mxu0 0.0
        %2729 = vmatprep.subr.mxu0 0.0
        %2730 = vmatpush2.xpose.msra.mxu0 0.0
        %2731 = vmatprep.subr.mxu0 0.0
        %2732 = vmatpush2.xpose.msra.mxu0 0.0
        %2733 = vmatprep.subr.mxu0 0.0
        %2734 = vmatpush2.xpose.msra.mxu0 0.0
        %2735 = vmatprep.subr.mxu0 0.0
        %2736 = vmatpush2.xpose.msra.mxu0 0.0
        %2737 = vmatprep.subr.mxu0 0.0
        %2738 = vmatpush2.xpose.msra.mxu0 0.0
        %2739 = vmatprep.subr.mxu0 0.0
        %2740 = vmatpush2.xpose.msra.mxu0 0.0
        %2741 = vmatprep.subr.mxu0 0.0
        %2742 = vmatpush2.xpose.msra.mxu0 0.0
        %2743 = vmatprep.subr.mxu0 0.0
        %2744 = vmatpush2.xpose.msra.mxu0 0.0
        %2745 = vmatprep.subr.mxu0 0.0
        %2746 = vmatpush2.xpose.msra.mxu0 0.0
        %2747 = vmatprep.subr.mxu0 0.0
        %2748 = vmatpush2.xpose.msra.mxu0 0.0
        %2749 = vmatprep.subr.mxu0 0.0
        %2750 = vmatpush2.xpose.msra.mxu0 0.0
        %2751 = vmatprep.subr.mxu0 0.0
        %2752 = vmatpush2.xpose.msra.mxu0 0.0
        %2753 = vmatprep.mubr.f32.mxu0 0.0
        %2754 = vmatmul.mubr.f32.gmra.mxu0 %v2681
        %v2755 = vpop.f32.mrf.mxu0
        %v2756 = vadd.f32 %v2216, %v2755
        %v2757 = vpop.f32.mrf.mxu0
        %2758 = vmatprep.mubr.f32.mxu0 0.0
        %2759 = vmatmul.mubr.f32.gmra.mxu0 %v2683
        %v2760 = vpop.f32.mrf.mxu0
        %v2761 = vadd.f32 %v2217, %v2760
        %v2762 = vpop.f32.mrf.mxu0
        %2763 = vdwg.mxu0
        %2764 = vrot.lane.b32.xlu0 %v561, 120
        %v2765 = vpop.permute.xlu0 %2764
        %2766 = vrot.lane.b32.xlu0 %v566, 120
        %v2767 = vpop.permute.xlu0 %2766
        %2768 = vrot.lane.b32.xlu0 %v561, 88
        %v2769 = vpop.permute.xlu0 %2768
        %2770 = vrot.lane.b32.xlu0 %v566, 88
        %v2771 = vpop.permute.xlu0 %2770
        %v2772 = vsel %vm603, %v2765, 0
        %v2774 = vsel %vm603, %v2767, 0
        %v2776 = vsel %vm603, %v2769, 0
        %v2778 = vsel %vm603, %v2771, 0
        %2780 = vmatprep.subr.mxu0 0.0
        %2781 = vmatpush1.xpose.msra.mxu0 0.0
        %2782 = vmatprep.subr.mxu0 0.0
        %2783 = vmatpush1.xpose.msra.mxu0 0.0
        %2784 = vmatprep.subr.mxu0 0.0
        %2785 = vmatpush1.xpose.msra.mxu0 0.0
        %2786 = vmatprep.subr.mxu0 0.0
        %2787 = vmatpush1.xpose.msra.mxu0 0.0
        %2788 = vmatprep.subr.mxu0 0.0
        %2789 = vmatpush1.xpose.msra.mxu0 0.0
        %2790 = vmatprep.subr.mxu0 0.0
        %2791 = vmatpush1.xpose.msra.mxu0 0.0
        %2792 = vmatprep.subr.mxu0 0.0
        %2793 = vmatpush1.xpose.msra.mxu0 0.0
        %2794 = vmatprep.subr.mxu0 0.0
        %2795 = vmatpush1.xpose.msra.mxu0 0.0
        %2796 = vmatprep.subr.mxu0 0.0
        %2797 = vmatpush1.xpose.msra.mxu0 0.0
        %2798 = vmatprep.subr.mxu0 0.0
        %2799 = vmatpush1.xpose.msra.mxu0 0.0
        %2800 = vmatprep.subr.mxu0 0.0
        %2801 = vmatpush1.xpose.msra.mxu0 0.0
        %2802 = vmatprep.subr.mxu0 0.0
        %2803 = vmatpush1.xpose.msra.mxu0 0.0
        %2804 = vmatprep.subr.mxu0 0.0
        %2805 = vmatpush1.xpose.msra.mxu0 0.0
        %2806 = vmatprep.subr.mxu0 0.0
        %2807 = vmatpush1.xpose.msra.mxu0 0.0
        %2808 = vmatprep.subr.mxu0 0.0
        %2809 = vmatpush1.xpose.msra.mxu0 %v2778
        %2810 = vmatprep.subr.mxu0 0.0
        %2811 = vmatpush1.xpose.msra.mxu0 %v2776
        %2812 = vmatprep.subr.mxu0 0.0
        %2813 = vmatpush2.xpose.msra.mxu0 0.0
        %2814 = vmatprep.subr.mxu0 0.0
        %2815 = vmatpush2.xpose.msra.mxu0 0.0
        %2816 = vmatprep.subr.mxu0 0.0
        %2817 = vmatpush2.xpose.msra.mxu0 0.0
        %2818 = vmatprep.subr.mxu0 0.0
        %2819 = vmatpush2.xpose.msra.mxu0 0.0
        %2820 = vmatprep.subr.mxu0 0.0
        %2821 = vmatpush2.xpose.msra.mxu0 0.0
        %2822 = vmatprep.subr.mxu0 0.0
        %2823 = vmatpush2.xpose.msra.mxu0 0.0
        %2824 = vmatprep.subr.mxu0 0.0
        %2825 = vmatpush2.xpose.msra.mxu0 0.0
        %2826 = vmatprep.subr.mxu0 0.0
        %2827 = vmatpush2.xpose.msra.mxu0 0.0
        %2828 = vmatprep.subr.mxu0 0.0
        %2829 = vmatpush2.xpose.msra.mxu0 0.0
        %2830 = vmatprep.subr.mxu0 0.0
        %2831 = vmatpush2.xpose.msra.mxu0 0.0
        %2832 = vmatprep.subr.mxu0 0.0
        %2833 = vmatpush2.xpose.msra.mxu0 0.0
        %2834 = vmatprep.subr.mxu0 0.0
        %2835 = vmatpush2.xpose.msra.mxu0 0.0
        %2836 = vmatprep.subr.mxu0 0.0
        %2837 = vmatpush2.xpose.msra.mxu0 0.0
        %2838 = vmatprep.subr.mxu0 0.0
        %2839 = vmatpush2.xpose.msra.mxu0 0.0
        %2840 = vmatprep.subr.mxu0 0.0
        %2841 = vmatpush2.xpose.msra.mxu0 0.0
        %2842 = vmatprep.subr.mxu0 0.0
        %2843 = vmatpush2.xpose.msra.mxu0 0.0
        %2844 = vmatprep.mubr.f32.mxu0 0.0
        %2845 = vmatmul.mubr.f32.gmra.mxu0 %v2772
        %v2846 = vpop.f32.mrf.mxu0
        %v2847 = vadd.f32 %v2216, %v2846
        %v2848 = vpop.f32.mrf.mxu0
        %2849 = vmatprep.mubr.f32.mxu0 0.0
        %2850 = vmatmul.mubr.f32.gmra.mxu0 %v2774
        %v2851 = vpop.f32.mrf.mxu0
        %v2852 = vadd.f32 %v2217, %v2851
        %v2853 = vpop.f32.mrf.mxu0
        %2854 = vdwg.mxu0
        %2855 = vrot.lane.b32.xlu0 %v571, 120
        %v2856 = vpop.permute.xlu0 %2855
        %2857 = vrot.lane.b32.xlu0 %v576, 120
        %v2858 = vpop.permute.xlu0 %2857
        %2859 = vrot.lane.b32.xlu0 %v571, 88
        %v2860 = vpop.permute.xlu0 %2859
        %2861 = vrot.lane.b32.xlu0 %v576, 88
        %v2862 = vpop.permute.xlu0 %2861
        %v2863 = vsel %vm603, %v2856, 0
        %v2865 = vsel %vm603, %v2858, 0
        %v2867 = vsel %vm603, %v2860, 0
        %v2869 = vsel %vm603, %v2862, 0
        %2871 = vmatprep.subr.mxu0 0.0
        %2872 = vmatpush1.xpose.msra.mxu0 0.0
        %2873 = vmatprep.subr.mxu0 0.0
        %2874 = vmatpush1.xpose.msra.mxu0 0.0
        %2875 = vmatprep.subr.mxu0 0.0
        %2876 = vmatpush1.xpose.msra.mxu0 0.0
        %2877 = vmatprep.subr.mxu0 0.0
        %2878 = vmatpush1.xpose.msra.mxu0 0.0
        %2879 = vmatprep.subr.mxu0 0.0
        %2880 = vmatpush1.xpose.msra.mxu0 0.0
        %2881 = vmatprep.subr.mxu0 0.0
        %2882 = vmatpush1.xpose.msra.mxu0 0.0
        %2883 = vmatprep.subr.mxu0 0.0
        %2884 = vmatpush1.xpose.msra.mxu0 0.0
        %2885 = vmatprep.subr.mxu0 0.0
        %2886 = vmatpush1.xpose.msra.mxu0 0.0
        %2887 = vmatprep.subr.mxu0 0.0
        %2888 = vmatpush1.xpose.msra.mxu0 0.0
        %2889 = vmatprep.subr.mxu0 0.0
        %2890 = vmatpush1.xpose.msra.mxu0 0.0
        %2891 = vmatprep.subr.mxu0 0.0
        %2892 = vmatpush1.xpose.msra.mxu0 0.0
        %2893 = vmatprep.subr.mxu0 0.0
        %2894 = vmatpush1.xpose.msra.mxu0 0.0
        %2895 = vmatprep.subr.mxu0 0.0
        %2896 = vmatpush1.xpose.msra.mxu0 0.0
        %2897 = vmatprep.subr.mxu0 0.0
        %2898 = vmatpush1.xpose.msra.mxu0 0.0
        %2899 = vmatprep.subr.mxu0 0.0
        %2900 = vmatpush1.xpose.msra.mxu0 %v2869
        %2901 = vmatprep.subr.mxu0 0.0
        %2902 = vmatpush1.xpose.msra.mxu0 %v2867
        %2903 = vmatprep.subr.mxu0 0.0
        %2904 = vmatpush2.xpose.msra.mxu0 0.0
        %2905 = vmatprep.subr.mxu0 0.0
        %2906 = vmatpush2.xpose.msra.mxu0 0.0
        %2907 = vmatprep.subr.mxu0 0.0
        %2908 = vmatpush2.xpose.msra.mxu0 0.0
        %2909 = vmatprep.subr.mxu0 0.0
        %2910 = vmatpush2.xpose.msra.mxu0 0.0
        %2911 = vmatprep.subr.mxu0 0.0
        %2912 = vmatpush2.xpose.msra.mxu0 0.0
        %2913 = vmatprep.subr.mxu0 0.0
        %2914 = vmatpush2.xpose.msra.mxu0 0.0
        %2915 = vmatprep.subr.mxu0 0.0
        %2916 = vmatpush2.xpose.msra.mxu0 0.0
        %2917 = vmatprep.subr.mxu0 0.0
        %2918 = vmatpush2.xpose.msra.mxu0 0.0
        %2919 = vmatprep.subr.mxu0 0.0
        %2920 = vmatpush2.xpose.msra.mxu0 0.0
        %2921 = vmatprep.subr.mxu0 0.0
        %2922 = vmatpush2.xpose.msra.mxu0 0.0
        %2923 = vmatprep.subr.mxu0 0.0
        %2924 = vmatpush2.xpose.msra.mxu0 0.0
        %2925 = vmatprep.subr.mxu0 0.0
        %2926 = vmatpush2.xpose.msra.mxu0 0.0
        %2927 = vmatprep.subr.mxu0 0.0
        %2928 = vmatpush2.xpose.msra.mxu0 0.0
        %2929 = vmatprep.subr.mxu0 0.0
        %2930 = vmatpush2.xpose.msra.mxu0 0.0
        %2931 = vmatprep.subr.mxu0 0.0
        %2932 = vmatpush2.xpose.msra.mxu0 0.0
        %2933 = vmatprep.subr.mxu0 0.0
        %2934 = vmatpush2.xpose.msra.mxu0 0.0
        %2935 = vmatprep.mubr.f32.mxu0 0.0
        %2936 = vmatmul.mubr.f32.gmra.mxu0 %v2863
        %v2937 = vpop.f32.mrf.mxu0
        %v2938 = vadd.f32 %v2216, %v2937
        %v2939 = vpop.f32.mrf.mxu0
        %2940 = vmatprep.mubr.f32.mxu0 0.0
        %2941 = vmatmul.mubr.f32.gmra.mxu0 %v2865
        %v2942 = vpop.f32.mrf.mxu0
        %v2943 = vadd.f32 %v2217, %v2942
        %v2944 = vpop.f32.mrf.mxu0
        %2945 = vdwg.mxu0
        %v2946 = vadd.f32 %v2301, %v579
        %v2947 = vadd.f32 %v2306, %v580
        %v2948 = vadd.f32 %v2392, %v581
        %v2949 = vadd.f32 %v2397, %v582
        %v2950 = vadd.f32 %v2483, %v583
        %v2951 = vadd.f32 %v2488, %v584
        %v2952 = vadd.f32 %v2574, %v585
        %v2953 = vadd.f32 %v2579, %v586
        %v2954 = vadd.f32 %v2665, %v587
        %v2955 = vadd.f32 %v2670, %v588
        %v2956 = vadd.f32 %v2756, %v589
        %v2957 = vadd.f32 %v2761, %v590
        %v2958 = vadd.f32 %v2847, %v591
        %v2959 = vadd.f32 %v2852, %v592
        %v2960 = vadd.f32 %v2938, %v593
        %v2961 = vadd.f32 %v2943, %v594
        %v2962 = vsel %vm1326, %v2946, -inf
        %2963 = vmax.xlane.f32.xlu0 %v2962
        %v2964 = vpop.xlane.xlu0 %2963
        %v2965 = vsel %vm1326, %v2947, -inf
        %2966 = vmax.xlane.f32.xlu0 %v2965
        %v2967 = vpop.xlane.xlu0 %2966
        %v2968 = vsel %vm1326, %v2948, -inf
        %2969 = vmax.xlane.f32.xlu0 %v2968
        %v2970 = vpop.xlane.xlu0 %2969
        %v2971 = vsel %vm1326, %v2949, -inf
        %2972 = vmax.xlane.f32.xlu0 %v2971
        %v2973 = vpop.xlane.xlu0 %2972
        %v2974 = vsel %vm1326, %v2950, -inf
        %2975 = vmax.xlane.f32.xlu0 %v2974
        %v2976 = vpop.xlane.xlu0 %2975
        %v2977 = vsel %vm1326, %v2951, -inf
        %2978 = vmax.xlane.f32.xlu0 %v2977
        %v2979 = vpop.xlane.xlu0 %2978
        %v2980 = vsel %vm1326, %v2952, -inf
        %2981 = vmax.xlane.f32.xlu0 %v2980
        %v2982 = vpop.xlane.xlu0 %2981
        %v2983 = vsel %vm1326, %v2953, -inf
        %2984 = vmax.xlane.f32.xlu0 %v2983
        %v2985 = vpop.xlane.xlu0 %2984
        %v2986 = vsel %vm1326, %v2954, -inf
        %2987 = vmax.xlane.f32.xlu0 %v2986
        %v2988 = vpop.xlane.xlu0 %2987
        %v2989 = vsel %vm1326, %v2955, -inf
        %2990 = vmax.xlane.f32.xlu0 %v2989
        %v2991 = vpop.xlane.xlu0 %2990
        %v2992 = vsel %vm1326, %v2956, -inf
        %2993 = vmax.xlane.f32.xlu0 %v2992
        %v2994 = vpop.xlane.xlu0 %2993
        %v2995 = vsel %vm1326, %v2957, -inf
        %2996 = vmax.xlane.f32.xlu0 %v2995
        %v2997 = vpop.xlane.xlu0 %2996
        %v2998 = vsel %vm1326, %v2958, -inf
        %2999 = vmax.xlane.f32.xlu0 %v2998
        %v3000 = vpop.xlane.xlu0 %2999
        %v3001 = vsel %vm1326, %v2959, -inf
        %3002 = vmax.xlane.f32.xlu0 %v3001
        %v3003 = vpop.xlane.xlu0 %3002
        %v3004 = vsel %vm1326, %v2960, -inf
        %3005 = vmax.xlane.f32.xlu0 %v3004
        %v3006 = vpop.xlane.xlu0 %3005
        %v3007 = vsel %vm1326, %v2961, -inf
        %3008 = vmax.xlane.f32.xlu0 %v3007
        %v3009 = vpop.xlane.xlu0 %3008
        %v3010 = vsub.f32 %v2946, %v2964
        %v3011 = vsub.f32 %v2947, %v2967
        %v3012 = vsub.f32 %v2948, %v2970
        %v3013 = vsub.f32 %v2949, %v2973
        %v3014 = vsub.f32 %v2950, %v2976
        %v3015 = vsub.f32 %v2951, %v2979
        %v3016 = vsub.f32 %v2952, %v2982
        %v3017 = vsub.f32 %v2953, %v2985
        %v3018 = vsub.f32 %v2954, %v2988
        %v3019 = vsub.f32 %v2955, %v2991
        %v3020 = vsub.f32 %v2956, %v2994
        %v3021 = vsub.f32 %v2957, %v2997
        %v3022 = vsub.f32 %v2958, %v3000
        %v3023 = vsub.f32 %v2959, %v3003
        %v3024 = vsub.f32 %v2960, %v3006
        %v3025 = vsub.f32 %v2961, %v3009
        %v3026 = vmul.f32 %v3010, 1.442695
        %v3027 = vpow.pop %v3026
        %v3028 = vmul.f32 %v3011, 1.442695
        %v3029 = vpow.pop %v3028
        %v3030 = vmul.f32 %v3012, 1.442695
        %v3031 = vpow.pop %v3030
        %v3032 = vmul.f32 %v3013, 1.442695
        %v3033 = vpow.pop %v3032
        %v3034 = vmul.f32 %v3014, 1.442695
        %v3035 = vpow.pop %v3034
        %v3036 = vmul.f32 %v3015, 1.442695
        %v3037 = vpow.pop %v3036
        %v3038 = vmul.f32 %v3016, 1.442695
        %v3039 = vpow.pop %v3038
        %v3040 = vmul.f32 %v3017, 1.442695
        %v3041 = vpow.pop %v3040
        %v3042 = vmul.f32 %v3018, 1.442695
        %v3043 = vpow.pop %v3042
        %v3044 = vmul.f32 %v3019, 1.442695
        %v3045 = vpow.pop %v3044
        %v3046 = vmul.f32 %v3020, 1.442695
        %v3047 = vpow.pop %v3046
        %v3048 = vmul.f32 %v3021, 1.442695
        %v3049 = vpow.pop %v3048
        %v3050 = vmul.f32 %v3022, 1.442695
        %v3051 = vpow.pop %v3050
        %v3052 = vmul.f32 %v3023, 1.442695
        %v3053 = vpow.pop %v3052
        %v3054 = vmul.f32 %v3024, 1.442695
        %v3055 = vpow.pop %v3054
        %v3056 = vmul.f32 %v3025, 1.442695
        %v3057 = vpow.pop %v3056
        %v3058 = vsel %vm1326, %v3027, 0.0
        %3059 = vadd.xlane.f32.xlu0 %v3058
        %v3060 = vpop.xlane.xlu0 %3059
        %v3061 = vsel %vm1326, %v3029, 0.0
        %3062 = vadd.xlane.f32.xlu0 %v3061
        %v3063 = vpop.xlane.xlu0 %3062
        %v3064 = vsel %vm1326, %v3031, 0.0
        %3065 = vadd.xlane.f32.xlu0 %v3064
        %v3066 = vpop.xlane.xlu0 %3065
        %v3067 = vsel %vm1326, %v3033, 0.0
        %3068 = vadd.xlane.f32.xlu0 %v3067
        %v3069 = vpop.xlane.xlu0 %3068
        %v3070 = vsel %vm1326, %v3035, 0.0
        %3071 = vadd.xlane.f32.xlu0 %v3070
        %v3072 = vpop.xlane.xlu0 %3071
        %v3073 = vsel %vm1326, %v3037, 0.0
        %3074 = vadd.xlane.f32.xlu0 %v3073
        %v3075 = vpop.xlane.xlu0 %3074
        %v3076 = vsel %vm1326, %v3039, 0.0
        %3077 = vadd.xlane.f32.xlu0 %v3076
        %v3078 = vpop.xlane.xlu0 %3077
        %v3079 = vsel %vm1326, %v3041, 0.0
        %3080 = vadd.xlane.f32.xlu0 %v3079
        %v3081 = vpop.xlane.xlu0 %3080
        %v3082 = vsel %vm1326, %v3043, 0.0
        %3083 = vadd.xlane.f32.xlu0 %v3082
        %v3084 = vpop.xlane.xlu0 %3083
        %v3085 = vsel %vm1326, %v3045, 0.0
        %3086 = vadd.xlane.f32.xlu0 %v3085
        %v3087 = vpop.xlane.xlu0 %3086
        %v3088 = vsel %vm1326, %v3047, 0.0
        %3089 = vadd.xlane.f32.xlu0 %v3088
        %v3090 = vpop.xlane.xlu0 %3089
        %v3091 = vsel %vm1326, %v3049, 0.0
        %3092 = vadd.xlane.f32.xlu0 %v3091
        %v3093 = vpop.xlane.xlu0 %3092
        %v3094 = vsel %vm1326, %v3051, 0.0
        %3095 = vadd.xlane.f32.xlu0 %v3094
        %v3096 = vpop.xlane.xlu0 %3095
        %v3097 = vsel %vm1326, %v3053, 0.0
        %3098 = vadd.xlane.f32.xlu0 %v3097
        %v3099 = vpop.xlane.xlu0 %3098
        %v3100 = vsel %vm1326, %v3055, 0.0
        %3101 = vadd.xlane.f32.xlu0 %v3100
        %v3102 = vpop.xlane.xlu0 %3101
        %v3103 = vsel %vm1326, %v3057, 0.0
        %3104 = vadd.xlane.f32.xlu0 %v3103
        %v3105 = vpop.xlane.xlu0 %3104
        %v3106 = vrcp.pop %v3060
        %v3107 = vrcp.pop %v3063
        %v3108 = vrcp.pop %v3066
        %v3109 = vrcp.pop %v3069
        %v3110 = vrcp.pop %v3072
        %v3111 = vrcp.pop %v3075
        %v3112 = vrcp.pop %v3078
        %v3113 = vrcp.pop %v3081
        %v3114 = vrcp.pop %v3084
        %v3115 = vrcp.pop %v3087
        %v3116 = vrcp.pop %v3090
        %v3117 = vrcp.pop %v3093
        %v3118 = vrcp.pop %v3096
        %v3119 = vrcp.pop %v3099
        %v3120 = vrcp.pop %v3102
        %v3121 = vrcp.pop %v3105
        %v3122 = vmul.f32 %v3027, %v3106
        %v3123 = vmul.f32 %v3029, %v3107
        %v3124 = vmul.f32 %v3031, %v3108
        %v3125 = vmul.f32 %v3033, %v3109
        %v3126 = vmul.f32 %v3035, %v3110
        %v3127 = vmul.f32 %v3037, %v3111
        %v3128 = vmul.f32 %v3039, %v3112
        %v3129 = vmul.f32 %v3041, %v3113
        %v3130 = vmul.f32 %v3043, %v3114
        %v3131 = vmul.f32 %v3045, %v3115
        %v3132 = vmul.f32 %v3047, %v3116
        %v3133 = vmul.f32 %v3049, %v3117
        %v3134 = vmul.f32 %v3051, %v3118
        %v3135 = vmul.f32 %v3053, %v3119
        %v3136 = vmul.f32 %v3055, %v3120
        %v3137 = vmul.f32 %v3057, %v3121
        %3138 = vrot.lane.b32.xlu0 %v501, 56
        %v3139 = vpop.permute.xlu0 %3138
        %3140 = vrot.lane.b32.xlu0 %v506, 56
        %v3141 = vpop.permute.xlu0 %3140
        %v3145 = vsel %vm1326, %v3122, 0
        %v3148 = vsel %vm1326, %v3123, 0
        %3150 = vmatprep.subr.mxu0 0.0
        %3151 = vmatpush1.msra.mxu0 0.0
        %3152 = vmatprep.subr.mxu0 0.0
        %3153 = vmatpush1.msra.mxu0 0.0
        %3154 = vmatprep.subr.mxu0 0.0
        %3155 = vmatpush1.msra.mxu0 0.0
        %3156 = vmatprep.subr.mxu0 0.0
        %3157 = vmatpush1.msra.mxu0 0.0
        %3158 = vmatprep.subr.mxu0 0.0
        %3159 = vmatpush1.msra.mxu0 0.0
        %3160 = vmatprep.subr.mxu0 0.0
        %3161 = vmatpush1.msra.mxu0 0.0
        %3162 = vmatprep.subr.mxu0 0.0
        %3163 = vmatpush1.msra.mxu0 0.0
        %3164 = vmatprep.subr.mxu0 0.0
        %3165 = vmatpush1.msra.mxu0 0.0
        %3166 = vmatprep.subr.mxu0 0.0
        %3167 = vmatpush1.msra.mxu0 0.0
        %3168 = vmatprep.subr.mxu0 0.0
        %3169 = vmatpush1.msra.mxu0 0.0
        %3170 = vmatprep.subr.mxu0 0.0
        %3171 = vmatpush1.msra.mxu0 0.0
        %3172 = vmatprep.subr.mxu0 0.0
        %3173 = vmatpush1.msra.mxu0 0.0
        %3174 = vmatprep.subr.mxu0 0.0
        %3175 = vmatpush1.msra.mxu0 0.0
        %3176 = vmatprep.subr.mxu0 0.0
        %3177 = vmatpush1.msra.mxu0 0.0
        %3178 = vmatprep.subr.mxu0 0.0
        %3179 = vmatpush1.msra.mxu0 %v3141
        %3180 = vmatprep.subr.mxu0 0.0
        %3181 = vmatpush1.msra.mxu0 %v3139
        %3182 = vmatprep.subr.mxu0 0.0
        %3183 = vmatpush2.msra.mxu0 0.0
        %3184 = vmatprep.subr.mxu0 0.0
        %3185 = vmatpush2.msra.mxu0 0.0
        %3186 = vmatprep.subr.mxu0 0.0
        %3187 = vmatpush2.msra.mxu0 0.0
        %3188 = vmatprep.subr.mxu0 0.0
        %3189 = vmatpush2.msra.mxu0 0.0
        %3190 = vmatprep.subr.mxu0 0.0
        %3191 = vmatpush2.msra.mxu0 0.0
        %3192 = vmatprep.subr.mxu0 0.0
        %3193 = vmatpush2.msra.mxu0 0.0
        %3194 = vmatprep.subr.mxu0 0.0
        %3195 = vmatpush2.msra.mxu0 0.0
        %3196 = vmatprep.subr.mxu0 0.0
        %3197 = vmatpush2.msra.mxu0 0.0
        %3198 = vmatprep.subr.mxu0 0.0
        %3199 = vmatpush2.msra.mxu0 0.0
        %3200 = vmatprep.subr.mxu0 0.0
        %3201 = vmatpush2.msra.mxu0 0.0
        %3202 = vmatprep.subr.mxu0 0.0
        %3203 = vmatpush2.msra.mxu0 0.0
        %3204 = vmatprep.subr.mxu0 0.0
        %3205 = vmatpush2.msra.mxu0 0.0
        %3206 = vmatprep.subr.mxu0 0.0
        %3207 = vmatpush2.msra.mxu0 0.0
        %3208 = vmatprep.subr.mxu0 0.0
        %3209 = vmatpush2.msra.mxu0 0.0
        %3210 = vmatprep.subr.mxu0 0.0
        %3211 = vmatpush2.msra.mxu0 0.0
        %3212 = vmatprep.subr.mxu0 0.0
        %3213 = vmatpush2.msra.mxu0 0.0
        %3214 = vmatprep.mubr.f32.mxu0 0.0
        %3215 = vmatmul.mubr.f32.gmra.mxu0 %v3145
        %v3216 = vpop.f32.mrf.mxu0
        %v3217 = vadd.f32 0.0, %v3216
        %v3218 = vpop.f32.mrf.mxu0
        %3219 = vmatprep.mubr.f32.mxu0 0.0
        %3220 = vmatmul.mubr.f32.gmra.mxu0 %v3148
        %v3221 = vpop.f32.mrf.mxu0
        %v3222 = vadd.f32 0.0, %v3221
        %v3223 = vpop.f32.mrf.mxu0
        %3224 = vdwg.mxu0
        %3225 = vrot.lane.b32.xlu0 %v511, 56
        %v3226 = vpop.permute.xlu0 %3225
        %3227 = vrot.lane.b32.xlu0 %v516, 56
        %v3228 = vpop.permute.xlu0 %3227
        %v3232 = vsel %vm1326, %v3124, 0
        %v3235 = vsel %vm1326, %v3125, 0
        %3237 = vmatprep.subr.mxu0 0.0
        %3238 = vmatpush1.msra.mxu0 0.0
        %3239 = vmatprep.subr.mxu0 0.0
        %3240 = vmatpush1.msra.mxu0 0.0
        %3241 = vmatprep.subr.mxu0 0.0
        %3242 = vmatpush1.msra.mxu0 0.0
        %3243 = vmatprep.subr.mxu0 0.0
        %3244 = vmatpush1.msra.mxu0 0.0
        %3245 = vmatprep.subr.mxu0 0.0
        %3246 = vmatpush1.msra.mxu0 0.0
        %3247 = vmatprep.subr.mxu0 0.0
        %3248 = vmatpush1.msra.mxu0 0.0
        %3249 = vmatprep.subr.mxu0 0.0
        %3250 = vmatpush1.msra.mxu0 0.0
        %3251 = vmatprep.subr.mxu0 0.0
        %3252 = vmatpush1.msra.mxu0 0.0
        %3253 = vmatprep.subr.mxu0 0.0
        %3254 = vmatpush1.msra.mxu0 0.0
        %3255 = vmatprep.subr.mxu0 0.0
        %3256 = vmatpush1.msra.mxu0 0.0
        %3257 = vmatprep.subr.mxu0 0.0
        %3258 = vmatpush1.msra.mxu0 0.0
        %3259 = vmatprep.subr.mxu0 0.0
        %3260 = vmatpush1.msra.mxu0 0.0
        %3261 = vmatprep.subr.mxu0 0.0
        %3262 = vmatpush1.msra.mxu0 0.0
        %3263 = vmatprep.subr.mxu0 0.0
        %3264 = vmatpush1.msra.mxu0 0.0
        %3265 = vmatprep.subr.mxu0 0.0
        %3266 = vmatpush1.msra.mxu0 %v3228
        %3267 = vmatprep.subr.mxu0 0.0
        %3268 = vmatpush1.msra.mxu0 %v3226
        %3269 = vmatprep.subr.mxu0 0.0
        %3270 = vmatpush2.msra.mxu0 0.0
        %3271 = vmatprep.subr.mxu0 0.0
        %3272 = vmatpush2.msra.mxu0 0.0
        %3273 = vmatprep.subr.mxu0 0.0
        %3274 = vmatpush2.msra.mxu0 0.0
        %3275 = vmatprep.subr.mxu0 0.0
        %3276 = vmatpush2.msra.mxu0 0.0
        %3277 = vmatprep.subr.mxu0 0.0
        %3278 = vmatpush2.msra.mxu0 0.0
        %3279 = vmatprep.subr.mxu0 0.0
        %3280 = vmatpush2.msra.mxu0 0.0
        %3281 = vmatprep.subr.mxu0 0.0
        %3282 = vmatpush2.msra.mxu0 0.0
        %3283 = vmatprep.subr.mxu0 0.0
        %3284 = vmatpush2.msra.mxu0 0.0
        %3285 = vmatprep.subr.mxu0 0.0
        %3286 = vmatpush2.msra.mxu0 0.0
        %3287 = vmatprep.subr.mxu0 0.0
        %3288 = vmatpush2.msra.mxu0 0.0
        %3289 = vmatprep.subr.mxu0 0.0
        %3290 = vmatpush2.msra.mxu0 0.0
        %3291 = vmatprep.subr.mxu0 0.0
        %3292 = vmatpush2.msra.mxu0 0.0
        %3293 = vmatprep.subr.mxu0 0.0
        %3294 = vmatpush2.msra.mxu0 0.0
        %3295 = vmatprep.subr.mxu0 0.0
        %3296 = vmatpush2.msra.mxu0 0.0
        %3297 = vmatprep.subr.mxu0 0.0
        %3298 = vmatpush2.msra.mxu0 0.0
        %3299 = vmatprep.subr.mxu0 0.0
        %3300 = vmatpush2.msra.mxu0 0.0
        %3301 = vmatprep.mubr.f32.mxu0 0.0
        %3302 = vmatmul.mubr.f32.gmra.mxu0 %v3232
        %v3303 = vpop.f32.mrf.mxu0
        %v3304 = vadd.f32 0.0, %v3303
        %v3305 = vpop.f32.mrf.mxu0
        %3306 = vmatprep.mubr.f32.mxu0 0.0
        %3307 = vmatmul.mubr.f32.gmra.mxu0 %v3235
        %v3308 = vpop.f32.mrf.mxu0
        %v3309 = vadd.f32 0.0, %v3308
        %v3310 = vpop.f32.mrf.mxu0
        %3311 = vdwg.mxu0
        %3312 = vrot.lane.b32.xlu0 %v521, 56
        %v3313 = vpop.permute.xlu0 %3312
        %3314 = vrot.lane.b32.xlu0 %v526, 56
        %v3315 = vpop.permute.xlu0 %3314
        %v3319 = vsel %vm1326, %v3126, 0
        %v3322 = vsel %vm1326, %v3127, 0
        %3324 = vmatprep.subr.mxu0 0.0
        %3325 = vmatpush1.msra.mxu0 0.0
        %3326 = vmatprep.subr.mxu0 0.0
        %3327 = vmatpush1.msra.mxu0 0.0
        %3328 = vmatprep.subr.mxu0 0.0
        %3329 = vmatpush1.msra.mxu0 0.0
        %3330 = vmatprep.subr.mxu0 0.0
        %3331 = vmatpush1.msra.mxu0 0.0
        %3332 = vmatprep.subr.mxu0 0.0
        %3333 = vmatpush1.msra.mxu0 0.0
        %3334 = vmatprep.subr.mxu0 0.0
        %3335 = vmatpush1.msra.mxu0 0.0
        %3336 = vmatprep.subr.mxu0 0.0
        %3337 = vmatpush1.msra.mxu0 0.0
        %3338 = vmatprep.subr.mxu0 0.0
        %3339 = vmatpush1.msra.mxu0 0.0
        %3340 = vmatprep.subr.mxu0 0.0
        %3341 = vmatpush1.msra.mxu0 0.0
        %3342 = vmatprep.subr.mxu0 0.0
        %3343 = vmatpush1.msra.mxu0 0.0
        %3344 = vmatprep.subr.mxu0 0.0
        %3345 = vmatpush1.msra.mxu0 0.0
        %3346 = vmatprep.subr.mxu0 0.0
        %3347 = vmatpush1.msra.mxu0 0.0
        %3348 = vmatprep.subr.mxu0 0.0
        %3349 = vmatpush1.msra.mxu0 0.0
        %3350 = vmatprep.subr.mxu0 0.0
        %3351 = vmatpush1.msra.mxu0 0.0
        %3352 = vmatprep.subr.mxu0 0.0
        %3353 = vmatpush1.msra.mxu0 %v3315
        %3354 = vmatprep.subr.mxu0 0.0
        %3355 = vmatpush1.msra.mxu0 %v3313
        %3356 = vmatprep.subr.mxu0 0.0
        %3357 = vmatpush2.msra.mxu0 0.0
        %3358 = vmatprep.subr.mxu0 0.0
        %3359 = vmatpush2.msra.mxu0 0.0
        %3360 = vmatprep.subr.mxu0 0.0
        %3361 = vmatpush2.msra.mxu0 0.0
        %3362 = vmatprep.subr.mxu0 0.0
        %3363 = vmatpush2.msra.mxu0 0.0
        %3364 = vmatprep.subr.mxu0 0.0
        %3365 = vmatpush2.msra.mxu0 0.0
        %3366 = vmatprep.subr.mxu0 0.0
        %3367 = vmatpush2.msra.mxu0 0.0
        %3368 = vmatprep.subr.mxu0 0.0
        %3369 = vmatpush2.msra.mxu0 0.0
        %3370 = vmatprep.subr.mxu0 0.0
        %3371 = vmatpush2.msra.mxu0 0.0
        %3372 = vmatprep.subr.mxu0 0.0
        %3373 = vmatpush2.msra.mxu0 0.0
        %3374 = vmatprep.subr.mxu0 0.0
        %3375 = vmatpush2.msra.mxu0 0.0
        %3376 = vmatprep.subr.mxu0 0.0
        %3377 = vmatpush2.msra.mxu0 0.0
        %3378 = vmatprep.subr.mxu0 0.0
        %3379 = vmatpush2.msra.mxu0 0.0
        %3380 = vmatprep.subr.mxu0 0.0
        %3381 = vmatpush2.msra.mxu0 0.0
        %3382 = vmatprep.subr.mxu0 0.0
        %3383 = vmatpush2.msra.mxu0 0.0
        %3384 = vmatprep.subr.mxu0 0.0
        %3385 = vmatpush2.msra.mxu0 0.0
        %3386 = vmatprep.subr.mxu0 0.0
        %3387 = vmatpush2.msra.mxu0 0.0
        %3388 = vmatprep.mubr.f32.mxu0 0.0
        %3389 = vmatmul.mubr.f32.gmra.mxu0 %v3319
        %v3390 = vpop.f32.mrf.mxu0
        %v3391 = vadd.f32 0.0, %v3390
        %v3392 = vpop.f32.mrf.mxu0
        %3393 = vmatprep.mubr.f32.mxu0 0.0
        %3394 = vmatmul.mubr.f32.gmra.mxu0 %v3322
        %v3395 = vpop.f32.mrf.mxu0
        %v3396 = vadd.f32 0.0, %v3395
        %v3397 = vpop.f32.mrf.mxu0
        %3398 = vdwg.mxu0
        %3399 = vrot.lane.b32.xlu0 %v531, 56
        %v3400 = vpop.permute.xlu0 %3399
        %3401 = vrot.lane.b32.xlu0 %v536, 56
        %v3402 = vpop.permute.xlu0 %3401
        %v3406 = vsel %vm1326, %v3128, 0
        %v3409 = vsel %vm1326, %v3129, 0
        %3411 = vmatprep.subr.mxu0 0.0
        %3412 = vmatpush1.msra.mxu0 0.0
        %3413 = vmatprep.subr.mxu0 0.0
        %3414 = vmatpush1.msra.mxu0 0.0
        %3415 = vmatprep.subr.mxu0 0.0
        %3416 = vmatpush1.msra.mxu0 0.0
        %3417 = vmatprep.subr.mxu0 0.0
        %3418 = vmatpush1.msra.mxu0 0.0
        %3419 = vmatprep.subr.mxu0 0.0
        %3420 = vmatpush1.msra.mxu0 0.0
        %3421 = vmatprep.subr.mxu0 0.0
        %3422 = vmatpush1.msra.mxu0 0.0
        %3423 = vmatprep.subr.mxu0 0.0
        %3424 = vmatpush1.msra.mxu0 0.0
        %3425 = vmatprep.subr.mxu0 0.0
        %3426 = vmatpush1.msra.mxu0 0.0
        %3427 = vmatprep.subr.mxu0 0.0
        %3428 = vmatpush1.msra.mxu0 0.0
        %3429 = vmatprep.subr.mxu0 0.0
        %3430 = vmatpush1.msra.mxu0 0.0
        %3431 = vmatprep.subr.mxu0 0.0
        %3432 = vmatpush1.msra.mxu0 0.0
        %3433 = vmatprep.subr.mxu0 0.0
        %3434 = vmatpush1.msra.mxu0 0.0
        %3435 = vmatprep.subr.mxu0 0.0
        %3436 = vmatpush1.msra.mxu0 0.0
        %3437 = vmatprep.subr.mxu0 0.0
        %3438 = vmatpush1.msra.mxu0 0.0
        %3439 = vmatprep.subr.mxu0 0.0
        %3440 = vmatpush1.msra.mxu0 %v3402
        %3441 = vmatprep.subr.mxu0 0.0
        %3442 = vmatpush1.msra.mxu0 %v3400
        %3443 = vmatprep.subr.mxu0 0.0
        %3444 = vmatpush2.msra.mxu0 0.0
        %3445 = vmatprep.subr.mxu0 0.0
        %3446 = vmatpush2.msra.mxu0 0.0
        %3447 = vmatprep.subr.mxu0 0.0
        %3448 = vmatpush2.msra.mxu0 0.0
        %3449 = vmatprep.subr.mxu0 0.0
        %3450 = vmatpush2.msra.mxu0 0.0
        %3451 = vmatprep.subr.mxu0 0.0
        %3452 = vmatpush2.msra.mxu0 0.0
        %3453 = vmatprep.subr.mxu0 0.0
        %3454 = vmatpush2.msra.mxu0 0.0
        %3455 = vmatprep.subr.mxu0 0.0
        %3456 = vmatpush2.msra.mxu0 0.0
        %3457 = vmatprep.subr.mxu0 0.0
        %3458 = vmatpush2.msra.mxu0 0.0
        %3459 = vmatprep.subr.mxu0 0.0
        %3460 = vmatpush2.msra.mxu0 0.0
        %3461 = vmatprep.subr.mxu0 0.0
        %3462 = vmatpush2.msra.mxu0 0.0
        %3463 = vmatprep.subr.mxu0 0.0
        %3464 = vmatpush2.msra.mxu0 0.0
        %3465 = vmatprep.subr.mxu0 0.0
        %3466 = vmatpush2.msra.mxu0 0.0
        %3467 = vmatprep.subr.mxu0 0.0
        %3468 = vmatpush2.msra.mxu0 0.0
        %3469 = vmatprep.subr.mxu0 0.0
        %3470 = vmatpush2.msra.mxu0 0.0
        %3471 = vmatprep.subr.mxu0 0.0
        %3472 = vmatpush2.msra.mxu0 0.0
        %3473 = vmatprep.subr.mxu0 0.0
        %3474 = vmatpush2.msra.mxu0 0.0
        %3475 = vmatprep.mubr.f32.mxu0 0.0
        %3476 = vmatmul.mubr.f32.gmra.mxu0 %v3406
        %v3477 = vpop.f32.mrf.mxu0
        %v3478 = vadd.f32 0.0, %v3477
        %v3479 = vpop.f32.mrf.mxu0
        %3480 = vmatprep.mubr.f32.mxu0 0.0
        %3481 = vmatmul.mubr.f32.gmra.mxu0 %v3409
        %v3482 = vpop.f32.mrf.mxu0
        %v3483 = vadd.f32 0.0, %v3482
        %v3484 = vpop.f32.mrf.mxu0
        %3485 = vdwg.mxu0
        %3486 = vrot.lane.b32.xlu0 %v541, 56
        %v3487 = vpop.permute.xlu0 %3486
        %3488 = vrot.lane.b32.xlu0 %v546, 56
        %v3489 = vpop.permute.xlu0 %3488
        %v3493 = vsel %vm1326, %v3130, 0
        %v3496 = vsel %vm1326, %v3131, 0
        %3498 = vmatprep.subr.mxu0 0.0
        %3499 = vmatpush1.msra.mxu0 0.0
        %3500 = vmatprep.subr.mxu0 0.0
        %3501 = vmatpush1.msra.mxu0 0.0
        %3502 = vmatprep.subr.mxu0 0.0
        %3503 = vmatpush1.msra.mxu0 0.0
        %3504 = vmatprep.subr.mxu0 0.0
        %3505 = vmatpush1.msra.mxu0 0.0
        %3506 = vmatprep.subr.mxu0 0.0
        %3507 = vmatpush1.msra.mxu0 0.0
        %3508 = vmatprep.subr.mxu0 0.0
        %3509 = vmatpush1.msra.mxu0 0.0
        %3510 = vmatprep.subr.mxu0 0.0
        %3511 = vmatpush1.msra.mxu0 0.0
        %3512 = vmatprep.subr.mxu0 0.0
        %3513 = vmatpush1.msra.mxu0 0.0
        %3514 = vmatprep.subr.mxu0 0.0
        %3515 = vmatpush1.msra.mxu0 0.0
        %3516 = vmatprep.subr.mxu0 0.0
        %3517 = vmatpush1.msra.mxu0 0.0
        %3518 = vmatprep.subr.mxu0 0.0
        %3519 = vmatpush1.msra.mxu0 0.0
        %3520 = vmatprep.subr.mxu0 0.0
        %3521 = vmatpush1.msra.mxu0 0.0
        %3522 = vmatprep.subr.mxu0 0.0
        %3523 = vmatpush1.msra.mxu0 0.0
        %3524 = vmatprep.subr.mxu0 0.0
        %3525 = vmatpush1.msra.mxu0 0.0
        %3526 = vmatprep.subr.mxu0 0.0
        %3527 = vmatpush1.msra.mxu0 %v3489
        %3528 = vmatprep.subr.mxu0 0.0
        %3529 = vmatpush1.msra.mxu0 %v3487
        %3530 = vmatprep.subr.mxu0 0.0
        %3531 = vmatpush2.msra.mxu0 0.0
        %3532 = vmatprep.subr.mxu0 0.0
        %3533 = vmatpush2.msra.mxu0 0.0
        %3534 = vmatprep.subr.mxu0 0.0
        %3535 = vmatpush2.msra.mxu0 0.0
        %3536 = vmatprep.subr.mxu0 0.0
        %3537 = vmatpush2.msra.mxu0 0.0
        %3538 = vmatprep.subr.mxu0 0.0
        %3539 = vmatpush2.msra.mxu0 0.0
        %3540 = vmatprep.subr.mxu0 0.0
        %3541 = vmatpush2.msra.mxu0 0.0
        %3542 = vmatprep.subr.mxu0 0.0
        %3543 = vmatpush2.msra.mxu0 0.0
        %3544 = vmatprep.subr.mxu0 0.0
        %3545 = vmatpush2.msra.mxu0 0.0
        %3546 = vmatprep.subr.mxu0 0.0
        %3547 = vmatpush2.msra.mxu0 0.0
        %3548 = vmatprep.subr.mxu0 0.0
        %3549 = vmatpush2.msra.mxu0 0.0
        %3550 = vmatprep.subr.mxu0 0.0
        %3551 = vmatpush2.msra.mxu0 0.0
        %3552 = vmatprep.subr.mxu0 0.0
        %3553 = vmatpush2.msra.mxu0 0.0
        %3554 = vmatprep.subr.mxu0 0.0
        %3555 = vmatpush2.msra.mxu0 0.0
        %3556 = vmatprep.subr.mxu0 0.0
        %3557 = vmatpush2.msra.mxu0 0.0
        %3558 = vmatprep.subr.mxu0 0.0
        %3559 = vmatpush2.msra.mxu0 0.0
        %3560 = vmatprep.subr.mxu0 0.0
        %3561 = vmatpush2.msra.mxu0 0.0
        %3562 = vmatprep.mubr.f32.mxu0 0.0
        %3563 = vmatmul.mubr.f32.gmra.mxu0 %v3493
        %v3564 = vpop.f32.mrf.mxu0
        %v3565 = vadd.f32 0.0, %v3564
        %v3566 = vpop.f32.mrf.mxu0
        %3567 = vmatprep.mubr.f32.mxu0 0.0
        %3568 = vmatmul.mubr.f32.gmra.mxu0 %v3496
        %v3569 = vpop.f32.mrf.mxu0
        %v3570 = vadd.f32 0.0, %v3569
        %v3571 = vpop.f32.mrf.mxu0
        %3572 = vdwg.mxu0
        %3573 = vrot.lane.b32.xlu0 %v551, 56
        %v3574 = vpop.permute.xlu0 %3573
        %3575 = vrot.lane.b32.xlu0 %v556, 56
        %v3576 = vpop.permute.xlu0 %3575
        %v3580 = vsel %vm1326, %v3132, 0
        %v3583 = vsel %vm1326, %v3133, 0
        %3585 = vmatprep.subr.mxu0 0.0
        %3586 = vmatpush1.msra.mxu0 0.0
        %3587 = vmatprep.subr.mxu0 0.0
        %3588 = vmatpush1.msra.mxu0 0.0
        %3589 = vmatprep.subr.mxu0 0.0
        %3590 = vmatpush1.msra.mxu0 0.0
        %3591 = vmatprep.subr.mxu0 0.0
        %3592 = vmatpush1.msra.mxu0 0.0
        %3593 = vmatprep.subr.mxu0 0.0
        %3594 = vmatpush1.msra.mxu0 0.0
        %3595 = vmatprep.subr.mxu0 0.0
        %3596 = vmatpush1.msra.mxu0 0.0
        %3597 = vmatprep.subr.mxu0 0.0
        %3598 = vmatpush1.msra.mxu0 0.0
        %3599 = vmatprep.subr.mxu0 0.0
        %3600 = vmatpush1.msra.mxu0 0.0
        %3601 = vmatprep.subr.mxu0 0.0
        %3602 = vmatpush1.msra.mxu0 0.0
        %3603 = vmatprep.subr.mxu0 0.0
        %3604 = vmatpush1.msra.mxu0 0.0
        %3605 = vmatprep.subr.mxu0 0.0
        %3606 = vmatpush1.msra.mxu0 0.0
        %3607 = vmatprep.subr.mxu0 0.0
        %3608 = vmatpush1.msra.mxu0 0.0
        %3609 = vmatprep.subr.mxu0 0.0
        %3610 = vmatpush1.msra.mxu0 0.0
        %3611 = vmatprep.subr.mxu0 0.0
        %3612 = vmatpush1.msra.mxu0 0.0
        %3613 = vmatprep.subr.mxu0 0.0
        %3614 = vmatpush1.msra.mxu0 %v3576
        %3615 = vmatprep.subr.mxu0 0.0
        %3616 = vmatpush1.msra.mxu0 %v3574
        %3617 = vmatprep.subr.mxu0 0.0
        %3618 = vmatpush2.msra.mxu0 0.0
        %3619 = vmatprep.subr.mxu0 0.0
        %3620 = vmatpush2.msra.mxu0 0.0
        %3621 = vmatprep.subr.mxu0 0.0
        %3622 = vmatpush2.msra.mxu0 0.0
        %3623 = vmatprep.subr.mxu0 0.0
        %3624 = vmatpush2.msra.mxu0 0.0
        %3625 = vmatprep.subr.mxu0 0.0
        %3626 = vmatpush2.msra.mxu0 0.0
        %3627 = vmatprep.subr.mxu0 0.0
        %3628 = vmatpush2.msra.mxu0 0.0
        %3629 = vmatprep.subr.mxu0 0.0
        %3630 = vmatpush2.msra.mxu0 0.0
        %3631 = vmatprep.subr.mxu0 0.0
        %3632 = vmatpush2.msra.mxu0 0.0
        %3633 = vmatprep.subr.mxu0 0.0
        %3634 = vmatpush2.msra.mxu0 0.0
        %3635 = vmatprep.subr.mxu0 0.0
        %3636 = vmatpush2.msra.mxu0 0.0
        %3637 = vmatprep.subr.mxu0 0.0
        %3638 = vmatpush2.msra.mxu0 0.0
        %3639 = vmatprep.subr.mxu0 0.0
        %3640 = vmatpush2.msra.mxu0 0.0
        %3641 = vmatprep.subr.mxu0 0.0
        %3642 = vmatpush2.msra.mxu0 0.0
        %3643 = vmatprep.subr.mxu0 0.0
        %3644 = vmatpush2.msra.mxu0 0.0
        %3645 = vmatprep.subr.mxu0 0.0
        %3646 = vmatpush2.msra.mxu0 0.0
        %3647 = vmatprep.subr.mxu0 0.0
        %3648 = vmatpush2.msra.mxu0 0.0
        %3649 = vmatprep.mubr.f32.mxu0 0.0
        %3650 = vmatmul.mubr.f32.gmra.mxu0 %v3580
        %v3651 = vpop.f32.mrf.mxu0
        %v3652 = vadd.f32 0.0, %v3651
        %v3653 = vpop.f32.mrf.mxu0
        %3654 = vmatprep.mubr.f32.mxu0 0.0
        %3655 = vmatmul.mubr.f32.gmra.mxu0 %v3583
        %v3656 = vpop.f32.mrf.mxu0
        %v3657 = vadd.f32 0.0, %v3656
        %v3658 = vpop.f32.mrf.mxu0
        %3659 = vdwg.mxu0
        %3660 = vrot.lane.b32.xlu0 %v561, 56
        %v3661 = vpop.permute.xlu0 %3660
        %3662 = vrot.lane.b32.xlu0 %v566, 56
        %v3663 = vpop.permute.xlu0 %3662
        %v3667 = vsel %vm1326, %v3134, 0
        %v3670 = vsel %vm1326, %v3135, 0
        %3672 = vmatprep.subr.mxu0 0.0
        %3673 = vmatpush1.msra.mxu0 0.0
        %3674 = vmatprep.subr.mxu0 0.0
        %3675 = vmatpush1.msra.mxu0 0.0
        %3676 = vmatprep.subr.mxu0 0.0
        %3677 = vmatpush1.msra.mxu0 0.0
        %3678 = vmatprep.subr.mxu0 0.0
        %3679 = vmatpush1.msra.mxu0 0.0
        %3680 = vmatprep.subr.mxu0 0.0
        %3681 = vmatpush1.msra.mxu0 0.0
        %3682 = vmatprep.subr.mxu0 0.0
        %3683 = vmatpush1.msra.mxu0 0.0
        %3684 = vmatprep.subr.mxu0 0.0
        %3685 = vmatpush1.msra.mxu0 0.0
        %3686 = vmatprep.subr.mxu0 0.0
        %3687 = vmatpush1.msra.mxu0 0.0
        %3688 = vmatprep.subr.mxu0 0.0
        %3689 = vmatpush1.msra.mxu0 0.0
        %3690 = vmatprep.subr.mxu0 0.0
        %3691 = vmatpush1.msra.mxu0 0.0
        %3692 = vmatprep.subr.mxu0 0.0
        %3693 = vmatpush1.msra.mxu0 0.0
        %3694 = vmatprep.subr.mxu0 0.0
        %3695 = vmatpush1.msra.mxu0 0.0
        %3696 = vmatprep.subr.mxu0 0.0
        %3697 = vmatpush1.msra.mxu0 0.0
        %3698 = vmatprep.subr.mxu0 0.0
        %3699 = vmatpush1.msra.mxu0 0.0
        %3700 = vmatprep.subr.mxu0 0.0
        %3701 = vmatpush1.msra.mxu0 %v3663
        %3702 = vmatprep.subr.mxu0 0.0
        %3703 = vmatpush1.msra.mxu0 %v3661
        %3704 = vmatprep.subr.mxu0 0.0
        %3705 = vmatpush2.msra.mxu0 0.0
        %3706 = vmatprep.subr.mxu0 0.0
        %3707 = vmatpush2.msra.mxu0 0.0
        %3708 = vmatprep.subr.mxu0 0.0
        %3709 = vmatpush2.msra.mxu0 0.0
        %3710 = vmatprep.subr.mxu0 0.0
        %3711 = vmatpush2.msra.mxu0 0.0
        %3712 = vmatprep.subr.mxu0 0.0
        %3713 = vmatpush2.msra.mxu0 0.0
        %3714 = vmatprep.subr.mxu0 0.0
        %3715 = vmatpush2.msra.mxu0 0.0
        %3716 = vmatprep.subr.mxu0 0.0
        %3717 = vmatpush2.msra.mxu0 0.0
        %3718 = vmatprep.subr.mxu0 0.0
        %3719 = vmatpush2.msra.mxu0 0.0
        %3720 = vmatprep.subr.mxu0 0.0
        %3721 = vmatpush2.msra.mxu0 0.0
        %3722 = vmatprep.subr.mxu0 0.0
        %3723 = vmatpush2.msra.mxu0 0.0
        %3724 = vmatprep.subr.mxu0 0.0
        %3725 = vmatpush2.msra.mxu0 0.0
        %3726 = vmatprep.subr.mxu0 0.0
        %3727 = vmatpush2.msra.mxu0 0.0
        %3728 = vmatprep.subr.mxu0 0.0
        %3729 = vmatpush2.msra.mxu0 0.0
        %3730 = vmatprep.subr.mxu0 0.0
        %3731 = vmatpush2.msra.mxu0 0.0
        %3732 = vmatprep.subr.mxu0 0.0
        %3733 = vmatpush2.msra.mxu0 0.0
        %3734 = vmatprep.subr.mxu0 0.0
        %3735 = vmatpush2.msra.mxu0 0.0
        %3736 = vmatprep.mubr.f32.mxu0 0.0
        %3737 = vmatmul.mubr.f32.gmra.mxu0 %v3667
        %v3738 = vpop.f32.mrf.mxu0
        %v3739 = vadd.f32 0.0, %v3738
        %v3740 = vpop.f32.mrf.mxu0
        %3741 = vmatprep.mubr.f32.mxu0 0.0
        %3742 = vmatmul.mubr.f32.gmra.mxu0 %v3670
        %v3743 = vpop.f32.mrf.mxu0
        %v3744 = vadd.f32 0.0, %v3743
        %v3745 = vpop.f32.mrf.mxu0
        %3746 = vdwg.mxu0
        %3747 = vrot.lane.b32.xlu0 %v571, 56
        %v3748 = vpop.permute.xlu0 %3747
        %3749 = vrot.lane.b32.xlu0 %v576, 56
        %v3750 = vpop.permute.xlu0 %3749
        %v3754 = vsel %vm1326, %v3136, 0
        %v3757 = vsel %vm1326, %v3137, 0
        %3759 = vmatprep.subr.mxu0 0.0
        %3760 = vmatpush1.msra.mxu0 0.0
        %3761 = vmatprep.subr.mxu0 0.0
        %3762 = vmatpush1.msra.mxu0 0.0
        %3763 = vmatprep.subr.mxu0 0.0
        %3764 = vmatpush1.msra.mxu0 0.0
        %3765 = vmatprep.subr.mxu0 0.0
        %3766 = vmatpush1.msra.mxu0 0.0
        %3767 = vmatprep.subr.mxu0 0.0
        %3768 = vmatpush1.msra.mxu0 0.0
        %3769 = vmatprep.subr.mxu0 0.0
        %3770 = vmatpush1.msra.mxu0 0.0
        %3771 = vmatprep.subr.mxu0 0.0
        %3772 = vmatpush1.msra.mxu0 0.0
        %3773 = vmatprep.subr.mxu0 0.0
        %3774 = vmatpush1.msra.mxu0 0.0
        %3775 = vmatprep.subr.mxu0 0.0
        %3776 = vmatpush1.msra.mxu0 0.0
        %3777 = vmatprep.subr.mxu0 0.0
        %3778 = vmatpush1.msra.mxu0 0.0
        %3779 = vmatprep.subr.mxu0 0.0
        %3780 = vmatpush1.msra.mxu0 0.0
        %3781 = vmatprep.subr.mxu0 0.0
        %3782 = vmatpush1.msra.mxu0 0.0
        %3783 = vmatprep.subr.mxu0 0.0
        %3784 = vmatpush1.msra.mxu0 0.0
        %3785 = vmatprep.subr.mxu0 0.0
        %3786 = vmatpush1.msra.mxu0 0.0
        %3787 = vmatprep.subr.mxu0 0.0
        %3788 = vmatpush1.msra.mxu0 %v3750
        %3789 = vmatprep.subr.mxu0 0.0
        %3790 = vmatpush1.msra.mxu0 %v3748
        %3791 = vmatprep.subr.mxu0 0.0
        %3792 = vmatpush2.msra.mxu0 0.0
        %3793 = vmatprep.subr.mxu0 0.0
        %3794 = vmatpush2.msra.mxu0 0.0
        %3795 = vmatprep.subr.mxu0 0.0
        %3796 = vmatpush2.msra.mxu0 0.0
        %3797 = vmatprep.subr.mxu0 0.0
        %3798 = vmatpush2.msra.mxu0 0.0
        %3799 = vmatprep.subr.mxu0 0.0
        %3800 = vmatpush2.msra.mxu0 0.0
        %3801 = vmatprep.subr.mxu0 0.0
        %3802 = vmatpush2.msra.mxu0 0.0
        %3803 = vmatprep.subr.mxu0 0.0
        %3804 = vmatpush2.msra.mxu0 0.0
        %3805 = vmatprep.subr.mxu0 0.0
        %3806 = vmatpush2.msra.mxu0 0.0
        %3807 = vmatprep.subr.mxu0 0.0
        %3808 = vmatpush2.msra.mxu0 0.0
        %3809 = vmatprep.subr.mxu0 0.0
        %3810 = vmatpush2.msra.mxu0 0.0
        %3811 = vmatprep.subr.mxu0 0.0
        %3812 = vmatpush2.msra.mxu0 0.0
        %3813 = vmatprep.subr.mxu0 0.0
        %3814 = vmatpush2.msra.mxu0 0.0
        %3815 = vmatprep.subr.mxu0 0.0
        %3816 = vmatpush2.msra.mxu0 0.0
        %3817 = vmatprep.subr.mxu0 0.0
        %3818 = vmatpush2.msra.mxu0 0.0
        %3819 = vmatprep.subr.mxu0 0.0
        %3820 = vmatpush2.msra.mxu0 0.0
        %3821 = vmatprep.subr.mxu0 0.0
        %3822 = vmatpush2.msra.mxu0 0.0
        %3823 = vmatprep.mubr.f32.mxu0 0.0
        %3824 = vmatmul.mubr.f32.gmra.mxu0 %v3754
        %v3825 = vpop.f32.mrf.mxu0
        %v3826 = vadd.f32 0.0, %v3825
        %v3827 = vpop.f32.mrf.mxu0
        %3828 = vmatprep.mubr.f32.mxu0 0.0
        %3829 = vmatmul.mubr.f32.gmra.mxu0 %v3757
        %v3830 = vpop.f32.mrf.mxu0
        %v3831 = vadd.f32 0.0, %v3830
        %v3832 = vpop.f32.mrf.mxu0
        %3833 = vdwg.mxu0
        %3850 = vrot.lane.b32.xlu0 %v3217, 8
        %v3851 = vpop.permute.xlu0 %3850
        %3852 = vrot.lane.b32.xlu0 %v3222, 8
        %v3853 = vpop.permute.xlu0 %3852
        %3854 = vrot.lane.b32.xlu0 %v3304, 8
        %v3855 = vpop.permute.xlu0 %3854
        %3856 = vrot.lane.b32.xlu0 %v3309, 8
        %v3857 = vpop.permute.xlu0 %3856
        %3858 = vrot.lane.b32.xlu0 %v3391, 8
        %v3859 = vpop.permute.xlu0 %3858
        %3860 = vrot.lane.b32.xlu0 %v3396, 8
        %v3861 = vpop.permute.xlu0 %3860
        %3862 = vrot.lane.b32.xlu0 %v3478, 8
        %v3863 = vpop.permute.xlu0 %3862
        %3864 = vrot.lane.b32.xlu0 %v3483, 8
        %v3865 = vpop.permute.xlu0 %3864
        %3866 = vrot.lane.b32.xlu0 %v3565, 8
        %v3867 = vpop.permute.xlu0 %3866
        %3868 = vrot.lane.b32.xlu0 %v3570, 8
        %v3869 = vpop.permute.xlu0 %3868
        %3870 = vrot.lane.b32.xlu0 %v3652, 8
        %v3871 = vpop.permute.xlu0 %3870
        %3872 = vrot.lane.b32.xlu0 %v3657, 8
        %v3873 = vpop.permute.xlu0 %3872
        %3874 = vrot.lane.b32.xlu0 %v3739, 8
        %v3875 = vpop.permute.xlu0 %3874
        %3876 = vrot.lane.b32.xlu0 %v3744, 8
        %v3877 = vpop.permute.xlu0 %3876
        %3878 = vrot.lane.b32.xlu0 %v3826, 8
        %v3879 = vpop.permute.xlu0 %3878
        %3880 = vrot.lane.b32.xlu0 %v3831, 8
        %v3881 = vpop.permute.xlu0 %3880
        %vm3898 = vcmask 130112
        %3899 = vst.msk [vmem:[#allocation2] sm:$0xff] %vm3898, %v3851
        %3900 = vst.msk [vmem:[#allocation2 + $0x8] sm:$0xff] %vm3898, %v3853
        %3901 = vst.msk [vmem:[#allocation2 + $0x10] sm:$0xff] %vm3898, %v3855
        %3902 = vst.msk [vmem:[#allocation2 + $0x18] sm:$0xff] %vm3898, %v3857
        %3903 = vst.msk [vmem:[#allocation2 + $0x20] sm:$0xff] %vm3898, %v3859
        %3904 = vst.msk [vmem:[#allocation2 + $0x28] sm:$0xff] %vm3898, %v3861
        %3905 = vst.msk [vmem:[#allocation2 + $0x30] sm:$0xff] %vm3898, %v3863
        %3906 = vst.msk [vmem:[#allocation2 + $0x38] sm:$0xff] %vm3898, %v3865
        %3907 = vst.msk [vmem:[#allocation2 + $0x40] sm:$0xff] %vm3898, %v3867
        %3908 = vst.msk [vmem:[#allocation2 + $0x48] sm:$0xff] %vm3898, %v3869
        %3909 = vst.msk [vmem:[#allocation2 + $0x50] sm:$0xff] %vm3898, %v3871
        %3910 = vst.msk [vmem:[#allocation2 + $0x58] sm:$0xff] %vm3898, %v3873
        %3911 = vst.msk [vmem:[#allocation2 + $0x60] sm:$0xff] %vm3898, %v3875
        %3912 = vst.msk [vmem:[#allocation2 + $0x68] sm:$0xff] %vm3898, %v3877
        %3913 = vst.msk [vmem:[#allocation2 + $0x70] sm:$0xff] %vm3898, %v3879
        %3914 = vst.msk [vmem:[#allocation2 + $0x78] sm:$0xff] %vm3898, %v3881
        %s3915 = scalar_lea.vmem [#allocation8], 32
        %v3916 = vld [vmem:[%s3915] sm:$0xff]
        %v3917 = vld [vmem:[%s3915 + $0x8] sm:$0xff]
        %3918 = vrot.lane.b32.xlu0 %v501, 112
        %v3919 = vpop.permute.xlu0 %3918
        %3920 = vrot.lane.b32.xlu0 %v506, 112
        %v3921 = vpop.permute.xlu0 %3920
        %3922 = vrot.lane.b32.xlu0 %v501, 80
        %v3923 = vpop.permute.xlu0 %3922
        %3924 = vrot.lane.b32.xlu0 %v506, 80
        %v3925 = vpop.permute.xlu0 %3924
        %v3926 = vsel %vm603, %v3919, 0
        %v3928 = vsel %vm603, %v3921, 0
        %v3930 = vsel %vm603, %v3923, 0
        %v3932 = vsel %vm603, %v3925, 0
        %3934 = vmatprep.subr.mxu0 0.0
        %3935 = vmatpush1.xpose.msra.mxu0 0.0
        %3936 = vmatprep.subr.mxu0 0.0
        %3937 = vmatpush1.xpose.msra.mxu0 0.0
        %3938 = vmatprep.subr.mxu0 0.0
        %3939 = vmatpush1.xpose.msra.mxu0 0.0
        %3940 = vmatprep.subr.mxu0 0.0
        %3941 = vmatpush1.xpose.msra.mxu0 0.0
        %3942 = vmatprep.subr.mxu0 0.0
        %3943 = vmatpush1.xpose.msra.mxu0 0.0
        %3944 = vmatprep.subr.mxu0 0.0
        %3945 = vmatpush1.xpose.msra.mxu0 0.0
        %3946 = vmatprep.subr.mxu0 0.0
        %3947 = vmatpush1.xpose.msra.mxu0 0.0
        %3948 = vmatprep.subr.mxu0 0.0
        %3949 = vmatpush1.xpose.msra.mxu0 0.0
        %3950 = vmatprep.subr.mxu0 0.0
        %3951 = vmatpush1.xpose.msra.mxu0 0.0
        %3952 = vmatprep.subr.mxu0 0.0
        %3953 = vmatpush1.xpose.msra.mxu0 0.0
        %3954 = vmatprep.subr.mxu0 0.0
        %3955 = vmatpush1.xpose.msra.mxu0 0.0
        %3956 = vmatprep.subr.mxu0 0.0
        %3957 = vmatpush1.xpose.msra.mxu0 0.0
        %3958 = vmatprep.subr.mxu0 0.0
        %3959 = vmatpush1.xpose.msra.mxu0 0.0
        %3960 = vmatprep.subr.mxu0 0.0
        %3961 = vmatpush1.xpose.msra.mxu0 0.0
        %3962 = vmatprep.subr.mxu0 0.0
        %3963 = vmatpush1.xpose.msra.mxu0 %v3932
        %3964 = vmatprep.subr.mxu0 0.0
        %3965 = vmatpush1.xpose.msra.mxu0 %v3930
        %3966 = vmatprep.subr.mxu0 0.0
        %3967 = vmatpush2.xpose.msra.mxu0 0.0
        %3968 = vmatprep.subr.mxu0 0.0
        %3969 = vmatpush2.xpose.msra.mxu0 0.0
        %3970 = vmatprep.subr.mxu0 0.0
        %3971 = vmatpush2.xpose.msra.mxu0 0.0
        %3972 = vmatprep.subr.mxu0 0.0
        %3973 = vmatpush2.xpose.msra.mxu0 0.0
        %3974 = vmatprep.subr.mxu0 0.0
        %3975 = vmatpush2.xpose.msra.mxu0 0.0
        %3976 = vmatprep.subr.mxu0 0.0
        %3977 = vmatpush2.xpose.msra.mxu0 0.0
        %3978 = vmatprep.subr.mxu0 0.0
        %3979 = vmatpush2.xpose.msra.mxu0 0.0
        %3980 = vmatprep.subr.mxu0 0.0
        %3981 = vmatpush2.xpose.msra.mxu0 0.0
        %3982 = vmatprep.subr.mxu0 0.0
        %3983 = vmatpush2.xpose.msra.mxu0 0.0
        %3984 = vmatprep.subr.mxu0 0.0
        %3985 = vmatpush2.xpose.msra.mxu0 0.0
        %3986 = vmatprep.subr.mxu0 0.0
        %3987 = vmatpush2.xpose.msra.mxu0 0.0
        %3988 = vmatprep.subr.mxu0 0.0
        %3989 = vmatpush2.xpose.msra.mxu0 0.0
        %3990 = vmatprep.subr.mxu0 0.0
        %3991 = vmatpush2.xpose.msra.mxu0 0.0
        %3992 = vmatprep.subr.mxu0 0.0
        %3993 = vmatpush2.xpose.msra.mxu0 0.0
        %3994 = vmatprep.subr.mxu0 0.0
        %3995 = vmatpush2.xpose.msra.mxu0 0.0
        %3996 = vmatprep.subr.mxu0 0.0
        %3997 = vmatpush2.xpose.msra.mxu0 0.0
        %3998 = vmatprep.mubr.f32.mxu0 0.0
        %3999 = vmatmul.mubr.f32.gmra.mxu0 %v3926
        %v4000 = vpop.f32.mrf.mxu0
        %v4001 = vadd.f32 %v3916, %v4000
        %v4002 = vpop.f32.mrf.mxu0
        %4003 = vmatprep.mubr.f32.mxu0 0.0
        %4004 = vmatmul.mubr.f32.gmra.mxu0 %v3928
        %v4005 = vpop.f32.mrf.mxu0
        %v4006 = vadd.f32 %v3917, %v4005
        %v4007 = vpop.f32.mrf.mxu0
        %4008 = vdwg.mxu0
        %4009 = vrot.lane.b32.xlu0 %v511, 112
        %v4010 = vpop.permute.xlu0 %4009
        %4011 = vrot.lane.b32.xlu0 %v516, 112
        %v4012 = vpop.permute.xlu0 %4011
        %4013 = vrot.lane.b32.xlu0 %v511, 80
        %v4014 = vpop.permute.xlu0 %4013
        %4015 = vrot.lane.b32.xlu0 %v516, 80
        %v4016 = vpop.permute.xlu0 %4015
        %v4017 = vsel %vm603, %v4010, 0
        %v4019 = vsel %vm603, %v4012, 0
        %v4021 = vsel %vm603, %v4014, 0
        %v4023 = vsel %vm603, %v4016, 0
        %4025 = vmatprep.subr.mxu0 0.0
        %4026 = vmatpush1.xpose.msra.mxu0 0.0
        %4027 = vmatprep.subr.mxu0 0.0
        %4028 = vmatpush1.xpose.msra.mxu0 0.0
        %4029 = vmatprep.subr.mxu0 0.0
        %4030 = vmatpush1.xpose.msra.mxu0 0.0
        %4031 = vmatprep.subr.mxu0 0.0
        %4032 = vmatpush1.xpose.msra.mxu0 0.0
        %4033 = vmatprep.subr.mxu0 0.0
        %4034 = vmatpush1.xpose.msra.mxu0 0.0
        %4035 = vmatprep.subr.mxu0 0.0
        %4036 = vmatpush1.xpose.msra.mxu0 0.0
        %4037 = vmatprep.subr.mxu0 0.0
        %4038 = vmatpush1.xpose.msra.mxu0 0.0
        %4039 = vmatprep.subr.mxu0 0.0
        %4040 = vmatpush1.xpose.msra.mxu0 0.0
        %4041 = vmatprep.subr.mxu0 0.0
        %4042 = vmatpush1.xpose.msra.mxu0 0.0
        %4043 = vmatprep.subr.mxu0 0.0
        %4044 = vmatpush1.xpose.msra.mxu0 0.0
        %4045 = vmatprep.subr.mxu0 0.0
        %4046 = vmatpush1.xpose.msra.mxu0 0.0
        %4047 = vmatprep.subr.mxu0 0.0
        %4048 = vmatpush1.xpose.msra.mxu0 0.0
        %4049 = vmatprep.subr.mxu0 0.0
        %4050 = vmatpush1.xpose.msra.mxu0 0.0
        %4051 = vmatprep.subr.mxu0 0.0
        %4052 = vmatpush1.xpose.msra.mxu0 0.0
        %4053 = vmatprep.subr.mxu0 0.0
        %4054 = vmatpush1.xpose.msra.mxu0 %v4023
        %4055 = vmatprep.subr.mxu0 0.0
        %4056 = vmatpush1.xpose.msra.mxu0 %v4021
        %4057 = vmatprep.subr.mxu0 0.0
        %4058 = vmatpush2.xpose.msra.mxu0 0.0
        %4059 = vmatprep.subr.mxu0 0.0
        %4060 = vmatpush2.xpose.msra.mxu0 0.0
        %4061 = vmatprep.subr.mxu0 0.0
        %4062 = vmatpush2.xpose.msra.mxu0 0.0
        %4063 = vmatprep.subr.mxu0 0.0
        %4064 = vmatpush2.xpose.msra.mxu0 0.0
        %4065 = vmatprep.subr.mxu0 0.0
        %4066 = vmatpush2.xpose.msra.mxu0 0.0
        %4067 = vmatprep.subr.mxu0 0.0
        %4068 = vmatpush2.xpose.msra.mxu0 0.0
        %4069 = vmatprep.subr.mxu0 0.0
        %4070 = vmatpush2.xpose.msra.mxu0 0.0
        %4071 = vmatprep.subr.mxu0 0.0
        %4072 = vmatpush2.xpose.msra.mxu0 0.0
        %4073 = vmatprep.subr.mxu0 0.0
        %4074 = vmatpush2.xpose.msra.mxu0 0.0
        %4075 = vmatprep.subr.mxu0 0.0
        %4076 = vmatpush2.xpose.msra.mxu0 0.0
        %4077 = vmatprep.subr.mxu0 0.0
        %4078 = vmatpush2.xpose.msra.mxu0 0.0
        %4079 = vmatprep.subr.mxu0 0.0
        %4080 = vmatpush2.xpose.msra.mxu0 0.0
        %4081 = vmatprep.subr.mxu0 0.0
        %4082 = vmatpush2.xpose.msra.mxu0 0.0
        %4083 = vmatprep.subr.mxu0 0.0
        %4084 = vmatpush2.xpose.msra.mxu0 0.0
        %4085 = vmatprep.subr.mxu0 0.0
        %4086 = vmatpush2.xpose.msra.mxu0 0.0
        %4087 = vmatprep.subr.mxu0 0.0
        %4088 = vmatpush2.xpose.msra.mxu0 0.0
        %4089 = vmatprep.mubr.f32.mxu0 0.0
        %4090 = vmatmul.mubr.f32.gmra.mxu0 %v4017
        %v4091 = vpop.f32.mrf.mxu0
        %v4092 = vadd.f32 %v3916, %v4091
        %v4093 = vpop.f32.mrf.mxu0
        %4094 = vmatprep.mubr.f32.mxu0 0.0
        %4095 = vmatmul.mubr.f32.gmra.mxu0 %v4019
        %v4096 = vpop.f32.mrf.mxu0
        %v4097 = vadd.f32 %v3917, %v4096
        %v4098 = vpop.f32.mrf.mxu0
        %4099 = vdwg.mxu0
        %4100 = vrot.lane.b32.xlu0 %v521, 112
        %v4101 = vpop.permute.xlu0 %4100
        %4102 = vrot.lane.b32.xlu0 %v526, 112
        %v4103 = vpop.permute.xlu0 %4102
        %4104 = vrot.lane.b32.xlu0 %v521, 80
        %v4105 = vpop.permute.xlu0 %4104
        %4106 = vrot.lane.b32.xlu0 %v526, 80
        %v4107 = vpop.permute.xlu0 %4106
        %v4108 = vsel %vm603, %v4101, 0
        %v4110 = vsel %vm603, %v4103, 0
        %v4112 = vsel %vm603, %v4105, 0
        %v4114 = vsel %vm603, %v4107, 0
        %4116 = vmatprep.subr.mxu0 0.0
        %4117 = vmatpush1.xpose.msra.mxu0 0.0
        %4118 = vmatprep.subr.mxu0 0.0
        %4119 = vmatpush1.xpose.msra.mxu0 0.0
        %4120 = vmatprep.subr.mxu0 0.0
        %4121 = vmatpush1.xpose.msra.mxu0 0.0
        %4122 = vmatprep.subr.mxu0 0.0
        %4123 = vmatpush1.xpose.msra.mxu0 0.0
        %4124 = vmatprep.subr.mxu0 0.0
        %4125 = vmatpush1.xpose.msra.mxu0 0.0
        %4126 = vmatprep.subr.mxu0 0.0
        %4127 = vmatpush1.xpose.msra.mxu0 0.0
        %4128 = vmatprep.subr.mxu0 0.0
        %4129 = vmatpush1.xpose.msra.mxu0 0.0
        %4130 = vmatprep.subr.mxu0 0.0
        %4131 = vmatpush1.xpose.msra.mxu0 0.0
        %4132 = vmatprep.subr.mxu0 0.0
        %4133 = vmatpush1.xpose.msra.mxu0 0.0
        %4134 = vmatprep.subr.mxu0 0.0
        %4135 = vmatpush1.xpose.msra.mxu0 0.0
        %4136 = vmatprep.subr.mxu0 0.0
        %4137 = vmatpush1.xpose.msra.mxu0 0.0
        %4138 = vmatprep.subr.mxu0 0.0
        %4139 = vmatpush1.xpose.msra.mxu0 0.0
        %4140 = vmatprep.subr.mxu0 0.0
        %4141 = vmatpush1.xpose.msra.mxu0 0.0
        %4142 = vmatprep.subr.mxu0 0.0
        %4143 = vmatpush1.xpose.msra.mxu0 0.0
        %4144 = vmatprep.subr.mxu0 0.0
        %4145 = vmatpush1.xpose.msra.mxu0 %v4114
        %4146 = vmatprep.subr.mxu0 0.0
        %4147 = vmatpush1.xpose.msra.mxu0 %v4112
        %4148 = vmatprep.subr.mxu0 0.0
        %4149 = vmatpush2.xpose.msra.mxu0 0.0
        %4150 = vmatprep.subr.mxu0 0.0
        %4151 = vmatpush2.xpose.msra.mxu0 0.0
        %4152 = vmatprep.subr.mxu0 0.0
        %4153 = vmatpush2.xpose.msra.mxu0 0.0
        %4154 = vmatprep.subr.mxu0 0.0
        %4155 = vmatpush2.xpose.msra.mxu0 0.0
        %4156 = vmatprep.subr.mxu0 0.0
        %4157 = vmatpush2.xpose.msra.mxu0 0.0
        %4158 = vmatprep.subr.mxu0 0.0
        %4159 = vmatpush2.xpose.msra.mxu0 0.0
        %4160 = vmatprep.subr.mxu0 0.0
        %4161 = vmatpush2.xpose.msra.mxu0 0.0
        %4162 = vmatprep.subr.mxu0 0.0
        %4163 = vmatpush2.xpose.msra.mxu0 0.0
        %4164 = vmatprep.subr.mxu0 0.0
        %4165 = vmatpush2.xpose.msra.mxu0 0.0
        %4166 = vmatprep.subr.mxu0 0.0
        %4167 = vmatpush2.xpose.msra.mxu0 0.0
        %4168 = vmatprep.subr.mxu0 0.0
        %4169 = vmatpush2.xpose.msra.mxu0 0.0
        %4170 = vmatprep.subr.mxu0 0.0
        %4171 = vmatpush2.xpose.msra.mxu0 0.0
        %4172 = vmatprep.subr.mxu0 0.0
        %4173 = vmatpush2.xpose.msra.mxu0 0.0
        %4174 = vmatprep.subr.mxu0 0.0
        %4175 = vmatpush2.xpose.msra.mxu0 0.0
        %4176 = vmatprep.subr.mxu0 0.0
        %4177 = vmatpush2.xpose.msra.mxu0 0.0
        %4178 = vmatprep.subr.mxu0 0.0
        %4179 = vmatpush2.xpose.msra.mxu0 0.0
        %4180 = vmatprep.mubr.f32.mxu0 0.0
        %4181 = vmatmul.mubr.f32.gmra.mxu0 %v4108
        %v4182 = vpop.f32.mrf.mxu0
        %v4183 = vadd.f32 %v3916, %v4182
        %v4184 = vpop.f32.mrf.mxu0
        %4185 = vmatprep.mubr.f32.mxu0 0.0
        %4186 = vmatmul.mubr.f32.gmra.mxu0 %v4110
        %v4187 = vpop.f32.mrf.mxu0
        %v4188 = vadd.f32 %v3917, %v4187
        %v4189 = vpop.f32.mrf.mxu0
        %4190 = vdwg.mxu0
        %4191 = vrot.lane.b32.xlu0 %v531, 112
        %v4192 = vpop.permute.xlu0 %4191
        %4193 = vrot.lane.b32.xlu0 %v536, 112
        %v4194 = vpop.permute.xlu0 %4193
        %4195 = vrot.lane.b32.xlu0 %v531, 80
        %v4196 = vpop.permute.xlu0 %4195
        %4197 = vrot.lane.b32.xlu0 %v536, 80
        %v4198 = vpop.permute.xlu0 %4197
        %v4199 = vsel %vm603, %v4192, 0
        %v4201 = vsel %vm603, %v4194, 0
        %v4203 = vsel %vm603, %v4196, 0
        %v4205 = vsel %vm603, %v4198, 0
        %4207 = vmatprep.subr.mxu0 0.0
        %4208 = vmatpush1.xpose.msra.mxu0 0.0
        %4209 = vmatprep.subr.mxu0 0.0
        %4210 = vmatpush1.xpose.msra.mxu0 0.0
        %4211 = vmatprep.subr.mxu0 0.0
        %4212 = vmatpush1.xpose.msra.mxu0 0.0
        %4213 = vmatprep.subr.mxu0 0.0
        %4214 = vmatpush1.xpose.msra.mxu0 0.0
        %4215 = vmatprep.subr.mxu0 0.0
        %4216 = vmatpush1.xpose.msra.mxu0 0.0
        %4217 = vmatprep.subr.mxu0 0.0
        %4218 = vmatpush1.xpose.msra.mxu0 0.0
        %4219 = vmatprep.subr.mxu0 0.0
        %4220 = vmatpush1.xpose.msra.mxu0 0.0
        %4221 = vmatprep.subr.mxu0 0.0
        %4222 = vmatpush1.xpose.msra.mxu0 0.0
        %4223 = vmatprep.subr.mxu0 0.0
        %4224 = vmatpush1.xpose.msra.mxu0 0.0
        %4225 = vmatprep.subr.mxu0 0.0
        %4226 = vmatpush1.xpose.msra.mxu0 0.0
        %4227 = vmatprep.subr.mxu0 0.0
        %4228 = vmatpush1.xpose.msra.mxu0 0.0
        %4229 = vmatprep.subr.mxu0 0.0
        %4230 = vmatpush1.xpose.msra.mxu0 0.0
        %4231 = vmatprep.subr.mxu0 0.0
        %4232 = vmatpush1.xpose.msra.mxu0 0.0
        %4233 = vmatprep.subr.mxu0 0.0
        %4234 = vmatpush1.xpose.msra.mxu0 0.0
        %4235 = vmatprep.subr.mxu0 0.0
        %4236 = vmatpush1.xpose.msra.mxu0 %v4205
        %4237 = vmatprep.subr.mxu0 0.0
        %4238 = vmatpush1.xpose.msra.mxu0 %v4203
        %4239 = vmatprep.subr.mxu0 0.0
        %4240 = vmatpush2.xpose.msra.mxu0 0.0
        %4241 = vmatprep.subr.mxu0 0.0
        %4242 = vmatpush2.xpose.msra.mxu0 0.0
        %4243 = vmatprep.subr.mxu0 0.0
        %4244 = vmatpush2.xpose.msra.mxu0 0.0
        %4245 = vmatprep.subr.mxu0 0.0
        %4246 = vmatpush2.xpose.msra.mxu0 0.0
        %4247 = vmatprep.subr.mxu0 0.0
        %4248 = vmatpush2.xpose.msra.mxu0 0.0
        %4249 = vmatprep.subr.mxu0 0.0
        %4250 = vmatpush2.xpose.msra.mxu0 0.0
        %4251 = vmatprep.subr.mxu0 0.0
        %4252 = vmatpush2.xpose.msra.mxu0 0.0
        %4253 = vmatprep.subr.mxu0 0.0
        %4254 = vmatpush2.xpose.msra.mxu0 0.0
        %4255 = vmatprep.subr.mxu0 0.0
        %4256 = vmatpush2.xpose.msra.mxu0 0.0
        %4257 = vmatprep.subr.mxu0 0.0
        %4258 = vmatpush2.xpose.msra.mxu0 0.0
        %4259 = vmatprep.subr.mxu0 0.0
        %4260 = vmatpush2.xpose.msra.mxu0 0.0
        %4261 = vmatprep.subr.mxu0 0.0
        %4262 = vmatpush2.xpose.msra.mxu0 0.0
        %4263 = vmatprep.subr.mxu0 0.0
        %4264 = vmatpush2.xpose.msra.mxu0 0.0
        %4265 = vmatprep.subr.mxu0 0.0
        %4266 = vmatpush2.xpose.msra.mxu0 0.0
        %4267 = vmatprep.subr.mxu0 0.0
        %4268 = vmatpush2.xpose.msra.mxu0 0.0
        %4269 = vmatprep.subr.mxu0 0.0
        %4270 = vmatpush2.xpose.msra.mxu0 0.0
        %4271 = vmatprep.mubr.f32.mxu0 0.0
        %4272 = vmatmul.mubr.f32.gmra.mxu0 %v4199
        %v4273 = vpop.f32.mrf.mxu0
        %v4274 = vadd.f32 %v3916, %v4273
        %v4275 = vpop.f32.mrf.mxu0
        %4276 = vmatprep.mubr.f32.mxu0 0.0
        %4277 = vmatmul.mubr.f32.gmra.mxu0 %v4201
        %v4278 = vpop.f32.mrf.mxu0
        %v4279 = vadd.f32 %v3917, %v4278
        %v4280 = vpop.f32.mrf.mxu0
        %4281 = vdwg.mxu0
        %4282 = vrot.lane.b32.xlu0 %v541, 112
        %v4283 = vpop.permute.xlu0 %4282
        %4284 = vrot.lane.b32.xlu0 %v546, 112
        %v4285 = vpop.permute.xlu0 %4284
        %4286 = vrot.lane.b32.xlu0 %v541, 80
        %v4287 = vpop.permute.xlu0 %4286
        %4288 = vrot.lane.b32.xlu0 %v546, 80
        %v4289 = vpop.permute.xlu0 %4288
        %v4290 = vsel %vm603, %v4283, 0
        %v4292 = vsel %vm603, %v4285, 0
        %v4294 = vsel %vm603, %v4287, 0
        %v4296 = vsel %vm603, %v4289, 0
        %4298 = vmatprep.subr.mxu0 0.0
        %4299 = vmatpush1.xpose.msra.mxu0 0.0
        %4300 = vmatprep.subr.mxu0 0.0
        %4301 = vmatpush1.xpose.msra.mxu0 0.0
        %4302 = vmatprep.subr.mxu0 0.0
        %4303 = vmatpush1.xpose.msra.mxu0 0.0
        %4304 = vmatprep.subr.mxu0 0.0
        %4305 = vmatpush1.xpose.msra.mxu0 0.0
        %4306 = vmatprep.subr.mxu0 0.0
        %4307 = vmatpush1.xpose.msra.mxu0 0.0
        %4308 = vmatprep.subr.mxu0 0.0
        %4309 = vmatpush1.xpose.msra.mxu0 0.0
        %4310 = vmatprep.subr.mxu0 0.0
        %4311 = vmatpush1.xpose.msra.mxu0 0.0
        %4312 = vmatprep.subr.mxu0 0.0
        %4313 = vmatpush1.xpose.msra.mxu0 0.0
        %4314 = vmatprep.subr.mxu0 0.0
        %4315 = vmatpush1.xpose.msra.mxu0 0.0
        %4316 = vmatprep.subr.mxu0 0.0
        %4317 = vmatpush1.xpose.msra.mxu0 0.0
        %4318 = vmatprep.subr.mxu0 0.0
        %4319 = vmatpush1.xpose.msra.mxu0 0.0
        %4320 = vmatprep.subr.mxu0 0.0
        %4321 = vmatpush1.xpose.msra.mxu0 0.0
        %4322 = vmatprep.subr.mxu0 0.0
        %4323 = vmatpush1.xpose.msra.mxu0 0.0
        %4324 = vmatprep.subr.mxu0 0.0
        %4325 = vmatpush1.xpose.msra.mxu0 0.0
        %4326 = vmatprep.subr.mxu0 0.0
        %4327 = vmatpush1.xpose.msra.mxu0 %v4296
        %4328 = vmatprep.subr.mxu0 0.0
        %4329 = vmatpush1.xpose.msra.mxu0 %v4294
        %4330 = vmatprep.subr.mxu0 0.0
        %4331 = vmatpush2.xpose.msra.mxu0 0.0
        %4332 = vmatprep.subr.mxu0 0.0
        %4333 = vmatpush2.xpose.msra.mxu0 0.0
        %4334 = vmatprep.subr.mxu0 0.0
        %4335 = vmatpush2.xpose.msra.mxu0 0.0
        %4336 = vmatprep.subr.mxu0 0.0
        %4337 = vmatpush2.xpose.msra.mxu0 0.0
        %4338 = vmatprep.subr.mxu0 0.0
        %4339 = vmatpush2.xpose.msra.mxu0 0.0
        %4340 = vmatprep.subr.mxu0 0.0
        %4341 = vmatpush2.xpose.msra.mxu0 0.0
        %4342 = vmatprep.subr.mxu0 0.0
        %4343 = vmatpush2.xpose.msra.mxu0 0.0
        %4344 = vmatprep.subr.mxu0 0.0
        %4345 = vmatpush2.xpose.msra.mxu0 0.0
        %4346 = vmatprep.subr.mxu0 0.0
        %4347 = vmatpush2.xpose.msra.mxu0 0.0
        %4348 = vmatprep.subr.mxu0 0.0
        %4349 = vmatpush2.xpose.msra.mxu0 0.0
        %4350 = vmatprep.subr.mxu0 0.0
        %4351 = vmatpush2.xpose.msra.mxu0 0.0
        %4352 = vmatprep.subr.mxu0 0.0
        %4353 = vmatpush2.xpose.msra.mxu0 0.0
        %4354 = vmatprep.subr.mxu0 0.0
        %4355 = vmatpush2.xpose.msra.mxu0 0.0
        %4356 = vmatprep.subr.mxu0 0.0
        %4357 = vmatpush2.xpose.msra.mxu0 0.0
        %4358 = vmatprep.subr.mxu0 0.0
        %4359 = vmatpush2.xpose.msra.mxu0 0.0
        %4360 = vmatprep.subr.mxu0 0.0
        %4361 = vmatpush2.xpose.msra.mxu0 0.0
        %4362 = vmatprep.mubr.f32.mxu0 0.0
        %4363 = vmatmul.mubr.f32.gmra.mxu0 %v4290
        %v4364 = vpop.f32.mrf.mxu0
        %v4365 = vadd.f32 %v3916, %v4364
        %v4366 = vpop.f32.mrf.mxu0
        %4367 = vmatprep.mubr.f32.mxu0 0.0
        %4368 = vmatmul.mubr.f32.gmra.mxu0 %v4292
        %v4369 = vpop.f32.mrf.mxu0
        %v4370 = vadd.f32 %v3917, %v4369
        %v4371 = vpop.f32.mrf.mxu0
        %4372 = vdwg.mxu0
        %4373 = vrot.lane.b32.xlu0 %v551, 112
        %v4374 = vpop.permute.xlu0 %4373
        %4375 = vrot.lane.b32.xlu0 %v556, 112
        %v4376 = vpop.permute.xlu0 %4375
        %4377 = vrot.lane.b32.xlu0 %v551, 80
        %v4378 = vpop.permute.xlu0 %4377
        %4379 = vrot.lane.b32.xlu0 %v556, 80
        %v4380 = vpop.permute.xlu0 %4379
        %v4381 = vsel %vm603, %v4374, 0
        %v4383 = vsel %vm603, %v4376, 0
        %v4385 = vsel %vm603, %v4378, 0
        %v4387 = vsel %vm603, %v4380, 0
        %4389 = vmatprep.subr.mxu0 0.0
        %4390 = vmatpush1.xpose.msra.mxu0 0.0
        %4391 = vmatprep.subr.mxu0 0.0
        %4392 = vmatpush1.xpose.msra.mxu0 0.0
        %4393 = vmatprep.subr.mxu0 0.0
        %4394 = vmatpush1.xpose.msra.mxu0 0.0
        %4395 = vmatprep.subr.mxu0 0.0
        %4396 = vmatpush1.xpose.msra.mxu0 0.0
        %4397 = vmatprep.subr.mxu0 0.0
        %4398 = vmatpush1.xpose.msra.mxu0 0.0
        %4399 = vmatprep.subr.mxu0 0.0
        %4400 = vmatpush1.xpose.msra.mxu0 0.0
        %4401 = vmatprep.subr.mxu0 0.0
        %4402 = vmatpush1.xpose.msra.mxu0 0.0
        %4403 = vmatprep.subr.mxu0 0.0
        %4404 = vmatpush1.xpose.msra.mxu0 0.0
        %4405 = vmatprep.subr.mxu0 0.0
        %4406 = vmatpush1.xpose.msra.mxu0 0.0
        %4407 = vmatprep.subr.mxu0 0.0
        %4408 = vmatpush1.xpose.msra.mxu0 0.0
        %4409 = vmatprep.subr.mxu0 0.0
        %4410 = vmatpush1.xpose.msra.mxu0 0.0
        %4411 = vmatprep.subr.mxu0 0.0
        %4412 = vmatpush1.xpose.msra.mxu0 0.0
        %4413 = vmatprep.subr.mxu0 0.0
        %4414 = vmatpush1.xpose.msra.mxu0 0.0
        %4415 = vmatprep.subr.mxu0 0.0
        %4416 = vmatpush1.xpose.msra.mxu0 0.0
        %4417 = vmatprep.subr.mxu0 0.0
        %4418 = vmatpush1.xpose.msra.mxu0 %v4387
        %4419 = vmatprep.subr.mxu0 0.0
        %4420 = vmatpush1.xpose.msra.mxu0 %v4385
        %4421 = vmatprep.subr.mxu0 0.0
        %4422 = vmatpush2.xpose.msra.mxu0 0.0
        %4423 = vmatprep.subr.mxu0 0.0
        %4424 = vmatpush2.xpose.msra.mxu0 0.0
        %4425 = vmatprep.subr.mxu0 0.0
        %4426 = vmatpush2.xpose.msra.mxu0 0.0
        %4427 = vmatprep.subr.mxu0 0.0
        %4428 = vmatpush2.xpose.msra.mxu0 0.0
        %4429 = vmatprep.subr.mxu0 0.0
        %4430 = vmatpush2.xpose.msra.mxu0 0.0
        %4431 = vmatprep.subr.mxu0 0.0
        %4432 = vmatpush2.xpose.msra.mxu0 0.0
        %4433 = vmatprep.subr.mxu0 0.0
        %4434 = vmatpush2.xpose.msra.mxu0 0.0
        %4435 = vmatprep.subr.mxu0 0.0
        %4436 = vmatpush2.xpose.msra.mxu0 0.0
        %4437 = vmatprep.subr.mxu0 0.0
        %4438 = vmatpush2.xpose.msra.mxu0 0.0
        %4439 = vmatprep.subr.mxu0 0.0
        %4440 = vmatpush2.xpose.msra.mxu0 0.0
        %4441 = vmatprep.subr.mxu0 0.0
        %4442 = vmatpush2.xpose.msra.mxu0 0.0
        %4443 = vmatprep.subr.mxu0 0.0
        %4444 = vmatpush2.xpose.msra.mxu0 0.0
        %4445 = vmatprep.subr.mxu0 0.0
        %4446 = vmatpush2.xpose.msra.mxu0 0.0
        %4447 = vmatprep.subr.mxu0 0.0
        %4448 = vmatpush2.xpose.msra.mxu0 0.0
        %4449 = vmatprep.subr.mxu0 0.0
        %4450 = vmatpush2.xpose.msra.mxu0 0.0
        %4451 = vmatprep.subr.mxu0 0.0
        %4452 = vmatpush2.xpose.msra.mxu0 0.0
        %4453 = vmatprep.mubr.f32.mxu0 0.0
        %4454 = vmatmul.mubr.f32.gmra.mxu0 %v4381
        %v4455 = vpop.f32.mrf.mxu0
        %v4456 = vadd.f32 %v3916, %v4455
        %v4457 = vpop.f32.mrf.mxu0
        %4458 = vmatprep.mubr.f32.mxu0 0.0
        %4459 = vmatmul.mubr.f32.gmra.mxu0 %v4383
        %v4460 = vpop.f32.mrf.mxu0
        %v4461 = vadd.f32 %v3917, %v4460
        %v4462 = vpop.f32.mrf.mxu0
        %4463 = vdwg.mxu0
        %4464 = vrot.lane.b32.xlu0 %v561, 112
        %v4465 = vpop.permute.xlu0 %4464
        %4466 = vrot.lane.b32.xlu0 %v566, 112
        %v4467 = vpop.permute.xlu0 %4466
        %4468 = vrot.lane.b32.xlu0 %v561, 80
        %v4469 = vpop.permute.xlu0 %4468
        %4470 = vrot.lane.b32.xlu0 %v566, 80
        %v4471 = vpop.permute.xlu0 %4470
        %v4472 = vsel %vm603, %v4465, 0
        %v4474 = vsel %vm603, %v4467, 0
        %v4476 = vsel %vm603, %v4469, 0
        %v4478 = vsel %vm603, %v4471, 0
        %4480 = vmatprep.subr.mxu0 0.0
        %4481 = vmatpush1.xpose.msra.mxu0 0.0
        %4482 = vmatprep.subr.mxu0 0.0
        %4483 = vmatpush1.xpose.msra.mxu0 0.0
        %4484 = vmatprep.subr.mxu0 0.0
        %4485 = vmatpush1.xpose.msra.mxu0 0.0
        %4486 = vmatprep.subr.mxu0 0.0
        %4487 = vmatpush1.xpose.msra.mxu0 0.0
        %4488 = vmatprep.subr.mxu0 0.0
        %4489 = vmatpush1.xpose.msra.mxu0 0.0
        %4490 = vmatprep.subr.mxu0 0.0
        %4491 = vmatpush1.xpose.msra.mxu0 0.0
        %4492 = vmatprep.subr.mxu0 0.0
        %4493 = vmatpush1.xpose.msra.mxu0 0.0
        %4494 = vmatprep.subr.mxu0 0.0
        %4495 = vmatpush1.xpose.msra.mxu0 0.0
        %4496 = vmatprep.subr.mxu0 0.0
        %4497 = vmatpush1.xpose.msra.mxu0 0.0
        %4498 = vmatprep.subr.mxu0 0.0
        %4499 = vmatpush1.xpose.msra.mxu0 0.0
        %4500 = vmatprep.subr.mxu0 0.0
        %4501 = vmatpush1.xpose.msra.mxu0 0.0
        %4502 = vmatprep.subr.mxu0 0.0
        %4503 = vmatpush1.xpose.msra.mxu0 0.0
        %4504 = vmatprep.subr.mxu0 0.0
        %4505 = vmatpush1.xpose.msra.mxu0 0.0
        %4506 = vmatprep.subr.mxu0 0.0
        %4507 = vmatpush1.xpose.msra.mxu0 0.0
        %4508 = vmatprep.subr.mxu0 0.0
        %4509 = vmatpush1.xpose.msra.mxu0 %v4478
        %4510 = vmatprep.subr.mxu0 0.0
        %4511 = vmatpush1.xpose.msra.mxu0 %v4476
        %4512 = vmatprep.subr.mxu0 0.0
        %4513 = vmatpush2.xpose.msra.mxu0 0.0
        %4514 = vmatprep.subr.mxu0 0.0
        %4515 = vmatpush2.xpose.msra.mxu0 0.0
        %4516 = vmatprep.subr.mxu0 0.0
        %4517 = vmatpush2.xpose.msra.mxu0 0.0
        %4518 = vmatprep.subr.mxu0 0.0
        %4519 = vmatpush2.xpose.msra.mxu0 0.0
        %4520 = vmatprep.subr.mxu0 0.0
        %4521 = vmatpush2.xpose.msra.mxu0 0.0
        %4522 = vmatprep.subr.mxu0 0.0
        %4523 = vmatpush2.xpose.msra.mxu0 0.0
        %4524 = vmatprep.subr.mxu0 0.0
        %4525 = vmatpush2.xpose.msra.mxu0 0.0
        %4526 = vmatprep.subr.mxu0 0.0
        %4527 = vmatpush2.xpose.msra.mxu0 0.0
        %4528 = vmatprep.subr.mxu0 0.0
        %4529 = vmatpush2.xpose.msra.mxu0 0.0
        %4530 = vmatprep.subr.mxu0 0.0
        %4531 = vmatpush2.xpose.msra.mxu0 0.0
        %4532 = vmatprep.subr.mxu0 0.0
        %4533 = vmatpush2.xpose.msra.mxu0 0.0
        %4534 = vmatprep.subr.mxu0 0.0
        %4535 = vmatpush2.xpose.msra.mxu0 0.0
        %4536 = vmatprep.subr.mxu0 0.0
        %4537 = vmatpush2.xpose.msra.mxu0 0.0
        %4538 = vmatprep.subr.mxu0 0.0
        %4539 = vmatpush2.xpose.msra.mxu0 0.0
        %4540 = vmatprep.subr.mxu0 0.0
        %4541 = vmatpush2.xpose.msra.mxu0 0.0
        %4542 = vmatprep.subr.mxu0 0.0
        %4543 = vmatpush2.xpose.msra.mxu0 0.0
        %4544 = vmatprep.mubr.f32.mxu0 0.0
        %4545 = vmatmul.mubr.f32.gmra.mxu0 %v4472
        %v4546 = vpop.f32.mrf.mxu0
        %v4547 = vadd.f32 %v3916, %v4546
        %v4548 = vpop.f32.mrf.mxu0
        %4549 = vmatprep.mubr.f32.mxu0 0.0
        %4550 = vmatmul.mubr.f32.gmra.mxu0 %v4474
        %v4551 = vpop.f32.mrf.mxu0
        %v4552 = vadd.f32 %v3917, %v4551
        %v4553 = vpop.f32.mrf.mxu0
        %4554 = vdwg.mxu0
        %4555 = vrot.lane.b32.xlu0 %v571, 112
        %v4556 = vpop.permute.xlu0 %4555
        %4557 = vrot.lane.b32.xlu0 %v576, 112
        %v4558 = vpop.permute.xlu0 %4557
        %4559 = vrot.lane.b32.xlu0 %v571, 80
        %v4560 = vpop.permute.xlu0 %4559
        %4561 = vrot.lane.b32.xlu0 %v576, 80
        %v4562 = vpop.permute.xlu0 %4561
        %v4563 = vsel %vm603, %v4556, 0
        %v4565 = vsel %vm603, %v4558, 0
        %v4567 = vsel %vm603, %v4560, 0
        %v4569 = vsel %vm603, %v4562, 0
        %4571 = vmatprep.subr.mxu0 0.0
        %4572 = vmatpush1.xpose.msra.mxu0 0.0
        %4573 = vmatprep.subr.mxu0 0.0
        %4574 = vmatpush1.xpose.msra.mxu0 0.0
        %4575 = vmatprep.subr.mxu0 0.0
        %4576 = vmatpush1.xpose.msra.mxu0 0.0
        %4577 = vmatprep.subr.mxu0 0.0
        %4578 = vmatpush1.xpose.msra.mxu0 0.0
        %4579 = vmatprep.subr.mxu0 0.0
        %4580 = vmatpush1.xpose.msra.mxu0 0.0
        %4581 = vmatprep.subr.mxu0 0.0
        %4582 = vmatpush1.xpose.msra.mxu0 0.0
        %4583 = vmatprep.subr.mxu0 0.0
        %4584 = vmatpush1.xpose.msra.mxu0 0.0
        %4585 = vmatprep.subr.mxu0 0.0
        %4586 = vmatpush1.xpose.msra.mxu0 0.0
        %4587 = vmatprep.subr.mxu0 0.0
        %4588 = vmatpush1.xpose.msra.mxu0 0.0
        %4589 = vmatprep.subr.mxu0 0.0
        %4590 = vmatpush1.xpose.msra.mxu0 0.0
        %4591 = vmatprep.subr.mxu0 0.0
        %4592 = vmatpush1.xpose.msra.mxu0 0.0
        %4593 = vmatprep.subr.mxu0 0.0
        %4594 = vmatpush1.xpose.msra.mxu0 0.0
        %4595 = vmatprep.subr.mxu0 0.0
        %4596 = vmatpush1.xpose.msra.mxu0 0.0
        %4597 = vmatprep.subr.mxu0 0.0
        %4598 = vmatpush1.xpose.msra.mxu0 0.0
        %4599 = vmatprep.subr.mxu0 0.0
        %4600 = vmatpush1.xpose.msra.mxu0 %v4569
        %4601 = vmatprep.subr.mxu0 0.0
        %4602 = vmatpush1.xpose.msra.mxu0 %v4567
        %4603 = vmatprep.subr.mxu0 0.0
        %4604 = vmatpush2.xpose.msra.mxu0 0.0
        %4605 = vmatprep.subr.mxu0 0.0
        %4606 = vmatpush2.xpose.msra.mxu0 0.0
        %4607 = vmatprep.subr.mxu0 0.0
        %4608 = vmatpush2.xpose.msra.mxu0 0.0
        %4609 = vmatprep.subr.mxu0 0.0
        %4610 = vmatpush2.xpose.msra.mxu0 0.0
        %4611 = vmatprep.subr.mxu0 0.0
        %4612 = vmatpush2.xpose.msra.mxu0 0.0
        %4613 = vmatprep.subr.mxu0 0.0
        %4614 = vmatpush2.xpose.msra.mxu0 0.0
        %4615 = vmatprep.subr.mxu0 0.0
        %4616 = vmatpush2.xpose.msra.mxu0 0.0
        %4617 = vmatprep.subr.mxu0 0.0
        %4618 = vmatpush2.xpose.msra.mxu0 0.0
        %4619 = vmatprep.subr.mxu0 0.0
        %4620 = vmatpush2.xpose.msra.mxu0 0.0
        %4621 = vmatprep.subr.mxu0 0.0
        %4622 = vmatpush2.xpose.msra.mxu0 0.0
        %4623 = vmatprep.subr.mxu0 0.0
        %4624 = vmatpush2.xpose.msra.mxu0 0.0
        %4625 = vmatprep.subr.mxu0 0.0
        %4626 = vmatpush2.xpose.msra.mxu0 0.0
        %4627 = vmatprep.subr.mxu0 0.0
        %4628 = vmatpush2.xpose.msra.mxu0 0.0
        %4629 = vmatprep.subr.mxu0 0.0
        %4630 = vmatpush2.xpose.msra.mxu0 0.0
        %4631 = vmatprep.subr.mxu0 0.0
        %4632 = vmatpush2.xpose.msra.mxu0 0.0
        %4633 = vmatprep.subr.mxu0 0.0
        %4634 = vmatpush2.xpose.msra.mxu0 0.0
        %4635 = vmatprep.mubr.f32.mxu0 0.0
        %4636 = vmatmul.mubr.f32.gmra.mxu0 %v4563
        %v4637 = vpop.f32.mrf.mxu0
        %v4638 = vadd.f32 %v3916, %v4637
        %v4639 = vpop.f32.mrf.mxu0
        %4640 = vmatprep.mubr.f32.mxu0 0.0
        %4641 = vmatmul.mubr.f32.gmra.mxu0 %v4565
        %v4642 = vpop.f32.mrf.mxu0
        %v4643 = vadd.f32 %v3917, %v4642
        %v4644 = vpop.f32.mrf.mxu0
        %4645 = vdwg.mxu0
        %v4646 = vadd.f32 %v4001, %v579
        %v4647 = vadd.f32 %v4006, %v580
        %v4648 = vadd.f32 %v4092, %v581
        %v4649 = vadd.f32 %v4097, %v582
        %v4650 = vadd.f32 %v4183, %v583
        %v4651 = vadd.f32 %v4188, %v584
        %v4652 = vadd.f32 %v4274, %v585
        %v4653 = vadd.f32 %v4279, %v586
        %v4654 = vadd.f32 %v4365, %v587
        %v4655 = vadd.f32 %v4370, %v588
        %v4656 = vadd.f32 %v4456, %v589
        %v4657 = vadd.f32 %v4461, %v590
        %v4658 = vadd.f32 %v4547, %v591
        %v4659 = vadd.f32 %v4552, %v592
        %v4660 = vadd.f32 %v4638, %v593
        %v4661 = vadd.f32 %v4643, %v594
        %v4662 = vsel %vm1326, %v4646, -inf
        %4663 = vmax.xlane.f32.xlu0 %v4662
        %v4664 = vpop.xlane.xlu0 %4663
        %v4665 = vsel %vm1326, %v4647, -inf
        %4666 = vmax.xlane.f32.xlu0 %v4665
        %v4667 = vpop.xlane.xlu0 %4666
        %v4668 = vsel %vm1326, %v4648, -inf
        %4669 = vmax.xlane.f32.xlu0 %v4668
        %v4670 = vpop.xlane.xlu0 %4669
        %v4671 = vsel %vm1326, %v4649, -inf
        %4672 = vmax.xlane.f32.xlu0 %v4671
        %v4673 = vpop.xlane.xlu0 %4672
        %v4674 = vsel %vm1326, %v4650, -inf
        %4675 = vmax.xlane.f32.xlu0 %v4674
        %v4676 = vpop.xlane.xlu0 %4675
        %v4677 = vsel %vm1326, %v4651, -inf
        %4678 = vmax.xlane.f32.xlu0 %v4677
        %v4679 = vpop.xlane.xlu0 %4678
        %v4680 = vsel %vm1326, %v4652, -inf
        %4681 = vmax.xlane.f32.xlu0 %v4680
        %v4682 = vpop.xlane.xlu0 %4681
        %v4683 = vsel %vm1326, %v4653, -inf
        %4684 = vmax.xlane.f32.xlu0 %v4683
        %v4685 = vpop.xlane.xlu0 %4684
        %v4686 = vsel %vm1326, %v4654, -inf
        %4687 = vmax.xlane.f32.xlu0 %v4686
        %v4688 = vpop.xlane.xlu0 %4687
        %v4689 = vsel %vm1326, %v4655, -inf
        %4690 = vmax.xlane.f32.xlu0 %v4689
        %v4691 = vpop.xlane.xlu0 %4690
        %v4692 = vsel %vm1326, %v4656, -inf
        %4693 = vmax.xlane.f32.xlu0 %v4692
        %v4694 = vpop.xlane.xlu0 %4693
        %v4695 = vsel %vm1326, %v4657, -inf
        %4696 = vmax.xlane.f32.xlu0 %v4695
        %v4697 = vpop.xlane.xlu0 %4696
        %v4698 = vsel %vm1326, %v4658, -inf
        %4699 = vmax.xlane.f32.xlu0 %v4698
        %v4700 = vpop.xlane.xlu0 %4699
        %v4701 = vsel %vm1326, %v4659, -inf
        %4702 = vmax.xlane.f32.xlu0 %v4701
        %v4703 = vpop.xlane.xlu0 %4702
        %v4704 = vsel %vm1326, %v4660, -inf
        %4705 = vmax.xlane.f32.xlu0 %v4704
        %v4706 = vpop.xlane.xlu0 %4705
        %v4707 = vsel %vm1326, %v4661, -inf
        %4708 = vmax.xlane.f32.xlu0 %v4707
        %v4709 = vpop.xlane.xlu0 %4708
        %v4710 = vsub.f32 %v4646, %v4664
        %v4711 = vsub.f32 %v4647, %v4667
        %v4712 = vsub.f32 %v4648, %v4670
        %v4713 = vsub.f32 %v4649, %v4673
        %v4714 = vsub.f32 %v4650, %v4676
        %v4715 = vsub.f32 %v4651, %v4679
        %v4716 = vsub.f32 %v4652, %v4682
        %v4717 = vsub.f32 %v4653, %v4685
        %v4718 = vsub.f32 %v4654, %v4688
        %v4719 = vsub.f32 %v4655, %v4691
        %v4720 = vsub.f32 %v4656, %v4694
        %v4721 = vsub.f32 %v4657, %v4697
        %v4722 = vsub.f32 %v4658, %v4700
        %v4723 = vsub.f32 %v4659, %v4703
        %v4724 = vsub.f32 %v4660, %v4706
        %v4725 = vsub.f32 %v4661, %v4709
        %v4726 = vmul.f32 %v4710, 1.442695
        %v4727 = vpow.pop %v4726
        %v4728 = vmul.f32 %v4711, 1.442695
        %v4729 = vpow.pop %v4728
        %v4730 = vmul.f32 %v4712, 1.442695
        %v4731 = vpow.pop %v4730
        %v4732 = vmul.f32 %v4713, 1.442695
        %v4733 = vpow.pop %v4732
        %v4734 = vmul.f32 %v4714, 1.442695
        %v4735 = vpow.pop %v4734
        %v4736 = vmul.f32 %v4715, 1.442695
        %v4737 = vpow.pop %v4736
        %v4738 = vmul.f32 %v4716, 1.442695
        %v4739 = vpow.pop %v4738
        %v4740 = vmul.f32 %v4717, 1.442695
        %v4741 = vpow.pop %v4740
        %v4742 = vmul.f32 %v4718, 1.442695
        %v4743 = vpow.pop %v4742
        %v4744 = vmul.f32 %v4719, 1.442695
        %v4745 = vpow.pop %v4744
        %v4746 = vmul.f32 %v4720, 1.442695
        %v4747 = vpow.pop %v4746
        %v4748 = vmul.f32 %v4721, 1.442695
        %v4749 = vpow.pop %v4748
        %v4750 = vmul.f32 %v4722, 1.442695
        %v4751 = vpow.pop %v4750
        %v4752 = vmul.f32 %v4723, 1.442695
        %v4753 = vpow.pop %v4752
        %v4754 = vmul.f32 %v4724, 1.442695
        %v4755 = vpow.pop %v4754
        %v4756 = vmul.f32 %v4725, 1.442695
        %v4757 = vpow.pop %v4756
        %v4758 = vsel %vm1326, %v4727, 0.0
        %4759 = vadd.xlane.f32.xlu0 %v4758
        %v4760 = vpop.xlane.xlu0 %4759
        %v4761 = vsel %vm1326, %v4729, 0.0
        %4762 = vadd.xlane.f32.xlu0 %v4761
        %v4763 = vpop.xlane.xlu0 %4762
        %v4764 = vsel %vm1326, %v4731, 0.0
        %4765 = vadd.xlane.f32.xlu0 %v4764
        %v4766 = vpop.xlane.xlu0 %4765
        %v4767 = vsel %vm1326, %v4733, 0.0
        %4768 = vadd.xlane.f32.xlu0 %v4767
        %v4769 = vpop.xlane.xlu0 %4768
        %v4770 = vsel %vm1326, %v4735, 0.0
        %4771 = vadd.xlane.f32.xlu0 %v4770
        %v4772 = vpop.xlane.xlu0 %4771
        %v4773 = vsel %vm1326, %v4737, 0.0
        %4774 = vadd.xlane.f32.xlu0 %v4773
        %v4775 = vpop.xlane.xlu0 %4774
        %v4776 = vsel %vm1326, %v4739, 0.0
        %4777 = vadd.xlane.f32.xlu0 %v4776
        %v4778 = vpop.xlane.xlu0 %4777
        %v4779 = vsel %vm1326, %v4741, 0.0
        %4780 = vadd.xlane.f32.xlu0 %v4779
        %v4781 = vpop.xlane.xlu0 %4780
        %v4782 = vsel %vm1326, %v4743, 0.0
        %4783 = vadd.xlane.f32.xlu0 %v4782
        %v4784 = vpop.xlane.xlu0 %4783
        %v4785 = vsel %vm1326, %v4745, 0.0
        %4786 = vadd.xlane.f32.xlu0 %v4785
        %v4787 = vpop.xlane.xlu0 %4786
        %v4788 = vsel %vm1326, %v4747, 0.0
        %4789 = vadd.xlane.f32.xlu0 %v4788
        %v4790 = vpop.xlane.xlu0 %4789
        %v4791 = vsel %vm1326, %v4749, 0.0
        %4792 = vadd.xlane.f32.xlu0 %v4791
        %v4793 = vpop.xlane.xlu0 %4792
        %v4794 = vsel %vm1326, %v4751, 0.0
        %4795 = vadd.xlane.f32.xlu0 %v4794
        %v4796 = vpop.xlane.xlu0 %4795
        %v4797 = vsel %vm1326, %v4753, 0.0
        %4798 = vadd.xlane.f32.xlu0 %v4797
        %v4799 = vpop.xlane.xlu0 %4798
        %v4800 = vsel %vm1326, %v4755, 0.0
        %4801 = vadd.xlane.f32.xlu0 %v4800
        %v4802 = vpop.xlane.xlu0 %4801
        %v4803 = vsel %vm1326, %v4757, 0.0
        %4804 = vadd.xlane.f32.xlu0 %v4803
        %v4805 = vpop.xlane.xlu0 %4804
        %v4806 = vrcp.pop %v4760
        %v4807 = vrcp.pop %v4763
        %v4808 = vrcp.pop %v4766
        %v4809 = vrcp.pop %v4769
        %v4810 = vrcp.pop %v4772
        %v4811 = vrcp.pop %v4775
        %v4812 = vrcp.pop %v4778
        %v4813 = vrcp.pop %v4781
        %v4814 = vrcp.pop %v4784
        %v4815 = vrcp.pop %v4787
        %v4816 = vrcp.pop %v4790
        %v4817 = vrcp.pop %v4793
        %v4818 = vrcp.pop %v4796
        %v4819 = vrcp.pop %v4799
        %v4820 = vrcp.pop %v4802
        %v4821 = vrcp.pop %v4805
        %v4822 = vmul.f32 %v4727, %v4806
        %v4823 = vmul.f32 %v4729, %v4807
        %v4824 = vmul.f32 %v4731, %v4808
        %v4825 = vmul.f32 %v4733, %v4809
        %v4826 = vmul.f32 %v4735, %v4810
        %v4827 = vmul.f32 %v4737, %v4811
        %v4828 = vmul.f32 %v4739, %v4812
        %v4829 = vmul.f32 %v4741, %v4813
        %v4830 = vmul.f32 %v4743, %v4814
        %v4831 = vmul.f32 %v4745, %v4815
        %v4832 = vmul.f32 %v4747, %v4816
        %v4833 = vmul.f32 %v4749, %v4817
        %v4834 = vmul.f32 %v4751, %v4818
        %v4835 = vmul.f32 %v4753, %v4819
        %v4836 = vmul.f32 %v4755, %v4820
        %v4837 = vmul.f32 %v4757, %v4821
        %4838 = vrot.lane.b32.xlu0 %v501, 48
        %v4839 = vpop.permute.xlu0 %4838
        %4840 = vrot.lane.b32.xlu0 %v506, 48
        %v4841 = vpop.permute.xlu0 %4840
        %v4845 = vsel %vm1326, %v4822, 0
        %v4848 = vsel %vm1326, %v4823, 0
        %4850 = vmatprep.subr.mxu0 0.0
        %4851 = vmatpush1.msra.mxu0 0.0
        %4852 = vmatprep.subr.mxu0 0.0
        %4853 = vmatpush1.msra.mxu0 0.0
        %4854 = vmatprep.subr.mxu0 0.0
        %4855 = vmatpush1.msra.mxu0 0.0
        %4856 = vmatprep.subr.mxu0 0.0
        %4857 = vmatpush1.msra.mxu0 0.0
        %4858 = vmatprep.subr.mxu0 0.0
        %4859 = vmatpush1.msra.mxu0 0.0
        %4860 = vmatprep.subr.mxu0 0.0
        %4861 = vmatpush1.msra.mxu0 0.0
        %4862 = vmatprep.subr.mxu0 0.0
        %4863 = vmatpush1.msra.mxu0 0.0
        %4864 = vmatprep.subr.mxu0 0.0
        %4865 = vmatpush1.msra.mxu0 0.0
        %4866 = vmatprep.subr.mxu0 0.0
        %4867 = vmatpush1.msra.mxu0 0.0
        %4868 = vmatprep.subr.mxu0 0.0
        %4869 = vmatpush1.msra.mxu0 0.0
        %4870 = vmatprep.subr.mxu0 0.0
        %4871 = vmatpush1.msra.mxu0 0.0
        %4872 = vmatprep.subr.mxu0 0.0
        %4873 = vmatpush1.msra.mxu0 0.0
        %4874 = vmatprep.subr.mxu0 0.0
        %4875 = vmatpush1.msra.mxu0 0.0
        %4876 = vmatprep.subr.mxu0 0.0
        %4877 = vmatpush1.msra.mxu0 0.0
        %4878 = vmatprep.subr.mxu0 0.0
        %4879 = vmatpush1.msra.mxu0 %v4841
        %4880 = vmatprep.subr.mxu0 0.0
        %4881 = vmatpush1.msra.mxu0 %v4839
        %4882 = vmatprep.subr.mxu0 0.0
        %4883 = vmatpush2.msra.mxu0 0.0
        %4884 = vmatprep.subr.mxu0 0.0
        %4885 = vmatpush2.msra.mxu0 0.0
        %4886 = vmatprep.subr.mxu0 0.0
        %4887 = vmatpush2.msra.mxu0 0.0
        %4888 = vmatprep.subr.mxu0 0.0
        %4889 = vmatpush2.msra.mxu0 0.0
        %4890 = vmatprep.subr.mxu0 0.0
        %4891 = vmatpush2.msra.mxu0 0.0
        %4892 = vmatprep.subr.mxu0 0.0
        %4893 = vmatpush2.msra.mxu0 0.0
        %4894 = vmatprep.subr.mxu0 0.0
        %4895 = vmatpush2.msra.mxu0 0.0
        %4896 = vmatprep.subr.mxu0 0.0
        %4897 = vmatpush2.msra.mxu0 0.0
        %4898 = vmatprep.subr.mxu0 0.0
        %4899 = vmatpush2.msra.mxu0 0.0
        %4900 = vmatprep.subr.mxu0 0.0
        %4901 = vmatpush2.msra.mxu0 0.0
        %4902 = vmatprep.subr.mxu0 0.0
        %4903 = vmatpush2.msra.mxu0 0.0
        %4904 = vmatprep.subr.mxu0 0.0
        %4905 = vmatpush2.msra.mxu0 0.0
        %4906 = vmatprep.subr.mxu0 0.0
        %4907 = vmatpush2.msra.mxu0 0.0
        %4908 = vmatprep.subr.mxu0 0.0
        %4909 = vmatpush2.msra.mxu0 0.0
        %4910 = vmatprep.subr.mxu0 0.0
        %4911 = vmatpush2.msra.mxu0 0.0
        %4912 = vmatprep.subr.mxu0 0.0
        %4913 = vmatpush2.msra.mxu0 0.0
        %4914 = vmatprep.mubr.f32.mxu0 0.0
        %4915 = vmatmul.mubr.f32.gmra.mxu0 %v4845
        %v4916 = vpop.f32.mrf.mxu0
        %v4917 = vadd.f32 0.0, %v4916
        %v4918 = vpop.f32.mrf.mxu0
        %4919 = vmatprep.mubr.f32.mxu0 0.0
        %4920 = vmatmul.mubr.f32.gmra.mxu0 %v4848
        %v4921 = vpop.f32.mrf.mxu0
        %v4922 = vadd.f32 0.0, %v4921
        %v4923 = vpop.f32.mrf.mxu0
        %4924 = vdwg.mxu0
        %4925 = vrot.lane.b32.xlu0 %v511, 48
        %v4926 = vpop.permute.xlu0 %4925
        %4927 = vrot.lane.b32.xlu0 %v516, 48
        %v4928 = vpop.permute.xlu0 %4927
        %v4932 = vsel %vm1326, %v4824, 0
        %v4935 = vsel %vm1326, %v4825, 0
        %4937 = vmatprep.subr.mxu0 0.0
        %4938 = vmatpush1.msra.mxu0 0.0
        %4939 = vmatprep.subr.mxu0 0.0
        %4940 = vmatpush1.msra.mxu0 0.0
        %4941 = vmatprep.subr.mxu0 0.0
        %4942 = vmatpush1.msra.mxu0 0.0
        %4943 = vmatprep.subr.mxu0 0.0
        %4944 = vmatpush1.msra.mxu0 0.0
        %4945 = vmatprep.subr.mxu0 0.0
        %4946 = vmatpush1.msra.mxu0 0.0
        %4947 = vmatprep.subr.mxu0 0.0
        %4948 = vmatpush1.msra.mxu0 0.0
        %4949 = vmatprep.subr.mxu0 0.0
        %4950 = vmatpush1.msra.mxu0 0.0
        %4951 = vmatprep.subr.mxu0 0.0
        %4952 = vmatpush1.msra.mxu0 0.0
        %4953 = vmatprep.subr.mxu0 0.0
        %4954 = vmatpush1.msra.mxu0 0.0
        %4955 = vmatprep.subr.mxu0 0.0
        %4956 = vmatpush1.msra.mxu0 0.0
        %4957 = vmatprep.subr.mxu0 0.0
        %4958 = vmatpush1.msra.mxu0 0.0
        %4959 = vmatprep.subr.mxu0 0.0
        %4960 = vmatpush1.msra.mxu0 0.0
        %4961 = vmatprep.subr.mxu0 0.0
        %4962 = vmatpush1.msra.mxu0 0.0
        %4963 = vmatprep.subr.mxu0 0.0
        %4964 = vmatpush1.msra.mxu0 0.0
        %4965 = vmatprep.subr.mxu0 0.0
        %4966 = vmatpush1.msra.mxu0 %v4928
        %4967 = vmatprep.subr.mxu0 0.0
        %4968 = vmatpush1.msra.mxu0 %v4926
        %4969 = vmatprep.subr.mxu0 0.0
        %4970 = vmatpush2.msra.mxu0 0.0
        %4971 = vmatprep.subr.mxu0 0.0
        %4972 = vmatpush2.msra.mxu0 0.0
        %4973 = vmatprep.subr.mxu0 0.0
        %4974 = vmatpush2.msra.mxu0 0.0
        %4975 = vmatprep.subr.mxu0 0.0
        %4976 = vmatpush2.msra.mxu0 0.0
        %4977 = vmatprep.subr.mxu0 0.0
        %4978 = vmatpush2.msra.mxu0 0.0
        %4979 = vmatprep.subr.mxu0 0.0
        %4980 = vmatpush2.msra.mxu0 0.0
        %4981 = vmatprep.subr.mxu0 0.0
        %4982 = vmatpush2.msra.mxu0 0.0
        %4983 = vmatprep.subr.mxu0 0.0
        %4984 = vmatpush2.msra.mxu0 0.0
        %4985 = vmatprep.subr.mxu0 0.0
        %4986 = vmatpush2.msra.mxu0 0.0
        %4987 = vmatprep.subr.mxu0 0.0
        %4988 = vmatpush2.msra.mxu0 0.0
        %4989 = vmatprep.subr.mxu0 0.0
        %4990 = vmatpush2.msra.mxu0 0.0
        %4991 = vmatprep.subr.mxu0 0.0
        %4992 = vmatpush2.msra.mxu0 0.0
        %4993 = vmatprep.subr.mxu0 0.0
        %4994 = vmatpush2.msra.mxu0 0.0
        %4995 = vmatprep.subr.mxu0 0.0
        %4996 = vmatpush2.msra.mxu0 0.0
        %4997 = vmatprep.subr.mxu0 0.0
        %4998 = vmatpush2.msra.mxu0 0.0
        %4999 = vmatprep.subr.mxu0 0.0
        %5000 = vmatpush2.msra.mxu0 0.0
        %5001 = vmatprep.mubr.f32.mxu0 0.0
        %5002 = vmatmul.mubr.f32.gmra.mxu0 %v4932
        %v5003 = vpop.f32.mrf.mxu0
        %v5004 = vadd.f32 0.0, %v5003
        %v5005 = vpop.f32.mrf.mxu0
        %5006 = vmatprep.mubr.f32.mxu0 0.0
        %5007 = vmatmul.mubr.f32.gmra.mxu0 %v4935
        %v5008 = vpop.f32.mrf.mxu0
        %v5009 = vadd.f32 0.0, %v5008
        %v5010 = vpop.f32.mrf.mxu0
        %5011 = vdwg.mxu0
        %5012 = vrot.lane.b32.xlu0 %v521, 48
        %v5013 = vpop.permute.xlu0 %5012
        %5014 = vrot.lane.b32.xlu0 %v526, 48
        %v5015 = vpop.permute.xlu0 %5014
        %v5019 = vsel %vm1326, %v4826, 0
        %v5022 = vsel %vm1326, %v4827, 0
        %5024 = vmatprep.subr.mxu0 0.0
        %5025 = vmatpush1.msra.mxu0 0.0
        %5026 = vmatprep.subr.mxu0 0.0
        %5027 = vmatpush1.msra.mxu0 0.0
        %5028 = vmatprep.subr.mxu0 0.0
        %5029 = vmatpush1.msra.mxu0 0.0
        %5030 = vmatprep.subr.mxu0 0.0
        %5031 = vmatpush1.msra.mxu0 0.0
        %5032 = vmatprep.subr.mxu0 0.0
        %5033 = vmatpush1.msra.mxu0 0.0
        %5034 = vmatprep.subr.mxu0 0.0
        %5035 = vmatpush1.msra.mxu0 0.0
        %5036 = vmatprep.subr.mxu0 0.0
        %5037 = vmatpush1.msra.mxu0 0.0
        %5038 = vmatprep.subr.mxu0 0.0
        %5039 = vmatpush1.msra.mxu0 0.0
        %5040 = vmatprep.subr.mxu0 0.0
        %5041 = vmatpush1.msra.mxu0 0.0
        %5042 = vmatprep.subr.mxu0 0.0
        %5043 = vmatpush1.msra.mxu0 0.0
        %5044 = vmatprep.subr.mxu0 0.0
        %5045 = vmatpush1.msra.mxu0 0.0
        %5046 = vmatprep.subr.mxu0 0.0
        %5047 = vmatpush1.msra.mxu0 0.0
        %5048 = vmatprep.subr.mxu0 0.0
        %5049 = vmatpush1.msra.mxu0 0.0
        %5050 = vmatprep.subr.mxu0 0.0
        %5051 = vmatpush1.msra.mxu0 0.0
        %5052 = vmatprep.subr.mxu0 0.0
        %5053 = vmatpush1.msra.mxu0 %v5015
        %5054 = vmatprep.subr.mxu0 0.0
        %5055 = vmatpush1.msra.mxu0 %v5013
        %5056 = vmatprep.subr.mxu0 0.0
        %5057 = vmatpush2.msra.mxu0 0.0
        %5058 = vmatprep.subr.mxu0 0.0
        %5059 = vmatpush2.msra.mxu0 0.0
        %5060 = vmatprep.subr.mxu0 0.0
        %5061 = vmatpush2.msra.mxu0 0.0
        %5062 = vmatprep.subr.mxu0 0.0
        %5063 = vmatpush2.msra.mxu0 0.0
        %5064 = vmatprep.subr.mxu0 0.0
        %5065 = vmatpush2.msra.mxu0 0.0
        %5066 = vmatprep.subr.mxu0 0.0
        %5067 = vmatpush2.msra.mxu0 0.0
        %5068 = vmatprep.subr.mxu0 0.0
        %5069 = vmatpush2.msra.mxu0 0.0
        %5070 = vmatprep.subr.mxu0 0.0
        %5071 = vmatpush2.msra.mxu0 0.0
        %5072 = vmatprep.subr.mxu0 0.0
        %5073 = vmatpush2.msra.mxu0 0.0
        %5074 = vmatprep.subr.mxu0 0.0
        %5075 = vmatpush2.msra.mxu0 0.0
        %5076 = vmatprep.subr.mxu0 0.0
        %5077 = vmatpush2.msra.mxu0 0.0
        %5078 = vmatprep.subr.mxu0 0.0
        %5079 = vmatpush2.msra.mxu0 0.0
        %5080 = vmatprep.subr.mxu0 0.0
        %5081 = vmatpush2.msra.mxu0 0.0
        %5082 = vmatprep.subr.mxu0 0.0
        %5083 = vmatpush2.msra.mxu0 0.0
        %5084 = vmatprep.subr.mxu0 0.0
        %5085 = vmatpush2.msra.mxu0 0.0
        %5086 = vmatprep.subr.mxu0 0.0
        %5087 = vmatpush2.msra.mxu0 0.0
        %5088 = vmatprep.mubr.f32.mxu0 0.0
        %5089 = vmatmul.mubr.f32.gmra.mxu0 %v5019
        %v5090 = vpop.f32.mrf.mxu0
        %v5091 = vadd.f32 0.0, %v5090
        %v5092 = vpop.f32.mrf.mxu0
        %5093 = vmatprep.mubr.f32.mxu0 0.0
        %5094 = vmatmul.mubr.f32.gmra.mxu0 %v5022
        %v5095 = vpop.f32.mrf.mxu0
        %v5096 = vadd.f32 0.0, %v5095
        %v5097 = vpop.f32.mrf.mxu0
        %5098 = vdwg.mxu0
        %5099 = vrot.lane.b32.xlu0 %v531, 48
        %v5100 = vpop.permute.xlu0 %5099
        %5101 = vrot.lane.b32.xlu0 %v536, 48
        %v5102 = vpop.permute.xlu0 %5101
        %v5106 = vsel %vm1326, %v4828, 0
        %v5109 = vsel %vm1326, %v4829, 0
        %5111 = vmatprep.subr.mxu0 0.0
        %5112 = vmatpush1.msra.mxu0 0.0
        %5113 = vmatprep.subr.mxu0 0.0
        %5114 = vmatpush1.msra.mxu0 0.0
        %5115 = vmatprep.subr.mxu0 0.0
        %5116 = vmatpush1.msra.mxu0 0.0
        %5117 = vmatprep.subr.mxu0 0.0
        %5118 = vmatpush1.msra.mxu0 0.0
        %5119 = vmatprep.subr.mxu0 0.0
        %5120 = vmatpush1.msra.mxu0 0.0
        %5121 = vmatprep.subr.mxu0 0.0
        %5122 = vmatpush1.msra.mxu0 0.0
        %5123 = vmatprep.subr.mxu0 0.0
        %5124 = vmatpush1.msra.mxu0 0.0
        %5125 = vmatprep.subr.mxu0 0.0
        %5126 = vmatpush1.msra.mxu0 0.0
        %5127 = vmatprep.subr.mxu0 0.0
        %5128 = vmatpush1.msra.mxu0 0.0
        %5129 = vmatprep.subr.mxu0 0.0
        %5130 = vmatpush1.msra.mxu0 0.0
        %5131 = vmatprep.subr.mxu0 0.0
        %5132 = vmatpush1.msra.mxu0 0.0
        %5133 = vmatprep.subr.mxu0 0.0
        %5134 = vmatpush1.msra.mxu0 0.0
        %5135 = vmatprep.subr.mxu0 0.0
        %5136 = vmatpush1.msra.mxu0 0.0
        %5137 = vmatprep.subr.mxu0 0.0
        %5138 = vmatpush1.msra.mxu0 0.0
        %5139 = vmatprep.subr.mxu0 0.0
        %5140 = vmatpush1.msra.mxu0 %v5102
        %5141 = vmatprep.subr.mxu0 0.0
        %5142 = vmatpush1.msra.mxu0 %v5100
        %5143 = vmatprep.subr.mxu0 0.0
        %5144 = vmatpush2.msra.mxu0 0.0
        %5145 = vmatprep.subr.mxu0 0.0
        %5146 = vmatpush2.msra.mxu0 0.0
        %5147 = vmatprep.subr.mxu0 0.0
        %5148 = vmatpush2.msra.mxu0 0.0
        %5149 = vmatprep.subr.mxu0 0.0
        %5150 = vmatpush2.msra.mxu0 0.0
        %5151 = vmatprep.subr.mxu0 0.0
        %5152 = vmatpush2.msra.mxu0 0.0
        %5153 = vmatprep.subr.mxu0 0.0
        %5154 = vmatpush2.msra.mxu0 0.0
        %5155 = vmatprep.subr.mxu0 0.0
        %5156 = vmatpush2.msra.mxu0 0.0
        %5157 = vmatprep.subr.mxu0 0.0
        %5158 = vmatpush2.msra.mxu0 0.0
        %5159 = vmatprep.subr.mxu0 0.0
        %5160 = vmatpush2.msra.mxu0 0.0
        %5161 = vmatprep.subr.mxu0 0.0
        %5162 = vmatpush2.msra.mxu0 0.0
        %5163 = vmatprep.subr.mxu0 0.0
        %5164 = vmatpush2.msra.mxu0 0.0
        %5165 = vmatprep.subr.mxu0 0.0
        %5166 = vmatpush2.msra.mxu0 0.0
        %5167 = vmatprep.subr.mxu0 0.0
        %5168 = vmatpush2.msra.mxu0 0.0
        %5169 = vmatprep.subr.mxu0 0.0
        %5170 = vmatpush2.msra.mxu0 0.0
        %5171 = vmatprep.subr.mxu0 0.0
        %5172 = vmatpush2.msra.mxu0 0.0
        %5173 = vmatprep.subr.mxu0 0.0
        %5174 = vmatpush2.msra.mxu0 0.0
        %5175 = vmatprep.mubr.f32.mxu0 0.0
        %5176 = vmatmul.mubr.f32.gmra.mxu0 %v5106
        %v5177 = vpop.f32.mrf.mxu0
        %v5178 = vadd.f32 0.0, %v5177
        %v5179 = vpop.f32.mrf.mxu0
        %5180 = vmatprep.mubr.f32.mxu0 0.0
        %5181 = vmatmul.mubr.f32.gmra.mxu0 %v5109
        %v5182 = vpop.f32.mrf.mxu0
        %v5183 = vadd.f32 0.0, %v5182
        %v5184 = vpop.f32.mrf.mxu0
        %5185 = vdwg.mxu0
        %5186 = vrot.lane.b32.xlu0 %v541, 48
        %v5187 = vpop.permute.xlu0 %5186
        %5188 = vrot.lane.b32.xlu0 %v546, 48
        %v5189 = vpop.permute.xlu0 %5188
        %v5193 = vsel %vm1326, %v4830, 0
        %v5196 = vsel %vm1326, %v4831, 0
        %5198 = vmatprep.subr.mxu0 0.0
        %5199 = vmatpush1.msra.mxu0 0.0
        %5200 = vmatprep.subr.mxu0 0.0
        %5201 = vmatpush1.msra.mxu0 0.0
        %5202 = vmatprep.subr.mxu0 0.0
        %5203 = vmatpush1.msra.mxu0 0.0
        %5204 = vmatprep.subr.mxu0 0.0
        %5205 = vmatpush1.msra.mxu0 0.0
        %5206 = vmatprep.subr.mxu0 0.0
        %5207 = vmatpush1.msra.mxu0 0.0
        %5208 = vmatprep.subr.mxu0 0.0
        %5209 = vmatpush1.msra.mxu0 0.0
        %5210 = vmatprep.subr.mxu0 0.0
        %5211 = vmatpush1.msra.mxu0 0.0
        %5212 = vmatprep.subr.mxu0 0.0
        %5213 = vmatpush1.msra.mxu0 0.0
        %5214 = vmatprep.subr.mxu0 0.0
        %5215 = vmatpush1.msra.mxu0 0.0
        %5216 = vmatprep.subr.mxu0 0.0
        %5217 = vmatpush1.msra.mxu0 0.0
        %5218 = vmatprep.subr.mxu0 0.0
        %5219 = vmatpush1.msra.mxu0 0.0
        %5220 = vmatprep.subr.mxu0 0.0
        %5221 = vmatpush1.msra.mxu0 0.0
        %5222 = vmatprep.subr.mxu0 0.0
        %5223 = vmatpush1.msra.mxu0 0.0
        %5224 = vmatprep.subr.mxu0 0.0
        %5225 = vmatpush1.msra.mxu0 0.0
        %5226 = vmatprep.subr.mxu0 0.0
        %5227 = vmatpush1.msra.mxu0 %v5189
        %5228 = vmatprep.subr.mxu0 0.0
        %5229 = vmatpush1.msra.mxu0 %v5187
        %5230 = vmatprep.subr.mxu0 0.0
        %5231 = vmatpush2.msra.mxu0 0.0
        %5232 = vmatprep.subr.mxu0 0.0
        %5233 = vmatpush2.msra.mxu0 0.0
        %5234 = vmatprep.subr.mxu0 0.0
        %5235 = vmatpush2.msra.mxu0 0.0
        %5236 = vmatprep.subr.mxu0 0.0
        %5237 = vmatpush2.msra.mxu0 0.0
        %5238 = vmatprep.subr.mxu0 0.0
        %5239 = vmatpush2.msra.mxu0 0.0
        %5240 = vmatprep.subr.mxu0 0.0
        %5241 = vmatpush2.msra.mxu0 0.0
        %5242 = vmatprep.subr.mxu0 0.0
        %5243 = vmatpush2.msra.mxu0 0.0
        %5244 = vmatprep.subr.mxu0 0.0
        %5245 = vmatpush2.msra.mxu0 0.0
        %5246 = vmatprep.subr.mxu0 0.0
        %5247 = vmatpush2.msra.mxu0 0.0
        %5248 = vmatprep.subr.mxu0 0.0
        %5249 = vmatpush2.msra.mxu0 0.0
        %5250 = vmatprep.subr.mxu0 0.0
        %5251 = vmatpush2.msra.mxu0 0.0
        %5252 = vmatprep.subr.mxu0 0.0
        %5253 = vmatpush2.msra.mxu0 0.0
        %5254 = vmatprep.subr.mxu0 0.0
        %5255 = vmatpush2.msra.mxu0 0.0
        %5256 = vmatprep.subr.mxu0 0.0
        %5257 = vmatpush2.msra.mxu0 0.0
        %5258 = vmatprep.subr.mxu0 0.0
        %5259 = vmatpush2.msra.mxu0 0.0
        %5260 = vmatprep.subr.mxu0 0.0
        %5261 = vmatpush2.msra.mxu0 0.0
        %5262 = vmatprep.mubr.f32.mxu0 0.0
        %5263 = vmatmul.mubr.f32.gmra.mxu0 %v5193
        %v5264 = vpop.f32.mrf.mxu0
        %v5265 = vadd.f32 0.0, %v5264
        %v5266 = vpop.f32.mrf.mxu0
        %5267 = vmatprep.mubr.f32.mxu0 0.0
        %5268 = vmatmul.mubr.f32.gmra.mxu0 %v5196
        %v5269 = vpop.f32.mrf.mxu0
        %v5270 = vadd.f32 0.0, %v5269
        %v5271 = vpop.f32.mrf.mxu0
        %5272 = vdwg.mxu0
        %5273 = vrot.lane.b32.xlu0 %v551, 48
        %v5274 = vpop.permute.xlu0 %5273
        %5275 = vrot.lane.b32.xlu0 %v556, 48
        %v5276 = vpop.permute.xlu0 %5275
        %v5280 = vsel %vm1326, %v4832, 0
        %v5283 = vsel %vm1326, %v4833, 0
        %5285 = vmatprep.subr.mxu0 0.0
        %5286 = vmatpush1.msra.mxu0 0.0
        %5287 = vmatprep.subr.mxu0 0.0
        %5288 = vmatpush1.msra.mxu0 0.0
        %5289 = vmatprep.subr.mxu0 0.0
        %5290 = vmatpush1.msra.mxu0 0.0
        %5291 = vmatprep.subr.mxu0 0.0
        %5292 = vmatpush1.msra.mxu0 0.0
        %5293 = vmatprep.subr.mxu0 0.0
        %5294 = vmatpush1.msra.mxu0 0.0
        %5295 = vmatprep.subr.mxu0 0.0
        %5296 = vmatpush1.msra.mxu0 0.0
        %5297 = vmatprep.subr.mxu0 0.0
        %5298 = vmatpush1.msra.mxu0 0.0
        %5299 = vmatprep.subr.mxu0 0.0
        %5300 = vmatpush1.msra.mxu0 0.0
        %5301 = vmatprep.subr.mxu0 0.0
        %5302 = vmatpush1.msra.mxu0 0.0
        %5303 = vmatprep.subr.mxu0 0.0
        %5304 = vmatpush1.msra.mxu0 0.0
        %5305 = vmatprep.subr.mxu0 0.0
        %5306 = vmatpush1.msra.mxu0 0.0
        %5307 = vmatprep.subr.mxu0 0.0
        %5308 = vmatpush1.msra.mxu0 0.0
        %5309 = vmatprep.subr.mxu0 0.0
        %5310 = vmatpush1.msra.mxu0 0.0
        %5311 = vmatprep.subr.mxu0 0.0
        %5312 = vmatpush1.msra.mxu0 0.0
        %5313 = vmatprep.subr.mxu0 0.0
        %5314 = vmatpush1.msra.mxu0 %v5276
        %5315 = vmatprep.subr.mxu0 0.0
        %5316 = vmatpush1.msra.mxu0 %v5274
        %5317 = vmatprep.subr.mxu0 0.0
        %5318 = vmatpush2.msra.mxu0 0.0
        %5319 = vmatprep.subr.mxu0 0.0
        %5320 = vmatpush2.msra.mxu0 0.0
        %5321 = vmatprep.subr.mxu0 0.0
        %5322 = vmatpush2.msra.mxu0 0.0
        %5323 = vmatprep.subr.mxu0 0.0
        %5324 = vmatpush2.msra.mxu0 0.0
        %5325 = vmatprep.subr.mxu0 0.0
        %5326 = vmatpush2.msra.mxu0 0.0
        %5327 = vmatprep.subr.mxu0 0.0
        %5328 = vmatpush2.msra.mxu0 0.0
        %5329 = vmatprep.subr.mxu0 0.0
        %5330 = vmatpush2.msra.mxu0 0.0
        %5331 = vmatprep.subr.mxu0 0.0
        %5332 = vmatpush2.msra.mxu0 0.0
        %5333 = vmatprep.subr.mxu0 0.0
        %5334 = vmatpush2.msra.mxu0 0.0
        %5335 = vmatprep.subr.mxu0 0.0
        %5336 = vmatpush2.msra.mxu0 0.0
        %5337 = vmatprep.subr.mxu0 0.0
        %5338 = vmatpush2.msra.mxu0 0.0
        %5339 = vmatprep.subr.mxu0 0.0
        %5340 = vmatpush2.msra.mxu0 0.0
        %5341 = vmatprep.subr.mxu0 0.0
        %5342 = vmatpush2.msra.mxu0 0.0
        %5343 = vmatprep.subr.mxu0 0.0
        %5344 = vmatpush2.msra.mxu0 0.0
        %5345 = vmatprep.subr.mxu0 0.0
        %5346 = vmatpush2.msra.mxu0 0.0
        %5347 = vmatprep.subr.mxu0 0.0
        %5348 = vmatpush2.msra.mxu0 0.0
        %5349 = vmatprep.mubr.f32.mxu0 0.0
        %5350 = vmatmul.mubr.f32.gmra.mxu0 %v5280
        %v5351 = vpop.f32.mrf.mxu0
        %v5352 = vadd.f32 0.0, %v5351
        %v5353 = vpop.f32.mrf.mxu0
        %5354 = vmatprep.mubr.f32.mxu0 0.0
        %5355 = vmatmul.mubr.f32.gmra.mxu0 %v5283
        %v5356 = vpop.f32.mrf.mxu0
        %v5357 = vadd.f32 0.0, %v5356
        %v5358 = vpop.f32.mrf.mxu0
        %5359 = vdwg.mxu0
        %5360 = vrot.lane.b32.xlu0 %v561, 48
        %v5361 = vpop.permute.xlu0 %5360
        %5362 = vrot.lane.b32.xlu0 %v566, 48
        %v5363 = vpop.permute.xlu0 %5362
        %v5367 = vsel %vm1326, %v4834, 0
        %v5370 = vsel %vm1326, %v4835, 0
        %5372 = vmatprep.subr.mxu0 0.0
        %5373 = vmatpush1.msra.mxu0 0.0
        %5374 = vmatprep.subr.mxu0 0.0
        %5375 = vmatpush1.msra.mxu0 0.0
        %5376 = vmatprep.subr.mxu0 0.0
        %5377 = vmatpush1.msra.mxu0 0.0
        %5378 = vmatprep.subr.mxu0 0.0
        %5379 = vmatpush1.msra.mxu0 0.0
        %5380 = vmatprep.subr.mxu0 0.0
        %5381 = vmatpush1.msra.mxu0 0.0
        %5382 = vmatprep.subr.mxu0 0.0
        %5383 = vmatpush1.msra.mxu0 0.0
        %5384 = vmatprep.subr.mxu0 0.0
        %5385 = vmatpush1.msra.mxu0 0.0
        %5386 = vmatprep.subr.mxu0 0.0
        %5387 = vmatpush1.msra.mxu0 0.0
        %5388 = vmatprep.subr.mxu0 0.0
        %5389 = vmatpush1.msra.mxu0 0.0
        %5390 = vmatprep.subr.mxu0 0.0
        %5391 = vmatpush1.msra.mxu0 0.0
        %5392 = vmatprep.subr.mxu0 0.0
        %5393 = vmatpush1.msra.mxu0 0.0
        %5394 = vmatprep.subr.mxu0 0.0
        %5395 = vmatpush1.msra.mxu0 0.0
        %5396 = vmatprep.subr.mxu0 0.0
        %5397 = vmatpush1.msra.mxu0 0.0
        %5398 = vmatprep.subr.mxu0 0.0
        %5399 = vmatpush1.msra.mxu0 0.0
        %5400 = vmatprep.subr.mxu0 0.0
        %5401 = vmatpush1.msra.mxu0 %v5363
        %5402 = vmatprep.subr.mxu0 0.0
        %5403 = vmatpush1.msra.mxu0 %v5361
        %5404 = vmatprep.subr.mxu0 0.0
        %5405 = vmatpush2.msra.mxu0 0.0
        %5406 = vmatprep.subr.mxu0 0.0
        %5407 = vmatpush2.msra.mxu0 0.0
        %5408 = vmatprep.subr.mxu0 0.0
        %5409 = vmatpush2.msra.mxu0 0.0
        %5410 = vmatprep.subr.mxu0 0.0
        %5411 = vmatpush2.msra.mxu0 0.0
        %5412 = vmatprep.subr.mxu0 0.0
        %5413 = vmatpush2.msra.mxu0 0.0
        %5414 = vmatprep.subr.mxu0 0.0
        %5415 = vmatpush2.msra.mxu0 0.0
        %5416 = vmatprep.subr.mxu0 0.0
        %5417 = vmatpush2.msra.mxu0 0.0
        %5418 = vmatprep.subr.mxu0 0.0
        %5419 = vmatpush2.msra.mxu0 0.0
        %5420 = vmatprep.subr.mxu0 0.0
        %5421 = vmatpush2.msra.mxu0 0.0
        %5422 = vmatprep.subr.mxu0 0.0
        %5423 = vmatpush2.msra.mxu0 0.0
        %5424 = vmatprep.subr.mxu0 0.0
        %5425 = vmatpush2.msra.mxu0 0.0
        %5426 = vmatprep.subr.mxu0 0.0
        %5427 = vmatpush2.msra.mxu0 0.0
        %5428 = vmatprep.subr.mxu0 0.0
        %5429 = vmatpush2.msra.mxu0 0.0
        %5430 = vmatprep.subr.mxu0 0.0
        %5431 = vmatpush2.msra.mxu0 0.0
        %5432 = vmatprep.subr.mxu0 0.0
        %5433 = vmatpush2.msra.mxu0 0.0
        %5434 = vmatprep.subr.mxu0 0.0
        %5435 = vmatpush2.msra.mxu0 0.0
        %5436 = vmatprep.mubr.f32.mxu0 0.0
        %5437 = vmatmul.mubr.f32.gmra.mxu0 %v5367
        %v5438 = vpop.f32.mrf.mxu0
        %v5439 = vadd.f32 0.0, %v5438
        %v5440 = vpop.f32.mrf.mxu0
        %5441 = vmatprep.mubr.f32.mxu0 0.0
        %5442 = vmatmul.mubr.f32.gmra.mxu0 %v5370
        %v5443 = vpop.f32.mrf.mxu0
        %v5444 = vadd.f32 0.0, %v5443
        %v5445 = vpop.f32.mrf.mxu0
        %5446 = vdwg.mxu0
        %5447 = vrot.lane.b32.xlu0 %v571, 48
        %v5448 = vpop.permute.xlu0 %5447
        %5449 = vrot.lane.b32.xlu0 %v576, 48
        %v5450 = vpop.permute.xlu0 %5449
        %v5454 = vsel %vm1326, %v4836, 0
        %v5457 = vsel %vm1326, %v4837, 0
        %5459 = vmatprep.subr.mxu0 0.0
        %5460 = vmatpush1.msra.mxu0 0.0
        %5461 = vmatprep.subr.mxu0 0.0
        %5462 = vmatpush1.msra.mxu0 0.0
        %5463 = vmatprep.subr.mxu0 0.0
        %5464 = vmatpush1.msra.mxu0 0.0
        %5465 = vmatprep.subr.mxu0 0.0
        %5466 = vmatpush1.msra.mxu0 0.0
        %5467 = vmatprep.subr.mxu0 0.0
        %5468 = vmatpush1.msra.mxu0 0.0
        %5469 = vmatprep.subr.mxu0 0.0
        %5470 = vmatpush1.msra.mxu0 0.0
        %5471 = vmatprep.subr.mxu0 0.0
        %5472 = vmatpush1.msra.mxu0 0.0
        %5473 = vmatprep.subr.mxu0 0.0
        %5474 = vmatpush1.msra.mxu0 0.0
        %5475 = vmatprep.subr.mxu0 0.0
        %5476 = vmatpush1.msra.mxu0 0.0
        %5477 = vmatprep.subr.mxu0 0.0
        %5478 = vmatpush1.msra.mxu0 0.0
        %5479 = vmatprep.subr.mxu0 0.0
        %5480 = vmatpush1.msra.mxu0 0.0
        %5481 = vmatprep.subr.mxu0 0.0
        %5482 = vmatpush1.msra.mxu0 0.0
        %5483 = vmatprep.subr.mxu0 0.0
        %5484 = vmatpush1.msra.mxu0 0.0
        %5485 = vmatprep.subr.mxu0 0.0
        %5486 = vmatpush1.msra.mxu0 0.0
        %5487 = vmatprep.subr.mxu0 0.0
        %5488 = vmatpush1.msra.mxu0 %v5450
        %5489 = vmatprep.subr.mxu0 0.0
        %5490 = vmatpush1.msra.mxu0 %v5448
        %5491 = vmatprep.subr.mxu0 0.0
        %5492 = vmatpush2.msra.mxu0 0.0
        %5493 = vmatprep.subr.mxu0 0.0
        %5494 = vmatpush2.msra.mxu0 0.0
        %5495 = vmatprep.subr.mxu0 0.0
        %5496 = vmatpush2.msra.mxu0 0.0
        %5497 = vmatprep.subr.mxu0 0.0
        %5498 = vmatpush2.msra.mxu0 0.0
        %5499 = vmatprep.subr.mxu0 0.0
        %5500 = vmatpush2.msra.mxu0 0.0
        %5501 = vmatprep.subr.mxu0 0.0
        %5502 = vmatpush2.msra.mxu0 0.0
        %5503 = vmatprep.subr.mxu0 0.0
        %5504 = vmatpush2.msra.mxu0 0.0
        %5505 = vmatprep.subr.mxu0 0.0
        %5506 = vmatpush2.msra.mxu0 0.0
        %5507 = vmatprep.subr.mxu0 0.0
        %5508 = vmatpush2.msra.mxu0 0.0
        %5509 = vmatprep.subr.mxu0 0.0
        %5510 = vmatpush2.msra.mxu0 0.0
        %5511 = vmatprep.subr.mxu0 0.0
        %5512 = vmatpush2.msra.mxu0 0.0
        %5513 = vmatprep.subr.mxu0 0.0
        %5514 = vmatpush2.msra.mxu0 0.0
        %5515 = vmatprep.subr.mxu0 0.0
        %5516 = vmatpush2.msra.mxu0 0.0
        %5517 = vmatprep.subr.mxu0 0.0
        %5518 = vmatpush2.msra.mxu0 0.0
        %5519 = vmatprep.subr.mxu0 0.0
        %5520 = vmatpush2.msra.mxu0 0.0
        %5521 = vmatprep.subr.mxu0 0.0
        %5522 = vmatpush2.msra.mxu0 0.0
        %5523 = vmatprep.mubr.f32.mxu0 0.0
        %5524 = vmatmul.mubr.f32.gmra.mxu0 %v5454
        %v5525 = vpop.f32.mrf.mxu0
        %v5526 = vadd.f32 0.0, %v5525
        %v5527 = vpop.f32.mrf.mxu0
        %5528 = vmatprep.mubr.f32.mxu0 0.0
        %5529 = vmatmul.mubr.f32.gmra.mxu0 %v5457
        %v5530 = vpop.f32.mrf.mxu0
        %v5531 = vadd.f32 0.0, %v5530
        %v5532 = vpop.f32.mrf.mxu0
        %5533 = vdwg.mxu0
        %5550 = vrot.lane.b32.xlu0 %v4917, 16
        %v5551 = vpop.permute.xlu0 %5550
        %5552 = vrot.lane.b32.xlu0 %v4922, 16
        %v5553 = vpop.permute.xlu0 %5552
        %5554 = vrot.lane.b32.xlu0 %v5004, 16
        %v5555 = vpop.permute.xlu0 %5554
        %5556 = vrot.lane.b32.xlu0 %v5009, 16
        %v5557 = vpop.permute.xlu0 %5556
        %5558 = vrot.lane.b32.xlu0 %v5091, 16
        %v5559 = vpop.permute.xlu0 %5558
        %5560 = vrot.lane.b32.xlu0 %v5096, 16
        %v5561 = vpop.permute.xlu0 %5560
        %5562 = vrot.lane.b32.xlu0 %v5178, 16
        %v5563 = vpop.permute.xlu0 %5562
        %5564 = vrot.lane.b32.xlu0 %v5183, 16
        %v5565 = vpop.permute.xlu0 %5564
        %5566 = vrot.lane.b32.xlu0 %v5265, 16
        %v5567 = vpop.permute.xlu0 %5566
        %5568 = vrot.lane.b32.xlu0 %v5270, 16
        %v5569 = vpop.permute.xlu0 %5568
        %5570 = vrot.lane.b32.xlu0 %v5352, 16
        %v5571 = vpop.permute.xlu0 %5570
        %5572 = vrot.lane.b32.xlu0 %v5357, 16
        %v5573 = vpop.permute.xlu0 %5572
        %5574 = vrot.lane.b32.xlu0 %v5439, 16
        %v5575 = vpop.permute.xlu0 %5574
        %5576 = vrot.lane.b32.xlu0 %v5444, 16
        %v5577 = vpop.permute.xlu0 %5576
        %5578 = vrot.lane.b32.xlu0 %v5526, 16
        %v5579 = vpop.permute.xlu0 %5578
        %5580 = vrot.lane.b32.xlu0 %v5531, 16
        %v5581 = vpop.permute.xlu0 %5580
        %vm5598 = vcmask 195712
        %5599 = vst.msk [vmem:[#allocation2] sm:$0xff] %vm5598, %v5551
        %5600 = vst.msk [vmem:[#allocation2 + $0x8] sm:$0xff] %vm5598, %v5553
        %5601 = vst.msk [vmem:[#allocation2 + $0x10] sm:$0xff] %vm5598, %v5555
        %5602 = vst.msk [vmem:[#allocation2 + $0x18] sm:$0xff] %vm5598, %v5557
        %5603 = vst.msk [vmem:[#allocation2 + $0x20] sm:$0xff] %vm5598, %v5559
        %5604 = vst.msk [vmem:[#allocation2 + $0x28] sm:$0xff] %vm5598, %v5561
        %5605 = vst.msk [vmem:[#allocation2 + $0x30] sm:$0xff] %vm5598, %v5563
        %5606 = vst.msk [vmem:[#allocation2 + $0x38] sm:$0xff] %vm5598, %v5565
        %5607 = vst.msk [vmem:[#allocation2 + $0x40] sm:$0xff] %vm5598, %v5567
        %5608 = vst.msk [vmem:[#allocation2 + $0x48] sm:$0xff] %vm5598, %v5569
        %5609 = vst.msk [vmem:[#allocation2 + $0x50] sm:$0xff] %vm5598, %v5571
        %5610 = vst.msk [vmem:[#allocation2 + $0x58] sm:$0xff] %vm5598, %v5573
        %5611 = vst.msk [vmem:[#allocation2 + $0x60] sm:$0xff] %vm5598, %v5575
        %5612 = vst.msk [vmem:[#allocation2 + $0x68] sm:$0xff] %vm5598, %v5577
        %5613 = vst.msk [vmem:[#allocation2 + $0x70] sm:$0xff] %vm5598, %v5579
        %5614 = vst.msk [vmem:[#allocation2 + $0x78] sm:$0xff] %vm5598, %v5581
        %s5615 = scalar_lea.vmem [#allocation8], 48
        %v5616 = vld [vmem:[%s5615] sm:$0xff]
        %v5617 = vld [vmem:[%s5615 + $0x8] sm:$0xff]
        %5618 = vrot.lane.b32.xlu0 %v501, 104
        %v5619 = vpop.permute.xlu0 %5618
        %5620 = vrot.lane.b32.xlu0 %v506, 104
        %v5621 = vpop.permute.xlu0 %5620
        %5622 = vrot.lane.b32.xlu0 %v501, 72
        %v5623 = vpop.permute.xlu0 %5622
        %5624 = vrot.lane.b32.xlu0 %v506, 72
        %v5625 = vpop.permute.xlu0 %5624
        %v5626 = vsel %vm603, %v5619, 0
        %v5628 = vsel %vm603, %v5621, 0
        %v5630 = vsel %vm603, %v5623, 0
        %v5632 = vsel %vm603, %v5625, 0
        %5634 = vmatprep.subr.mxu0 0.0
        %5635 = vmatpush1.xpose.msra.mxu0 0.0
        %5636 = vmatprep.subr.mxu0 0.0
        %5637 = vmatpush1.xpose.msra.mxu0 0.0
        %5638 = vmatprep.subr.mxu0 0.0
        %5639 = vmatpush1.xpose.msra.mxu0 0.0
        %5640 = vmatprep.subr.mxu0 0.0
        %5641 = vmatpush1.xpose.msra.mxu0 0.0
        %5642 = vmatprep.subr.mxu0 0.0
        %5643 = vmatpush1.xpose.msra.mxu0 0.0
        %5644 = vmatprep.subr.mxu0 0.0
        %5645 = vmatpush1.xpose.msra.mxu0 0.0
        %5646 = vmatprep.subr.mxu0 0.0
        %5647 = vmatpush1.xpose.msra.mxu0 0.0
        %5648 = vmatprep.subr.mxu0 0.0
        %5649 = vmatpush1.xpose.msra.mxu0 0.0
        %5650 = vmatprep.subr.mxu0 0.0
        %5651 = vmatpush1.xpose.msra.mxu0 0.0
        %5652 = vmatprep.subr.mxu0 0.0
        %5653 = vmatpush1.xpose.msra.mxu0 0.0
        %5654 = vmatprep.subr.mxu0 0.0
        %5655 = vmatpush1.xpose.msra.mxu0 0.0
        %5656 = vmatprep.subr.mxu0 0.0
        %5657 = vmatpush1.xpose.msra.mxu0 0.0
        %5658 = vmatprep.subr.mxu0 0.0
        %5659 = vmatpush1.xpose.msra.mxu0 0.0
        %5660 = vmatprep.subr.mxu0 0.0
        %5661 = vmatpush1.xpose.msra.mxu0 0.0
        %5662 = vmatprep.subr.mxu0 0.0
        %5663 = vmatpush1.xpose.msra.mxu0 %v5632
        %5664 = vmatprep.subr.mxu0 0.0
        %5665 = vmatpush1.xpose.msra.mxu0 %v5630
        %5666 = vmatprep.subr.mxu0 0.0
        %5667 = vmatpush2.xpose.msra.mxu0 0.0
        %5668 = vmatprep.subr.mxu0 0.0
        %5669 = vmatpush2.xpose.msra.mxu0 0.0
        %5670 = vmatprep.subr.mxu0 0.0
        %5671 = vmatpush2.xpose.msra.mxu0 0.0
        %5672 = vmatprep.subr.mxu0 0.0
        %5673 = vmatpush2.xpose.msra.mxu0 0.0
        %5674 = vmatprep.subr.mxu0 0.0
        %5675 = vmatpush2.xpose.msra.mxu0 0.0
        %5676 = vmatprep.subr.mxu0 0.0
        %5677 = vmatpush2.xpose.msra.mxu0 0.0
        %5678 = vmatprep.subr.mxu0 0.0
        %5679 = vmatpush2.xpose.msra.mxu0 0.0
        %5680 = vmatprep.subr.mxu0 0.0
        %5681 = vmatpush2.xpose.msra.mxu0 0.0
        %5682 = vmatprep.subr.mxu0 0.0
        %5683 = vmatpush2.xpose.msra.mxu0 0.0
        %5684 = vmatprep.subr.mxu0 0.0
        %5685 = vmatpush2.xpose.msra.mxu0 0.0
        %5686 = vmatprep.subr.mxu0 0.0
        %5687 = vmatpush2.xpose.msra.mxu0 0.0
        %5688 = vmatprep.subr.mxu0 0.0
        %5689 = vmatpush2.xpose.msra.mxu0 0.0
        %5690 = vmatprep.subr.mxu0 0.0
        %5691 = vmatpush2.xpose.msra.mxu0 0.0
        %5692 = vmatprep.subr.mxu0 0.0
        %5693 = vmatpush2.xpose.msra.mxu0 0.0
        %5694 = vmatprep.subr.mxu0 0.0
        %5695 = vmatpush2.xpose.msra.mxu0 0.0
        %5696 = vmatprep.subr.mxu0 0.0
        %5697 = vmatpush2.xpose.msra.mxu0 0.0
        %5698 = vmatprep.mubr.f32.mxu0 0.0
        %5699 = vmatmul.mubr.f32.gmra.mxu0 %v5626
        %v5700 = vpop.f32.mrf.mxu0
        %v5701 = vadd.f32 %v5616, %v5700
        %v5702 = vpop.f32.mrf.mxu0
        %5703 = vmatprep.mubr.f32.mxu0 0.0
        %5704 = vmatmul.mubr.f32.gmra.mxu0 %v5628
        %v5705 = vpop.f32.mrf.mxu0
        %v5706 = vadd.f32 %v5617, %v5705
        %v5707 = vpop.f32.mrf.mxu0
        %5708 = vdwg.mxu0
        %5709 = vrot.lane.b32.xlu0 %v511, 104
        %v5710 = vpop.permute.xlu0 %5709
        %5711 = vrot.lane.b32.xlu0 %v516, 104
        %v5712 = vpop.permute.xlu0 %5711
        %5713 = vrot.lane.b32.xlu0 %v511, 72
        %v5714 = vpop.permute.xlu0 %5713
        %5715 = vrot.lane.b32.xlu0 %v516, 72
        %v5716 = vpop.permute.xlu0 %5715
        %v5717 = vsel %vm603, %v5710, 0
        %v5719 = vsel %vm603, %v5712, 0
        %v5721 = vsel %vm603, %v5714, 0
        %v5723 = vsel %vm603, %v5716, 0
        %5725 = vmatprep.subr.mxu0 0.0
        %5726 = vmatpush1.xpose.msra.mxu0 0.0
        %5727 = vmatprep.subr.mxu0 0.0
        %5728 = vmatpush1.xpose.msra.mxu0 0.0
        %5729 = vmatprep.subr.mxu0 0.0
        %5730 = vmatpush1.xpose.msra.mxu0 0.0
        %5731 = vmatprep.subr.mxu0 0.0
        %5732 = vmatpush1.xpose.msra.mxu0 0.0
        %5733 = vmatprep.subr.mxu0 0.0
        %5734 = vmatpush1.xpose.msra.mxu0 0.0
        %5735 = vmatprep.subr.mxu0 0.0
        %5736 = vmatpush1.xpose.msra.mxu0 0.0
        %5737 = vmatprep.subr.mxu0 0.0
        %5738 = vmatpush1.xpose.msra.mxu0 0.0
        %5739 = vmatprep.subr.mxu0 0.0
        %5740 = vmatpush1.xpose.msra.mxu0 0.0
        %5741 = vmatprep.subr.mxu0 0.0
        %5742 = vmatpush1.xpose.msra.mxu0 0.0
        %5743 = vmatprep.subr.mxu0 0.0
        %5744 = vmatpush1.xpose.msra.mxu0 0.0
        %5745 = vmatprep.subr.mxu0 0.0
        %5746 = vmatpush1.xpose.msra.mxu0 0.0
        %5747 = vmatprep.subr.mxu0 0.0
        %5748 = vmatpush1.xpose.msra.mxu0 0.0
        %5749 = vmatprep.subr.mxu0 0.0
        %5750 = vmatpush1.xpose.msra.mxu0 0.0
        %5751 = vmatprep.subr.mxu0 0.0
        %5752 = vmatpush1.xpose.msra.mxu0 0.0
        %5753 = vmatprep.subr.mxu0 0.0
        %5754 = vmatpush1.xpose.msra.mxu0 %v5723
        %5755 = vmatprep.subr.mxu0 0.0
        %5756 = vmatpush1.xpose.msra.mxu0 %v5721
        %5757 = vmatprep.subr.mxu0 0.0
        %5758 = vmatpush2.xpose.msra.mxu0 0.0
        %5759 = vmatprep.subr.mxu0 0.0
        %5760 = vmatpush2.xpose.msra.mxu0 0.0
        %5761 = vmatprep.subr.mxu0 0.0
        %5762 = vmatpush2.xpose.msra.mxu0 0.0
        %5763 = vmatprep.subr.mxu0 0.0
        %5764 = vmatpush2.xpose.msra.mxu0 0.0
        %5765 = vmatprep.subr.mxu0 0.0
        %5766 = vmatpush2.xpose.msra.mxu0 0.0
        %5767 = vmatprep.subr.mxu0 0.0
        %5768 = vmatpush2.xpose.msra.mxu0 0.0
        %5769 = vmatprep.subr.mxu0 0.0
        %5770 = vmatpush2.xpose.msra.mxu0 0.0
        %5771 = vmatprep.subr.mxu0 0.0
        %5772 = vmatpush2.xpose.msra.mxu0 0.0
        %5773 = vmatprep.subr.mxu0 0.0
        %5774 = vmatpush2.xpose.msra.mxu0 0.0
        %5775 = vmatprep.subr.mxu0 0.0
        %5776 = vmatpush2.xpose.msra.mxu0 0.0
        %5777 = vmatprep.subr.mxu0 0.0
        %5778 = vmatpush2.xpose.msra.mxu0 0.0
        %5779 = vmatprep.subr.mxu0 0.0
        %5780 = vmatpush2.xpose.msra.mxu0 0.0
        %5781 = vmatprep.subr.mxu0 0.0
        %5782 = vmatpush2.xpose.msra.mxu0 0.0
        %5783 = vmatprep.subr.mxu0 0.0
        %5784 = vmatpush2.xpose.msra.mxu0 0.0
        %5785 = vmatprep.subr.mxu0 0.0
        %5786 = vmatpush2.xpose.msra.mxu0 0.0
        %5787 = vmatprep.subr.mxu0 0.0
        %5788 = vmatpush2.xpose.msra.mxu0 0.0
        %5789 = vmatprep.mubr.f32.mxu0 0.0
        %5790 = vmatmul.mubr.f32.gmra.mxu0 %v5717
        %v5791 = vpop.f32.mrf.mxu0
        %v5792 = vadd.f32 %v5616, %v5791
        %v5793 = vpop.f32.mrf.mxu0
        %5794 = vmatprep.mubr.f32.mxu0 0.0
        %5795 = vmatmul.mubr.f32.gmra.mxu0 %v5719
        %v5796 = vpop.f32.mrf.mxu0
        %v5797 = vadd.f32 %v5617, %v5796
        %v5798 = vpop.f32.mrf.mxu0
        %5799 = vdwg.mxu0
        %5800 = vrot.lane.b32.xlu0 %v521, 104
        %v5801 = vpop.permute.xlu0 %5800
        %5802 = vrot.lane.b32.xlu0 %v526, 104
        %v5803 = vpop.permute.xlu0 %5802
        %5804 = vrot.lane.b32.xlu0 %v521, 72
        %v5805 = vpop.permute.xlu0 %5804
        %5806 = vrot.lane.b32.xlu0 %v526, 72
        %v5807 = vpop.permute.xlu0 %5806
        %v5808 = vsel %vm603, %v5801, 0
        %v5810 = vsel %vm603, %v5803, 0
        %v5812 = vsel %vm603, %v5805, 0
        %v5814 = vsel %vm603, %v5807, 0
        %5816 = vmatprep.subr.mxu0 0.0
        %5817 = vmatpush1.xpose.msra.mxu0 0.0
        %5818 = vmatprep.subr.mxu0 0.0
        %5819 = vmatpush1.xpose.msra.mxu0 0.0
        %5820 = vmatprep.subr.mxu0 0.0
        %5821 = vmatpush1.xpose.msra.mxu0 0.0
        %5822 = vmatprep.subr.mxu0 0.0
        %5823 = vmatpush1.xpose.msra.mxu0 0.0
        %5824 = vmatprep.subr.mxu0 0.0
        %5825 = vmatpush1.xpose.msra.mxu0 0.0
        %5826 = vmatprep.subr.mxu0 0.0
        %5827 = vmatpush1.xpose.msra.mxu0 0.0
        %5828 = vmatprep.subr.mxu0 0.0
        %5829 = vmatpush1.xpose.msra.mxu0 0.0
        %5830 = vmatprep.subr.mxu0 0.0
        %5831 = vmatpush1.xpose.msra.mxu0 0.0
        %5832 = vmatprep.subr.mxu0 0.0
        %5833 = vmatpush1.xpose.msra.mxu0 0.0
        %5834 = vmatprep.subr.mxu0 0.0
        %5835 = vmatpush1.xpose.msra.mxu0 0.0
        %5836 = vmatprep.subr.mxu0 0.0
        %5837 = vmatpush1.xpose.msra.mxu0 0.0
        %5838 = vmatprep.subr.mxu0 0.0
        %5839 = vmatpush1.xpose.msra.mxu0 0.0
        %5840 = vmatprep.subr.mxu0 0.0
        %5841 = vmatpush1.xpose.msra.mxu0 0.0
        %5842 = vmatprep.subr.mxu0 0.0
        %5843 = vmatpush1.xpose.msra.mxu0 0.0
        %5844 = vmatprep.subr.mxu0 0.0
        %5845 = vmatpush1.xpose.msra.mxu0 %v5814
        %5846 = vmatprep.subr.mxu0 0.0
        %5847 = vmatpush1.xpose.msra.mxu0 %v5812
        %5848 = vmatprep.subr.mxu0 0.0
        %5849 = vmatpush2.xpose.msra.mxu0 0.0
        %5850 = vmatprep.subr.mxu0 0.0
        %5851 = vmatpush2.xpose.msra.mxu0 0.0
        %5852 = vmatprep.subr.mxu0 0.0
        %5853 = vmatpush2.xpose.msra.mxu0 0.0
        %5854 = vmatprep.subr.mxu0 0.0
        %5855 = vmatpush2.xpose.msra.mxu0 0.0
        %5856 = vmatprep.subr.mxu0 0.0
        %5857 = vmatpush2.xpose.msra.mxu0 0.0
        %5858 = vmatprep.subr.mxu0 0.0
        %5859 = vmatpush2.xpose.msra.mxu0 0.0
        %5860 = vmatprep.subr.mxu0 0.0
        %5861 = vmatpush2.xpose.msra.mxu0 0.0
        %5862 = vmatprep.subr.mxu0 0.0
        %5863 = vmatpush2.xpose.msra.mxu0 0.0
        %5864 = vmatprep.subr.mxu0 0.0
        %5865 = vmatpush2.xpose.msra.mxu0 0.0
        %5866 = vmatprep.subr.mxu0 0.0
        %5867 = vmatpush2.xpose.msra.mxu0 0.0
        %5868 = vmatprep.subr.mxu0 0.0
        %5869 = vmatpush2.xpose.msra.mxu0 0.0
        %5870 = vmatprep.subr.mxu0 0.0
        %5871 = vmatpush2.xpose.msra.mxu0 0.0
        %5872 = vmatprep.subr.mxu0 0.0
        %5873 = vmatpush2.xpose.msra.mxu0 0.0
        %5874 = vmatprep.subr.mxu0 0.0
        %5875 = vmatpush2.xpose.msra.mxu0 0.0
        %5876 = vmatprep.subr.mxu0 0.0
        %5877 = vmatpush2.xpose.msra.mxu0 0.0
        %5878 = vmatprep.subr.mxu0 0.0
        %5879 = vmatpush2.xpose.msra.mxu0 0.0
        %5880 = vmatprep.mubr.f32.mxu0 0.0
        %5881 = vmatmul.mubr.f32.gmra.mxu0 %v5808
        %v5882 = vpop.f32.mrf.mxu0
        %v5883 = vadd.f32 %v5616, %v5882
        %v5884 = vpop.f32.mrf.mxu0
        %5885 = vmatprep.mubr.f32.mxu0 0.0
        %5886 = vmatmul.mubr.f32.gmra.mxu0 %v5810
        %v5887 = vpop.f32.mrf.mxu0
        %v5888 = vadd.f32 %v5617, %v5887
        %v5889 = vpop.f32.mrf.mxu0
        %5890 = vdwg.mxu0
        %5891 = vrot.lane.b32.xlu0 %v531, 104
        %v5892 = vpop.permute.xlu0 %5891
        %5893 = vrot.lane.b32.xlu0 %v536, 104
        %v5894 = vpop.permute.xlu0 %5893
        %5895 = vrot.lane.b32.xlu0 %v531, 72
        %v5896 = vpop.permute.xlu0 %5895
        %5897 = vrot.lane.b32.xlu0 %v536, 72
        %v5898 = vpop.permute.xlu0 %5897
        %v5899 = vsel %vm603, %v5892, 0
        %v5901 = vsel %vm603, %v5894, 0
        %v5903 = vsel %vm603, %v5896, 0
        %v5905 = vsel %vm603, %v5898, 0
        %5907 = vmatprep.subr.mxu0 0.0
        %5908 = vmatpush1.xpose.msra.mxu0 0.0
        %5909 = vmatprep.subr.mxu0 0.0
        %5910 = vmatpush1.xpose.msra.mxu0 0.0
        %5911 = vmatprep.subr.mxu0 0.0
        %5912 = vmatpush1.xpose.msra.mxu0 0.0
        %5913 = vmatprep.subr.mxu0 0.0
        %5914 = vmatpush1.xpose.msra.mxu0 0.0
        %5915 = vmatprep.subr.mxu0 0.0
        %5916 = vmatpush1.xpose.msra.mxu0 0.0
        %5917 = vmatprep.subr.mxu0 0.0
        %5918 = vmatpush1.xpose.msra.mxu0 0.0
        %5919 = vmatprep.subr.mxu0 0.0
        %5920 = vmatpush1.xpose.msra.mxu0 0.0
        %5921 = vmatprep.subr.mxu0 0.0
        %5922 = vmatpush1.xpose.msra.mxu0 0.0
        %5923 = vmatprep.subr.mxu0 0.0
        %5924 = vmatpush1.xpose.msra.mxu0 0.0
        %5925 = vmatprep.subr.mxu0 0.0
        %5926 = vmatpush1.xpose.msra.mxu0 0.0
        %5927 = vmatprep.subr.mxu0 0.0
        %5928 = vmatpush1.xpose.msra.mxu0 0.0
        %5929 = vmatprep.subr.mxu0 0.0
        %5930 = vmatpush1.xpose.msra.mxu0 0.0
        %5931 = vmatprep.subr.mxu0 0.0
        %5932 = vmatpush1.xpose.msra.mxu0 0.0
        %5933 = vmatprep.subr.mxu0 0.0
        %5934 = vmatpush1.xpose.msra.mxu0 0.0
        %5935 = vmatprep.subr.mxu0 0.0
        %5936 = vmatpush1.xpose.msra.mxu0 %v5905
        %5937 = vmatprep.subr.mxu0 0.0
        %5938 = vmatpush1.xpose.msra.mxu0 %v5903
        %5939 = vmatprep.subr.mxu0 0.0
        %5940 = vmatpush2.xpose.msra.mxu0 0.0
        %5941 = vmatprep.subr.mxu0 0.0
        %5942 = vmatpush2.xpose.msra.mxu0 0.0
        %5943 = vmatprep.subr.mxu0 0.0
        %5944 = vmatpush2.xpose.msra.mxu0 0.0
        %5945 = vmatprep.subr.mxu0 0.0
        %5946 = vmatpush2.xpose.msra.mxu0 0.0
        %5947 = vmatprep.subr.mxu0 0.0
        %5948 = vmatpush2.xpose.msra.mxu0 0.0
        %5949 = vmatprep.subr.mxu0 0.0
        %5950 = vmatpush2.xpose.msra.mxu0 0.0
        %5951 = vmatprep.subr.mxu0 0.0
        %5952 = vmatpush2.xpose.msra.mxu0 0.0
        %5953 = vmatprep.subr.mxu0 0.0
        %5954 = vmatpush2.xpose.msra.mxu0 0.0
        %5955 = vmatprep.subr.mxu0 0.0
        %5956 = vmatpush2.xpose.msra.mxu0 0.0
        %5957 = vmatprep.subr.mxu0 0.0
        %5958 = vmatpush2.xpose.msra.mxu0 0.0
        %5959 = vmatprep.subr.mxu0 0.0
        %5960 = vmatpush2.xpose.msra.mxu0 0.0
        %5961 = vmatprep.subr.mxu0 0.0
        %5962 = vmatpush2.xpose.msra.mxu0 0.0
        %5963 = vmatprep.subr.mxu0 0.0
        %5964 = vmatpush2.xpose.msra.mxu0 0.0
        %5965 = vmatprep.subr.mxu0 0.0
        %5966 = vmatpush2.xpose.msra.mxu0 0.0
        %5967 = vmatprep.subr.mxu0 0.0
        %5968 = vmatpush2.xpose.msra.mxu0 0.0
        %5969 = vmatprep.subr.mxu0 0.0
        %5970 = vmatpush2.xpose.msra.mxu0 0.0
        %5971 = vmatprep.mubr.f32.mxu0 0.0
        %5972 = vmatmul.mubr.f32.gmra.mxu0 %v5899
        %v5973 = vpop.f32.mrf.mxu0
        %v5974 = vadd.f32 %v5616, %v5973
        %v5975 = vpop.f32.mrf.mxu0
        %5976 = vmatprep.mubr.f32.mxu0 0.0
        %5977 = vmatmul.mubr.f32.gmra.mxu0 %v5901
        %v5978 = vpop.f32.mrf.mxu0
        %v5979 = vadd.f32 %v5617, %v5978
        %v5980 = vpop.f32.mrf.mxu0
        %5981 = vdwg.mxu0
        %5982 = vrot.lane.b32.xlu0 %v541, 104
        %v5983 = vpop.permute.xlu0 %5982
        %5984 = vrot.lane.b32.xlu0 %v546, 104
        %v5985 = vpop.permute.xlu0 %5984
        %5986 = vrot.lane.b32.xlu0 %v541, 72
        %v5987 = vpop.permute.xlu0 %5986
        %5988 = vrot.lane.b32.xlu0 %v546, 72
        %v5989 = vpop.permute.xlu0 %5988
        %v5990 = vsel %vm603, %v5983, 0
        %v5992 = vsel %vm603, %v5985, 0
        %v5994 = vsel %vm603, %v5987, 0
        %v5996 = vsel %vm603, %v5989, 0
        %5998 = vmatprep.subr.mxu0 0.0
        %5999 = vmatpush1.xpose.msra.mxu0 0.0
        %6000 = vmatprep.subr.mxu0 0.0
        %6001 = vmatpush1.xpose.msra.mxu0 0.0
        %6002 = vmatprep.subr.mxu0 0.0
        %6003 = vmatpush1.xpose.msra.mxu0 0.0
        %6004 = vmatprep.subr.mxu0 0.0
        %6005 = vmatpush1.xpose.msra.mxu0 0.0
        %6006 = vmatprep.subr.mxu0 0.0
        %6007 = vmatpush1.xpose.msra.mxu0 0.0
        %6008 = vmatprep.subr.mxu0 0.0
        %6009 = vmatpush1.xpose.msra.mxu0 0.0
        %6010 = vmatprep.subr.mxu0 0.0
        %6011 = vmatpush1.xpose.msra.mxu0 0.0
        %6012 = vmatprep.subr.mxu0 0.0
        %6013 = vmatpush1.xpose.msra.mxu0 0.0
        %6014 = vmatprep.subr.mxu0 0.0
        %6015 = vmatpush1.xpose.msra.mxu0 0.0
        %6016 = vmatprep.subr.mxu0 0.0
        %6017 = vmatpush1.xpose.msra.mxu0 0.0
        %6018 = vmatprep.subr.mxu0 0.0
        %6019 = vmatpush1.xpose.msra.mxu0 0.0
        %6020 = vmatprep.subr.mxu0 0.0
        %6021 = vmatpush1.xpose.msra.mxu0 0.0
        %6022 = vmatprep.subr.mxu0 0.0
        %6023 = vmatpush1.xpose.msra.mxu0 0.0
        %6024 = vmatprep.subr.mxu0 0.0
        %6025 = vmatpush1.xpose.msra.mxu0 0.0
        %6026 = vmatprep.subr.mxu0 0.0
        %6027 = vmatpush1.xpose.msra.mxu0 %v5996
        %6028 = vmatprep.subr.mxu0 0.0
        %6029 = vmatpush1.xpose.msra.mxu0 %v5994
        %6030 = vmatprep.subr.mxu0 0.0
        %6031 = vmatpush2.xpose.msra.mxu0 0.0
        %6032 = vmatprep.subr.mxu0 0.0
        %6033 = vmatpush2.xpose.msra.mxu0 0.0
        %6034 = vmatprep.subr.mxu0 0.0
        %6035 = vmatpush2.xpose.msra.mxu0 0.0
        %6036 = vmatprep.subr.mxu0 0.0
        %6037 = vmatpush2.xpose.msra.mxu0 0.0
        %6038 = vmatprep.subr.mxu0 0.0
        %6039 = vmatpush2.xpose.msra.mxu0 0.0
        %6040 = vmatprep.subr.mxu0 0.0
        %6041 = vmatpush2.xpose.msra.mxu0 0.0
        %6042 = vmatprep.subr.mxu0 0.0
        %6043 = vmatpush2.xpose.msra.mxu0 0.0
        %6044 = vmatprep.subr.mxu0 0.0
        %6045 = vmatpush2.xpose.msra.mxu0 0.0
        %6046 = vmatprep.subr.mxu0 0.0
        %6047 = vmatpush2.xpose.msra.mxu0 0.0
        %6048 = vmatprep.subr.mxu0 0.0
        %6049 = vmatpush2.xpose.msra.mxu0 0.0
        %6050 = vmatprep.subr.mxu0 0.0
        %6051 = vmatpush2.xpose.msra.mxu0 0.0
        %6052 = vmatprep.subr.mxu0 0.0
        %6053 = vmatpush2.xpose.msra.mxu0 0.0
        %6054 = vmatprep.subr.mxu0 0.0
        %6055 = vmatpush2.xpose.msra.mxu0 0.0
        %6056 = vmatprep.subr.mxu0 0.0
        %6057 = vmatpush2.xpose.msra.mxu0 0.0
        %6058 = vmatprep.subr.mxu0 0.0
        %6059 = vmatpush2.xpose.msra.mxu0 0.0
        %6060 = vmatprep.subr.mxu0 0.0
        %6061 = vmatpush2.xpose.msra.mxu0 0.0
        %6062 = vmatprep.mubr.f32.mxu0 0.0
        %6063 = vmatmul.mubr.f32.gmra.mxu0 %v5990
        %v6064 = vpop.f32.mrf.mxu0
        %v6065 = vadd.f32 %v5616, %v6064
        %v6066 = vpop.f32.mrf.mxu0
        %6067 = vmatprep.mubr.f32.mxu0 0.0
        %6068 = vmatmul.mubr.f32.gmra.mxu0 %v5992
        %v6069 = vpop.f32.mrf.mxu0
        %v6070 = vadd.f32 %v5617, %v6069
        %v6071 = vpop.f32.mrf.mxu0
        %6072 = vdwg.mxu0
        %6073 = vrot.lane.b32.xlu0 %v551, 104
        %v6074 = vpop.permute.xlu0 %6073
        %6075 = vrot.lane.b32.xlu0 %v556, 104
        %v6076 = vpop.permute.xlu0 %6075
        %6077 = vrot.lane.b32.xlu0 %v551, 72
        %v6078 = vpop.permute.xlu0 %6077
        %6079 = vrot.lane.b32.xlu0 %v556, 72
        %v6080 = vpop.permute.xlu0 %6079
        %v6081 = vsel %vm603, %v6074, 0
        %v6083 = vsel %vm603, %v6076, 0
        %v6085 = vsel %vm603, %v6078, 0
        %v6087 = vsel %vm603, %v6080, 0
        %6089 = vmatprep.subr.mxu0 0.0
        %6090 = vmatpush1.xpose.msra.mxu0 0.0
        %6091 = vmatprep.subr.mxu0 0.0
        %6092 = vmatpush1.xpose.msra.mxu0 0.0
        %6093 = vmatprep.subr.mxu0 0.0
        %6094 = vmatpush1.xpose.msra.mxu0 0.0
        %6095 = vmatprep.subr.mxu0 0.0
        %6096 = vmatpush1.xpose.msra.mxu0 0.0
        %6097 = vmatprep.subr.mxu0 0.0
        %6098 = vmatpush1.xpose.msra.mxu0 0.0
        %6099 = vmatprep.subr.mxu0 0.0
        %6100 = vmatpush1.xpose.msra.mxu0 0.0
        %6101 = vmatprep.subr.mxu0 0.0
        %6102 = vmatpush1.xpose.msra.mxu0 0.0
        %6103 = vmatprep.subr.mxu0 0.0
        %6104 = vmatpush1.xpose.msra.mxu0 0.0
        %6105 = vmatprep.subr.mxu0 0.0
        %6106 = vmatpush1.xpose.msra.mxu0 0.0
        %6107 = vmatprep.subr.mxu0 0.0
        %6108 = vmatpush1.xpose.msra.mxu0 0.0
        %6109 = vmatprep.subr.mxu0 0.0
        %6110 = vmatpush1.xpose.msra.mxu0 0.0
        %6111 = vmatprep.subr.mxu0 0.0
        %6112 = vmatpush1.xpose.msra.mxu0 0.0
        %6113 = vmatprep.subr.mxu0 0.0
        %6114 = vmatpush1.xpose.msra.mxu0 0.0
        %6115 = vmatprep.subr.mxu0 0.0
        %6116 = vmatpush1.xpose.msra.mxu0 0.0
        %6117 = vmatprep.subr.mxu0 0.0
        %6118 = vmatpush1.xpose.msra.mxu0 %v6087
        %6119 = vmatprep.subr.mxu0 0.0
        %6120 = vmatpush1.xpose.msra.mxu0 %v6085
        %6121 = vmatprep.subr.mxu0 0.0
        %6122 = vmatpush2.xpose.msra.mxu0 0.0
        %6123 = vmatprep.subr.mxu0 0.0
        %6124 = vmatpush2.xpose.msra.mxu0 0.0
        %6125 = vmatprep.subr.mxu0 0.0
        %6126 = vmatpush2.xpose.msra.mxu0 0.0
        %6127 = vmatprep.subr.mxu0 0.0
        %6128 = vmatpush2.xpose.msra.mxu0 0.0
        %6129 = vmatprep.subr.mxu0 0.0
        %6130 = vmatpush2.xpose.msra.mxu0 0.0
        %6131 = vmatprep.subr.mxu0 0.0
        %6132 = vmatpush2.xpose.msra.mxu0 0.0
        %6133 = vmatprep.subr.mxu0 0.0
        %6134 = vmatpush2.xpose.msra.mxu0 0.0
        %6135 = vmatprep.subr.mxu0 0.0
        %6136 = vmatpush2.xpose.msra.mxu0 0.0
        %6137 = vmatprep.subr.mxu0 0.0
        %6138 = vmatpush2.xpose.msra.mxu0 0.0
        %6139 = vmatprep.subr.mxu0 0.0
        %6140 = vmatpush2.xpose.msra.mxu0 0.0
        %6141 = vmatprep.subr.mxu0 0.0
        %6142 = vmatpush2.xpose.msra.mxu0 0.0
        %6143 = vmatprep.subr.mxu0 0.0
        %6144 = vmatpush2.xpose.msra.mxu0 0.0
        %6145 = vmatprep.subr.mxu0 0.0
        %6146 = vmatpush2.xpose.msra.mxu0 0.0
        %6147 = vmatprep.subr.mxu0 0.0
        %6148 = vmatpush2.xpose.msra.mxu0 0.0
        %6149 = vmatprep.subr.mxu0 0.0
        %6150 = vmatpush2.xpose.msra.mxu0 0.0
        %6151 = vmatprep.subr.mxu0 0.0
        %6152 = vmatpush2.xpose.msra.mxu0 0.0
        %6153 = vmatprep.mubr.f32.mxu0 0.0
        %6154 = vmatmul.mubr.f32.gmra.mxu0 %v6081
        %v6155 = vpop.f32.mrf.mxu0
        %v6156 = vadd.f32 %v5616, %v6155
        %v6157 = vpop.f32.mrf.mxu0
        %6158 = vmatprep.mubr.f32.mxu0 0.0
        %6159 = vmatmul.mubr.f32.gmra.mxu0 %v6083
        %v6160 = vpop.f32.mrf.mxu0
        %v6161 = vadd.f32 %v5617, %v6160
        %v6162 = vpop.f32.mrf.mxu0
        %6163 = vdwg.mxu0
        %6164 = vrot.lane.b32.xlu0 %v561, 104
        %v6165 = vpop.permute.xlu0 %6164
        %6166 = vrot.lane.b32.xlu0 %v566, 104
        %v6167 = vpop.permute.xlu0 %6166
        %6168 = vrot.lane.b32.xlu0 %v561, 72
        %v6169 = vpop.permute.xlu0 %6168
        %6170 = vrot.lane.b32.xlu0 %v566, 72
        %v6171 = vpop.permute.xlu0 %6170
        %v6172 = vsel %vm603, %v6165, 0
        %v6174 = vsel %vm603, %v6167, 0
        %v6176 = vsel %vm603, %v6169, 0
        %v6178 = vsel %vm603, %v6171, 0
        %6180 = vmatprep.subr.mxu0 0.0
        %6181 = vmatpush1.xpose.msra.mxu0 0.0
        %6182 = vmatprep.subr.mxu0 0.0
        %6183 = vmatpush1.xpose.msra.mxu0 0.0
        %6184 = vmatprep.subr.mxu0 0.0
        %6185 = vmatpush1.xpose.msra.mxu0 0.0
        %6186 = vmatprep.subr.mxu0 0.0
        %6187 = vmatpush1.xpose.msra.mxu0 0.0
        %6188 = vmatprep.subr.mxu0 0.0
        %6189 = vmatpush1.xpose.msra.mxu0 0.0
        %6190 = vmatprep.subr.mxu0 0.0
        %6191 = vmatpush1.xpose.msra.mxu0 0.0
        %6192 = vmatprep.subr.mxu0 0.0
        %6193 = vmatpush1.xpose.msra.mxu0 0.0
        %6194 = vmatprep.subr.mxu0 0.0
        %6195 = vmatpush1.xpose.msra.mxu0 0.0
        %6196 = vmatprep.subr.mxu0 0.0
        %6197 = vmatpush1.xpose.msra.mxu0 0.0
        %6198 = vmatprep.subr.mxu0 0.0
        %6199 = vmatpush1.xpose.msra.mxu0 0.0
        %6200 = vmatprep.subr.mxu0 0.0
        %6201 = vmatpush1.xpose.msra.mxu0 0.0
        %6202 = vmatprep.subr.mxu0 0.0
        %6203 = vmatpush1.xpose.msra.mxu0 0.0
        %6204 = vmatprep.subr.mxu0 0.0
        %6205 = vmatpush1.xpose.msra.mxu0 0.0
        %6206 = vmatprep.subr.mxu0 0.0
        %6207 = vmatpush1.xpose.msra.mxu0 0.0
        %6208 = vmatprep.subr.mxu0 0.0
        %6209 = vmatpush1.xpose.msra.mxu0 %v6178
        %6210 = vmatprep.subr.mxu0 0.0
        %6211 = vmatpush1.xpose.msra.mxu0 %v6176
        %6212 = vmatprep.subr.mxu0 0.0
        %6213 = vmatpush2.xpose.msra.mxu0 0.0
        %6214 = vmatprep.subr.mxu0 0.0
        %6215 = vmatpush2.xpose.msra.mxu0 0.0
        %6216 = vmatprep.subr.mxu0 0.0
        %6217 = vmatpush2.xpose.msra.mxu0 0.0
        %6218 = vmatprep.subr.mxu0 0.0
        %6219 = vmatpush2.xpose.msra.mxu0 0.0
        %6220 = vmatprep.subr.mxu0 0.0
        %6221 = vmatpush2.xpose.msra.mxu0 0.0
        %6222 = vmatprep.subr.mxu0 0.0
        %6223 = vmatpush2.xpose.msra.mxu0 0.0
        %6224 = vmatprep.subr.mxu0 0.0
        %6225 = vmatpush2.xpose.msra.mxu0 0.0
        %6226 = vmatprep.subr.mxu0 0.0
        %6227 = vmatpush2.xpose.msra.mxu0 0.0
        %6228 = vmatprep.subr.mxu0 0.0
        %6229 = vmatpush2.xpose.msra.mxu0 0.0
        %6230 = vmatprep.subr.mxu0 0.0
        %6231 = vmatpush2.xpose.msra.mxu0 0.0
        %6232 = vmatprep.subr.mxu0 0.0
        %6233 = vmatpush2.xpose.msra.mxu0 0.0
        %6234 = vmatprep.subr.mxu0 0.0
        %6235 = vmatpush2.xpose.msra.mxu0 0.0
        %6236 = vmatprep.subr.mxu0 0.0
        %6237 = vmatpush2.xpose.msra.mxu0 0.0
        %6238 = vmatprep.subr.mxu0 0.0
        %6239 = vmatpush2.xpose.msra.mxu0 0.0
        %6240 = vmatprep.subr.mxu0 0.0
        %6241 = vmatpush2.xpose.msra.mxu0 0.0
        %6242 = vmatprep.subr.mxu0 0.0
        %6243 = vmatpush2.xpose.msra.mxu0 0.0
        %6244 = vmatprep.mubr.f32.mxu0 0.0
        %6245 = vmatmul.mubr.f32.gmra.mxu0 %v6172
        %v6246 = vpop.f32.mrf.mxu0
        %v6247 = vadd.f32 %v5616, %v6246
        %v6248 = vpop.f32.mrf.mxu0
        %6249 = vmatprep.mubr.f32.mxu0 0.0
        %6250 = vmatmul.mubr.f32.gmra.mxu0 %v6174
        %v6251 = vpop.f32.mrf.mxu0
        %v6252 = vadd.f32 %v5617, %v6251
        %v6253 = vpop.f32.mrf.mxu0
        %6254 = vdwg.mxu0
        %6255 = vrot.lane.b32.xlu0 %v571, 104
        %v6256 = vpop.permute.xlu0 %6255
        %6257 = vrot.lane.b32.xlu0 %v576, 104
        %v6258 = vpop.permute.xlu0 %6257
        %6259 = vrot.lane.b32.xlu0 %v571, 72
        %v6260 = vpop.permute.xlu0 %6259
        %6261 = vrot.lane.b32.xlu0 %v576, 72
        %v6262 = vpop.permute.xlu0 %6261
        %v6263 = vsel %vm603, %v6256, 0
        %v6265 = vsel %vm603, %v6258, 0
        %v6267 = vsel %vm603, %v6260, 0
        %v6269 = vsel %vm603, %v6262, 0
        %6271 = vmatprep.subr.mxu0 0.0
        %6272 = vmatpush1.xpose.msra.mxu0 0.0
        %6273 = vmatprep.subr.mxu0 0.0
        %6274 = vmatpush1.xpose.msra.mxu0 0.0
        %6275 = vmatprep.subr.mxu0 0.0
        %6276 = vmatpush1.xpose.msra.mxu0 0.0
        %6277 = vmatprep.subr.mxu0 0.0
        %6278 = vmatpush1.xpose.msra.mxu0 0.0
        %6279 = vmatprep.subr.mxu0 0.0
        %6280 = vmatpush1.xpose.msra.mxu0 0.0
        %6281 = vmatprep.subr.mxu0 0.0
        %6282 = vmatpush1.xpose.msra.mxu0 0.0
        %6283 = vmatprep.subr.mxu0 0.0
        %6284 = vmatpush1.xpose.msra.mxu0 0.0
        %6285 = vmatprep.subr.mxu0 0.0
        %6286 = vmatpush1.xpose.msra.mxu0 0.0
        %6287 = vmatprep.subr.mxu0 0.0
        %6288 = vmatpush1.xpose.msra.mxu0 0.0
        %6289 = vmatprep.subr.mxu0 0.0
        %6290 = vmatpush1.xpose.msra.mxu0 0.0
        %6291 = vmatprep.subr.mxu0 0.0
        %6292 = vmatpush1.xpose.msra.mxu0 0.0
        %6293 = vmatprep.subr.mxu0 0.0
        %6294 = vmatpush1.xpose.msra.mxu0 0.0
        %6295 = vmatprep.subr.mxu0 0.0
        %6296 = vmatpush1.xpose.msra.mxu0 0.0
        %6297 = vmatprep.subr.mxu0 0.0
        %6298 = vmatpush1.xpose.msra.mxu0 0.0
        %6299 = vmatprep.subr.mxu0 0.0
        %6300 = vmatpush1.xpose.msra.mxu0 %v6269
        %6301 = vmatprep.subr.mxu0 0.0
        %6302 = vmatpush1.xpose.msra.mxu0 %v6267
        %6303 = vmatprep.subr.mxu0 0.0
        %6304 = vmatpush2.xpose.msra.mxu0 0.0
        %6305 = vmatprep.subr.mxu0 0.0
        %6306 = vmatpush2.xpose.msra.mxu0 0.0
        %6307 = vmatprep.subr.mxu0 0.0
        %6308 = vmatpush2.xpose.msra.mxu0 0.0
        %6309 = vmatprep.subr.mxu0 0.0
        %6310 = vmatpush2.xpose.msra.mxu0 0.0
        %6311 = vmatprep.subr.mxu0 0.0
        %6312 = vmatpush2.xpose.msra.mxu0 0.0
        %6313 = vmatprep.subr.mxu0 0.0
        %6314 = vmatpush2.xpose.msra.mxu0 0.0
        %6315 = vmatprep.subr.mxu0 0.0
        %6316 = vmatpush2.xpose.msra.mxu0 0.0
        %6317 = vmatprep.subr.mxu0 0.0
        %6318 = vmatpush2.xpose.msra.mxu0 0.0
        %6319 = vmatprep.subr.mxu0 0.0
        %6320 = vmatpush2.xpose.msra.mxu0 0.0
        %6321 = vmatprep.subr.mxu0 0.0
        %6322 = vmatpush2.xpose.msra.mxu0 0.0
        %6323 = vmatprep.subr.mxu0 0.0
        %6324 = vmatpush2.xpose.msra.mxu0 0.0
        %6325 = vmatprep.subr.mxu0 0.0
        %6326 = vmatpush2.xpose.msra.mxu0 0.0
        %6327 = vmatprep.subr.mxu0 0.0
        %6328 = vmatpush2.xpose.msra.mxu0 0.0
        %6329 = vmatprep.subr.mxu0 0.0
        %6330 = vmatpush2.xpose.msra.mxu0 0.0
        %6331 = vmatprep.subr.mxu0 0.0
        %6332 = vmatpush2.xpose.msra.mxu0 0.0
        %6333 = vmatprep.subr.mxu0 0.0
        %6334 = vmatpush2.xpose.msra.mxu0 0.0
        %6335 = vmatprep.mubr.f32.mxu0 0.0
        %6336 = vmatmul.mubr.f32.gmra.mxu0 %v6263
        %v6337 = vpop.f32.mrf.mxu0
        %v6338 = vadd.f32 %v5616, %v6337
        %v6339 = vpop.f32.mrf.mxu0
        %6340 = vmatprep.mubr.f32.mxu0 0.0
        %6341 = vmatmul.mubr.f32.gmra.mxu0 %v6265
        %v6342 = vpop.f32.mrf.mxu0
        %v6343 = vadd.f32 %v5617, %v6342
        %v6344 = vpop.f32.mrf.mxu0
        %6345 = vdwg.mxu0
        %v6346 = vadd.f32 %v5701, %v579
        %v6347 = vadd.f32 %v5706, %v580
        %v6348 = vadd.f32 %v5792, %v581
        %v6349 = vadd.f32 %v5797, %v582
        %v6350 = vadd.f32 %v5883, %v583
        %v6351 = vadd.f32 %v5888, %v584
        %v6352 = vadd.f32 %v5974, %v585
        %v6353 = vadd.f32 %v5979, %v586
        %v6354 = vadd.f32 %v6065, %v587
        %v6355 = vadd.f32 %v6070, %v588
        %v6356 = vadd.f32 %v6156, %v589
        %v6357 = vadd.f32 %v6161, %v590
        %v6358 = vadd.f32 %v6247, %v591
        %v6359 = vadd.f32 %v6252, %v592
        %v6360 = vadd.f32 %v6338, %v593
        %v6361 = vadd.f32 %v6343, %v594
        %v6362 = vsel %vm1326, %v6346, -inf
        %6363 = vmax.xlane.f32.xlu0 %v6362
        %v6364 = vpop.xlane.xlu0 %6363
        %v6365 = vsel %vm1326, %v6347, -inf
        %6366 = vmax.xlane.f32.xlu0 %v6365
        %v6367 = vpop.xlane.xlu0 %6366
        %v6368 = vsel %vm1326, %v6348, -inf
        %6369 = vmax.xlane.f32.xlu0 %v6368
        %v6370 = vpop.xlane.xlu0 %6369
        %v6371 = vsel %vm1326, %v6349, -inf
        %6372 = vmax.xlane.f32.xlu0 %v6371
        %v6373 = vpop.xlane.xlu0 %6372
        %v6374 = vsel %vm1326, %v6350, -inf
        %6375 = vmax.xlane.f32.xlu0 %v6374
        %v6376 = vpop.xlane.xlu0 %6375
        %v6377 = vsel %vm1326, %v6351, -inf
        %6378 = vmax.xlane.f32.xlu0 %v6377
        %v6379 = vpop.xlane.xlu0 %6378
        %v6380 = vsel %vm1326, %v6352, -inf
        %6381 = vmax.xlane.f32.xlu0 %v6380
        %v6382 = vpop.xlane.xlu0 %6381
        %v6383 = vsel %vm1326, %v6353, -inf
        %6384 = vmax.xlane.f32.xlu0 %v6383
        %v6385 = vpop.xlane.xlu0 %6384
        %v6386 = vsel %vm1326, %v6354, -inf
        %6387 = vmax.xlane.f32.xlu0 %v6386
        %v6388 = vpop.xlane.xlu0 %6387
        %v6389 = vsel %vm1326, %v6355, -inf
        %6390 = vmax.xlane.f32.xlu0 %v6389
        %v6391 = vpop.xlane.xlu0 %6390
        %v6392 = vsel %vm1326, %v6356, -inf
        %6393 = vmax.xlane.f32.xlu0 %v6392
        %v6394 = vpop.xlane.xlu0 %6393
        %v6395 = vsel %vm1326, %v6357, -inf
        %6396 = vmax.xlane.f32.xlu0 %v6395
        %v6397 = vpop.xlane.xlu0 %6396
        %v6398 = vsel %vm1326, %v6358, -inf
        %6399 = vmax.xlane.f32.xlu0 %v6398
        %v6400 = vpop.xlane.xlu0 %6399
        %v6401 = vsel %vm1326, %v6359, -inf
        %6402 = vmax.xlane.f32.xlu0 %v6401
        %v6403 = vpop.xlane.xlu0 %6402
        %v6404 = vsel %vm1326, %v6360, -inf
        %6405 = vmax.xlane.f32.xlu0 %v6404
        %v6406 = vpop.xlane.xlu0 %6405
        %v6407 = vsel %vm1326, %v6361, -inf
        %6408 = vmax.xlane.f32.xlu0 %v6407
        %v6409 = vpop.xlane.xlu0 %6408
        %v6410 = vsub.f32 %v6346, %v6364
        %v6411 = vsub.f32 %v6347, %v6367
        %v6412 = vsub.f32 %v6348, %v6370
        %v6413 = vsub.f32 %v6349, %v6373
        %v6414 = vsub.f32 %v6350, %v6376
        %v6415 = vsub.f32 %v6351, %v6379
        %v6416 = vsub.f32 %v6352, %v6382
        %v6417 = vsub.f32 %v6353, %v6385
        %v6418 = vsub.f32 %v6354, %v6388
        %v6419 = vsub.f32 %v6355, %v6391
        %v6420 = vsub.f32 %v6356, %v6394
        %v6421 = vsub.f32 %v6357, %v6397
        %v6422 = vsub.f32 %v6358, %v6400
        %v6423 = vsub.f32 %v6359, %v6403
        %v6424 = vsub.f32 %v6360, %v6406
        %v6425 = vsub.f32 %v6361, %v6409
        %v6426 = vmul.f32 %v6410, 1.442695
        %v6427 = vpow.pop %v6426
        %v6428 = vmul.f32 %v6411, 1.442695
        %v6429 = vpow.pop %v6428
        %v6430 = vmul.f32 %v6412, 1.442695
        %v6431 = vpow.pop %v6430
        %v6432 = vmul.f32 %v6413, 1.442695
        %v6433 = vpow.pop %v6432
        %v6434 = vmul.f32 %v6414, 1.442695
        %v6435 = vpow.pop %v6434
        %v6436 = vmul.f32 %v6415, 1.442695
        %v6437 = vpow.pop %v6436
        %v6438 = vmul.f32 %v6416, 1.442695
        %v6439 = vpow.pop %v6438
        %v6440 = vmul.f32 %v6417, 1.442695
        %v6441 = vpow.pop %v6440
        %v6442 = vmul.f32 %v6418, 1.442695
        %v6443 = vpow.pop %v6442
        %v6444 = vmul.f32 %v6419, 1.442695
        %v6445 = vpow.pop %v6444
        %v6446 = vmul.f32 %v6420, 1.442695
        %v6447 = vpow.pop %v6446
        %v6448 = vmul.f32 %v6421, 1.442695
        %v6449 = vpow.pop %v6448
        %v6450 = vmul.f32 %v6422, 1.442695
        %v6451 = vpow.pop %v6450
        %v6452 = vmul.f32 %v6423, 1.442695
        %v6453 = vpow.pop %v6452
        %v6454 = vmul.f32 %v6424, 1.442695
        %v6455 = vpow.pop %v6454
        %v6456 = vmul.f32 %v6425, 1.442695
        %v6457 = vpow.pop %v6456
        %v6458 = vsel %vm1326, %v6427, 0.0
        %6459 = vadd.xlane.f32.xlu0 %v6458
        %v6460 = vpop.xlane.xlu0 %6459
        %v6461 = vsel %vm1326, %v6429, 0.0
        %6462 = vadd.xlane.f32.xlu0 %v6461
        %v6463 = vpop.xlane.xlu0 %6462
        %v6464 = vsel %vm1326, %v6431, 0.0
        %6465 = vadd.xlane.f32.xlu0 %v6464
        %v6466 = vpop.xlane.xlu0 %6465
        %v6467 = vsel %vm1326, %v6433, 0.0
        %6468 = vadd.xlane.f32.xlu0 %v6467
        %v6469 = vpop.xlane.xlu0 %6468
        %v6470 = vsel %vm1326, %v6435, 0.0
        %6471 = vadd.xlane.f32.xlu0 %v6470
        %v6472 = vpop.xlane.xlu0 %6471
        %v6473 = vsel %vm1326, %v6437, 0.0
        %6474 = vadd.xlane.f32.xlu0 %v6473
        %v6475 = vpop.xlane.xlu0 %6474
        %v6476 = vsel %vm1326, %v6439, 0.0
        %6477 = vadd.xlane.f32.xlu0 %v6476
        %v6478 = vpop.xlane.xlu0 %6477
        %v6479 = vsel %vm1326, %v6441, 0.0
        %6480 = vadd.xlane.f32.xlu0 %v6479
        %v6481 = vpop.xlane.xlu0 %6480
        %v6482 = vsel %vm1326, %v6443, 0.0
        %6483 = vadd.xlane.f32.xlu0 %v6482
        %v6484 = vpop.xlane.xlu0 %6483
        %v6485 = vsel %vm1326, %v6445, 0.0
        %6486 = vadd.xlane.f32.xlu0 %v6485
        %v6487 = vpop.xlane.xlu0 %6486
        %v6488 = vsel %vm1326, %v6447, 0.0
        %6489 = vadd.xlane.f32.xlu0 %v6488
        %v6490 = vpop.xlane.xlu0 %6489
        %v6491 = vsel %vm1326, %v6449, 0.0
        %6492 = vadd.xlane.f32.xlu0 %v6491
        %v6493 = vpop.xlane.xlu0 %6492
        %v6494 = vsel %vm1326, %v6451, 0.0
        %6495 = vadd.xlane.f32.xlu0 %v6494
        %v6496 = vpop.xlane.xlu0 %6495
        %v6497 = vsel %vm1326, %v6453, 0.0
        %6498 = vadd.xlane.f32.xlu0 %v6497
        %v6499 = vpop.xlane.xlu0 %6498
        %v6500 = vsel %vm1326, %v6455, 0.0
        %6501 = vadd.xlane.f32.xlu0 %v6500
        %v6502 = vpop.xlane.xlu0 %6501
        %v6503 = vsel %vm1326, %v6457, 0.0
        %6504 = vadd.xlane.f32.xlu0 %v6503
        %v6505 = vpop.xlane.xlu0 %6504
        %v6506 = vrcp.pop %v6460
        %v6507 = vrcp.pop %v6463
        %v6508 = vrcp.pop %v6466
        %v6509 = vrcp.pop %v6469
        %v6510 = vrcp.pop %v6472
        %v6511 = vrcp.pop %v6475
        %v6512 = vrcp.pop %v6478
        %v6513 = vrcp.pop %v6481
        %v6514 = vrcp.pop %v6484
        %v6515 = vrcp.pop %v6487
        %v6516 = vrcp.pop %v6490
        %v6517 = vrcp.pop %v6493
        %v6518 = vrcp.pop %v6496
        %v6519 = vrcp.pop %v6499
        %v6520 = vrcp.pop %v6502
        %v6521 = vrcp.pop %v6505
        %v6522 = vmul.f32 %v6427, %v6506
        %v6523 = vmul.f32 %v6429, %v6507
        %v6524 = vmul.f32 %v6431, %v6508
        %v6525 = vmul.f32 %v6433, %v6509
        %v6526 = vmul.f32 %v6435, %v6510
        %v6527 = vmul.f32 %v6437, %v6511
        %v6528 = vmul.f32 %v6439, %v6512
        %v6529 = vmul.f32 %v6441, %v6513
        %v6530 = vmul.f32 %v6443, %v6514
        %v6531 = vmul.f32 %v6445, %v6515
        %v6532 = vmul.f32 %v6447, %v6516
        %v6533 = vmul.f32 %v6449, %v6517
        %v6534 = vmul.f32 %v6451, %v6518
        %v6535 = vmul.f32 %v6453, %v6519
        %v6536 = vmul.f32 %v6455, %v6520
        %v6537 = vmul.f32 %v6457, %v6521
        %6538 = vrot.lane.b32.xlu0 %v501, 40
        %v6539 = vpop.permute.xlu0 %6538
        %6540 = vrot.lane.b32.xlu0 %v506, 40
        %v6541 = vpop.permute.xlu0 %6540
        %v6545 = vsel %vm1326, %v6522, 0
        %v6548 = vsel %vm1326, %v6523, 0
        %6550 = vmatprep.subr.mxu0 0.0
        %6551 = vmatpush1.msra.mxu0 0.0
        %6552 = vmatprep.subr.mxu0 0.0
        %6553 = vmatpush1.msra.mxu0 0.0
        %6554 = vmatprep.subr.mxu0 0.0
        %6555 = vmatpush1.msra.mxu0 0.0
        %6556 = vmatprep.subr.mxu0 0.0
        %6557 = vmatpush1.msra.mxu0 0.0
        %6558 = vmatprep.subr.mxu0 0.0
        %6559 = vmatpush1.msra.mxu0 0.0
        %6560 = vmatprep.subr.mxu0 0.0
        %6561 = vmatpush1.msra.mxu0 0.0
        %6562 = vmatprep.subr.mxu0 0.0
        %6563 = vmatpush1.msra.mxu0 0.0
        %6564 = vmatprep.subr.mxu0 0.0
        %6565 = vmatpush1.msra.mxu0 0.0
        %6566 = vmatprep.subr.mxu0 0.0
        %6567 = vmatpush1.msra.mxu0 0.0
        %6568 = vmatprep.subr.mxu0 0.0
        %6569 = vmatpush1.msra.mxu0 0.0
        %6570 = vmatprep.subr.mxu0 0.0
        %6571 = vmatpush1.msra.mxu0 0.0
        %6572 = vmatprep.subr.mxu0 0.0
        %6573 = vmatpush1.msra.mxu0 0.0
        %6574 = vmatprep.subr.mxu0 0.0
        %6575 = vmatpush1.msra.mxu0 0.0
        %6576 = vmatprep.subr.mxu0 0.0
        %6577 = vmatpush1.msra.mxu0 0.0
        %6578 = vmatprep.subr.mxu0 0.0
        %6579 = vmatpush1.msra.mxu0 %v6541
        %6580 = vmatprep.subr.mxu0 0.0
        %6581 = vmatpush1.msra.mxu0 %v6539
        %6582 = vmatprep.subr.mxu0 0.0
        %6583 = vmatpush2.msra.mxu0 0.0
        %6584 = vmatprep.subr.mxu0 0.0
        %6585 = vmatpush2.msra.mxu0 0.0
        %6586 = vmatprep.subr.mxu0 0.0
        %6587 = vmatpush2.msra.mxu0 0.0
        %6588 = vmatprep.subr.mxu0 0.0
        %6589 = vmatpush2.msra.mxu0 0.0
        %6590 = vmatprep.subr.mxu0 0.0
        %6591 = vmatpush2.msra.mxu0 0.0
        %6592 = vmatprep.subr.mxu0 0.0
        %6593 = vmatpush2.msra.mxu0 0.0
        %6594 = vmatprep.subr.mxu0 0.0
        %6595 = vmatpush2.msra.mxu0 0.0
        %6596 = vmatprep.subr.mxu0 0.0
        %6597 = vmatpush2.msra.mxu0 0.0
        %6598 = vmatprep.subr.mxu0 0.0
        %6599 = vmatpush2.msra.mxu0 0.0
        %6600 = vmatprep.subr.mxu0 0.0
        %6601 = vmatpush2.msra.mxu0 0.0
        %6602 = vmatprep.subr.mxu0 0.0
        %6603 = vmatpush2.msra.mxu0 0.0
        %6604 = vmatprep.subr.mxu0 0.0
        %6605 = vmatpush2.msra.mxu0 0.0
        %6606 = vmatprep.subr.mxu0 0.0
        %6607 = vmatpush2.msra.mxu0 0.0
        %6608 = vmatprep.subr.mxu0 0.0
        %6609 = vmatpush2.msra.mxu0 0.0
        %6610 = vmatprep.subr.mxu0 0.0
        %6611 = vmatpush2.msra.mxu0 0.0
        %6612 = vmatprep.subr.mxu0 0.0
        %6613 = vmatpush2.msra.mxu0 0.0
        %6614 = vmatprep.mubr.f32.mxu0 0.0
        %6615 = vmatmul.mubr.f32.gmra.mxu0 %v6545
        %v6616 = vpop.f32.mrf.mxu0
        %v6617 = vadd.f32 0.0, %v6616
        %v6618 = vpop.f32.mrf.mxu0
        %6619 = vmatprep.mubr.f32.mxu0 0.0
        %6620 = vmatmul.mubr.f32.gmra.mxu0 %v6548
        %v6621 = vpop.f32.mrf.mxu0
        %v6622 = vadd.f32 0.0, %v6621
        %v6623 = vpop.f32.mrf.mxu0
        %6624 = vdwg.mxu0
        %6625 = vrot.lane.b32.xlu0 %v511, 40
        %v6626 = vpop.permute.xlu0 %6625
        %6627 = vrot.lane.b32.xlu0 %v516, 40
        %v6628 = vpop.permute.xlu0 %6627
        %v6632 = vsel %vm1326, %v6524, 0
        %v6635 = vsel %vm1326, %v6525, 0
        %6637 = vmatprep.subr.mxu0 0.0
        %6638 = vmatpush1.msra.mxu0 0.0
        %6639 = vmatprep.subr.mxu0 0.0
        %6640 = vmatpush1.msra.mxu0 0.0
        %6641 = vmatprep.subr.mxu0 0.0
        %6642 = vmatpush1.msra.mxu0 0.0
        %6643 = vmatprep.subr.mxu0 0.0
        %6644 = vmatpush1.msra.mxu0 0.0
        %6645 = vmatprep.subr.mxu0 0.0
        %6646 = vmatpush1.msra.mxu0 0.0
        %6647 = vmatprep.subr.mxu0 0.0
        %6648 = vmatpush1.msra.mxu0 0.0
        %6649 = vmatprep.subr.mxu0 0.0
        %6650 = vmatpush1.msra.mxu0 0.0
        %6651 = vmatprep.subr.mxu0 0.0
        %6652 = vmatpush1.msra.mxu0 0.0
        %6653 = vmatprep.subr.mxu0 0.0
        %6654 = vmatpush1.msra.mxu0 0.0
        %6655 = vmatprep.subr.mxu0 0.0
        %6656 = vmatpush1.msra.mxu0 0.0
        %6657 = vmatprep.subr.mxu0 0.0
        %6658 = vmatpush1.msra.mxu0 0.0
        %6659 = vmatprep.subr.mxu0 0.0
        %6660 = vmatpush1.msra.mxu0 0.0
        %6661 = vmatprep.subr.mxu0 0.0
        %6662 = vmatpush1.msra.mxu0 0.0
        %6663 = vmatprep.subr.mxu0 0.0
        %6664 = vmatpush1.msra.mxu0 0.0
        %6665 = vmatprep.subr.mxu0 0.0
        %6666 = vmatpush1.msra.mxu0 %v6628
        %6667 = vmatprep.subr.mxu0 0.0
        %6668 = vmatpush1.msra.mxu0 %v6626
        %6669 = vmatprep.subr.mxu0 0.0
        %6670 = vmatpush2.msra.mxu0 0.0
        %6671 = vmatprep.subr.mxu0 0.0
        %6672 = vmatpush2.msra.mxu0 0.0
        %6673 = vmatprep.subr.mxu0 0.0
        %6674 = vmatpush2.msra.mxu0 0.0
        %6675 = vmatprep.subr.mxu0 0.0
        %6676 = vmatpush2.msra.mxu0 0.0
        %6677 = vmatprep.subr.mxu0 0.0
        %6678 = vmatpush2.msra.mxu0 0.0
        %6679 = vmatprep.subr.mxu0 0.0
        %6680 = vmatpush2.msra.mxu0 0.0
        %6681 = vmatprep.subr.mxu0 0.0
        %6682 = vmatpush2.msra.mxu0 0.0
        %6683 = vmatprep.subr.mxu0 0.0
        %6684 = vmatpush2.msra.mxu0 0.0
        %6685 = vmatprep.subr.mxu0 0.0
        %6686 = vmatpush2.msra.mxu0 0.0
        %6687 = vmatprep.subr.mxu0 0.0
        %6688 = vmatpush2.msra.mxu0 0.0
        %6689 = vmatprep.subr.mxu0 0.0
        %6690 = vmatpush2.msra.mxu0 0.0
        %6691 = vmatprep.subr.mxu0 0.0
        %6692 = vmatpush2.msra.mxu0 0.0
        %6693 = vmatprep.subr.mxu0 0.0
        %6694 = vmatpush2.msra.mxu0 0.0
        %6695 = vmatprep.subr.mxu0 0.0
        %6696 = vmatpush2.msra.mxu0 0.0
        %6697 = vmatprep.subr.mxu0 0.0
        %6698 = vmatpush2.msra.mxu0 0.0
        %6699 = vmatprep.subr.mxu0 0.0
        %6700 = vmatpush2.msra.mxu0 0.0
        %6701 = vmatprep.mubr.f32.mxu0 0.0
        %6702 = vmatmul.mubr.f32.gmra.mxu0 %v6632
        %v6703 = vpop.f32.mrf.mxu0
        %v6704 = vadd.f32 0.0, %v6703
        %v6705 = vpop.f32.mrf.mxu0
        %6706 = vmatprep.mubr.f32.mxu0 0.0
        %6707 = vmatmul.mubr.f32.gmra.mxu0 %v6635
        %v6708 = vpop.f32.mrf.mxu0
        %v6709 = vadd.f32 0.0, %v6708
        %v6710 = vpop.f32.mrf.mxu0
        %6711 = vdwg.mxu0
        %6712 = vrot.lane.b32.xlu0 %v521, 40
        %v6713 = vpop.permute.xlu0 %6712
        %6714 = vrot.lane.b32.xlu0 %v526, 40
        %v6715 = vpop.permute.xlu0 %6714
        %v6719 = vsel %vm1326, %v6526, 0
        %v6722 = vsel %vm1326, %v6527, 0
        %6724 = vmatprep.subr.mxu0 0.0
        %6725 = vmatpush1.msra.mxu0 0.0
        %6726 = vmatprep.subr.mxu0 0.0
        %6727 = vmatpush1.msra.mxu0 0.0
        %6728 = vmatprep.subr.mxu0 0.0
        %6729 = vmatpush1.msra.mxu0 0.0
        %6730 = vmatprep.subr.mxu0 0.0
        %6731 = vmatpush1.msra.mxu0 0.0
        %6732 = vmatprep.subr.mxu0 0.0
        %6733 = vmatpush1.msra.mxu0 0.0
        %6734 = vmatprep.subr.mxu0 0.0
        %6735 = vmatpush1.msra.mxu0 0.0
        %6736 = vmatprep.subr.mxu0 0.0
        %6737 = vmatpush1.msra.mxu0 0.0
        %6738 = vmatprep.subr.mxu0 0.0
        %6739 = vmatpush1.msra.mxu0 0.0
        %6740 = vmatprep.subr.mxu0 0.0
        %6741 = vmatpush1.msra.mxu0 0.0
        %6742 = vmatprep.subr.mxu0 0.0
        %6743 = vmatpush1.msra.mxu0 0.0
        %6744 = vmatprep.subr.mxu0 0.0
        %6745 = vmatpush1.msra.mxu0 0.0
        %6746 = vmatprep.subr.mxu0 0.0
        %6747 = vmatpush1.msra.mxu0 0.0
        %6748 = vmatprep.subr.mxu0 0.0
        %6749 = vmatpush1.msra.mxu0 0.0
        %6750 = vmatprep.subr.mxu0 0.0
        %6751 = vmatpush1.msra.mxu0 0.0
        %6752 = vmatprep.subr.mxu0 0.0
        %6753 = vmatpush1.msra.mxu0 %v6715
        %6754 = vmatprep.subr.mxu0 0.0
        %6755 = vmatpush1.msra.mxu0 %v6713
        %6756 = vmatprep.subr.mxu0 0.0
        %6757 = vmatpush2.msra.mxu0 0.0
        %6758 = vmatprep.subr.mxu0 0.0
        %6759 = vmatpush2.msra.mxu0 0.0
        %6760 = vmatprep.subr.mxu0 0.0
        %6761 = vmatpush2.msra.mxu0 0.0
        %6762 = vmatprep.subr.mxu0 0.0
        %6763 = vmatpush2.msra.mxu0 0.0
        %6764 = vmatprep.subr.mxu0 0.0
        %6765 = vmatpush2.msra.mxu0 0.0
        %6766 = vmatprep.subr.mxu0 0.0
        %6767 = vmatpush2.msra.mxu0 0.0
        %6768 = vmatprep.subr.mxu0 0.0
        %6769 = vmatpush2.msra.mxu0 0.0
        %6770 = vmatprep.subr.mxu0 0.0
        %6771 = vmatpush2.msra.mxu0 0.0
        %6772 = vmatprep.subr.mxu0 0.0
        %6773 = vmatpush2.msra.mxu0 0.0
        %6774 = vmatprep.subr.mxu0 0.0
        %6775 = vmatpush2.msra.mxu0 0.0
        %6776 = vmatprep.subr.mxu0 0.0
        %6777 = vmatpush2.msra.mxu0 0.0
        %6778 = vmatprep.subr.mxu0 0.0
        %6779 = vmatpush2.msra.mxu0 0.0
        %6780 = vmatprep.subr.mxu0 0.0
        %6781 = vmatpush2.msra.mxu0 0.0
        %6782 = vmatprep.subr.mxu0 0.0
        %6783 = vmatpush2.msra.mxu0 0.0
        %6784 = vmatprep.subr.mxu0 0.0
        %6785 = vmatpush2.msra.mxu0 0.0
        %6786 = vmatprep.subr.mxu0 0.0
        %6787 = vmatpush2.msra.mxu0 0.0
        %6788 = vmatprep.mubr.f32.mxu0 0.0
        %6789 = vmatmul.mubr.f32.gmra.mxu0 %v6719
        %v6790 = vpop.f32.mrf.mxu0
        %v6791 = vadd.f32 0.0, %v6790
        %v6792 = vpop.f32.mrf.mxu0
        %6793 = vmatprep.mubr.f32.mxu0 0.0
        %6794 = vmatmul.mubr.f32.gmra.mxu0 %v6722
        %v6795 = vpop.f32.mrf.mxu0
        %v6796 = vadd.f32 0.0, %v6795
        %v6797 = vpop.f32.mrf.mxu0
        %6798 = vdwg.mxu0
        %6799 = vrot.lane.b32.xlu0 %v531, 40
        %v6800 = vpop.permute.xlu0 %6799
        %6801 = vrot.lane.b32.xlu0 %v536, 40
        %v6802 = vpop.permute.xlu0 %6801
        %v6806 = vsel %vm1326, %v6528, 0
        %v6809 = vsel %vm1326, %v6529, 0
        %6811 = vmatprep.subr.mxu0 0.0
        %6812 = vmatpush1.msra.mxu0 0.0
        %6813 = vmatprep.subr.mxu0 0.0
        %6814 = vmatpush1.msra.mxu0 0.0
        %6815 = vmatprep.subr.mxu0 0.0
        %6816 = vmatpush1.msra.mxu0 0.0
        %6817 = vmatprep.subr.mxu0 0.0
        %6818 = vmatpush1.msra.mxu0 0.0
        %6819 = vmatprep.subr.mxu0 0.0
        %6820 = vmatpush1.msra.mxu0 0.0
        %6821 = vmatprep.subr.mxu0 0.0
        %6822 = vmatpush1.msra.mxu0 0.0
        %6823 = vmatprep.subr.mxu0 0.0
        %6824 = vmatpush1.msra.mxu0 0.0
        %6825 = vmatprep.subr.mxu0 0.0
        %6826 = vmatpush1.msra.mxu0 0.0
        %6827 = vmatprep.subr.mxu0 0.0
        %6828 = vmatpush1.msra.mxu0 0.0
        %6829 = vmatprep.subr.mxu0 0.0
        %6830 = vmatpush1.msra.mxu0 0.0
        %6831 = vmatprep.subr.mxu0 0.0
        %6832 = vmatpush1.msra.mxu0 0.0
        %6833 = vmatprep.subr.mxu0 0.0
        %6834 = vmatpush1.msra.mxu0 0.0
        %6835 = vmatprep.subr.mxu0 0.0
        %6836 = vmatpush1.msra.mxu0 0.0
        %6837 = vmatprep.subr.mxu0 0.0
        %6838 = vmatpush1.msra.mxu0 0.0
        %6839 = vmatprep.subr.mxu0 0.0
        %6840 = vmatpush1.msra.mxu0 %v6802
        %6841 = vmatprep.subr.mxu0 0.0
        %6842 = vmatpush1.msra.mxu0 %v6800
        %6843 = vmatprep.subr.mxu0 0.0
        %6844 = vmatpush2.msra.mxu0 0.0
        %6845 = vmatprep.subr.mxu0 0.0
        %6846 = vmatpush2.msra.mxu0 0.0
        %6847 = vmatprep.subr.mxu0 0.0
        %6848 = vmatpush2.msra.mxu0 0.0
        %6849 = vmatprep.subr.mxu0 0.0
        %6850 = vmatpush2.msra.mxu0 0.0
        %6851 = vmatprep.subr.mxu0 0.0
        %6852 = vmatpush2.msra.mxu0 0.0
        %6853 = vmatprep.subr.mxu0 0.0
        %6854 = vmatpush2.msra.mxu0 0.0
        %6855 = vmatprep.subr.mxu0 0.0
        %6856 = vmatpush2.msra.mxu0 0.0
        %6857 = vmatprep.subr.mxu0 0.0
        %6858 = vmatpush2.msra.mxu0 0.0
        %6859 = vmatprep.subr.mxu0 0.0
        %6860 = vmatpush2.msra.mxu0 0.0
        %6861 = vmatprep.subr.mxu0 0.0
        %6862 = vmatpush2.msra.mxu0 0.0
        %6863 = vmatprep.subr.mxu0 0.0
        %6864 = vmatpush2.msra.mxu0 0.0
        %6865 = vmatprep.subr.mxu0 0.0
        %6866 = vmatpush2.msra.mxu0 0.0
        %6867 = vmatprep.subr.mxu0 0.0
        %6868 = vmatpush2.msra.mxu0 0.0
        %6869 = vmatprep.subr.mxu0 0.0
        %6870 = vmatpush2.msra.mxu0 0.0
        %6871 = vmatprep.subr.mxu0 0.0
        %6872 = vmatpush2.msra.mxu0 0.0
        %6873 = vmatprep.subr.mxu0 0.0
        %6874 = vmatpush2.msra.mxu0 0.0
        %6875 = vmatprep.mubr.f32.mxu0 0.0
        %6876 = vmatmul.mubr.f32.gmra.mxu0 %v6806
        %v6877 = vpop.f32.mrf.mxu0
        %v6878 = vadd.f32 0.0, %v6877
        %v6879 = vpop.f32.mrf.mxu0
        %6880 = vmatprep.mubr.f32.mxu0 0.0
        %6881 = vmatmul.mubr.f32.gmra.mxu0 %v6809
        %v6882 = vpop.f32.mrf.mxu0
        %v6883 = vadd.f32 0.0, %v6882
        %v6884 = vpop.f32.mrf.mxu0
        %6885 = vdwg.mxu0
        %6886 = vrot.lane.b32.xlu0 %v541, 40
        %v6887 = vpop.permute.xlu0 %6886
        %6888 = vrot.lane.b32.xlu0 %v546, 40
        %v6889 = vpop.permute.xlu0 %6888
        %v6893 = vsel %vm1326, %v6530, 0
        %v6896 = vsel %vm1326, %v6531, 0
        %6898 = vmatprep.subr.mxu0 0.0
        %6899 = vmatpush1.msra.mxu0 0.0
        %6900 = vmatprep.subr.mxu0 0.0
        %6901 = vmatpush1.msra.mxu0 0.0
        %6902 = vmatprep.subr.mxu0 0.0
        %6903 = vmatpush1.msra.mxu0 0.0
        %6904 = vmatprep.subr.mxu0 0.0
        %6905 = vmatpush1.msra.mxu0 0.0
        %6906 = vmatprep.subr.mxu0 0.0
        %6907 = vmatpush1.msra.mxu0 0.0
        %6908 = vmatprep.subr.mxu0 0.0
        %6909 = vmatpush1.msra.mxu0 0.0
        %6910 = vmatprep.subr.mxu0 0.0
        %6911 = vmatpush1.msra.mxu0 0.0
        %6912 = vmatprep.subr.mxu0 0.0
        %6913 = vmatpush1.msra.mxu0 0.0
        %6914 = vmatprep.subr.mxu0 0.0
        %6915 = vmatpush1.msra.mxu0 0.0
        %6916 = vmatprep.subr.mxu0 0.0
        %6917 = vmatpush1.msra.mxu0 0.0
        %6918 = vmatprep.subr.mxu0 0.0
        %6919 = vmatpush1.msra.mxu0 0.0
        %6920 = vmatprep.subr.mxu0 0.0
        %6921 = vmatpush1.msra.mxu0 0.0
        %6922 = vmatprep.subr.mxu0 0.0
        %6923 = vmatpush1.msra.mxu0 0.0
        %6924 = vmatprep.subr.mxu0 0.0
        %6925 = vmatpush1.msra.mxu0 0.0
        %6926 = vmatprep.subr.mxu0 0.0
        %6927 = vmatpush1.msra.mxu0 %v6889
        %6928 = vmatprep.subr.mxu0 0.0
        %6929 = vmatpush1.msra.mxu0 %v6887
        %6930 = vmatprep.subr.mxu0 0.0
        %6931 = vmatpush2.msra.mxu0 0.0
        %6932 = vmatprep.subr.mxu0 0.0
        %6933 = vmatpush2.msra.mxu0 0.0
        %6934 = vmatprep.subr.mxu0 0.0
        %6935 = vmatpush2.msra.mxu0 0.0
        %6936 = vmatprep.subr.mxu0 0.0
        %6937 = vmatpush2.msra.mxu0 0.0
        %6938 = vmatprep.subr.mxu0 0.0
        %6939 = vmatpush2.msra.mxu0 0.0
        %6940 = vmatprep.subr.mxu0 0.0
        %6941 = vmatpush2.msra.mxu0 0.0
        %6942 = vmatprep.subr.mxu0 0.0
        %6943 = vmatpush2.msra.mxu0 0.0
        %6944 = vmatprep.subr.mxu0 0.0
        %6945 = vmatpush2.msra.mxu0 0.0
        %6946 = vmatprep.subr.mxu0 0.0
        %6947 = vmatpush2.msra.mxu0 0.0
        %6948 = vmatprep.subr.mxu0 0.0
        %6949 = vmatpush2.msra.mxu0 0.0
        %6950 = vmatprep.subr.mxu0 0.0
        %6951 = vmatpush2.msra.mxu0 0.0
        %6952 = vmatprep.subr.mxu0 0.0
        %6953 = vmatpush2.msra.mxu0 0.0
        %6954 = vmatprep.subr.mxu0 0.0
        %6955 = vmatpush2.msra.mxu0 0.0
        %6956 = vmatprep.subr.mxu0 0.0
        %6957 = vmatpush2.msra.mxu0 0.0
        %6958 = vmatprep.subr.mxu0 0.0
        %6959 = vmatpush2.msra.mxu0 0.0
        %6960 = vmatprep.subr.mxu0 0.0
        %6961 = vmatpush2.msra.mxu0 0.0
        %6962 = vmatprep.mubr.f32.mxu0 0.0
        %6963 = vmatmul.mubr.f32.gmra.mxu0 %v6893
        %v6964 = vpop.f32.mrf.mxu0
        %v6965 = vadd.f32 0.0, %v6964
        %v6966 = vpop.f32.mrf.mxu0
        %6967 = vmatprep.mubr.f32.mxu0 0.0
        %6968 = vmatmul.mubr.f32.gmra.mxu0 %v6896
        %v6969 = vpop.f32.mrf.mxu0
        %v6970 = vadd.f32 0.0, %v6969
        %v6971 = vpop.f32.mrf.mxu0
        %6972 = vdwg.mxu0
        %6973 = vrot.lane.b32.xlu0 %v551, 40
        %v6974 = vpop.permute.xlu0 %6973
        %6975 = vrot.lane.b32.xlu0 %v556, 40
        %v6976 = vpop.permute.xlu0 %6975
        %v6980 = vsel %vm1326, %v6532, 0
        %v6983 = vsel %vm1326, %v6533, 0
        %6985 = vmatprep.subr.mxu0 0.0
        %6986 = vmatpush1.msra.mxu0 0.0
        %6987 = vmatprep.subr.mxu0 0.0
        %6988 = vmatpush1.msra.mxu0 0.0
        %6989 = vmatprep.subr.mxu0 0.0
        %6990 = vmatpush1.msra.mxu0 0.0
        %6991 = vmatprep.subr.mxu0 0.0
        %6992 = vmatpush1.msra.mxu0 0.0
        %6993 = vmatprep.subr.mxu0 0.0
        %6994 = vmatpush1.msra.mxu0 0.0
        %6995 = vmatprep.subr.mxu0 0.0
        %6996 = vmatpush1.msra.mxu0 0.0
        %6997 = vmatprep.subr.mxu0 0.0
        %6998 = vmatpush1.msra.mxu0 0.0
        %6999 = vmatprep.subr.mxu0 0.0
        %7000 = vmatpush1.msra.mxu0 0.0
        %7001 = vmatprep.subr.mxu0 0.0
        %7002 = vmatpush1.msra.mxu0 0.0
        %7003 = vmatprep.subr.mxu0 0.0
        %7004 = vmatpush1.msra.mxu0 0.0
        %7005 = vmatprep.subr.mxu0 0.0
        %7006 = vmatpush1.msra.mxu0 0.0
        %7007 = vmatprep.subr.mxu0 0.0
        %7008 = vmatpush1.msra.mxu0 0.0
        %7009 = vmatprep.subr.mxu0 0.0
        %7010 = vmatpush1.msra.mxu0 0.0
        %7011 = vmatprep.subr.mxu0 0.0
        %7012 = vmatpush1.msra.mxu0 0.0
        %7013 = vmatprep.subr.mxu0 0.0
        %7014 = vmatpush1.msra.mxu0 %v6976
        %7015 = vmatprep.subr.mxu0 0.0
        %7016 = vmatpush1.msra.mxu0 %v6974
        %7017 = vmatprep.subr.mxu0 0.0
        %7018 = vmatpush2.msra.mxu0 0.0
        %7019 = vmatprep.subr.mxu0 0.0
        %7020 = vmatpush2.msra.mxu0 0.0
        %7021 = vmatprep.subr.mxu0 0.0
        %7022 = vmatpush2.msra.mxu0 0.0
        %7023 = vmatprep.subr.mxu0 0.0
        %7024 = vmatpush2.msra.mxu0 0.0
        %7025 = vmatprep.subr.mxu0 0.0
        %7026 = vmatpush2.msra.mxu0 0.0
        %7027 = vmatprep.subr.mxu0 0.0
        %7028 = vmatpush2.msra.mxu0 0.0
        %7029 = vmatprep.subr.mxu0 0.0
        %7030 = vmatpush2.msra.mxu0 0.0
        %7031 = vmatprep.subr.mxu0 0.0
        %7032 = vmatpush2.msra.mxu0 0.0
        %7033 = vmatprep.subr.mxu0 0.0
        %7034 = vmatpush2.msra.mxu0 0.0
        %7035 = vmatprep.subr.mxu0 0.0
        %7036 = vmatpush2.msra.mxu0 0.0
        %7037 = vmatprep.subr.mxu0 0.0
        %7038 = vmatpush2.msra.mxu0 0.0
        %7039 = vmatprep.subr.mxu0 0.0
        %7040 = vmatpush2.msra.mxu0 0.0
        %7041 = vmatprep.subr.mxu0 0.0
        %7042 = vmatpush2.msra.mxu0 0.0
        %7043 = vmatprep.subr.mxu0 0.0
        %7044 = vmatpush2.msra.mxu0 0.0
        %7045 = vmatprep.subr.mxu0 0.0
        %7046 = vmatpush2.msra.mxu0 0.0
        %7047 = vmatprep.subr.mxu0 0.0
        %7048 = vmatpush2.msra.mxu0 0.0
        %7049 = vmatprep.mubr.f32.mxu0 0.0
        %7050 = vmatmul.mubr.f32.gmra.mxu0 %v6980
        %v7051 = vpop.f32.mrf.mxu0
        %v7052 = vadd.f32 0.0, %v7051
        %v7053 = vpop.f32.mrf.mxu0
        %7054 = vmatprep.mubr.f32.mxu0 0.0
        %7055 = vmatmul.mubr.f32.gmra.mxu0 %v6983
        %v7056 = vpop.f32.mrf.mxu0
        %v7057 = vadd.f32 0.0, %v7056
        %v7058 = vpop.f32.mrf.mxu0
        %7059 = vdwg.mxu0
        %7060 = vrot.lane.b32.xlu0 %v561, 40
        %v7061 = vpop.permute.xlu0 %7060
        %7062 = vrot.lane.b32.xlu0 %v566, 40
        %v7063 = vpop.permute.xlu0 %7062
        %v7067 = vsel %vm1326, %v6534, 0
        %v7070 = vsel %vm1326, %v6535, 0
        %7072 = vmatprep.subr.mxu0 0.0
        %7073 = vmatpush1.msra.mxu0 0.0
        %7074 = vmatprep.subr.mxu0 0.0
        %7075 = vmatpush1.msra.mxu0 0.0
        %7076 = vmatprep.subr.mxu0 0.0
        %7077 = vmatpush1.msra.mxu0 0.0
        %7078 = vmatprep.subr.mxu0 0.0
        %7079 = vmatpush1.msra.mxu0 0.0
        %7080 = vmatprep.subr.mxu0 0.0
        %7081 = vmatpush1.msra.mxu0 0.0
        %7082 = vmatprep.subr.mxu0 0.0
        %7083 = vmatpush1.msra.mxu0 0.0
        %7084 = vmatprep.subr.mxu0 0.0
        %7085 = vmatpush1.msra.mxu0 0.0
        %7086 = vmatprep.subr.mxu0 0.0
        %7087 = vmatpush1.msra.mxu0 0.0
        %7088 = vmatprep.subr.mxu0 0.0
        %7089 = vmatpush1.msra.mxu0 0.0
        %7090 = vmatprep.subr.mxu0 0.0
        %7091 = vmatpush1.msra.mxu0 0.0
        %7092 = vmatprep.subr.mxu0 0.0
        %7093 = vmatpush1.msra.mxu0 0.0
        %7094 = vmatprep.subr.mxu0 0.0
        %7095 = vmatpush1.msra.mxu0 0.0
        %7096 = vmatprep.subr.mxu0 0.0
        %7097 = vmatpush1.msra.mxu0 0.0
        %7098 = vmatprep.subr.mxu0 0.0
        %7099 = vmatpush1.msra.mxu0 0.0
        %7100 = vmatprep.subr.mxu0 0.0
        %7101 = vmatpush1.msra.mxu0 %v7063
        %7102 = vmatprep.subr.mxu0 0.0
        %7103 = vmatpush1.msra.mxu0 %v7061
        %7104 = vmatprep.subr.mxu0 0.0
        %7105 = vmatpush2.msra.mxu0 0.0
        %7106 = vmatprep.subr.mxu0 0.0
        %7107 = vmatpush2.msra.mxu0 0.0
        %7108 = vmatprep.subr.mxu0 0.0
        %7109 = vmatpush2.msra.mxu0 0.0
        %7110 = vmatprep.subr.mxu0 0.0
        %7111 = vmatpush2.msra.mxu0 0.0
        %7112 = vmatprep.subr.mxu0 0.0
        %7113 = vmatpush2.msra.mxu0 0.0
        %7114 = vmatprep.subr.mxu0 0.0
        %7115 = vmatpush2.msra.mxu0 0.0
        %7116 = vmatprep.subr.mxu0 0.0
        %7117 = vmatpush2.msra.mxu0 0.0
        %7118 = vmatprep.subr.mxu0 0.0
        %7119 = vmatpush2.msra.mxu0 0.0
        %7120 = vmatprep.subr.mxu0 0.0
        %7121 = vmatpush2.msra.mxu0 0.0
        %7122 = vmatprep.subr.mxu0 0.0
        %7123 = vmatpush2.msra.mxu0 0.0
        %7124 = vmatprep.subr.mxu0 0.0
        %7125 = vmatpush2.msra.mxu0 0.0
        %7126 = vmatprep.subr.mxu0 0.0
        %7127 = vmatpush2.msra.mxu0 0.0
        %7128 = vmatprep.subr.mxu0 0.0
        %7129 = vmatpush2.msra.mxu0 0.0
        %7130 = vmatprep.subr.mxu0 0.0
        %7131 = vmatpush2.msra.mxu0 0.0
        %7132 = vmatprep.subr.mxu0 0.0
        %7133 = vmatpush2.msra.mxu0 0.0
        %7134 = vmatprep.subr.mxu0 0.0
        %7135 = vmatpush2.msra.mxu0 0.0
        %7136 = vmatprep.mubr.f32.mxu0 0.0
        %7137 = vmatmul.mubr.f32.gmra.mxu0 %v7067
        %v7138 = vpop.f32.mrf.mxu0
        %v7139 = vadd.f32 0.0, %v7138
        %v7140 = vpop.f32.mrf.mxu0
        %7141 = vmatprep.mubr.f32.mxu0 0.0
        %7142 = vmatmul.mubr.f32.gmra.mxu0 %v7070
        %v7143 = vpop.f32.mrf.mxu0
        %v7144 = vadd.f32 0.0, %v7143
        %v7145 = vpop.f32.mrf.mxu0
        %7146 = vdwg.mxu0
        %7147 = vrot.lane.b32.xlu0 %v571, 40
        %v7148 = vpop.permute.xlu0 %7147
        %7149 = vrot.lane.b32.xlu0 %v576, 40
        %v7150 = vpop.permute.xlu0 %7149
        %v7154 = vsel %vm1326, %v6536, 0
        %v7157 = vsel %vm1326, %v6537, 0
        %7159 = vmatprep.subr.mxu0 0.0
        %7160 = vmatpush1.msra.mxu0 0.0
        %7161 = vmatprep.subr.mxu0 0.0
        %7162 = vmatpush1.msra.mxu0 0.0
        %7163 = vmatprep.subr.mxu0 0.0
        %7164 = vmatpush1.msra.mxu0 0.0
        %7165 = vmatprep.subr.mxu0 0.0
        %7166 = vmatpush1.msra.mxu0 0.0
        %7167 = vmatprep.subr.mxu0 0.0
        %7168 = vmatpush1.msra.mxu0 0.0
        %7169 = vmatprep.subr.mxu0 0.0
        %7170 = vmatpush1.msra.mxu0 0.0
        %7171 = vmatprep.subr.mxu0 0.0
        %7172 = vmatpush1.msra.mxu0 0.0
        %7173 = vmatprep.subr.mxu0 0.0
        %7174 = vmatpush1.msra.mxu0 0.0
        %7175 = vmatprep.subr.mxu0 0.0
        %7176 = vmatpush1.msra.mxu0 0.0
        %7177 = vmatprep.subr.mxu0 0.0
        %7178 = vmatpush1.msra.mxu0 0.0
        %7179 = vmatprep.subr.mxu0 0.0
        %7180 = vmatpush1.msra.mxu0 0.0
        %7181 = vmatprep.subr.mxu0 0.0
        %7182 = vmatpush1.msra.mxu0 0.0
        %7183 = vmatprep.subr.mxu0 0.0
        %7184 = vmatpush1.msra.mxu0 0.0
        %7185 = vmatprep.subr.mxu0 0.0
        %7186 = vmatpush1.msra.mxu0 0.0
        %7187 = vmatprep.subr.mxu0 0.0
        %7188 = vmatpush1.msra.mxu0 %v7150
        %7189 = vmatprep.subr.mxu0 0.0
        %7190 = vmatpush1.msra.mxu0 %v7148
        %7191 = vmatprep.subr.mxu0 0.0
        %7192 = vmatpush2.msra.mxu0 0.0
        %7193 = vmatprep.subr.mxu0 0.0
        %7194 = vmatpush2.msra.mxu0 0.0
        %7195 = vmatprep.subr.mxu0 0.0
        %7196 = vmatpush2.msra.mxu0 0.0
        %7197 = vmatprep.subr.mxu0 0.0
        %7198 = vmatpush2.msra.mxu0 0.0
        %7199 = vmatprep.subr.mxu0 0.0
        %7200 = vmatpush2.msra.mxu0 0.0
        %7201 = vmatprep.subr.mxu0 0.0
        %7202 = vmatpush2.msra.mxu0 0.0
        %7203 = vmatprep.subr.mxu0 0.0
        %7204 = vmatpush2.msra.mxu0 0.0
        %7205 = vmatprep.subr.mxu0 0.0
        %7206 = vmatpush2.msra.mxu0 0.0
        %7207 = vmatprep.subr.mxu0 0.0
        %7208 = vmatpush2.msra.mxu0 0.0
        %7209 = vmatprep.subr.mxu0 0.0
        %7210 = vmatpush2.msra.mxu0 0.0
        %7211 = vmatprep.subr.mxu0 0.0
        %7212 = vmatpush2.msra.mxu0 0.0
        %7213 = vmatprep.subr.mxu0 0.0
        %7214 = vmatpush2.msra.mxu0 0.0
        %7215 = vmatprep.subr.mxu0 0.0
        %7216 = vmatpush2.msra.mxu0 0.0
        %7217 = vmatprep.subr.mxu0 0.0
        %7218 = vmatpush2.msra.mxu0 0.0
        %7219 = vmatprep.subr.mxu0 0.0
        %7220 = vmatpush2.msra.mxu0 0.0
        %7221 = vmatprep.subr.mxu0 0.0
        %7222 = vmatpush2.msra.mxu0 0.0
        %7223 = vmatprep.mubr.f32.mxu0 0.0
        %7224 = vmatmul.mubr.f32.gmra.mxu0 %v7154
        %v7225 = vpop.f32.mrf.mxu0
        %v7226 = vadd.f32 0.0, %v7225
        %v7227 = vpop.f32.mrf.mxu0
        %7228 = vmatprep.mubr.f32.mxu0 0.0
        %7229 = vmatmul.mubr.f32.gmra.mxu0 %v7157
        %v7230 = vpop.f32.mrf.mxu0
        %v7231 = vadd.f32 0.0, %v7230
        %v7232 = vpop.f32.mrf.mxu0
        %7233 = vdwg.mxu0
        %7250 = vrot.lane.b32.xlu0 %v6617, 24
        %v7251 = vpop.permute.xlu0 %7250
        %7252 = vrot.lane.b32.xlu0 %v6622, 24
        %v7253 = vpop.permute.xlu0 %7252
        %7254 = vrot.lane.b32.xlu0 %v6704, 24
        %v7255 = vpop.permute.xlu0 %7254
        %7256 = vrot.lane.b32.xlu0 %v6709, 24
        %v7257 = vpop.permute.xlu0 %7256
        %7258 = vrot.lane.b32.xlu0 %v6791, 24
        %v7259 = vpop.permute.xlu0 %7258
        %7260 = vrot.lane.b32.xlu0 %v6796, 24
        %v7261 = vpop.permute.xlu0 %7260
        %7262 = vrot.lane.b32.xlu0 %v6878, 24
        %v7263 = vpop.permute.xlu0 %7262
        %7264 = vrot.lane.b32.xlu0 %v6883, 24
        %v7265 = vpop.permute.xlu0 %7264
        %7266 = vrot.lane.b32.xlu0 %v6965, 24
        %v7267 = vpop.permute.xlu0 %7266
        %7268 = vrot.lane.b32.xlu0 %v6970, 24
        %v7269 = vpop.permute.xlu0 %7268
        %7270 = vrot.lane.b32.xlu0 %v7052, 24
        %v7271 = vpop.permute.xlu0 %7270
        %7272 = vrot.lane.b32.xlu0 %v7057, 24
        %v7273 = vpop.permute.xlu0 %7272
        %7274 = vrot.lane.b32.xlu0 %v7139, 24
        %v7275 = vpop.permute.xlu0 %7274
        %7276 = vrot.lane.b32.xlu0 %v7144, 24
        %v7277 = vpop.permute.xlu0 %7276
        %7278 = vrot.lane.b32.xlu0 %v7226, 24
        %v7279 = vpop.permute.xlu0 %7278
        %7280 = vrot.lane.b32.xlu0 %v7231, 24
        %v7281 = vpop.permute.xlu0 %7280
        %vm7298 = vcmask 261312
        %7299 = vst.msk [vmem:[#allocation2] sm:$0xff] %vm7298, %v7251
        %7300 = vst.msk [vmem:[#allocation2 + $0x8] sm:$0xff] %vm7298, %v7253
        %7301 = vst.msk [vmem:[#allocation2 + $0x10] sm:$0xff] %vm7298, %v7255
        %7302 = vst.msk [vmem:[#allocation2 + $0x18] sm:$0xff] %vm7298, %v7257
        %7303 = vst.msk [vmem:[#allocation2 + $0x20] sm:$0xff] %vm7298, %v7259
        %7304 = vst.msk [vmem:[#allocation2 + $0x28] sm:$0xff] %vm7298, %v7261
        %7305 = vst.msk [vmem:[#allocation2 + $0x30] sm:$0xff] %vm7298, %v7263
        %7306 = vst.msk [vmem:[#allocation2 + $0x38] sm:$0xff] %vm7298, %v7265
        %7307 = vst.msk [vmem:[#allocation2 + $0x40] sm:$0xff] %vm7298, %v7267
        %7308 = vst.msk [vmem:[#allocation2 + $0x48] sm:$0xff] %vm7298, %v7269
        %7309 = vst.msk [vmem:[#allocation2 + $0x50] sm:$0xff] %vm7298, %v7271
        %7310 = vst.msk [vmem:[#allocation2 + $0x58] sm:$0xff] %vm7298, %v7273
        %7311 = vst.msk [vmem:[#allocation2 + $0x60] sm:$0xff] %vm7298, %v7275
        %7312 = vst.msk [vmem:[#allocation2 + $0x68] sm:$0xff] %vm7298, %v7277
        %7313 = vst.msk [vmem:[#allocation2 + $0x70] sm:$0xff] %vm7298, %v7279
        %7314 = vst.msk [vmem:[#allocation2 + $0x78] sm:$0xff] %vm7298, %v7281
        %v7315 = vld [vmem:[#allocation2] sm:$0xff]
        %v7316 = vld [vmem:[#allocation2 + $0x8] sm:$0xff]
        %v7317 = vld [vmem:[#allocation2 + $0x10] sm:$0xff]
        %v7318 = vld [vmem:[#allocation2 + $0x18] sm:$0xff]
        %v7319 = vld [vmem:[#allocation2 + $0x20] sm:$0xff]
        %v7320 = vld [vmem:[#allocation2 + $0x28] sm:$0xff]
        %v7321 = vld [vmem:[#allocation2 + $0x30] sm:$0xff]
        %v7322 = vld [vmem:[#allocation2 + $0x38] sm:$0xff]
        %v7323 = vld [vmem:[#allocation2 + $0x40] sm:$0xff]
        %v7324 = vld [vmem:[#allocation2 + $0x48] sm:$0xff]
        %v7325 = vld [vmem:[#allocation2 + $0x50] sm:$0xff]
        %v7326 = vld [vmem:[#allocation2 + $0x58] sm:$0xff]
        %v7327 = vld [vmem:[#allocation2 + $0x60] sm:$0xff]
        %v7328 = vld [vmem:[#allocation2 + $0x68] sm:$0xff]
        %v7329 = vld [vmem:[#allocation2 + $0x70] sm:$0xff]
        %v7330 = vld [vmem:[#allocation2 + $0x78] sm:$0xff]
        %v7331 = vld [vmem:[#allocation11] sm:$0xff]
        %v7332 = vld [vmem:[#allocation11 + $0x8] sm:$0xff]
        %v7333 = vld [vmem:[#allocation11 + $0x10] sm:$0xff]
        %v7334 = vld [vmem:[#allocation11 + $0x18] sm:$0xff]
        %v7335 = vld [vmem:[%s6] sm:$0x1]
        %v7337 = vlaneseq
        %v7338 = vshrl.u32 %v7337, 7
        %v7339 = vsub.s32 0, %v7338
        %v7340 = vrot.slane %v7335, %v7339
        %v7343 = vsel %vm385, %v7315, 0
        %v7346 = vsel %vm385, %v7316, 0
        %v7349 = vsel %vm385, %v7317, 0
        %v7352 = vsel %vm385, %v7318, 0
        %v7355 = vsel %vm385, %v7319, 0
        %v7358 = vsel %vm385, %v7320, 0
        %v7361 = vsel %vm385, %v7321, 0
        %v7364 = vsel %vm385, %v7322, 0
        %v7367 = vsel %vm385, %v7323, 0
        %v7370 = vsel %vm385, %v7324, 0
        %v7373 = vsel %vm385, %v7325, 0
        %v7376 = vsel %vm385, %v7326, 0
        %v7379 = vsel %vm385, %v7327, 0
        %v7382 = vsel %vm385, %v7328, 0
        %v7385 = vsel %vm385, %v7329, 0
        %v7388 = vsel %vm385, %v7330, 0
        %7390 = vmatprep.subr.mxu0 0.0
        %7391 = vmatpush1.msra.mxu0 0.0
        %7392 = vmatprep.subr.mxu0 0.0
        %7393 = vmatpush1.msra.mxu0 0.0
        %7394 = vmatprep.subr.mxu0 0.0
        %7395 = vmatpush1.msra.mxu0 0.0
        %7396 = vmatprep.subr.mxu0 0.0
        %7397 = vmatpush1.msra.mxu0 0.0
        %7398 = vmatprep.subr.mxu0 0.0
        %7399 = vmatpush1.msra.mxu0 0.0
        %7400 = vmatprep.subr.mxu0 0.0
        %7401 = vmatpush1.msra.mxu0 0.0
        %7402 = vmatprep.subr.mxu0 0.0
        %7403 = vmatpush1.msra.mxu0 0.0
        %7404 = vmatprep.subr.mxu0 0.0
        %7405 = vmatpush1.msra.mxu0 0.0
        %7406 = vmatprep.subr.mxu0 0.0
        %7407 = vmatpush1.msra.mxu0 0.0
        %7408 = vmatprep.subr.mxu0 0.0
        %7409 = vmatpush1.msra.mxu0 0.0
        %7410 = vmatprep.subr.mxu0 0.0
        %7411 = vmatpush1.msra.mxu0 0.0
        %7412 = vmatprep.subr.mxu0 0.0
        %7413 = vmatpush1.msra.mxu0 0.0
        %7414 = vmatprep.subr.mxu0 0.0
        %7415 = vmatpush1.msra.mxu0 %v7334
        %7416 = vmatprep.subr.mxu0 0.0
        %7417 = vmatpush1.msra.mxu0 %v7333
        %7418 = vmatprep.subr.mxu0 0.0
        %7419 = vmatpush1.msra.mxu0 %v7332
        %7420 = vmatprep.subr.mxu0 0.0
        %7421 = vmatpush1.msra.mxu0 %v7331
        %7422 = vmatprep.subr.mxu0 0.0
        %7423 = vmatpush2.msra.mxu0 0.0
        %7424 = vmatprep.subr.mxu0 0.0
        %7425 = vmatpush2.msra.mxu0 0.0
        %7426 = vmatprep.subr.mxu0 0.0
        %7427 = vmatpush2.msra.mxu0 0.0
        %7428 = vmatprep.subr.mxu0 0.0
        %7429 = vmatpush2.msra.mxu0 0.0
        %7430 = vmatprep.subr.mxu0 0.0
        %7431 = vmatpush2.msra.mxu0 0.0
        %7432 = vmatprep.subr.mxu0 0.0
        %7433 = vmatpush2.msra.mxu0 0.0
        %7434 = vmatprep.subr.mxu0 0.0
        %7435 = vmatpush2.msra.mxu0 0.0
        %7436 = vmatprep.subr.mxu0 0.0
        %7437 = vmatpush2.msra.mxu0 0.0
        %7438 = vmatprep.subr.mxu0 0.0
        %7439 = vmatpush2.msra.mxu0 0.0
        %7440 = vmatprep.subr.mxu0 0.0
        %7441 = vmatpush2.msra.mxu0 0.0
        %7442 = vmatprep.subr.mxu0 0.0
        %7443 = vmatpush2.msra.mxu0 0.0
        %7444 = vmatprep.subr.mxu0 0.0
        %7445 = vmatpush2.msra.mxu0 0.0
        %7446 = vmatprep.subr.mxu0 0.0
        %7447 = vmatpush2.msra.mxu0 0.0
        %7448 = vmatprep.subr.mxu0 0.0
        %7449 = vmatpush2.msra.mxu0 0.0
        %7450 = vmatprep.subr.mxu0 0.0
        %7451 = vmatpush2.msra.mxu0 0.0
        %7452 = vmatprep.subr.mxu0 0.0
        %7453 = vmatpush2.msra.mxu0 0.0
        %7454 = vmatprep.mubr.f32.mxu0 0.0
        %7455 = vmatmul.mubr.f32.gmra.mxu0 %v7343
        %v7456 = vpop.f32.mrf.mxu0
        %v7457 = vadd.f32 %v7340, %v7456
        %v7458 = vpop.f32.mrf.mxu0
        %7459 = vmatprep.mubr.f32.mxu0 0.0
        %7460 = vmatmul.mubr.f32.gmra.mxu0 %v7346
        %v7461 = vpop.f32.mrf.mxu0
        %v7462 = vadd.f32 %v7340, %v7461
        %v7463 = vpop.f32.mrf.mxu0
        %7464 = vmatprep.mubr.f32.mxu0 0.0
        %7465 = vmatmul.mubr.f32.gmra.mxu0 %v7349
        %v7466 = vpop.f32.mrf.mxu0
        %v7467 = vadd.f32 %v7340, %v7466
        %v7468 = vpop.f32.mrf.mxu0
        %7469 = vmatprep.mubr.f32.mxu0 0.0
        %7470 = vmatmul.mubr.f32.gmra.mxu0 %v7352
        %v7471 = vpop.f32.mrf.mxu0
        %v7472 = vadd.f32 %v7340, %v7471
        %v7473 = vpop.f32.mrf.mxu0
        %7474 = vmatprep.mubr.f32.mxu0 0.0
        %7475 = vmatmul.mubr.f32.gmra.mxu0 %v7355
        %v7476 = vpop.f32.mrf.mxu0
        %v7477 = vadd.f32 %v7340, %v7476
        %v7478 = vpop.f32.mrf.mxu0
        %7479 = vmatprep.mubr.f32.mxu0 0.0
        %7480 = vmatmul.mubr.f32.gmra.mxu0 %v7358
        %v7481 = vpop.f32.mrf.mxu0
        %v7482 = vadd.f32 %v7340, %v7481
        %v7483 = vpop.f32.mrf.mxu0
        %7484 = vmatprep.mubr.f32.mxu0 0.0
        %7485 = vmatmul.mubr.f32.gmra.mxu0 %v7361
        %v7486 = vpop.f32.mrf.mxu0
        %v7487 = vadd.f32 %v7340, %v7486
        %v7488 = vpop.f32.mrf.mxu0
        %7489 = vmatprep.mubr.f32.mxu0 0.0
        %7490 = vmatmul.mubr.f32.gmra.mxu0 %v7364
        %v7491 = vpop.f32.mrf.mxu0
        %v7492 = vadd.f32 %v7340, %v7491
        %v7493 = vpop.f32.mrf.mxu0
        %7494 = vmatprep.mubr.f32.mxu0 0.0
        %7495 = vmatmul.mubr.f32.gmra.mxu0 %v7367
        %v7496 = vpop.f32.mrf.mxu0
        %v7497 = vadd.f32 %v7340, %v7496
        %v7498 = vpop.f32.mrf.mxu0
        %7499 = vmatprep.mubr.f32.mxu0 0.0
        %7500 = vmatmul.mubr.f32.gmra.mxu0 %v7370
        %v7501 = vpop.f32.mrf.mxu0
        %v7502 = vadd.f32 %v7340, %v7501
        %v7503 = vpop.f32.mrf.mxu0
        %7504 = vmatprep.mubr.f32.mxu0 0.0
        %7505 = vmatmul.mubr.f32.gmra.mxu0 %v7373
        %v7506 = vpop.f32.mrf.mxu0
        %v7507 = vadd.f32 %v7340, %v7506
        %v7508 = vpop.f32.mrf.mxu0
        %7509 = vmatprep.mubr.f32.mxu0 0.0
        %7510 = vmatmul.mubr.f32.gmra.mxu0 %v7376
        %v7511 = vpop.f32.mrf.mxu0
        %v7512 = vadd.f32 %v7340, %v7511
        %v7513 = vpop.f32.mrf.mxu0
        %7514 = vmatprep.mubr.f32.mxu0 0.0
        %7515 = vmatmul.mubr.f32.gmra.mxu0 %v7379
        %v7516 = vpop.f32.mrf.mxu0
        %v7517 = vadd.f32 %v7340, %v7516
        %v7518 = vpop.f32.mrf.mxu0
        %7519 = vmatprep.mubr.f32.mxu0 0.0
        %7520 = vmatmul.mubr.f32.gmra.mxu0 %v7382
        %v7521 = vpop.f32.mrf.mxu0
        %v7522 = vadd.f32 %v7340, %v7521
        %v7523 = vpop.f32.mrf.mxu0
        %7524 = vmatprep.mubr.f32.mxu0 0.0
        %7525 = vmatmul.mubr.f32.gmra.mxu0 %v7385
        %v7526 = vpop.f32.mrf.mxu0
        %v7527 = vadd.f32 %v7340, %v7526
        %v7528 = vpop.f32.mrf.mxu0
        %7529 = vmatprep.mubr.f32.mxu0 0.0
        %7530 = vmatmul.mubr.f32.gmra.mxu0 %v7388
        %v7531 = vpop.f32.mrf.mxu0
        %v7532 = vadd.f32 %v7340, %v7531
        %v7533 = vpop.f32.mrf.mxu0
        %7534 = vdwg.mxu0
        %7535 = vst.msk [vmem:[%s355] sm:$0xff] %vm385, %v7457
        %7536 = vst.msk [vmem:[%s355 + $0x8] sm:$0xff] %vm385, %v7462
        %7537 = vst.msk [vmem:[%s355 + $0x10] sm:$0xff] %vm385, %v7467
        %7538 = vst.msk [vmem:[%s355 + $0x18] sm:$0xff] %vm385, %v7472
        %7539 = vst.msk [vmem:[%s355 + $0x20] sm:$0xff] %vm385, %v7477
        %7540 = vst.msk [vmem:[%s355 + $0x28] sm:$0xff] %vm385, %v7482
        %7541 = vst.msk [vmem:[%s355 + $0x30] sm:$0xff] %vm385, %v7487
        %7542 = vst.msk [vmem:[%s355 + $0x38] sm:$0xff] %vm385, %v7492
        %7543 = vst.msk [vmem:[%s355 + $0x40] sm:$0xff] %vm385, %v7497
        %7544 = vst.msk [vmem:[%s355 + $0x48] sm:$0xff] %vm385, %v7502
        %7545 = vst.msk [vmem:[%s355 + $0x50] sm:$0xff] %vm385, %v7507
        %7546 = vst.msk [vmem:[%s355 + $0x58] sm:$0xff] %vm385, %v7512
        %7547 = vst.msk [vmem:[%s355 + $0x60] sm:$0xff] %vm385, %v7517
        %7548 = vst.msk [vmem:[%s355 + $0x68] sm:$0xff] %vm385, %v7522
        %7549 = vst.msk [vmem:[%s355 + $0x70] sm:$0xff] %vm385, %v7527
        %7550 = vst.msk [vmem:[%s355 + $0x78] sm:$0xff] %vm385, %v7532
        %s7551 = sand.u32 %s186, 1
        %s7552 = scalar_lea.sflag [#allocation5], %s7551
        %s7553 = sand.u32 %s186, 1
        %s7554 = smul.addr %s7553, 128
        %s7555 = scalar_lea.vmem [#allocation12], %s7554
        // Predicated region
        $region69: #{tpu_custom_call.1} parent=47 // pred_check
          %p7556 = pneg %p196
        $region70: #{tpu_custom_call.1} parent=47 // pred_check_branch
          %7558 = sbr.rel (%p7556) target = $region72
        $region71: #{tpu_custom_call.1} parent=47 // pred_region
          %s7559 = smul.u32 8, %s26
          %s7561 = ssub.s32 2048, 2048
          %7562 = vsyncadd %s7552, %s7561
          %s7563 = smul.addr %s7559, 2
          %s7564 = smul.addr %s7563, 128
          %s7565 = scalar_lea.hbm %s7, %s7564
          %s7566 = sshll.u32 %s7555, 4
          %s7567 = int_to_ptr.vmem [resolvable:$true] %s7566
          %7572 = dma.vmem_to_hbm [thread:$0]  %s7567, 2048, %s7565, %s7552, 128, 128, 8
        $region72: #{tpu_custom_call.1} parent=47 // pred_fallthru
          _
      $region48: #{tpu_custom_call.1} parent=5 // pred_fallthru
        _
      %p7573 = scmp.le.s32.totalorder 2, %s21
      // Predicated region
      $region73: #{tpu_custom_call.1} parent=5 // pred_check
        %p7574 = pneg %p7573
      $region74: #{tpu_custom_call.1} parent=5 // pred_check_branch
        %7576 = sbr.rel (%p7574) target = $region76
      $region75: #{tpu_custom_call.1} parent=5 // pred_region
        %s7577 = ssub.s32 %s21, 2
        // Predicated region
        $region77: #{tpu_custom_call.1} parent=75 // pred_check
          %p7578 = pneg %p202
        $region78: #{tpu_custom_call.1} parent=75 // pred_check_branch
          %7580 = sbr.rel (%p7578) target = $region80
        $region79: #{tpu_custom_call.1} parent=75 // pred_region
          %s7581 = sand.u32 %s187, 1
          %s7582 = scalar_lea.sflag [#allocation5], %s7581
          %s7583 = sand.u32 %s187, 1
          %s7584 = smul.addr %s7583, 128
          %s7585 = scalar_lea.vmem [#allocation12], %s7584
          %7586 = dma.done %s7582, 2048
        $region80: #{tpu_custom_call.1} parent=75 // pred_fallthru
          _
      $region76: #{tpu_custom_call.1} parent=5 // pred_fallthru
        _
    $region6: #{tpu_custom_call.1} parent=1 // loop_footer
      %s25 = sadd.s32 1, %s21
    $region7: #{tpu_custom_call.1} parent=1 // loop_footer_branch
      %20 = sbr.rel target = $region3
    $region8: #{tpu_custom_call.1} parent=1 // loop_exit
      _
    %7587 = vsyncpa [#allocation4], 1
    %s7588 = scalar_lea.sflag [#allocation4], 1
    %7589 = vsyncpa %s7588, 1
    %7590 = vsyncpa [#allocation7], 1
    %7591 = vsyncpa [#allocation10], 1
    %7592 = vsyncpa [#allocation5], 1
    %s7593 = scalar_lea.sflag [#allocation5], 1
    %7594 = vsyncpa %s7593, 1

</llo_original>
